<compile_context>
chip_gen: v7x
topology: tpu7x:2x2x1
jax: 0.10.0
libtpu: 0.0.40
codegen_flags: <defaults>
</compile_context>

<pallas_src>
import math
from functools import partial

import numpy as np
import jax
import jax.numpy as jnp
from jax.experimental import pallas as pl
from jax.experimental.pallas import tpu as pltpu

_LANE = 128


def _round_up(x, m):
    return ((x + m - 1) // m) * m


def _widths(W):
    """(Wf, Wp2): h-grid width and padded-x width, both multiples of 8."""
    wf = _round_up(W + 2, 8)
    return wf, wf + 8


# ---------------------------------------------------------------------------
# Fused BasicBlock kernel (per batch image, per row strip)
# ---------------------------------------------------------------------------
def _up_block_kernel(xm_ref, xh_ref, w1_ref, wd_ref, w2_ref, bn_ref, o_ref,
                     *, TH, W, Wp2, Wf, n_strips):
    i = pl.program_id(1)
    cin_p = xm_ref.shape[-1]
    n = w1_ref.shape[-1]
    M1 = (TH + 2) * Wp2           # rows of the h grid (TH output rows + 1-row halo)
    M2 = TH * Wf                  # rows of the output grid

    bn = bn_ref[...]                            # (6, n) f32 folded BN params
    s1, t1 = bn[0:1, :], bn[1:2, :]
    sd, td = bn[2:3, :], bn[3:4, :]
    s2, t2 = bn[4:5, :], bn[5:6, :]

    # Strip of the spatially padded input: TH "main" rows + 4 halo rows.
    xs = jnp.concatenate([xm_ref[0], xh_ref[0]], axis=0)     # (TH+4, Wp2, cin_p) bf16
    X = xs.reshape((TH + 4) * Wp2, cin_p)                    # free view (Wp2 % 8 == 0)

    # ---- conv1 (3x3): dy packed along K (K = 3*cin_p); dx handled as
    #      column-shifted adds of full-width matmul results.
    p1 = jnp.concatenate(
        [X[dy * Wp2: dy * Wp2 + M1, :] for dy in range(3)], axis=-1)   # (M1, 3*cin_p)

    def conv1_tap(dx):
        q = jnp.dot(p1, w1_ref[dx], preferred_element_type=jnp.float32)
        return q.reshape(TH + 2, Wp2, n)

    h = conv1_tap(1)[:, 1:1 + Wf, :]
    h = h + conv1_tap(0)[:, 0:Wf, :]
    h = h + conv1_tap(2)[:, 2:2 + Wf, :]
    h = jnp.maximum(h * s1 + t1, 0.0)                        # BN1 + ReLU

    # h positions that act as conv2's zero padding must be exactly zero:
    #   col 0 / col W+1  <-> image cols -1 / W (always)
    #   row 0            <-> image row  -1 (first strip only)
    #   row TH+1         <-> image row   H (last strip only)
    rows = jax.lax.broadcasted_iota(jnp.int32, (TH + 2, Wf, 1), 0)
    cols = jax.lax.broadcasted_iota(jnp.int32, (TH + 2, Wf, 1), 1)
    keep = (cols != 0) & (cols != W + 1)
    keep = keep & ((i != 0) | (rows != 0))
    keep = keep & ((i != n_strips - 1) | (rows != TH + 1))
    h = jnp.where(keep, h, 0.0).astype(jnp.bfloat16)         # (TH+2, Wf, n)

    hf = h.reshape((TH + 2) * Wf, n)                         # free view (Wf % 8 == 0)

    # ---- conv2 (3x3) over h: same structure, K = 3*n
    p2 = jnp.concatenate(
        [hf[dy * Wf: dy * Wf + M2, :] for dy in range(3)], axis=-1)    # (M2, 3*n)

    def conv2_tap(dx):
        q = jnp.dot(p2, w2_ref[dx], preferred_element_type=jnp.float32)
        return q.reshape(TH, Wf, n)

    y = conv2_tap(1)[:, 1:W + 1, :]
    y = y + conv2_tap(0)[:, 0:W, :]
    y = y + conv2_tap(2)[:, 2:W + 2, :]
    y = y * s2 + t2                                          # BN2

    # ---- 1x1 downsample identity: centre rows of the resident strip (free view),
    #      conv bias + BN folded into sd/td.
    centre = xs[2:2 + TH].reshape(TH * Wp2, cin_p)
    ident = jnp.dot(centre, wd_ref[...], preferred_element_type=jnp.float32)
    ident = ident.reshape(TH, Wp2, n)[:, 2:2 + W, :] * sd + td

    y = jnp.maximum(y + ident, 0.0)                          # residual + ReLU
    o_ref[0] = y[:, :, :o_ref.shape[-1]].astype(o_ref.dtype)


# ---------------------------------------------------------------------------
# pallas_call wrapper
# ---------------------------------------------------------------------------
def _strip_footprint_bytes(TH, W, cin_p, n_p):
    Wf, Wp2 = _widths(W)
    m1 = (TH + 2) * Wp2
    m2 = TH * Wf
    b = 3 * ((TH + 4) * Wp2 * cin_p * 2)          # input blocks (buffered) + strip
    b += m1 * 3 * cin_p * 2                       # P1
    b += 2 * m1 * n_p * 4                         # conv1 partial + acc
    b += m1 * n_p * 2                             # h (bf16)
    b += m2 * 3 * n_p * 2                         # P2
    b += 2 * m2 * n_p * 4                         # conv2 partial + acc
    b += TH * Wp2 * n_p * 4                       # identity
    b += (2 * 9 * cin_p * n_p + cin_p * n_p) * 2  # weights (approx)
    return b


def _pick_strip_rows(H, W, cin_p, n_p, budget=18 * 2 ** 20):
    cands = [t for t in (64, 48, 32, 16, 8, 4) if t <= H and H % t == 0]
    if H % 4 == 0 and H <= 64 and H not in cands:
        cands.insert(0, H)
    for t in cands:                               # prefer the largest that fits VMEM
        if _strip_footprint_bytes(t, W, cin_p, n_p) <= budget:
            return t
    return cands[-1] if cands else None


def _vmem_limit_bytes(step_bytes):
    cap = None
    try:
        cap = getattr(pltpu.get_tpu_info(), "vmem_capacity_bytes", None)
    except Exception:
        cap = None
    if not cap:
        cap = 64 * 2 ** 20                        # conservative: v7x per-core VMEM
    ceiling = int(0.8 * cap)                      # headroom for Mosaic scratch
    want = max(32 * 2 ** 20, 2 * int(step_bytes))
    return max(min(want, ceiling), 16 * 2 ** 20)


def _basic_block_strip(x_pad, w1, wd, w2, bn, *, H, W, TH, out_ch):
    B = x_pad.shape[0]
    cin_p = x_pad.shape[-1]
    n_p = w1.shape[-1]
    Wf, Wp2 = _widths(W)
    assert x_pad.shape[2] == Wp2
    S = H // TH
    halo_step = TH // 4

    in_specs = [
        pl.BlockSpec((1, TH, Wp2, cin_p), lambda b, i: (b, i, 0, 0)),
        pl.BlockSpec((1, 4, Wp2, cin_p),
                     lambda b, i: (b, (i + 1) * halo_step, 0, 0)),
        pl.BlockSpec((3, 3 * cin_p, n_p), lambda b, i: (0, 0, 0)),
        pl.BlockSpec((cin_p, n_p), lambda b, i: (0, 0)),
        pl.BlockSpec((3, 3 * n_p, n_p), lambda b, i: (0, 0, 0)),
        pl.BlockSpec((6, n_p), lambda b, i: (0, 0)),
    ]
    out_specs = pl.BlockSpec((1, TH, W, out_ch), lambda b, i: (b, i, 0, 0))
    out_shape = jax.ShapeDtypeStruct((B, H, W, out_ch), jnp.bfloat16)

    step_bytes = _strip_footprint_bytes(TH, W, cin_p, n_p)
    flops = 2 * B * H * W * (9 * cin_p * n_p + cin_p * n_p + 9 * n_p * n_p)
    bytes_accessed = int(x_pad.size * 2 * (1.0 + 4.0 / TH)
                         + (w1.size + wd.size + w2.size) * 2 + bn.size * 4
                         + B * H * W * out_ch * 2)

    return pl.pallas_call(
        partial(_up_block_kernel, TH=TH, W=W, Wp2=Wp2, Wf=Wf, n_strips=S),
        grid=(B, S),
        in_specs=in_specs,
        out_specs=out_specs,
        out_shape=out_shape,
        compiler_params=pltpu.CompilerParams(
            dimension_semantics=("parallel", "parallel"),
            vmem_limit_bytes=_vmem_limit_bytes(step_bytes)),
        cost_estimate=pl.CostEstimate(flops=int(flops), transcendentals=0,
                                      bytes_accessed=bytes_accessed),
    )(x_pad, x_pad, w1, wd, w2, bn)


# ---------------------------------------------------------------------------
# Glue: bilinear upsample (align_corners=True), BN folding, weight packing
# ---------------------------------------------------------------------------
def _bilinear_matrix(out_size, in_size):
    mat = np.zeros((out_size, in_size), dtype=np.float32)
    if in_size == 1 or out_size == 1:
        mat[:, 0] = 1.0
        return jnp.asarray(mat)
    for o in range(out_size):
        src = o * (in_size - 1) / (out_size - 1)
        i0 = min(int(math.floor(src)), in_size - 1)
        i1 = min(i0 + 1, in_size - 1)
        frac = src - i0
        mat[o, i0] += 1.0 - frac
        mat[o, i1] += frac
    return jnp.asarray(mat)


def _fold_bn(gamma, beta, mean, var, conv_bias=None, eps=1e-5):
    scale = gamma / jnp.sqrt(var + eps)
    shift = beta - mean * scale
    if conv_bias is not None:
        shift = shift + conv_bias * scale
    return scale, shift


def _pack_conv3x3(w_oihw, kin_p, kout_p):
    """(O, I, 3, 3) -> (3[dx], 3*kin_p[dy,cin], kout_p) bf16, zero padded."""
    O, I, _, _ = w_oihw.shape
    w = jnp.transpose(w_oihw, (3, 2, 1, 0))          # (dx, dy, I, O)
    w = jnp.pad(w, ((0, 0), (0, 0), (0, kin_p - I), (0, kout_p - O)))
    return w.reshape(3, 3 * kin_p, kout_p).astype(jnp.bfloat16)


def _pack_conv1x1(w_oihw, kin_p, kout_p):
    O, I, _, _ = w_oihw.shape
    w = jnp.pad(w_oihw[:, :, 0, 0].T, ((0, kin_p - I), (0, kout_p - O)))
    return w.astype(jnp.bfloat16)


def _pack_vec(v, kout_p):
    return jnp.pad(v, (0, kout_p - v.shape[0])).astype(jnp.float32)


def init_params(key, in_ch, out_ch):
    cin = in_ch + out_ch
    cin_p = _round_up(cin, _LANE)
    n_p = _round_up(out_ch, _LANE)
    keys = jax.random.split(key, 16)
    w1 = 0.1 * jax.random.normal(keys[0], (out_ch, cin, 3, 3), jnp.float32)
    w2 = 0.1 * jax.random.normal(keys[1], (out_ch, out_ch, 3, 3), jnp.float32)
    wd = 0.1 * jax.random.normal(keys[2], (out_ch, cin, 1, 1), jnp.float32)
    bd = 0.1 * jax.random.normal(keys[3], (out_ch,), jnp.float32)

    def bn_params(k4):
        g = 1.0 + 0.1 * jax.random.normal(k4[0], (out_ch,), jnp.float32)
        b = 0.1 * jax.random.normal(k4[1], (out_ch,), jnp.float32)
        m = 0.1 * jax.random.normal(k4[2], (out_ch,), jnp.float32)
        v = jnp.abs(jax.random.normal(k4[3], (out_ch,), jnp.float32)) + 0.5
        return (g, b, m, v)

    bn1 = bn_params(keys[4:8])
    bn2 = bn_params(keys[8:12])
    bnd = bn_params(keys[12:16])
    raw = dict(w1=w1, w2=w2, wd=wd, bd=bd, bn1=bn1, bn2=bn2, bnd=bnd)

    s1, t1 = _fold_bn(*bn1)
    s2, t2 = _fold_bn(*bn2)
    sd, td = _fold_bn(*bnd, conv_bias=bd)
    bn_pack = jnp.stack([_pack_vec(v, n_p) for v in (s1, t1, sd, td, s2, t2)], 0)
    packed = dict(
        w1=_pack_conv3x3(w1, cin_p, n_p),
        wd=_pack_conv1x1(wd, cin_p, n_p),
        w2=_pack_conv3x3(w2, n_p, n_p),
        bn=bn_pack,
    )
    return packed, raw


# ---------------------------------------------------------------------------
# `up` forward (NCHW in / NCHW out)
# ---------------------------------------------------------------------------
def up_forward(x1, x2, params):
    B, in_ch, H1, W1 = x1.shape
    B2, out_ch, H, W = x2.shape
    assert B2 == B
    # PyTorch uses scale_factor=2; concat only works when x2 is exactly 2x x1.
    assert H == 2 * H1 and W == 2 * W1, "up() assumes x2 spatial = 2 * x1 spatial"
    assert H % 4 == 0, "row-strip tiling requires H % 4 == 0"
    cin = in_ch + out_ch
    cin_p = params["w1"].shape[1] // 3
    n_p = params["w1"].shape[2]

    # one transpose per input; everything else stays NHWC (channels on lanes)
    x1n = jnp.transpose(x1, (0, 2, 3, 1))
    x2n = jnp.transpose(x2, (0, 2, 3, 1))

    # bilinear upsample x2 (align_corners=True): separable interpolation matmuls
    Uh = _bilinear_matrix(H, H1)
    Uw = _bilinear_matrix(W, W1)
    x1_up = jnp.einsum("hy,byxc,wx->bhwc", Uh, x1n, Uw)

    x_cat = jnp.concatenate([x2n, x1_up], axis=-1)
    if cin_p > cin:
        x_cat = jnp.pad(x_cat, ((0, 0), (0, 0), (0, 0), (0, cin_p - cin)))
    x_cat = x_cat.astype(jnp.bfloat16)

    TH = _pick_strip_rows(H, W, cin_p, n_p)
    Wf, Wp2 = _widths(W)
    # 2-pixel zero border (fused double conv) + right pad to a lane-friendly width
    x_pad = jnp.pad(x_cat, ((0, 0), (2, 2), (2, Wp2 - (W + 2)), (0, 0)))

    out = _basic_block_strip(x_pad, params["w1"], params["wd"], params["w2"],
                             params["bn"], H=H, W=W, TH=TH, out_ch=out_ch)
    # kernel emits bf16 / out_ch-only; the f32 upcast rides the final transpose
    return jnp.transpose(out, (0, 3, 1, 2)).astype(jnp.float32)


# ---------------------------------------------------------------------------
# Pure-JAX reference (same folded-BN inference semantics) for validation
# ---------------------------------------------------------------------------
def up_forward_reference(x1, x2, raw, eps=1e-5):
    B, in_ch, H1, W1 = x1.shape
    _, out_ch, H, W = x2.shape
    Uh = _bilinear_matrix(H, H1)
    Uw = _bilinear_matrix(W, W1)
    x1u = jnp.einsum("hy,bcyx,wx->bchw", Uh, x1, Uw)
    x = jnp.concatenate([x2, x1u], axis=1)

    def conv(z, w, pad):
        return jax.lax.conv_general_dilated(
            z, w, (1, 1), [(pad, pad), (pad, pad)],
            dimension_numbers=("NCHW", "OIHW", "NCHW"))

    def bn(z, p):
        g, b, m, v = p
        inv = g / jnp.sqrt(v + eps)
        return z * inv[None, :, None, None] + (b - m * inv)[None, :, None, None]

    identity = bn(conv(x, raw["wd"], 0) + raw["bd"][None, :, None, None], raw["bnd"])
    h = jax.nn.relu(bn(conv(x, raw["w1"], 1), raw["bn1"]))
    out = jax.nn.relu(bn(conv(h, raw["w2"], 1), raw["bn2"]) + identity)
    return out


if __name__ == "__main__":
    B, in_ch, out_ch = 2, 4, 8
    H1 = W1 = 8                               # x1 spatial; x2 spatial = 16

    key = jax.random.PRNGKey(0)
    k1, k2, kp = jax.random.split(key, 3)
    x1 = jax.random.normal(k1, (B, in_ch, H1, W1), jnp.float32)
    x2 = jax.random.normal(k2, (B, out_ch, 2 * H1, 2 * W1), jnp.float32)
    params, raw = init_params(kp, in_ch, out_ch)

    out = jax.jit(up_forward)(x1, x2, params)
    jax.block_until_ready(out)

    assert out.shape == (B, out_ch, 2 * H1, 2 * W1)
    assert bool(jnp.all(out >= 0.0))          # final ReLU

    ref = up_forward_reference(x1, x2, raw)
    max_err = float(jnp.max(jnp.abs(out - ref)))
    tol = 5e-2 * max(1.0, float(jnp.max(jnp.abs(ref))))
    assert max_err < tol, f"mismatch vs reference: {max_err} (tol {tol})"

    print("KERNEL_OK")
</pallas_src>

<mosaic_0001>
module attributes {stable_mosaic.version = 11 : i64} {
  func.func @_up_block_kernel(%arg0: i32, %arg1: i32, %arg2: memref<1x16x32x128xbf16, #tpu.memory_space<vmem>>, %arg3: memref<1x4x32x128xbf16, #tpu.memory_space<vmem>>, %arg4: memref<3x384x128xbf16, #tpu.memory_space<vmem>>, %arg5: memref<128x128xbf16, #tpu.memory_space<vmem>>, %arg6: memref<3x384x128xbf16, #tpu.memory_space<vmem>>, %arg7: memref<6x128xf32, #tpu.memory_space<vmem>>, %arg8: memref<1x16x16x8xbf16, #tpu.memory_space<vmem>>) attributes {dimension_semantics = [#tpu.dimension_semantics<parallel>, #tpu.dimension_semantics<parallel>], iteration_bounds = array<i64: 2, 1>, scalar_prefetch = 0 : i64, scratch_operands = 0 : i64, tpu.core_type = #tpu.core_type<tc>, window_params = [{transform_indices = @transform_0, window_bounds = array<i64: 1, 16, 32, 128>}, {transform_indices = @transform_1, window_bounds = array<i64: 1, 4, 32, 128>}, {pipeline_mode = #tpu.pipeline_mode<synchronous>, transform_indices = @transform_2, window_bounds = array<i64: 3, 384, 128>}, {pipeline_mode = #tpu.pipeline_mode<synchronous>, transform_indices = @transform_3, window_bounds = array<i64: 128, 128>}, {pipeline_mode = #tpu.pipeline_mode<synchronous>, transform_indices = @transform_4, window_bounds = array<i64: 3, 384, 128>}, {pipeline_mode = #tpu.pipeline_mode<synchronous>, transform_indices = @transform_5, window_bounds = array<i64: 6, 128>}, {transform_indices = @transform_6, window_bounds = array<i64: 1, 16, 16, 8>}]} {
    %c0 = arith.constant 0 : index
    %c0_0 = arith.constant 0 : index
    %0 = vector.load %arg7[%c0, %c0_0] : memref<6x128xf32, #tpu.memory_space<vmem>>, vector<6x128xf32>
    %1 = vector.extract_strided_slice %0 {offsets = [0, 0], sizes = [1, 128], strides = [1, 1]} : vector<6x128xf32> to vector<1x128xf32>
    %2 = vector.extract_strided_slice %0 {offsets = [1, 0], sizes = [1, 128], strides = [1, 1]} : vector<6x128xf32> to vector<1x128xf32>
    %3 = vector.extract_strided_slice %0 {offsets = [2, 0], sizes = [1, 128], strides = [1, 1]} : vector<6x128xf32> to vector<1x128xf32>
    %4 = vector.extract_strided_slice %0 {offsets = [3, 0], sizes = [1, 128], strides = [1, 1]} : vector<6x128xf32> to vector<1x128xf32>
    %5 = vector.extract_strided_slice %0 {offsets = [4, 0], sizes = [1, 128], strides = [1, 1]} : vector<6x128xf32> to vector<1x128xf32>
    %6 = vector.extract_strided_slice %0 {offsets = [5, 0], sizes = [1, 128], strides = [1, 1]} : vector<6x128xf32> to vector<1x128xf32>
    %c0_1 = arith.constant 0 : index
    %c0_2 = arith.constant 0 : index
    %c0_3 = arith.constant 0 : index
    %c0_4 = arith.constant 0 : index
    %7 = vector.load %arg2[%c0_1, %c0_2, %c0_3, %c0_4] : memref<1x16x32x128xbf16, #tpu.memory_space<vmem>>, vector<1x16x32x128xbf16>
    %8 = vector.shape_cast %7 : vector<1x16x32x128xbf16> to vector<16x32x128xbf16>
    %c0_5 = arith.constant 0 : index
    %c0_6 = arith.constant 0 : index
    %c0_7 = arith.constant 0 : index
    %c0_8 = arith.constant 0 : index
    %9 = vector.load %arg3[%c0_5, %c0_6, %c0_7, %c0_8] : memref<1x4x32x128xbf16, #tpu.memory_space<vmem>>, vector<1x4x32x128xbf16>
    %10 = vector.shape_cast %9 : vector<1x4x32x128xbf16> to vector<4x32x128xbf16>
    %11 = tpu.concatenate %8, %10 in 0 : vector<16x32x128xbf16>, vector<4x32x128xbf16> -> vector<20x32x128xbf16>
    %12 = vector.shape_cast %11 : vector<20x32x128xbf16> to vector<640x128xbf16>
    %13 = vector.extract_strided_slice %12 {offsets = [0, 0], sizes = [576, 128], strides = [1, 1]} : vector<640x128xbf16> to vector<576x128xbf16>
    %14 = vector.extract_strided_slice %12 {offsets = [32, 0], sizes = [576, 128], strides = [1, 1]} : vector<640x128xbf16> to vector<576x128xbf16>
    %15 = vector.extract_strided_slice %12 {offsets = [64, 0], sizes = [576, 128], strides = [1, 1]} : vector<640x128xbf16> to vector<576x128xbf16>
    %16 = tpu.concatenate %13, %14, %15 in 1 : vector<576x128xbf16>, vector<576x128xbf16>, vector<576x128xbf16> -> vector<576x384xbf16>
    %c1 = arith.constant 1 : index
    %c0_9 = arith.constant 0 : index
    %c0_10 = arith.constant 0 : index
    %17 = vector.load %arg4[%c1, %c0_9, %c0_10] : memref<3x384x128xbf16, #tpu.memory_space<vmem>>, vector<1x384x128xbf16>
    %18 = vector.shape_cast %17 : vector<1x384x128xbf16> to vector<384x128xbf16>
    %cst = arith.constant dense<0.000000e+00> : vector<576x128xf32>
    %19 = tpu.matmul %16, %18, %cst {dimension_numbers = #tpu.dot_dimension_numbers<[1], [0], [0], [1], [0, 0, 1, 1], [], []>} : vector<576x384xbf16>, vector<384x128xbf16>, vector<576x128xf32> -> vector<576x128xf32>
    %20 = vector.shape_cast %19 : vector<576x128xf32> to vector<18x32x128xf32>
    %21 = vector.extract_strided_slice %20 {offsets = [0, 1, 0], sizes = [18, 24, 128], strides = [1, 1, 1]} : vector<18x32x128xf32> to vector<18x24x128xf32>
    %c0_11 = arith.constant 0 : index
    %c0_12 = arith.constant 0 : index
    %c0_13 = arith.constant 0 : index
    %22 = vector.load %arg4[%c0_11, %c0_12, %c0_13] : memref<3x384x128xbf16, #tpu.memory_space<vmem>>, vector<1x384x128xbf16>
    %23 = vector.shape_cast %22 : vector<1x384x128xbf16> to vector<384x128xbf16>
    %cst_14 = arith.constant dense<0.000000e+00> : vector<576x128xf32>
    %24 = tpu.matmul %16, %23, %cst_14 {dimension_numbers = #tpu.dot_dimension_numbers<[1], [0], [0], [1], [0, 0, 1, 1], [], []>} : vector<576x384xbf16>, vector<384x128xbf16>, vector<576x128xf32> -> vector<576x128xf32>
    %25 = vector.shape_cast %24 : vector<576x128xf32> to vector<18x32x128xf32>
    %26 = vector.extract_strided_slice %25 {offsets = [0, 0, 0], sizes = [18, 24, 128], strides = [1, 1, 1]} : vector<18x32x128xf32> to vector<18x24x128xf32>
    %27 = arith.addf %21, %26 : vector<18x24x128xf32>
    %c2 = arith.constant 2 : index
    %c0_15 = arith.constant 0 : index
    %c0_16 = arith.constant 0 : index
    %28 = vector.load %arg4[%c2, %c0_15, %c0_16] : memref<3x384x128xbf16, #tpu.memory_space<vmem>>, vector<1x384x128xbf16>
    %29 = vector.shape_cast %28 : vector<1x384x128xbf16> to vector<384x128xbf16>
    %cst_17 = arith.constant dense<0.000000e+00> : vector<576x128xf32>
    %30 = tpu.matmul %16, %29, %cst_17 {dimension_numbers = #tpu.dot_dimension_numbers<[1], [0], [0], [1], [0, 0, 1, 1], [], []>} : vector<576x384xbf16>, vector<384x128xbf16>, vector<576x128xf32> -> vector<576x128xf32>
    %31 = vector.shape_cast %30 : vector<576x128xf32> to vector<18x32x128xf32>
    %32 = vector.extract_strided_slice %31 {offsets = [0, 2, 0], sizes = [18, 24, 128], strides = [1, 1, 1]} : vector<18x32x128xf32> to vector<18x24x128xf32>
    %33 = arith.addf %27, %32 : vector<18x24x128xf32>
    %34 = vector.shape_cast %1 : vector<1x128xf32> to vector<1x1x128xf32>
    %35 = vector.broadcast %34 : vector<1x1x128xf32> to vector<18x24x128xf32>
    %36 = arith.mulf %33, %35 : vector<18x24x128xf32>
    %37 = vector.shape_cast %2 : vector<1x128xf32> to vector<1x1x128xf32>
    %38 = vector.broadcast %37 : vector<1x1x128xf32> to vector<18x24x128xf32>
    %39 = arith.addf %36, %38 : vector<18x24x128xf32>
    %cst_18 = arith.constant 0.000000e+00 : f32
    %40 = vector.broadcast %cst_18 : f32 to vector<18x24x128xf32>
    %41 = arith.maximumf %39, %40 : vector<18x24x128xf32>
    %42 = tpu.iota {dimensions = array<i32: 0>} : vector<18x24x1xi32>
    %43 = tpu.iota {dimensions = array<i32: 1>} : vector<18x24x1xi32>
    %c0_i32 = arith.constant 0 : i32
    %44 = vector.broadcast %c0_i32 : i32 to vector<18x24x1xi32>
    %45 = arith.cmpi ne, %43, %44 : vector<18x24x1xi32>
    %c17_i32 = arith.constant 17 : i32
    %46 = vector.broadcast %c17_i32 : i32 to vector<18x24x1xi32>
    %47 = arith.cmpi ne, %43, %46 : vector<18x24x1xi32>
    %48 = arith.andi %45, %47 : vector<18x24x1xi1>
    %c0_i32_19 = arith.constant 0 : i32
    %49 = arith.cmpi ne, %arg1, %c0_i32_19 : i32
    %c0_i32_20 = arith.constant 0 : i32
    %50 = vector.broadcast %c0_i32_20 : i32 to vector<18x24x1xi32>
    %51 = arith.cmpi ne, %42, %50 : vector<18x24x1xi32>
    %52 = vector.broadcast %49 : i1 to vector<18x24x1xi1>
    %53 = arith.ori %52, %51 : vector<18x24x1xi1>
    %54 = arith.andi %48, %53 : vector<18x24x1xi1>
    %c0_i32_21 = arith.constant 0 : i32
    %55 = arith.cmpi ne, %arg1, %c0_i32_21 : i32
    %c17_i32_22 = arith.constant 17 : i32
    %56 = vector.broadcast %c17_i32_22 : i32 to vector<18x24x1xi32>
    %57 = arith.cmpi ne, %42, %56 : vector<18x24x1xi32>
    %58 = vector.broadcast %55 : i1 to vector<18x24x1xi1>
    %59 = arith.ori %58, %57 : vector<18x24x1xi1>
    %60 = arith.andi %54, %59 : vector<18x24x1xi1>
    %cst_23 = arith.constant 0.000000e+00 : f32
    %61 = vector.shape_cast %60 : vector<18x24x1xi1> to vector<18x24x1xi1>
    %62 = vector.broadcast %61 : vector<18x24x1xi1> to vector<18x24x128xi1>
    %63 = vector.broadcast %cst_23 : f32 to vector<18x24x128xf32>
    %64 = arith.select %62, %41, %63 : vector<18x24x128xi1>, vector<18x24x128xf32>
    %65 = arith.truncf %64 : vector<18x24x128xf32> to vector<18x24x128xbf16>
    %66 = vector.shape_cast %65 : vector<18x24x128xbf16> to vector<432x128xbf16>
    %67 = vector.extract_strided_slice %66 {offsets = [0, 0], sizes = [384, 128], strides = [1, 1]} : vector<432x128xbf16> to vector<384x128xbf16>
    %68 = vector.extract_strided_slice %66 {offsets = [24, 0], sizes = [384, 128], strides = [1, 1]} : vector<432x128xbf16> to vector<384x128xbf16>
    %69 = vector.extract_strided_slice %66 {offsets = [48, 0], sizes = [384, 128], strides = [1, 1]} : vector<432x128xbf16> to vector<384x128xbf16>
    %70 = tpu.concatenate %67, %68, %69 in 1 : vector<384x128xbf16>, vector<384x128xbf16>, vector<384x128xbf16> -> vector<384x384xbf16>
    %c1_24 = arith.constant 1 : index
    %c0_25 = arith.constant 0 : index
    %c0_26 = arith.constant 0 : index
    %71 = vector.load %arg6[%c1_24, %c0_25, %c0_26] : memref<3x384x128xbf16, #tpu.memory_space<vmem>>, vector<1x384x128xbf16>
    %72 = vector.shape_cast %71 : vector<1x384x128xbf16> to vector<384x128xbf16>
    %cst_27 = arith.constant dense<0.000000e+00> : vector<384x128xf32>
    %73 = tpu.matmul %70, %72, %cst_27 {dimension_numbers = #tpu.dot_dimension_numbers<[1], [0], [0], [1], [0, 0, 1, 1], [], []>} : vector<384x384xbf16>, vector<384x128xbf16>, vector<384x128xf32> -> vector<384x128xf32>
    %74 = vector.shape_cast %73 : vector<384x128xf32> to vector<16x24x128xf32>
    %75 = vector.extract_strided_slice %74 {offsets = [0, 1, 0], sizes = [16, 16, 128], strides = [1, 1, 1]} : vector<16x24x128xf32> to vector<16x16x128xf32>
    %c0_28 = arith.constant 0 : index
    %c0_29 = arith.constant 0 : index
    %c0_30 = arith.constant 0 : index
    %76 = vector.load %arg6[%c0_28, %c0_29, %c0_30] : memref<3x384x128xbf16, #tpu.memory_space<vmem>>, vector<1x384x128xbf16>
    %77 = vector.shape_cast %76 : vector<1x384x128xbf16> to vector<384x128xbf16>
    %cst_31 = arith.constant dense<0.000000e+00> : vector<384x128xf32>
    %78 = tpu.matmul %70, %77, %cst_31 {dimension_numbers = #tpu.dot_dimension_numbers<[1], [0], [0], [1], [0, 0, 1, 1], [], []>} : vector<384x384xbf16>, vector<384x128xbf16>, vector<384x128xf32> -> vector<384x128xf32>
    %79 = vector.shape_cast %78 : vector<384x128xf32> to vector<16x24x128xf32>
    %80 = vector.extract_strided_slice %79 {offsets = [0, 0, 0], sizes = [16, 16, 128], strides = [1, 1, 1]} : vector<16x24x128xf32> to vector<16x16x128xf32>
    %81 = arith.addf %75, %80 : vector<16x16x128xf32>
    %c2_32 = arith.constant 2 : index
    %c0_33 = arith.constant 0 : index
    %c0_34 = arith.constant 0 : index
    %82 = vector.load %arg6[%c2_32, %c0_33, %c0_34] : memref<3x384x128xbf16, #tpu.memory_space<vmem>>, vector<1x384x128xbf16>
    %83 = vector.shape_cast %82 : vector<1x384x128xbf16> to vector<384x128xbf16>
    %cst_35 = arith.constant dense<0.000000e+00> : vector<384x128xf32>
    %84 = tpu.matmul %70, %83, %cst_35 {dimension_numbers = #tpu.dot_dimension_numbers<[1], [0], [0], [1], [0, 0, 1, 1], [], []>} : vector<384x384xbf16>, vector<384x128xbf16>, vector<384x128xf32> -> vector<384x128xf32>
    %85 = vector.shape_cast %84 : vector<384x128xf32> to vector<16x24x128xf32>
    %86 = vector.extract_strided_slice %85 {offsets = [0, 2, 0], sizes = [16, 16, 128], strides = [1, 1, 1]} : vector<16x24x128xf32> to vector<16x16x128xf32>
    %87 = arith.addf %81, %86 : vector<16x16x128xf32>
    %88 = vector.shape_cast %5 : vector<1x128xf32> to vector<1x1x128xf32>
    %89 = vector.broadcast %88 : vector<1x1x128xf32> to vector<16x16x128xf32>
    %90 = arith.mulf %87, %89 : vector<16x16x128xf32>
    %91 = vector.shape_cast %6 : vector<1x128xf32> to vector<1x1x128xf32>
    %92 = vector.broadcast %91 : vector<1x1x128xf32> to vector<16x16x128xf32>
    %93 = arith.addf %90, %92 : vector<16x16x128xf32>
    %94 = vector.extract_strided_slice %11 {offsets = [2, 0, 0], sizes = [16, 32, 128], strides = [1, 1, 1]} : vector<20x32x128xbf16> to vector<16x32x128xbf16>
    %95 = vector.shape_cast %94 : vector<16x32x128xbf16> to vector<512x128xbf16>
    %c0_36 = arith.constant 0 : index
    %c0_37 = arith.constant 0 : index
    %96 = vector.load %arg5[%c0_36, %c0_37] : memref<128x128xbf16, #tpu.memory_space<vmem>>, vector<128x128xbf16>
    %cst_38 = arith.constant dense<0.000000e+00> : vector<512x128xf32>
    %97 = tpu.matmul %95, %96, %cst_38 {dimension_numbers = #tpu.dot_dimension_numbers<[1], [0], [0], [1], [0, 0, 1, 1], [], []>} : vector<512x128xbf16>, vector<128x128xbf16>, vector<512x128xf32> -> vector<512x128xf32>
    %98 = vector.shape_cast %97 : vector<512x128xf32> to vector<16x32x128xf32>
    %99 = vector.extract_strided_slice %98 {offsets = [0, 2, 0], sizes = [16, 16, 128], strides = [1, 1, 1]} : vector<16x32x128xf32> to vector<16x16x128xf32>
    %100 = vector.shape_cast %3 : vector<1x128xf32> to vector<1x1x128xf32>
    %101 = vector.broadcast %100 : vector<1x1x128xf32> to vector<16x16x128xf32>
    %102 = arith.mulf %99, %101 : vector<16x16x128xf32>
    %103 = vector.shape_cast %4 : vector<1x128xf32> to vector<1x1x128xf32>
    %104 = vector.broadcast %103 : vector<1x1x128xf32> to vector<16x16x128xf32>
    %105 = arith.addf %102, %104 : vector<16x16x128xf32>
    %106 = arith.addf %93, %105 : vector<16x16x128xf32>
    %cst_39 = arith.constant 0.000000e+00 : f32
    %107 = vector.broadcast %cst_39 : f32 to vector<16x16x128xf32>
    %108 = arith.maximumf %106, %107 : vector<16x16x128xf32>
    %109 = vector.extract_strided_slice %108 {offsets = [0, 0, 0], sizes = [16, 16, 8], strides = [1, 1, 1]} : vector<16x16x128xf32> to vector<16x16x8xf32>
    %110 = arith.truncf %109 : vector<16x16x8xf32> to vector<16x16x8xbf16>
    %c0_40 = arith.constant 0 : index
    %c0_41 = arith.constant 0 : index
    %c0_42 = arith.constant 0 : index
    %c0_43 = arith.constant 0 : index
    %111 = vector.load %arg8[%c0_40, %c0_41, %c0_42, %c0_43] : memref<1x16x16x8xbf16, #tpu.memory_space<vmem>>, vector<1x16x16x8xbf16>
    %112 = vector.shape_cast %111 : vector<1x16x16x8xbf16> to vector<16x16x8xbf16>
    %113 = vector.shape_cast %110 : vector<16x16x8xbf16> to vector<1x16x16x8xbf16>
    tpu.vector_store %arg8[%c0_40, %c0_41, %c0_42, %c0_43], %113 {strides = array<i32>} : memref<1x16x16x8xbf16, #tpu.memory_space<vmem>>, vector<1x16x16x8xbf16>,
    return
  }
  func.func @transform_0(%arg0: i32, %arg1: i32) -> (i32, i32, i32, i32) {
    %c0_i32 = arith.constant 0 : i32
    %c0_i32_0 = arith.constant 0 : i32
    %c0_i32_1 = arith.constant 0 : i32
    return %arg0, %arg1, %c0_i32, %c0_i32_0 : i32, i32, i32, i32
  }
  func.func @transform_1(%arg0: i32, %arg1: i32) -> (i32, i32, i32, i32) {
    %c1_i32 = arith.constant 1 : i32
    %0 = arith.addi %arg1, %c1_i32 : i32
    %c4_i32 = arith.constant 4 : i32
    %1 = arith.muli %0, %c4_i32 : i32
    %c0_i32 = arith.constant 0 : i32
    %c0_i32_0 = arith.constant 0 : i32
    %c0_i32_1 = arith.constant 0 : i32
    return %arg0, %1, %c0_i32, %c0_i32_0 : i32, i32, i32, i32
  }
  func.func @transform_2(%arg0: i32, %arg1: i32) -> (i32, i32, i32) {
    %c0_i32 = arith.constant 0 : i32
    %c0_i32_0 = arith.constant 0 : i32
    %c0_i32_1 = arith.constant 0 : i32
    %c0_i32_2 = arith.constant 0 : i32
    return %c0_i32, %c0_i32_0, %c0_i32_1 : i32, i32, i32
  }
  func.func @transform_3(%arg0: i32, %arg1: i32) -> (i32, i32) {
    %c0_i32 = arith.constant 0 : i32
    %c0_i32_0 = arith.constant 0 : i32
    %c0_i32_1 = arith.constant 0 : i32
    return %c0_i32, %c0_i32_0 : i32, i32
  }
  func.func @transform_4(%arg0: i32, %arg1: i32) -> (i32, i32, i32) {
    %c0_i32 = arith.constant 0 : i32
    %c0_i32_0 = arith.constant 0 : i32
    %c0_i32_1 = arith.constant 0 : i32
    %c0_i32_2 = arith.constant 0 : i32
    return %c0_i32, %c0_i32_0, %c0_i32_1 : i32, i32, i32
  }
  func.func @transform_5(%arg0: i32, %arg1: i32) -> (i32, i32) {
    %c0_i32 = arith.constant 0 : i32
    %c0_i32_0 = arith.constant 0 : i32
    %c0_i32_1 = arith.constant 0 : i32
    return %c0_i32, %c0_i32_0 : i32, i32
  }
  func.func @transform_6(%arg0: i32, %arg1: i32) -> (i32, i32, i32, i32) {
    %c0_i32 = arith.constant 0 : i32
    %c0_i32_0 = arith.constant 0 : i32
    %c0_i32_1 = arith.constant 0 : i32
    return %arg0, %arg1, %c0_i32, %c0_i32_0 : i32, i32, i32, i32
  }
}

</mosaic_0001>

<llo_original>
// kernel: up_forward.1
$region0: #{up_forward.1}
  #allocation0 [shape = 'u32[]', space=smem, size = 0x4, offset = 0x4, fixed_abs, tag = 'smem constant byte address 0x4 - core index']
  #allocation1 [shape = 'u32[144,128]{1,0:T(1,128)}', space=vmem, size = 0x12000, scoped, tag = 'internal scratch']
  %s0 = inlined_call_operand.vmem [shape: bf16[2,20,32,128], index: 0, kind: input, shape index: {}, may-alias: {0,1}]
  %s1 = inlined_call_operand.vmem [shape: bf16[2,20,32,128], index: 1, kind: input, shape index: {}, may-alias: {0,1}]
  %s2 = inlined_call_operand.vmem [shape: bf16[3,384,128], index: 2, kind: input, shape index: {}]
  %s3 = inlined_call_operand.vmem [shape: bf16[128,128], index: 3, kind: input, shape index: {}]
  %s4 = inlined_call_operand.vmem [shape: bf16[3,384,128], index: 4, kind: input, shape index: {}]
  %s5 = inlined_call_operand.vmem [shape: f32[6,128], index: 5, kind: input, shape index: {}]
  %s6 = inlined_call_operand.vmem [shape: bf16[2,16,16,8], index: 6, kind: output, shape index: {}]
  %s7 = sld [smem:[#allocation0]]
  $region57: #{up_forward.1} parent=0
    _
  %s9 = ssub.s32 1, %s7
  %s10 = scalar_select 0, %s9, %s7
  loop: start=0, step=1, limit=4
  $region2: #{up_forward.1} parent=0 // loop_pre_header
    _
  $region3: #{up_forward.1} parent=0 // loop_header
    %s12 = sphi 0, %s16
    %p13 = scmp.ge.s32.totalorder %s12, 4
    %s19 = sphi 0, %s31
    %s20 = sphi 0, %s27
    %s21 = sphi 0, %s19
    %s22 = sphi 0, %s20
    %s23 = sphi 0, %s21
    %s24 = sphi 0, %s22
    %s36 = sphi 0, %s38
    %s39 = sphi 0, %s36
    %s40 = sphi 0, %s39
    %s56 = sphi 0, %s40
    %s68 = sphi 0, %s70
    %s71 = sphi 0, %s68
    %s72 = sphi 0, %s71
    %s88 = sphi 0, %s72
    %s92 = sphi 0, %s92
    %s94 = sphi 0, %s92
    %s95 = sphi 0, %s94
    %s109 = sphi 0, %s95
    %s113 = sphi 0, %s113
    %s115 = sphi 0, %s113
    %s116 = sphi 0, %s115
    %s130 = sphi 0, %s116
    %s134 = sphi 0, %s134
    %s136 = sphi 0, %s134
    %s137 = sphi 0, %s136
    %s151 = sphi 0, %s137
    %s155 = sphi 0, %s155
    %s157 = sphi 0, %s155
    %s158 = sphi 0, %s157
    %s172 = sphi 0, %s158
    %s180 = sphi 0, %s182
    %s183 = sphi 0, %s180
    %s184 = sphi 0, %s183
    %s200 = sphi 0, %s184
  $region4: #{up_forward.1} parent=0 // loop_header_branch
    %15 = sbr.rel (%p13) target = $region8
  $region5: #{up_forward.1} parent=0 // loop_body
    %s17 = ssub.s32 %s12, 1
    %s18 = ssub.s32 %s12, 2
    %s25 = sadd.s32 1, %s20
    %p26 = scmp.ge.s32.totalorder %s25, 1
    %s27 = scalar_select %p26, 0, %s25
    %s28 = sadd.s32 1, %s19
    %s29 = scalar_select %p26, %s28, %s19
    %p30 = scmp.ge.s32.totalorder %s29, 2
    %s31 = scalar_select %p30, 0, %s29
    %s32 = ssub.s32 %s19, %s31
    %s33 = ssub.s32 %s20, %s27
    %s34 = sor.u32 %s32, %s33
    %p35 = scmp.eq.s32.totalorder %s34, 0
    %s37 = sadd.s32 %s36, 1
    %s38 = scalar_select %p35, %s36, %s37
    %p41 = pneg %p35
    %p42 = scmp.eq.s32.totalorder %s12, 1
    %p43 = por %p41, %p42
    %p44 = scmp.ne.s32.totalorder %s36, %s39
    %p45 = scmp.eq.s32.totalorder %s12, 0
    %p46 = por %p44, %p45
    %p47 = scmp.ne.s32.totalorder %s36, %s39
    %p48 = scmp.eq.s32.totalorder %s17, 1
    %p49 = por %p47, %p48
    %p50 = scmp.ne.s32.totalorder %s39, %s40
    %p51 = scmp.eq.s32.totalorder %s17, 0
    %p52 = por %p50, %p51
    %p53 = scmp.ne.s32.totalorder %s39, %s40
    %p54 = scmp.eq.s32.totalorder %s18, 1
    %p55 = por %p53, %p54
    %p57 = scmp.ne.s32.totalorder %s40, %s56
    %p58 = scmp.eq.s32.totalorder %s18, 0
    %p59 = por %p57, %p58
    %s60 = sadd.s32 %s20, 1
    %s61 = smul.u32 %s60, 4
    %s62 = sadd.s32 %s27, 1
    %s63 = smul.u32 %s62, 4
    %s64 = ssub.s32 %s19, %s31
    %s65 = ssub.s32 %s61, %s63
    %s66 = sor.u32 %s64, %s65
    %p67 = scmp.eq.s32.totalorder %s66, 0
    %s69 = sadd.s32 %s68, 1
    %s70 = scalar_select %p67, %s68, %s69
    %p73 = pneg %p67
    %p74 = scmp.eq.s32.totalorder %s12, 1
    %p75 = por %p73, %p74
    %p76 = scmp.ne.s32.totalorder %s68, %s71
    %p77 = scmp.eq.s32.totalorder %s12, 0
    %p78 = por %p76, %p77
    %p79 = scmp.ne.s32.totalorder %s68, %s71
    %p80 = scmp.eq.s32.totalorder %s17, 1
    %p81 = por %p79, %p80
    %p82 = scmp.ne.s32.totalorder %s71, %s72
    %p83 = scmp.eq.s32.totalorder %s17, 0
    %p84 = por %p82, %p83
    %p85 = scmp.ne.s32.totalorder %s71, %s72
    %p86 = scmp.eq.s32.totalorder %s18, 1
    %p87 = por %p85, %p86
    %p89 = scmp.ne.s32.totalorder %s72, %s88
    %p90 = scmp.eq.s32.totalorder %s18, 0
    %p91 = por %p89, %p90
    %s93 = sadd.s32 %s92, 1
    %p96 = scmp.eq.s32.totalorder %s12, 1
    %p97 = scmp.ne.s32.totalorder %s92, %s94
    %p98 = scmp.eq.s32.totalorder %s12, 0
    %p99 = por %p97, %p98
    %p100 = scmp.ne.s32.totalorder %s92, %s94
    %p101 = scmp.eq.s32.totalorder %s17, 1
    %p102 = por %p100, %p101
    %p103 = scmp.ne.s32.totalorder %s94, %s95
    %p104 = scmp.eq.s32.totalorder %s17, 0
    %p105 = por %p103, %p104
    %p106 = scmp.ne.s32.totalorder %s94, %s95
    %p107 = scmp.eq.s32.totalorder %s18, 1
    %p108 = por %p106, %p107
    %p110 = scmp.ne.s32.totalorder %s95, %s109
    %p111 = scmp.eq.s32.totalorder %s18, 0
    %p112 = por %p110, %p111
    %s114 = sadd.s32 %s113, 1
    %p117 = scmp.eq.s32.totalorder %s12, 1
    %p118 = scmp.ne.s32.totalorder %s113, %s115
    %p119 = scmp.eq.s32.totalorder %s12, 0
    %p120 = por %p118, %p119
    %p121 = scmp.ne.s32.totalorder %s113, %s115
    %p122 = scmp.eq.s32.totalorder %s17, 1
    %p123 = por %p121, %p122
    %p124 = scmp.ne.s32.totalorder %s115, %s116
    %p125 = scmp.eq.s32.totalorder %s17, 0
    %p126 = por %p124, %p125
    %p127 = scmp.ne.s32.totalorder %s115, %s116
    %p128 = scmp.eq.s32.totalorder %s18, 1
    %p129 = por %p127, %p128
    %p131 = scmp.ne.s32.totalorder %s116, %s130
    %p132 = scmp.eq.s32.totalorder %s18, 0
    %p133 = por %p131, %p132
    %s135 = sadd.s32 %s134, 1
    %p138 = scmp.eq.s32.totalorder %s12, 1
    %p139 = scmp.ne.s32.totalorder %s134, %s136
    %p140 = scmp.eq.s32.totalorder %s12, 0
    %p141 = por %p139, %p140
    %p142 = scmp.ne.s32.totalorder %s134, %s136
    %p143 = scmp.eq.s32.totalorder %s17, 1
    %p144 = por %p142, %p143
    %p145 = scmp.ne.s32.totalorder %s136, %s137
    %p146 = scmp.eq.s32.totalorder %s17, 0
    %p147 = por %p145, %p146
    %p148 = scmp.ne.s32.totalorder %s136, %s137
    %p149 = scmp.eq.s32.totalorder %s18, 1
    %p150 = por %p148, %p149
    %p152 = scmp.ne.s32.totalorder %s137, %s151
    %p153 = scmp.eq.s32.totalorder %s18, 0
    %p154 = por %p152, %p153
    %s156 = sadd.s32 %s155, 1
    %p159 = scmp.eq.s32.totalorder %s12, 1
    %p160 = scmp.ne.s32.totalorder %s155, %s157
    %p161 = scmp.eq.s32.totalorder %s12, 0
    %p162 = por %p160, %p161
    %p163 = scmp.ne.s32.totalorder %s155, %s157
    %p164 = scmp.eq.s32.totalorder %s17, 1
    %p165 = por %p163, %p164
    %p166 = scmp.ne.s32.totalorder %s157, %s158
    %p167 = scmp.eq.s32.totalorder %s17, 0
    %p168 = por %p166, %p167
    %p169 = scmp.ne.s32.totalorder %s157, %s158
    %p170 = scmp.eq.s32.totalorder %s18, 1
    %p171 = por %p169, %p170
    %p173 = scmp.ne.s32.totalorder %s158, %s172
    %p174 = scmp.eq.s32.totalorder %s18, 0
    %p175 = por %p173, %p174
    %s176 = ssub.s32 %s19, %s31
    %s177 = ssub.s32 %s20, %s27
    %s178 = sor.u32 %s176, %s177
    %p179 = scmp.eq.s32.totalorder %s178, 0
    %s181 = sadd.s32 %s180, 1
    %s182 = scalar_select %p179, %s180, %s181
    %p185 = pneg %p179
    %p186 = scmp.eq.s32.totalorder %s12, 1
    %p187 = por %p185, %p186
    %p188 = scmp.ne.s32.totalorder %s180, %s183
    %p189 = scmp.eq.s32.totalorder %s12, 0
    %p190 = por %p188, %p189
    %p191 = scmp.ne.s32.totalorder %s180, %s183
    %p192 = scmp.eq.s32.totalorder %s17, 1
    %p193 = por %p191, %p192
    %p194 = scmp.ne.s32.totalorder %s183, %s184
    %p195 = scmp.eq.s32.totalorder %s17, 0
    %p196 = por %p194, %p195
    %p197 = scmp.ne.s32.totalorder %s183, %s184
    %p198 = scmp.eq.s32.totalorder %s18, 1
    %p199 = por %p197, %p198
    %p201 = scmp.ne.s32.totalorder %s184, %s200
    %p202 = scmp.eq.s32.totalorder %s18, 0
    %p203 = por %p201, %p202
    %p204 = scmp.le.s32.totalorder 1, %s12
    %p205 = scmp.lt.s32.totalorder %s12, 3
    %p206 = pnand %p204, %p205
    %p207 = pneg %p206
    // Predicated region
    $region9: #{up_forward.1} parent=5 // pred_check
      _
    $region10: #{up_forward.1} parent=5 // pred_check_branch
      %209 = sbr.rel (%p206) target = $region12
    $region11: #{up_forward.1} parent=5 // pred_region
      %s210 = ssub.s32 %s12, 1
      // Predicated region
      $region13: #{up_forward.1} parent=11 // pred_check
        %p211 = pneg %p105
      $region14: #{up_forward.1} parent=11 // pred_check_branch
        %213 = sbr.rel (%p211) target = $region16
      $region15: #{up_forward.1} parent=11 // pred_region
        _
      $region16: #{up_forward.1} parent=11 // pred_fallthru
        _
      // Predicated region
      $region17: #{up_forward.1} parent=11 // pred_check
        %p214 = pneg %p126
      $region18: #{up_forward.1} parent=11 // pred_check_branch
        %216 = sbr.rel (%p214) target = $region20
      $region19: #{up_forward.1} parent=11 // pred_region
        _
      $region20: #{up_forward.1} parent=11 // pred_fallthru
        _
      // Predicated region
      $region21: #{up_forward.1} parent=11 // pred_check
        %p217 = pneg %p147
      $region22: #{up_forward.1} parent=11 // pred_check_branch
        %219 = sbr.rel (%p217) target = $region24
      $region23: #{up_forward.1} parent=11 // pred_region
        _
      $region24: #{up_forward.1} parent=11 // pred_fallthru
        _
      // Predicated region
      $region25: #{up_forward.1} parent=11 // pred_check
        %p220 = pneg %p168
      $region26: #{up_forward.1} parent=11 // pred_check_branch
        %222 = sbr.rel (%p220) target = $region28
      $region27: #{up_forward.1} parent=11 // pred_region
        _
      $region28: #{up_forward.1} parent=11 // pred_fallthru
        _
    $region12: #{up_forward.1} parent=5 // pred_fallthru
      _
    %p223 = scmp.lt.s32.totalorder %s12, 2
    // Predicated region
    $region29: #{up_forward.1} parent=5 // pred_check
      %p224 = pneg %p223
    $region30: #{up_forward.1} parent=5 // pred_check_branch
      %226 = sbr.rel (%p224) target = $region32
    $region31: #{up_forward.1} parent=5 // pred_region
      // Predicated region
      $region33: #{up_forward.1} parent=31 // pred_check
        %p227 = pneg %p46
      $region34: #{up_forward.1} parent=31 // pred_check_branch
        %229 = sbr.rel (%p227) target = $region36
      $region35: #{up_forward.1} parent=31 // pred_region
        %s230 = smul.u32 16, %s20
        %s231 = ssub.s32 20, %s230
        %p232 = scmp.lt.s32.totalorder %s231, 16
        %s233 = scalar_select %p232, %s231, 16
        %s234 = smul.u32 64, %s233
        %s235 = smul.u32 %s234, 4
        %p236 = scmp.lt.s32.totalorder %s19, 1
        %s237 = scalar_select %p236, %s19, 1
        %p238 = scmp.lt.s32.totalorder %s230, 19
        %s239 = scalar_select %p238, %s230, 19
        %s240 = smul.addr %s239, 4
        %s241 = smul.addr %s237, 80
        %s242 = sadd.s32 %s240, %s241
        %s243 = smul.addr %s242, 4
        %s244 = scalar_lea.vmem %s0, %s243
        %s245 = smul.u32 16, %s20
        %s246 = ssub.s32 20, %s245
        %p247 = scmp.lt.s32.totalorder %s246, 16
        %s248 = scalar_select %p247, %s246, 16
        %s249 = smul.u32 64, %s248
        %s250 = smul.u32 %s249, 4
      $region36: #{up_forward.1} parent=31 // pred_fallthru
        _
      // Predicated region
      $region37: #{up_forward.1} parent=31 // pred_check
        %p251 = pneg %p78
      $region38: #{up_forward.1} parent=31 // pred_check_branch
        %253 = sbr.rel (%p251) target = $region40
      $region39: #{up_forward.1} parent=31 // pred_region
        %s254 = sadd.s32 %s20, 1
        %s255 = smul.u32 %s254, 4
        %s256 = smul.u32 4, %s255
        %p257 = scmp.lt.s32.totalorder %s19, 1
        %s258 = scalar_select %p257, %s19, 1
        %p259 = scmp.lt.s32.totalorder %s256, 19
        %s260 = scalar_select %p259, %s256, 19
        %s261 = smul.addr %s260, 4
        %s262 = smul.addr %s258, 80
        %s263 = sadd.s32 %s261, %s262
        %s264 = smul.addr %s263, 4
        %s265 = scalar_lea.vmem %s1, %s264
        %s266 = sadd.s32 %s20, 1
        %s267 = smul.u32 %s266, 4
        %s268 = smul.u32 4, %s267
      $region40: #{up_forward.1} parent=31 // pred_fallthru
        _
    $region32: #{up_forward.1} parent=5 // pred_fallthru
      _
    %p269 = scmp.le.s32.totalorder 1, %s12
    %p270 = scmp.lt.s32.totalorder %s12, 3
    %p271 = pnand %p269, %p270
    %p272 = pneg %p271
    // Predicated region
    $region41: #{up_forward.1} parent=5 // pred_check
      _
    $region42: #{up_forward.1} parent=5 // pred_check_branch
      %274 = sbr.rel (%p271) target = $region44
    $region43: #{up_forward.1} parent=5 // pred_region
      %s275 = ssub.s32 %s12, 1
      %s276 = smul.u32 16, %s22
      %s277 = ssub.s32 20, %s276
      %p278 = scmp.lt.s32.totalorder %s277, 16
      %s279 = scalar_select %p278, %s277, 16
      %s280 = smul.u32 64, %s279
      %s281 = smul.u32 %s280, 4
      %p282 = scmp.lt.s32.totalorder %s21, 1
      %s283 = scalar_select %p282, %s21, 1
      %p284 = scmp.lt.s32.totalorder %s276, 19
      %s285 = scalar_select %p284, %s276, 19
      %s286 = smul.addr %s285, 4
      %s287 = smul.addr %s283, 80
      %s288 = sadd.s32 %s286, %s287
      %s289 = smul.addr %s288, 4
      %s290 = scalar_lea.vmem %s0, %s289
      %p291 = pneg %p52
      %p292 = pneg %p49
      %s293 = sadd.s32 %s22, 1
      %s294 = smul.u32 %s293, 4
      %s295 = smul.u32 4, %s294
      %p296 = scmp.lt.s32.totalorder %s21, 1
      %s297 = scalar_select %p296, %s21, 1
      %p298 = scmp.lt.s32.totalorder %s295, 19
      %s299 = scalar_select %p298, %s295, 19
      %s300 = smul.addr %s299, 4
      %s301 = smul.addr %s297, 80
      %s302 = sadd.s32 %s300, %s301
      %s303 = smul.addr %s302, 4
      %s304 = scalar_lea.vmem %s1, %s303
      %p305 = pneg %p84
      %p306 = pneg %p81
      %p307 = pneg %p105
      %p308 = pneg %p102
      %p309 = pneg %p126
      %p310 = pneg %p123
      %p311 = pneg %p147
      %p312 = pneg %p144
      %p313 = pneg %p168
      %p314 = pneg %p165
      %p315 = pneg %p196
      %p316 = pneg %p193
      %s317 = smul.u32 16, %s22
      %p318 = scmp.lt.s32.totalorder %s21, 1
      %s319 = scalar_select %p318, %s21, 1
      %p320 = scmp.lt.s32.totalorder %s317, 15
      %s321 = scalar_select %p320, %s317, 15
      %s322 = smul.addr %s321, 2
      %s323 = smul.addr %s319, 32
      %s324 = sadd.s32 %s322, %s323
      %s325 = smul.addr %s324, 4
      %s326 = scalar_lea.vmem %s6, %s325
      %s327 = smul.u32 16, %s22
      %s328 = ssub.s32 20, %s327
      %p329 = scmp.lt.s32.totalorder %s328, 16
      %s330 = scalar_select %p329, %s328, 16
      %s331 = smul.u32 64, %s330
      %s332 = smul.u32 %s331, 4
      %p333 = scmp.lt.s32.totalorder %s21, 1
      %s334 = scalar_select %p333, %s21, 1
      %p335 = scmp.lt.s32.totalorder %s327, 19
      %s336 = scalar_select %p335, %s327, 19
      %s337 = smul.addr %s336, 4
      %s338 = smul.addr %s334, 80
      %s339 = sadd.s32 %s337, %s338
      %s340 = smul.addr %s339, 4
      %s341 = scalar_lea.vmem %s0, %s340
      %s342 = smul.u32 16, %s22
      %s343 = ssub.s32 20, %s342
      %p344 = scmp.lt.s32.totalorder %s343, 16
      %s345 = scalar_select %p344, %s343, 16
      %s346 = smul.u32 64, %s345
      %s347 = smul.u32 %s346, 4
      %s348 = sadd.s32 %s22, 1
      %s349 = smul.u32 %s348, 4
      %s350 = smul.u32 4, %s349
      %p351 = scmp.lt.s32.totalorder %s21, 1
      %s352 = scalar_select %p351, %s21, 1
      %p353 = scmp.lt.s32.totalorder %s350, 19
      %s354 = scalar_select %p353, %s350, 19
      %s355 = smul.addr %s354, 4
      %s356 = smul.addr %s352, 80
      %s357 = sadd.s32 %s355, %s356
      %s358 = smul.addr %s357, 4
      %s359 = scalar_lea.vmem %s1, %s358
      %s360 = sadd.s32 %s22, 1
      %s361 = smul.u32 %s360, 4
      %s362 = smul.u32 4, %s361
      %s363 = smul.u32 16, %s22
      %p364 = scmp.lt.s32.totalorder %s21, 1
      %s365 = scalar_select %p364, %s21, 1
      %p366 = scmp.lt.s32.totalorder %s363, 15
      %s367 = scalar_select %p366, %s363, 15
      %s368 = smul.addr %s367, 2
      %s369 = smul.addr %s365, 32
      %s370 = sadd.s32 %s368, %s369
      %s371 = smul.addr %s370, 4
      %s372 = scalar_lea.vmem %s6, %s371
      %s373 = smul.u32 16, %s22
      %v375 = vld [vmem:[%s5] sm:$0x3f]
      %v376 = vld [vmem:[%s341] sm:$0xf]
      %v377 = vld [vmem:[%s341 + $0x4] sm:$0xf]
      %v378 = vld [vmem:[%s341 + $0x8] sm:$0xf]
      %v379 = vld [vmem:[%s341 + $0xc] sm:$0xf]
      %v380 = vld [vmem:[%s341 + $0x10] sm:$0xf]
      %v381 = vld [vmem:[%s341 + $0x14] sm:$0xf]
      %v382 = vld [vmem:[%s341 + $0x18] sm:$0xf]
      %v383 = vld [vmem:[%s341 + $0x1c] sm:$0xf]
      %v384 = vld [vmem:[%s341 + $0x20] sm:$0xf]
      %v385 = vld [vmem:[%s341 + $0x24] sm:$0xf]
      %v386 = vld [vmem:[%s341 + $0x28] sm:$0xf]
      %v387 = vld [vmem:[%s341 + $0x2c] sm:$0xf]
      %v388 = vld [vmem:[%s341 + $0x30] sm:$0xf]
      %v389 = vld [vmem:[%s341 + $0x34] sm:$0xf]
      %v390 = vld [vmem:[%s341 + $0x38] sm:$0xf]
      %v391 = vld [vmem:[%s341 + $0x3c] sm:$0xf]
      %v392 = vld [vmem:[%s341 + $0x40] sm:$0xf]
      %v393 = vld [vmem:[%s341 + $0x44] sm:$0xf]
      %v394 = vld [vmem:[%s341 + $0x48] sm:$0xf]
      %v395 = vld [vmem:[%s341 + $0x4c] sm:$0xf]
      %v396 = vld [vmem:[%s341 + $0x50] sm:$0xf]
      %v397 = vld [vmem:[%s341 + $0x54] sm:$0xf]
      %v398 = vld [vmem:[%s341 + $0x58] sm:$0xf]
      %v399 = vld [vmem:[%s341 + $0x5c] sm:$0xf]
      %v400 = vld [vmem:[%s341 + $0x60] sm:$0xf]
      %v401 = vld [vmem:[%s341 + $0x64] sm:$0xf]
      %v402 = vld [vmem:[%s341 + $0x68] sm:$0xf]
      %v403 = vld [vmem:[%s341 + $0x6c] sm:$0xf]
      %v404 = vld [vmem:[%s341 + $0x70] sm:$0xf]
      %v405 = vld [vmem:[%s341 + $0x74] sm:$0xf]
      %v406 = vld [vmem:[%s341 + $0x78] sm:$0xf]
      %v407 = vld [vmem:[%s341 + $0x7c] sm:$0xf]
      %v408 = vld [vmem:[%s341 + $0x80] sm:$0xf]
      %v409 = vld [vmem:[%s341 + $0x84] sm:$0xf]
      %v410 = vld [vmem:[%s341 + $0x88] sm:$0xf]
      %v411 = vld [vmem:[%s341 + $0x8c] sm:$0xf]
      %v412 = vld [vmem:[%s341 + $0x90] sm:$0xf]
      %v413 = vld [vmem:[%s341 + $0x94] sm:$0xf]
      %v414 = vld [vmem:[%s341 + $0x98] sm:$0xf]
      %v415 = vld [vmem:[%s341 + $0x9c] sm:$0xf]
      %v416 = vld [vmem:[%s341 + $0xa0] sm:$0xf]
      %v417 = vld [vmem:[%s341 + $0xa4] sm:$0xf]
      %v418 = vld [vmem:[%s341 + $0xa8] sm:$0xf]
      %v419 = vld [vmem:[%s341 + $0xac] sm:$0xf]
      %v420 = vld [vmem:[%s341 + $0xb0] sm:$0xf]
      %v421 = vld [vmem:[%s341 + $0xb4] sm:$0xf]
      %v422 = vld [vmem:[%s341 + $0xb8] sm:$0xf]
      %v423 = vld [vmem:[%s341 + $0xbc] sm:$0xf]
      %v424 = vld [vmem:[%s341 + $0xc0] sm:$0xf]
      %v425 = vld [vmem:[%s341 + $0xc4] sm:$0xf]
      %v426 = vld [vmem:[%s341 + $0xc8] sm:$0xf]
      %v427 = vld [vmem:[%s341 + $0xcc] sm:$0xf]
      %v428 = vld [vmem:[%s341 + $0xd0] sm:$0xf]
      %v429 = vld [vmem:[%s341 + $0xd4] sm:$0xf]
      %v430 = vld [vmem:[%s341 + $0xd8] sm:$0xf]
      %v431 = vld [vmem:[%s341 + $0xdc] sm:$0xf]
      %v432 = vld [vmem:[%s341 + $0xe0] sm:$0xf]
      %v433 = vld [vmem:[%s341 + $0xe4] sm:$0xf]
      %v434 = vld [vmem:[%s341 + $0xe8] sm:$0xf]
      %v435 = vld [vmem:[%s341 + $0xec] sm:$0xf]
      %v436 = vld [vmem:[%s341 + $0xf0] sm:$0xf]
      %v437 = vld [vmem:[%s341 + $0xf4] sm:$0xf]
      %v438 = vld [vmem:[%s341 + $0xf8] sm:$0xf]
      %v439 = vld [vmem:[%s341 + $0xfc] sm:$0xf]
      %v440 = vld [vmem:[%s359] sm:$0xf]
      %v441 = vld [vmem:[%s359 + $0x4] sm:$0xf]
      %v442 = vld [vmem:[%s359 + $0x8] sm:$0xf]
      %v443 = vld [vmem:[%s359 + $0xc] sm:$0xf]
      %v444 = vld [vmem:[%s359 + $0x10] sm:$0xf]
      %v445 = vld [vmem:[%s359 + $0x14] sm:$0xf]
      %v446 = vld [vmem:[%s359 + $0x18] sm:$0xf]
      %v447 = vld [vmem:[%s359 + $0x1c] sm:$0xf]
      %v448 = vld [vmem:[%s359 + $0x20] sm:$0xf]
      %v449 = vld [vmem:[%s359 + $0x24] sm:$0xf]
      %v450 = vld [vmem:[%s359 + $0x28] sm:$0xf]
      %v451 = vld [vmem:[%s359 + $0x2c] sm:$0xf]
      %v452 = vld [vmem:[%s359 + $0x30] sm:$0xf]
      %v453 = vld [vmem:[%s359 + $0x34] sm:$0xf]
      %v454 = vld [vmem:[%s359 + $0x38] sm:$0xf]
      %v455 = vld [vmem:[%s359 + $0x3c] sm:$0xf]
      %v528 = vunpack.c.l.b16 %v376
      %v529 = vunpack.c.l.b16 %v377
      %v530 = vunpack.c.l.b16 %v378
      %v531 = vunpack.c.l.b16 %v379
      %v532 = vunpack.c.l.b16 %v380
      %v533 = vunpack.c.l.b16 %v381
      %v534 = vunpack.c.l.b16 %v382
      %v535 = vunpack.c.l.b16 %v383
      %v536 = vunpack.c.l.b16 %v384
      %v537 = vunpack.c.l.b16 %v385
      %v538 = vunpack.c.l.b16 %v386
      %v539 = vunpack.c.l.b16 %v387
      %v540 = vunpack.c.l.b16 %v388
      %v541 = vunpack.c.l.b16 %v389
      %v542 = vunpack.c.l.b16 %v390
      %v543 = vunpack.c.l.b16 %v391
      %v544 = vunpack.c.l.b16 %v392
      %v545 = vunpack.c.l.b16 %v393
      %v546 = vunpack.c.l.b16 %v394
      %v547 = vunpack.c.l.b16 %v395
      %v548 = vunpack.c.l.b16 %v396
      %v549 = vunpack.c.l.b16 %v397
      %v550 = vunpack.c.l.b16 %v398
      %v551 = vunpack.c.l.b16 %v399
      %v552 = vunpack.c.l.b16 %v400
      %v553 = vunpack.c.l.b16 %v401
      %v554 = vunpack.c.l.b16 %v402
      %v555 = vunpack.c.l.b16 %v403
      %v556 = vunpack.c.l.b16 %v404
      %v557 = vunpack.c.l.b16 %v405
      %v558 = vunpack.c.l.b16 %v406
      %v559 = vunpack.c.l.b16 %v407
      %v560 = vunpack.c.l.b16 %v408
      %v561 = vunpack.c.l.b16 %v409
      %v562 = vunpack.c.l.b16 %v410
      %v563 = vunpack.c.l.b16 %v411
      %v564 = vunpack.c.l.b16 %v412
      %v565 = vunpack.c.l.b16 %v413
      %v566 = vunpack.c.l.b16 %v414
      %v567 = vunpack.c.l.b16 %v415
      %v568 = vunpack.c.l.b16 %v416
      %v569 = vunpack.c.l.b16 %v417
      %v570 = vunpack.c.l.b16 %v418
      %v571 = vunpack.c.l.b16 %v419
      %v572 = vunpack.c.l.b16 %v420
      %v573 = vunpack.c.l.b16 %v421
      %v574 = vunpack.c.l.b16 %v422
      %v575 = vunpack.c.l.b16 %v423
      %v576 = vunpack.c.l.b16 %v424
      %v577 = vunpack.c.l.b16 %v425
      %v578 = vunpack.c.l.b16 %v426
      %v579 = vunpack.c.l.b16 %v427
      %v580 = vunpack.c.l.b16 %v428
      %v581 = vunpack.c.l.b16 %v429
      %v582 = vunpack.c.l.b16 %v430
      %v583 = vunpack.c.l.b16 %v431
      %v584 = vunpack.c.l.b16 %v432
      %v585 = vunpack.c.l.b16 %v433
      %v586 = vunpack.c.l.b16 %v434
      %v587 = vunpack.c.l.b16 %v435
      %v588 = vunpack.c.l.b16 %v436
      %v589 = vunpack.c.l.b16 %v437
      %v590 = vunpack.c.l.b16 %v438
      %v591 = vunpack.c.l.b16 %v439
      %v592 = vunpack.c.l.b16 %v440
      %v593 = vunpack.c.l.b16 %v441
      %v594 = vunpack.c.l.b16 %v442
      %v595 = vunpack.c.l.b16 %v443
      %v596 = vunpack.c.l.b16 %v444
      %v597 = vunpack.c.l.b16 %v445
      %v598 = vunpack.c.l.b16 %v446
      %v599 = vunpack.c.l.b16 %v447
      %v600 = vpack.c.b16 %v529, %v528
      %v601 = vpack.c.b16 %v531, %v530
      %v602 = vpack.c.b16 %v533, %v532
      %v603 = vpack.c.b16 %v535, %v534
      %v604 = vpack.c.b16 %v537, %v536
      %v605 = vpack.c.b16 %v539, %v538
      %v606 = vpack.c.b16 %v541, %v540
      %v607 = vpack.c.b16 %v543, %v542
      %v608 = vpack.c.b16 %v545, %v544
      %v609 = vpack.c.b16 %v547, %v546
      %v610 = vpack.c.b16 %v549, %v548
      %v611 = vpack.c.b16 %v551, %v550
      %v612 = vpack.c.b16 %v553, %v552
      %v613 = vpack.c.b16 %v555, %v554
      %v614 = vpack.c.b16 %v557, %v556
      %v615 = vpack.c.b16 %v559, %v558
      %v616 = vpack.c.b16 %v561, %v560
      %v617 = vpack.c.b16 %v563, %v562
      %v618 = vpack.c.b16 %v565, %v564
      %v619 = vpack.c.b16 %v567, %v566
      %v620 = vpack.c.b16 %v569, %v568
      %v621 = vpack.c.b16 %v571, %v570
      %v622 = vpack.c.b16 %v573, %v572
      %v623 = vpack.c.b16 %v575, %v574
      %v624 = vpack.c.b16 %v577, %v576
      %v625 = vpack.c.b16 %v579, %v578
      %v626 = vpack.c.b16 %v581, %v580
      %v627 = vpack.c.b16 %v583, %v582
      %v628 = vpack.c.b16 %v585, %v584
      %v629 = vpack.c.b16 %v587, %v586
      %v630 = vpack.c.b16 %v589, %v588
      %v631 = vpack.c.b16 %v591, %v590
      %v632 = vpack.c.b16 %v593, %v592
      %v633 = vpack.c.b16 %v595, %v594
      %v634 = vpack.c.b16 %v597, %v596
      %v635 = vpack.c.b16 %v599, %v598
      %v676 = vunpack.c.l.b16 %v448
      %v677 = vunpack.c.l.b16 %v449
      %v678 = vunpack.c.l.b16 %v450
      %v679 = vunpack.c.l.b16 %v451
      %v680 = vpack.c.b16 %v677, %v676
      %v681 = vpack.c.b16 %v679, %v678
      %v688 = vunpack.c.l.b16 %v452
      %v689 = vunpack.c.l.b16 %v453
      %v690 = vunpack.c.l.b16 %v454
      %v691 = vunpack.c.l.b16 %v455
      %v692 = vpack.c.b16 %v689, %v688
      %v693 = vpack.c.b16 %v691, %v690
      %s696 = scalar_lea.vmem %s2, 192
      %v697 = vld [vmem:[%s696] sm:$0xf]
      %v698 = vld [vmem:[%s696 + $0x4] sm:$0xf]
      %v699 = vld [vmem:[%s696 + $0x8] sm:$0xf]
      %v700 = vld [vmem:[%s696 + $0xc] sm:$0xf]
      %v701 = vld [vmem:[%s696 + $0x10] sm:$0xf]
      %v702 = vld [vmem:[%s696 + $0x14] sm:$0xf]
      %v703 = vld [vmem:[%s696 + $0x18] sm:$0xf]
      %v704 = vld [vmem:[%s696 + $0x1c] sm:$0xf]
      %v705 = vld [vmem:[%s696 + $0x20] sm:$0xf]
      %v706 = vld [vmem:[%s696 + $0x24] sm:$0xf]
      %v707 = vld [vmem:[%s696 + $0x28] sm:$0xf]
      %v708 = vld [vmem:[%s696 + $0x2c] sm:$0xf]
      %v709 = vld [vmem:[%s696 + $0x30] sm:$0xf]
      %v710 = vld [vmem:[%s696 + $0x34] sm:$0xf]
      %v711 = vld [vmem:[%s696 + $0x38] sm:$0xf]
      %v712 = vld [vmem:[%s696 + $0x3c] sm:$0xf]
      %v713 = vld [vmem:[%s696 + $0x40] sm:$0xf]
      %v714 = vld [vmem:[%s696 + $0x44] sm:$0xf]
      %v715 = vld [vmem:[%s696 + $0x48] sm:$0xf]
      %v716 = vld [vmem:[%s696 + $0x4c] sm:$0xf]
      %v717 = vld [vmem:[%s696 + $0x50] sm:$0xf]
      %v718 = vld [vmem:[%s696 + $0x54] sm:$0xf]
      %v719 = vld [vmem:[%s696 + $0x58] sm:$0xf]
      %v720 = vld [vmem:[%s696 + $0x5c] sm:$0xf]
      %v721 = vld [vmem:[%s696 + $0x60] sm:$0xf]
      %v722 = vld [vmem:[%s696 + $0x64] sm:$0xf]
      %v723 = vld [vmem:[%s696 + $0x68] sm:$0xf]
      %v724 = vld [vmem:[%s696 + $0x6c] sm:$0xf]
      %v725 = vld [vmem:[%s696 + $0x70] sm:$0xf]
      %v726 = vld [vmem:[%s696 + $0x74] sm:$0xf]
      %v727 = vld [vmem:[%s696 + $0x78] sm:$0xf]
      %v728 = vld [vmem:[%s696 + $0x7c] sm:$0xf]
      %v729 = vld [vmem:[%s696 + $0x80] sm:$0xf]
      %v730 = vld [vmem:[%s696 + $0x84] sm:$0xf]
      %v731 = vld [vmem:[%s696 + $0x88] sm:$0xf]
      %v732 = vld [vmem:[%s696 + $0x8c] sm:$0xf]
      %v733 = vld [vmem:[%s696 + $0x90] sm:$0xf]
      %v734 = vld [vmem:[%s696 + $0x94] sm:$0xf]
      %v735 = vld [vmem:[%s696 + $0x98] sm:$0xf]
      %v736 = vld [vmem:[%s696 + $0x9c] sm:$0xf]
      %v737 = vld [vmem:[%s696 + $0xa0] sm:$0xf]
      %v738 = vld [vmem:[%s696 + $0xa4] sm:$0xf]
      %v739 = vld [vmem:[%s696 + $0xa8] sm:$0xf]
      %v740 = vld [vmem:[%s696 + $0xac] sm:$0xf]
      %v741 = vld [vmem:[%s696 + $0xb0] sm:$0xf]
      %v742 = vld [vmem:[%s696 + $0xb4] sm:$0xf]
      %v743 = vld [vmem:[%s696 + $0xb8] sm:$0xf]
      %v744 = vld [vmem:[%s696 + $0xbc] sm:$0xf]
      %v793 = vunpack.c.l.b16 %v697
      %v794 = vunpack.c.l.b16 %v698
      %v795 = vunpack.c.l.b16 %v699
      %v796 = vunpack.c.l.b16 %v700
      %v797 = vunpack.c.l.b16 %v701
      %v798 = vunpack.c.l.b16 %v702
      %v799 = vunpack.c.l.b16 %v703
      %v800 = vunpack.c.l.b16 %v704
      %v801 = vunpack.c.l.b16 %v705
      %v802 = vunpack.c.l.b16 %v706
      %v803 = vunpack.c.l.b16 %v707
      %v804 = vunpack.c.l.b16 %v708
      %v805 = vunpack.c.l.b16 %v709
      %v806 = vunpack.c.l.b16 %v710
      %v807 = vunpack.c.l.b16 %v711
      %v808 = vunpack.c.l.b16 %v712
      %v809 = vunpack.c.l.b16 %v713
      %v810 = vunpack.c.l.b16 %v714
      %v811 = vunpack.c.l.b16 %v715
      %v812 = vunpack.c.l.b16 %v716
      %v813 = vunpack.c.l.b16 %v717
      %v814 = vunpack.c.l.b16 %v718
      %v815 = vunpack.c.l.b16 %v719
      %v816 = vunpack.c.l.b16 %v720
      %v817 = vunpack.c.l.b16 %v721
      %v818 = vunpack.c.l.b16 %v722
      %v819 = vunpack.c.l.b16 %v723
      %v820 = vunpack.c.l.b16 %v724
      %v821 = vunpack.c.l.b16 %v725
      %v822 = vunpack.c.l.b16 %v726
      %v823 = vunpack.c.l.b16 %v727
      %v824 = vunpack.c.l.b16 %v728
      %v825 = vunpack.c.l.b16 %v729
      %v826 = vunpack.c.l.b16 %v730
      %v827 = vunpack.c.l.b16 %v731
      %v828 = vunpack.c.l.b16 %v732
      %v829 = vunpack.c.l.b16 %v733
      %v830 = vunpack.c.l.b16 %v734
      %v831 = vunpack.c.l.b16 %v735
      %v832 = vunpack.c.l.b16 %v736
      %v833 = vunpack.c.l.b16 %v737
      %v834 = vunpack.c.l.b16 %v738
      %v835 = vunpack.c.l.b16 %v739
      %v836 = vunpack.c.l.b16 %v740
      %v837 = vunpack.c.l.b16 %v741
      %v838 = vunpack.c.l.b16 %v742
      %v839 = vunpack.c.l.b16 %v743
      %v840 = vunpack.c.l.b16 %v744
      %v841 = vpack.c.b16 %v794, %v793
      %v842 = vpack.c.b16 %v796, %v795
      %v843 = vpack.c.b16 %v798, %v797
      %v844 = vpack.c.b16 %v800, %v799
      %v845 = vpack.c.b16 %v802, %v801
      %v846 = vpack.c.b16 %v804, %v803
      %v847 = vpack.c.b16 %v806, %v805
      %v848 = vpack.c.b16 %v808, %v807
      %v849 = vpack.c.b16 %v810, %v809
      %v850 = vpack.c.b16 %v812, %v811
      %v851 = vpack.c.b16 %v814, %v813
      %v852 = vpack.c.b16 %v816, %v815
      %v853 = vpack.c.b16 %v818, %v817
      %v854 = vpack.c.b16 %v820, %v819
      %v855 = vpack.c.b16 %v822, %v821
      %v856 = vpack.c.b16 %v824, %v823
      %v857 = vpack.c.b16 %v826, %v825
      %v858 = vpack.c.b16 %v828, %v827
      %v859 = vpack.c.b16 %v830, %v829
      %v860 = vpack.c.b16 %v832, %v831
      %v861 = vpack.c.b16 %v834, %v833
      %v862 = vpack.c.b16 %v836, %v835
      %v863 = vpack.c.b16 %v838, %v837
      %v864 = vpack.c.b16 %v840, %v839
      %889 = vmatprep.subr.bf16.mxu0 0
      %890 = vmatpush1.bf16.msra.mxu0 %v841
      %891 = vmatprep.subr.bf16.mxu0 0
      %892 = vmatpush1.bf16.msra.mxu0 %v842
      %893 = vmatprep.subr.bf16.mxu0 0
      %894 = vmatpush1.bf16.msra.mxu0 %v843
      %895 = vmatprep.subr.bf16.mxu0 0
      %896 = vmatpush1.bf16.msra.mxu0 %v844
      %897 = vmatprep.subr.bf16.mxu0 0
      %898 = vmatpush1.bf16.msra.mxu0 %v845
      %899 = vmatprep.subr.bf16.mxu0 0
      %900 = vmatpush1.bf16.msra.mxu0 %v846
      %901 = vmatprep.subr.bf16.mxu0 0
      %902 = vmatpush1.bf16.msra.mxu0 %v847
      %903 = vmatprep.subr.bf16.mxu0 0
      %904 = vmatpush1.bf16.msra.mxu0 %v848
      %905 = vmatprep.subr.bf16.mxu0 0
      %906 = vmatpush1.bf16.msra.mxu0 %v849
      %907 = vmatprep.subr.bf16.mxu0 0
      %908 = vmatpush1.bf16.msra.mxu0 %v850
      %909 = vmatprep.subr.bf16.mxu0 0
      %910 = vmatpush1.bf16.msra.mxu0 %v851
      %911 = vmatprep.subr.bf16.mxu0 0
      %912 = vmatpush1.bf16.msra.mxu0 %v852
      %913 = vmatprep.subr.bf16.mxu0 0
      %914 = vmatpush1.bf16.msra.mxu0 %v853
      %915 = vmatprep.subr.bf16.mxu0 0
      %916 = vmatpush1.bf16.msra.mxu0 %v854
      %917 = vmatprep.subr.bf16.mxu0 0
      %918 = vmatpush1.bf16.msra.mxu0 %v855
      %919 = vmatprep.subr.bf16.mxu0 0
      %920 = vmatpush1.bf16.msra.mxu0 %v856
      %921 = vmatprep.mubr.bf16.mxu0 %v602
      %922 = vmatmul.mubr.bf16.gmra.mrb[0].mxu0 %v600
      %v923 = vpop.f32.mrb[0].mxu0
      %v924 = vadd.f32 0.0, %v923
      %v925 = vpop.f32.mrb[0].mxu0
      %v926 = vpop.f32.mrb[0].mxu0
      %v927 = vadd.f32 0.0, %v926
      %v928 = vpop.f32.mrb[0].mxu0
      %929 = vmatprep.mubr.bf16.mxu0 %v603
      %930 = vmatmul.mubr.bf16.gmra.mrb[0].mxu0 %v601
      %v931 = vpop.f32.mrb[0].mxu0
      %v932 = vadd.f32 0.0, %v931
      %v933 = vpop.f32.mrb[0].mxu0
      %v934 = vpop.f32.mrb[0].mxu0
      %v935 = vadd.f32 0.0, %v934
      %v936 = vpop.f32.mrb[0].mxu0
      %937 = vmatprep.mubr.bf16.mxu0 %v604
      %938 = vmatmul.mubr.bf16.gmra.mrb[0].mxu0 %v602
      %v939 = vpop.f32.mrb[0].mxu0
      %v940 = vadd.f32 0.0, %v939
      %v941 = vpop.f32.mrb[0].mxu0
      %v942 = vpop.f32.mrb[0].mxu0
      %v943 = vadd.f32 0.0, %v942
      %v944 = vpop.f32.mrb[0].mxu0
      %945 = vmatprep.mubr.bf16.mxu0 %v605
      %946 = vmatmul.mubr.bf16.gmra.mrb[0].mxu0 %v603
      %v947 = vpop.f32.mrb[0].mxu0
      %v948 = vadd.f32 0.0, %v947
      %v949 = vpop.f32.mrb[0].mxu0
      %v950 = vpop.f32.mrb[0].mxu0
      %v951 = vadd.f32 0.0, %v950
      %v952 = vpop.f32.mrb[0].mxu0
      %953 = vmatprep.mubr.bf16.mxu0 %v606
      %954 = vmatmul.mubr.bf16.gmra.mrb[0].mxu0 %v604
      %v955 = vpop.f32.mrb[0].mxu0
      %v956 = vadd.f32 0.0, %v955
      %v957 = vpop.f32.mrb[0].mxu0
      %v958 = vpop.f32.mrb[0].mxu0
      %v959 = vadd.f32 0.0, %v958
      %v960 = vpop.f32.mrb[0].mxu0
      %961 = vmatprep.mubr.bf16.mxu0 %v607
      %962 = vmatmul.mubr.bf16.gmra.mrb[0].mxu0 %v605
      %v963 = vpop.f32.mrb[0].mxu0
      %v964 = vadd.f32 0.0, %v963
      %v965 = vpop.f32.mrb[0].mxu0
      %v966 = vpop.f32.mrb[0].mxu0
      %v967 = vadd.f32 0.0, %v966
      %v968 = vpop.f32.mrb[0].mxu0
      %969 = vmatprep.mubr.bf16.mxu0 %v608
      %970 = vmatmul.mubr.bf16.gmra.mrb[0].mxu0 %v606
      %v971 = vpop.f32.mrb[0].mxu0
      %v972 = vadd.f32 0.0, %v971
      %v973 = vpop.f32.mrb[0].mxu0
      %v974 = vpop.f32.mrb[0].mxu0
      %v975 = vadd.f32 0.0, %v974
      %v976 = vpop.f32.mrb[0].mxu0
      %977 = vmatprep.mubr.bf16.mxu0 %v609
      %978 = vmatmul.mubr.bf16.gmra.mrb[0].mxu0 %v607
      %v979 = vpop.f32.mrb[0].mxu0
      %v980 = vadd.f32 0.0, %v979
      %v981 = vpop.f32.mrb[0].mxu0
      %v982 = vpop.f32.mrb[0].mxu0
      %v983 = vadd.f32 0.0, %v982
      %v984 = vpop.f32.mrb[0].mxu0
      %985 = vmatprep.mubr.bf16.mxu0 %v610
      %986 = vmatmul.mubr.bf16.gmra.mrb[0].mxu0 %v608
      %v987 = vpop.f32.mrb[0].mxu0
      %v988 = vadd.f32 0.0, %v987
      %v989 = vpop.f32.mrb[0].mxu0
      %v990 = vpop.f32.mrb[0].mxu0
      %v991 = vadd.f32 0.0, %v990
      %v992 = vpop.f32.mrb[0].mxu0
      %993 = vmatprep.mubr.bf16.mxu0 %v611
      %994 = vmatmul.mubr.bf16.gmra.mrb[0].mxu0 %v609
      %v995 = vpop.f32.mrb[0].mxu0
      %v996 = vadd.f32 0.0, %v995
      %v997 = vpop.f32.mrb[0].mxu0
      %v998 = vpop.f32.mrb[0].mxu0
      %v999 = vadd.f32 0.0, %v998
      %v1000 = vpop.f32.mrb[0].mxu0
      %1001 = vmatprep.mubr.bf16.mxu0 %v612
      %1002 = vmatmul.mubr.bf16.gmra.mrb[0].mxu0 %v610
      %v1003 = vpop.f32.mrb[0].mxu0
      %v1004 = vadd.f32 0.0, %v1003
      %v1005 = vpop.f32.mrb[0].mxu0
      %v1006 = vpop.f32.mrb[0].mxu0
      %v1007 = vadd.f32 0.0, %v1006
      %v1008 = vpop.f32.mrb[0].mxu0
      %1009 = vmatprep.mubr.bf16.mxu0 %v613
      %1010 = vmatmul.mubr.bf16.gmra.mrb[0].mxu0 %v611
      %v1011 = vpop.f32.mrb[0].mxu0
      %v1012 = vadd.f32 0.0, %v1011
      %v1013 = vpop.f32.mrb[0].mxu0
      %v1014 = vpop.f32.mrb[0].mxu0
      %v1015 = vadd.f32 0.0, %v1014
      %v1016 = vpop.f32.mrb[0].mxu0
      %1017 = vmatprep.mubr.bf16.mxu0 %v614
      %1018 = vmatmul.mubr.bf16.gmra.mrb[0].mxu0 %v612
      %v1019 = vpop.f32.mrb[0].mxu0
      %v1020 = vadd.f32 0.0, %v1019
      %v1021 = vpop.f32.mrb[0].mxu0
      %v1022 = vpop.f32.mrb[0].mxu0
      %v1023 = vadd.f32 0.0, %v1022
      %v1024 = vpop.f32.mrb[0].mxu0
      %1025 = vmatprep.mubr.bf16.mxu0 %v615
      %1026 = vmatmul.mubr.bf16.gmra.mrb[0].mxu0 %v613
      %v1027 = vpop.f32.mrb[0].mxu0
      %v1028 = vadd.f32 0.0, %v1027
      %v1029 = vpop.f32.mrb[0].mxu0
      %v1030 = vpop.f32.mrb[0].mxu0
      %v1031 = vadd.f32 0.0, %v1030
      %v1032 = vpop.f32.mrb[0].mxu0
      %1033 = vmatprep.mubr.bf16.mxu0 %v616
      %1034 = vmatmul.mubr.bf16.gmra.mrb[0].mxu0 %v614
      %v1035 = vpop.f32.mrb[0].mxu0
      %v1036 = vadd.f32 0.0, %v1035
      %v1037 = vpop.f32.mrb[0].mxu0
      %v1038 = vpop.f32.mrb[0].mxu0
      %v1039 = vadd.f32 0.0, %v1038
      %v1040 = vpop.f32.mrb[0].mxu0
      %1041 = vmatprep.mubr.bf16.mxu0 %v617
      %1042 = vmatmul.mubr.bf16.gmra.mrb[0].mxu0 %v615
      %v1043 = vpop.f32.mrb[0].mxu0
      %v1044 = vadd.f32 0.0, %v1043
      %v1045 = vpop.f32.mrb[0].mxu0
      %v1046 = vpop.f32.mrb[0].mxu0
      %v1047 = vadd.f32 0.0, %v1046
      %v1048 = vpop.f32.mrb[0].mxu0
      %1049 = vmatprep.mubr.bf16.mxu0 %v618
      %1050 = vmatmul.mubr.bf16.gmra.mrb[0].mxu0 %v616
      %v1051 = vpop.f32.mrb[0].mxu0
      %v1052 = vadd.f32 0.0, %v1051
      %v1053 = vpop.f32.mrb[0].mxu0
      %v1054 = vpop.f32.mrb[0].mxu0
      %v1055 = vadd.f32 0.0, %v1054
      %v1056 = vpop.f32.mrb[0].mxu0
      %1057 = vmatprep.mubr.bf16.mxu0 %v619
      %1058 = vmatmul.mubr.bf16.gmra.mrb[0].mxu0 %v617
      %v1059 = vpop.f32.mrb[0].mxu0
      %v1060 = vadd.f32 0.0, %v1059
      %v1061 = vpop.f32.mrb[0].mxu0
      %v1062 = vpop.f32.mrb[0].mxu0
      %v1063 = vadd.f32 0.0, %v1062
      %v1064 = vpop.f32.mrb[0].mxu0
      %1065 = vmatprep.mubr.bf16.mxu0 %v620
      %1066 = vmatmul.mubr.bf16.gmra.mrb[0].mxu0 %v618
      %v1067 = vpop.f32.mrb[0].mxu0
      %v1068 = vadd.f32 0.0, %v1067
      %v1069 = vpop.f32.mrb[0].mxu0
      %v1070 = vpop.f32.mrb[0].mxu0
      %v1071 = vadd.f32 0.0, %v1070
      %v1072 = vpop.f32.mrb[0].mxu0
      %1073 = vmatprep.mubr.bf16.mxu0 %v621
      %1074 = vmatmul.mubr.bf16.gmra.mrb[0].mxu0 %v619
      %v1075 = vpop.f32.mrb[0].mxu0
      %v1076 = vadd.f32 0.0, %v1075
      %v1077 = vpop.f32.mrb[0].mxu0
      %v1078 = vpop.f32.mrb[0].mxu0
      %v1079 = vadd.f32 0.0, %v1078
      %v1080 = vpop.f32.mrb[0].mxu0
      %1081 = vmatprep.mubr.bf16.mxu0 %v622
      %1082 = vmatmul.mubr.bf16.gmra.mrb[0].mxu0 %v620
      %v1083 = vpop.f32.mrb[0].mxu0
      %v1084 = vadd.f32 0.0, %v1083
      %v1085 = vpop.f32.mrb[0].mxu0
      %v1086 = vpop.f32.mrb[0].mxu0
      %v1087 = vadd.f32 0.0, %v1086
      %v1088 = vpop.f32.mrb[0].mxu0
      %1089 = vmatprep.mubr.bf16.mxu0 %v623
      %1090 = vmatmul.mubr.bf16.gmra.mrb[0].mxu0 %v621
      %v1091 = vpop.f32.mrb[0].mxu0
      %v1092 = vadd.f32 0.0, %v1091
      %v1093 = vpop.f32.mrb[0].mxu0
      %v1094 = vpop.f32.mrb[0].mxu0
      %v1095 = vadd.f32 0.0, %v1094
      %v1096 = vpop.f32.mrb[0].mxu0
      %1097 = vmatprep.mubr.bf16.mxu0 %v624
      %1098 = vmatmul.mubr.bf16.gmra.mrb[0].mxu0 %v622
      %v1099 = vpop.f32.mrb[0].mxu0
      %v1100 = vadd.f32 0.0, %v1099
      %v1101 = vpop.f32.mrb[0].mxu0
      %v1102 = vpop.f32.mrb[0].mxu0
      %v1103 = vadd.f32 0.0, %v1102
      %v1104 = vpop.f32.mrb[0].mxu0
      %1105 = vmatprep.mubr.bf16.mxu0 %v625
      %1106 = vmatmul.mubr.bf16.gmra.mrb[0].mxu0 %v623
      %v1107 = vpop.f32.mrb[0].mxu0
      %v1108 = vadd.f32 0.0, %v1107
      %v1109 = vpop.f32.mrb[0].mxu0
      %v1110 = vpop.f32.mrb[0].mxu0
      %v1111 = vadd.f32 0.0, %v1110
      %v1112 = vpop.f32.mrb[0].mxu0
      %1113 = vmatprep.mubr.bf16.mxu0 %v626
      %1114 = vmatmul.mubr.bf16.gmra.mrb[0].mxu0 %v624
      %v1115 = vpop.f32.mrb[0].mxu0
      %v1116 = vadd.f32 0.0, %v1115
      %v1117 = vpop.f32.mrb[0].mxu0
      %v1118 = vpop.f32.mrb[0].mxu0
      %v1119 = vadd.f32 0.0, %v1118
      %v1120 = vpop.f32.mrb[0].mxu0
      %1121 = vmatprep.mubr.bf16.mxu0 %v627
      %1122 = vmatmul.mubr.bf16.gmra.mrb[0].mxu0 %v625
      %v1123 = vpop.f32.mrb[0].mxu0
      %v1124 = vadd.f32 0.0, %v1123
      %v1125 = vpop.f32.mrb[0].mxu0
      %v1126 = vpop.f32.mrb[0].mxu0
      %v1127 = vadd.f32 0.0, %v1126
      %v1128 = vpop.f32.mrb[0].mxu0
      %1129 = vmatprep.mubr.bf16.mxu0 %v628
      %1130 = vmatmul.mubr.bf16.gmra.mrb[0].mxu0 %v626
      %v1131 = vpop.f32.mrb[0].mxu0
      %v1132 = vadd.f32 0.0, %v1131
      %v1133 = vpop.f32.mrb[0].mxu0
      %v1134 = vpop.f32.mrb[0].mxu0
      %v1135 = vadd.f32 0.0, %v1134
      %v1136 = vpop.f32.mrb[0].mxu0
      %1137 = vmatprep.mubr.bf16.mxu0 %v629
      %1138 = vmatmul.mubr.bf16.gmra.mrb[0].mxu0 %v627
      %v1139 = vpop.f32.mrb[0].mxu0
      %v1140 = vadd.f32 0.0, %v1139
      %v1141 = vpop.f32.mrb[0].mxu0
      %v1142 = vpop.f32.mrb[0].mxu0
      %v1143 = vadd.f32 0.0, %v1142
      %v1144 = vpop.f32.mrb[0].mxu0
      %1145 = vmatprep.mubr.bf16.mxu0 %v630
      %1146 = vmatmul.mubr.bf16.gmra.mrb[0].mxu0 %v628
      %v1147 = vpop.f32.mrb[0].mxu0
      %v1148 = vadd.f32 0.0, %v1147
      %v1149 = vpop.f32.mrb[0].mxu0
      %v1150 = vpop.f32.mrb[0].mxu0
      %v1151 = vadd.f32 0.0, %v1150
      %v1152 = vpop.f32.mrb[0].mxu0
      %1153 = vmatprep.mubr.bf16.mxu0 %v631
      %1154 = vmatmul.mubr.bf16.gmra.mrb[0].mxu0 %v629
      %v1155 = vpop.f32.mrb[0].mxu0
      %v1156 = vadd.f32 0.0, %v1155
      %v1157 = vpop.f32.mrb[0].mxu0
      %v1158 = vpop.f32.mrb[0].mxu0
      %v1159 = vadd.f32 0.0, %v1158
      %v1160 = vpop.f32.mrb[0].mxu0
      %1161 = vmatprep.mubr.bf16.mxu0 %v632
      %1162 = vmatmul.mubr.bf16.gmra.mrb[0].mxu0 %v630
      %v1163 = vpop.f32.mrb[0].mxu0
      %v1164 = vadd.f32 0.0, %v1163
      %v1165 = vpop.f32.mrb[0].mxu0
      %v1166 = vpop.f32.mrb[0].mxu0
      %v1167 = vadd.f32 0.0, %v1166
      %v1168 = vpop.f32.mrb[0].mxu0
      %1169 = vmatprep.mubr.bf16.mxu0 %v633
      %1170 = vmatmul.mubr.bf16.gmra.mrb[0].mxu0 %v631
      %v1171 = vpop.f32.mrb[0].mxu0
      %v1172 = vadd.f32 0.0, %v1171
      %v1173 = vpop.f32.mrb[0].mxu0
      %v1174 = vpop.f32.mrb[0].mxu0
      %v1175 = vadd.f32 0.0, %v1174
      %v1176 = vpop.f32.mrb[0].mxu0
      %1177 = vmatprep.mubr.bf16.mxu0 %v634
      %1178 = vmatmul.mubr.bf16.gmra.mrb[0].mxu0 %v632
      %v1179 = vpop.f32.mrb[0].mxu0
      %v1180 = vadd.f32 0.0, %v1179
      %v1181 = vpop.f32.mrb[0].mxu0
      %v1182 = vpop.f32.mrb[0].mxu0
      %v1183 = vadd.f32 0.0, %v1182
      %v1184 = vpop.f32.mrb[0].mxu0
      %1185 = vmatprep.mubr.bf16.mxu0 %v635
      %1186 = vmatmul.mubr.bf16.gmra.mrb[0].mxu0 %v633
      %v1187 = vpop.f32.mrb[0].mxu0
      %v1188 = vadd.f32 0.0, %v1187
      %v1189 = vpop.f32.mrb[0].mxu0
      %v1190 = vpop.f32.mrb[0].mxu0
      %v1191 = vadd.f32 0.0, %v1190
      %v1192 = vpop.f32.mrb[0].mxu0
      %1193 = vmatprep.mubr.bf16.mxu0 %v680
      %1194 = vmatmul.mubr.bf16.gmra.mrb[0].mxu0 %v634
      %v1195 = vpop.f32.mrb[0].mxu0
      %v1196 = vadd.f32 0.0, %v1195
      %v1197 = vpop.f32.mrb[0].mxu0
      %v1198 = vpop.f32.mrb[0].mxu0
      %v1199 = vadd.f32 0.0, %v1198
      %v1200 = vpop.f32.mrb[0].mxu0
      %1201 = vmatprep.mubr.bf16.mxu0 %v681
      %1202 = vmatmul.mubr.bf16.gmra.mrb[0].mxu0 %v635
      %v1203 = vpop.f32.mrb[0].mxu0
      %v1204 = vadd.f32 0.0, %v1203
      %v1205 = vpop.f32.mrb[0].mxu0
      %v1206 = vpop.f32.mrb[0].mxu0
      %v1207 = vadd.f32 0.0, %v1206
      %v1208 = vpop.f32.mrb[0].mxu0
      %1209 = vdwg.mxu0
      %1210 = vmatprep.subr.bf16.mxu0 0
      %1211 = vmatpush1.bf16.msra.mxu0 %v857
      %1212 = vmatprep.subr.bf16.mxu0 0
      %1213 = vmatpush1.bf16.msra.mxu0 %v858
      %1214 = vmatprep.subr.bf16.mxu0 0
      %1215 = vmatpush1.bf16.msra.mxu0 %v859
      %1216 = vmatprep.subr.bf16.mxu0 0
      %1217 = vmatpush1.bf16.msra.mxu0 %v860
      %1218 = vmatprep.subr.bf16.mxu0 0
      %1219 = vmatpush1.bf16.msra.mxu0 %v861
      %1220 = vmatprep.subr.bf16.mxu0 0
      %1221 = vmatpush1.bf16.msra.mxu0 %v862
      %1222 = vmatprep.subr.bf16.mxu0 0
      %1223 = vmatpush1.bf16.msra.mxu0 %v863
      %1224 = vmatprep.subr.bf16.mxu0 0
      %1225 = vmatpush1.bf16.msra.mxu0 %v864
      %1226 = vmatprep.subr.bf16.mxu0 0
      %1227 = vmatpush1.bf16.msra.mxu0 0
      %1228 = vmatprep.subr.bf16.mxu0 0
      %1229 = vmatpush1.bf16.msra.mxu0 0
      %1230 = vmatprep.subr.bf16.mxu0 0
      %1231 = vmatpush1.bf16.msra.mxu0 0
      %1232 = vmatprep.subr.bf16.mxu0 0
      %1233 = vmatpush1.bf16.msra.mxu0 0
      %1234 = vmatprep.subr.bf16.mxu0 0
      %1235 = vmatpush1.bf16.msra.mxu0 0
      %1236 = vmatprep.subr.bf16.mxu0 0
      %1237 = vmatpush1.bf16.msra.mxu0 0
      %1238 = vmatprep.subr.bf16.mxu0 0
      %1239 = vmatpush1.bf16.msra.mxu0 0
      %1240 = vmatprep.subr.bf16.mxu0 0
      %1241 = vmatpush1.bf16.msra.mxu0 0
      %1242 = vmatprep.mubr.bf16.mxu0 0
      %1243 = vmatmul.mubr.bf16.gmra.mrb[0].mxu0 %v604
      %v1244 = vpop.f32.mrb[0].mxu0
      %v1245 = vadd.f32 %v924, %v1244
      %v1246 = vpop.f32.mrb[0].mxu0
      %v1247 = vpop.f32.mrb[0].mxu0
      %v1248 = vadd.f32 %v927, %v1247
      %v1249 = vpop.f32.mrb[0].mxu0
      %1250 = vmatprep.mubr.bf16.mxu0 0
      %1251 = vmatmul.mubr.bf16.gmra.mrb[0].mxu0 %v605
      %v1252 = vpop.f32.mrb[0].mxu0
      %v1253 = vadd.f32 %v932, %v1252
      %v1254 = vpop.f32.mrb[0].mxu0
      %v1255 = vpop.f32.mrb[0].mxu0
      %v1256 = vadd.f32 %v935, %v1255
      %v1257 = vpop.f32.mrb[0].mxu0
      %1258 = vmatprep.mubr.bf16.mxu0 0
      %1259 = vmatmul.mubr.bf16.gmra.mrb[0].mxu0 %v606
      %v1260 = vpop.f32.mrb[0].mxu0
      %v1261 = vadd.f32 %v940, %v1260
      %v1262 = vpop.f32.mrb[0].mxu0
      %v1263 = vpop.f32.mrb[0].mxu0
      %v1264 = vadd.f32 %v943, %v1263
      %v1265 = vpop.f32.mrb[0].mxu0
      %1266 = vmatprep.mubr.bf16.mxu0 0
      %1267 = vmatmul.mubr.bf16.gmra.mrb[0].mxu0 %v607
      %v1268 = vpop.f32.mrb[0].mxu0
      %v1269 = vadd.f32 %v948, %v1268
      %v1270 = vpop.f32.mrb[0].mxu0
      %v1271 = vpop.f32.mrb[0].mxu0
      %v1272 = vadd.f32 %v951, %v1271
      %v1273 = vpop.f32.mrb[0].mxu0
      %1274 = vmatprep.mubr.bf16.mxu0 0
      %1275 = vmatmul.mubr.bf16.gmra.mrb[0].mxu0 %v608
      %v1276 = vpop.f32.mrb[0].mxu0
      %v1277 = vadd.f32 %v956, %v1276
      %v1278 = vpop.f32.mrb[0].mxu0
      %v1279 = vpop.f32.mrb[0].mxu0
      %v1280 = vadd.f32 %v959, %v1279
      %v1281 = vpop.f32.mrb[0].mxu0
      %1282 = vmatprep.mubr.bf16.mxu0 0
      %1283 = vmatmul.mubr.bf16.gmra.mrb[0].mxu0 %v609
      %v1284 = vpop.f32.mrb[0].mxu0
      %v1285 = vadd.f32 %v964, %v1284
      %v1286 = vpop.f32.mrb[0].mxu0
      %v1287 = vpop.f32.mrb[0].mxu0
      %v1288 = vadd.f32 %v967, %v1287
      %v1289 = vpop.f32.mrb[0].mxu0
      %1290 = vmatprep.mubr.bf16.mxu0 0
      %1291 = vmatmul.mubr.bf16.gmra.mrb[0].mxu0 %v610
      %v1292 = vpop.f32.mrb[0].mxu0
      %v1293 = vadd.f32 %v972, %v1292
      %v1294 = vpop.f32.mrb[0].mxu0
      %v1295 = vpop.f32.mrb[0].mxu0
      %v1296 = vadd.f32 %v975, %v1295
      %v1297 = vpop.f32.mrb[0].mxu0
      %1298 = vmatprep.mubr.bf16.mxu0 0
      %1299 = vmatmul.mubr.bf16.gmra.mrb[0].mxu0 %v611
      %v1300 = vpop.f32.mrb[0].mxu0
      %v1301 = vadd.f32 %v980, %v1300
      %v1302 = vpop.f32.mrb[0].mxu0
      %v1303 = vpop.f32.mrb[0].mxu0
      %v1304 = vadd.f32 %v983, %v1303
      %v1305 = vpop.f32.mrb[0].mxu0
      %1306 = vmatprep.mubr.bf16.mxu0 0
      %1307 = vmatmul.mubr.bf16.gmra.mrb[0].mxu0 %v612
      %v1308 = vpop.f32.mrb[0].mxu0
      %v1309 = vadd.f32 %v988, %v1308
      %v1310 = vpop.f32.mrb[0].mxu0
      %v1311 = vpop.f32.mrb[0].mxu0
      %v1312 = vadd.f32 %v991, %v1311
      %v1313 = vpop.f32.mrb[0].mxu0
      %1314 = vmatprep.mubr.bf16.mxu0 0
      %1315 = vmatmul.mubr.bf16.gmra.mrb[0].mxu0 %v613
      %v1316 = vpop.f32.mrb[0].mxu0
      %v1317 = vadd.f32 %v996, %v1316
      %v1318 = vpop.f32.mrb[0].mxu0
      %v1319 = vpop.f32.mrb[0].mxu0
      %v1320 = vadd.f32 %v999, %v1319
      %v1321 = vpop.f32.mrb[0].mxu0
      %1322 = vmatprep.mubr.bf16.mxu0 0
      %1323 = vmatmul.mubr.bf16.gmra.mrb[0].mxu0 %v614
      %v1324 = vpop.f32.mrb[0].mxu0
      %v1325 = vadd.f32 %v1004, %v1324
      %v1326 = vpop.f32.mrb[0].mxu0
      %v1327 = vpop.f32.mrb[0].mxu0
      %v1328 = vadd.f32 %v1007, %v1327
      %v1329 = vpop.f32.mrb[0].mxu0
      %1330 = vmatprep.mubr.bf16.mxu0 0
      %1331 = vmatmul.mubr.bf16.gmra.mrb[0].mxu0 %v615
      %v1332 = vpop.f32.mrb[0].mxu0
      %v1333 = vadd.f32 %v1012, %v1332
      %v1334 = vpop.f32.mrb[0].mxu0
      %v1335 = vpop.f32.mrb[0].mxu0
      %v1336 = vadd.f32 %v1015, %v1335
      %v1337 = vpop.f32.mrb[0].mxu0
      %1338 = vmatprep.mubr.bf16.mxu0 0
      %1339 = vmatmul.mubr.bf16.gmra.mrb[0].mxu0 %v616
      %v1340 = vpop.f32.mrb[0].mxu0
      %v1341 = vadd.f32 %v1020, %v1340
      %v1342 = vpop.f32.mrb[0].mxu0
      %v1343 = vpop.f32.mrb[0].mxu0
      %v1344 = vadd.f32 %v1023, %v1343
      %v1345 = vpop.f32.mrb[0].mxu0
      %1346 = vmatprep.mubr.bf16.mxu0 0
      %1347 = vmatmul.mubr.bf16.gmra.mrb[0].mxu0 %v617
      %v1348 = vpop.f32.mrb[0].mxu0
      %v1349 = vadd.f32 %v1028, %v1348
      %v1350 = vpop.f32.mrb[0].mxu0
      %v1351 = vpop.f32.mrb[0].mxu0
      %v1352 = vadd.f32 %v1031, %v1351
      %v1353 = vpop.f32.mrb[0].mxu0
      %1354 = vmatprep.mubr.bf16.mxu0 0
      %1355 = vmatmul.mubr.bf16.gmra.mrb[0].mxu0 %v618
      %v1356 = vpop.f32.mrb[0].mxu0
      %v1357 = vadd.f32 %v1036, %v1356
      %v1358 = vpop.f32.mrb[0].mxu0
      %v1359 = vpop.f32.mrb[0].mxu0
      %v1360 = vadd.f32 %v1039, %v1359
      %v1361 = vpop.f32.mrb[0].mxu0
      %1362 = vmatprep.mubr.bf16.mxu0 0
      %1363 = vmatmul.mubr.bf16.gmra.mrb[0].mxu0 %v619
      %v1364 = vpop.f32.mrb[0].mxu0
      %v1365 = vadd.f32 %v1044, %v1364
      %v1366 = vpop.f32.mrb[0].mxu0
      %v1367 = vpop.f32.mrb[0].mxu0
      %v1368 = vadd.f32 %v1047, %v1367
      %v1369 = vpop.f32.mrb[0].mxu0
      %1370 = vmatprep.mubr.bf16.mxu0 0
      %1371 = vmatmul.mubr.bf16.gmra.mrb[0].mxu0 %v620
      %v1372 = vpop.f32.mrb[0].mxu0
      %v1373 = vadd.f32 %v1052, %v1372
      %v1374 = vpop.f32.mrb[0].mxu0
      %v1375 = vpop.f32.mrb[0].mxu0
      %v1376 = vadd.f32 %v1055, %v1375
      %v1377 = vpop.f32.mrb[0].mxu0
      %1378 = vmatprep.mubr.bf16.mxu0 0
      %1379 = vmatmul.mubr.bf16.gmra.mrb[0].mxu0 %v621
      %v1380 = vpop.f32.mrb[0].mxu0
      %v1381 = vadd.f32 %v1060, %v1380
      %v1382 = vpop.f32.mrb[0].mxu0
      %v1383 = vpop.f32.mrb[0].mxu0
      %v1384 = vadd.f32 %v1063, %v1383
      %v1385 = vpop.f32.mrb[0].mxu0
      %1386 = vmatprep.mubr.bf16.mxu0 0
      %1387 = vmatmul.mubr.bf16.gmra.mrb[0].mxu0 %v622
      %v1388 = vpop.f32.mrb[0].mxu0
      %v1389 = vadd.f32 %v1068, %v1388
      %v1390 = vpop.f32.mrb[0].mxu0
      %v1391 = vpop.f32.mrb[0].mxu0
      %v1392 = vadd.f32 %v1071, %v1391
      %v1393 = vpop.f32.mrb[0].mxu0
      %1394 = vmatprep.mubr.bf16.mxu0 0
      %1395 = vmatmul.mubr.bf16.gmra.mrb[0].mxu0 %v623
      %v1396 = vpop.f32.mrb[0].mxu0
      %v1397 = vadd.f32 %v1076, %v1396
      %v1398 = vpop.f32.mrb[0].mxu0
      %v1399 = vpop.f32.mrb[0].mxu0
      %v1400 = vadd.f32 %v1079, %v1399
      %v1401 = vpop.f32.mrb[0].mxu0
      %1402 = vmatprep.mubr.bf16.mxu0 0
      %1403 = vmatmul.mubr.bf16.gmra.mrb[0].mxu0 %v624
      %v1404 = vpop.f32.mrb[0].mxu0
      %v1405 = vadd.f32 %v1084, %v1404
      %v1406 = vpop.f32.mrb[0].mxu0
      %v1407 = vpop.f32.mrb[0].mxu0
      %v1408 = vadd.f32 %v1087, %v1407
      %v1409 = vpop.f32.mrb[0].mxu0
      %1410 = vmatprep.mubr.bf16.mxu0 0
      %1411 = vmatmul.mubr.bf16.gmra.mrb[0].mxu0 %v625
      %v1412 = vpop.f32.mrb[0].mxu0
      %v1413 = vadd.f32 %v1092, %v1412
      %v1414 = vpop.f32.mrb[0].mxu0
      %v1415 = vpop.f32.mrb[0].mxu0
      %v1416 = vadd.f32 %v1095, %v1415
      %v1417 = vpop.f32.mrb[0].mxu0
      %1418 = vmatprep.mubr.bf16.mxu0 0
      %1419 = vmatmul.mubr.bf16.gmra.mrb[0].mxu0 %v626
      %v1420 = vpop.f32.mrb[0].mxu0
      %v1421 = vadd.f32 %v1100, %v1420
      %v1422 = vpop.f32.mrb[0].mxu0
      %v1423 = vpop.f32.mrb[0].mxu0
      %v1424 = vadd.f32 %v1103, %v1423
      %v1425 = vpop.f32.mrb[0].mxu0
      %1426 = vmatprep.mubr.bf16.mxu0 0
      %1427 = vmatmul.mubr.bf16.gmra.mrb[0].mxu0 %v627
      %v1428 = vpop.f32.mrb[0].mxu0
      %v1429 = vadd.f32 %v1108, %v1428
      %v1430 = vpop.f32.mrb[0].mxu0
      %v1431 = vpop.f32.mrb[0].mxu0
      %v1432 = vadd.f32 %v1111, %v1431
      %v1433 = vpop.f32.mrb[0].mxu0
      %1434 = vmatprep.mubr.bf16.mxu0 0
      %1435 = vmatmul.mubr.bf16.gmra.mrb[0].mxu0 %v628
      %v1436 = vpop.f32.mrb[0].mxu0
      %v1437 = vadd.f32 %v1116, %v1436
      %v1438 = vpop.f32.mrb[0].mxu0
      %v1439 = vpop.f32.mrb[0].mxu0
      %v1440 = vadd.f32 %v1119, %v1439
      %v1441 = vpop.f32.mrb[0].mxu0
      %1442 = vmatprep.mubr.bf16.mxu0 0
      %1443 = vmatmul.mubr.bf16.gmra.mrb[0].mxu0 %v629
      %v1444 = vpop.f32.mrb[0].mxu0
      %v1445 = vadd.f32 %v1124, %v1444
      %v1446 = vpop.f32.mrb[0].mxu0
      %v1447 = vpop.f32.mrb[0].mxu0
      %v1448 = vadd.f32 %v1127, %v1447
      %v1449 = vpop.f32.mrb[0].mxu0
      %1450 = vmatprep.mubr.bf16.mxu0 0
      %1451 = vmatmul.mubr.bf16.gmra.mrb[0].mxu0 %v630
      %v1452 = vpop.f32.mrb[0].mxu0
      %v1453 = vadd.f32 %v1132, %v1452
      %v1454 = vpop.f32.mrb[0].mxu0
      %v1455 = vpop.f32.mrb[0].mxu0
      %v1456 = vadd.f32 %v1135, %v1455
      %v1457 = vpop.f32.mrb[0].mxu0
      %1458 = vmatprep.mubr.bf16.mxu0 0
      %1459 = vmatmul.mubr.bf16.gmra.mrb[0].mxu0 %v631
      %v1460 = vpop.f32.mrb[0].mxu0
      %v1461 = vadd.f32 %v1140, %v1460
      %v1462 = vpop.f32.mrb[0].mxu0
      %v1463 = vpop.f32.mrb[0].mxu0
      %v1464 = vadd.f32 %v1143, %v1463
      %v1465 = vpop.f32.mrb[0].mxu0
      %1466 = vmatprep.mubr.bf16.mxu0 0
      %1467 = vmatmul.mubr.bf16.gmra.mrb[0].mxu0 %v632
      %v1468 = vpop.f32.mrb[0].mxu0
      %v1469 = vadd.f32 %v1148, %v1468
      %v1470 = vpop.f32.mrb[0].mxu0
      %v1471 = vpop.f32.mrb[0].mxu0
      %v1472 = vadd.f32 %v1151, %v1471
      %v1473 = vpop.f32.mrb[0].mxu0
      %1474 = vmatprep.mubr.bf16.mxu0 0
      %1475 = vmatmul.mubr.bf16.gmra.mrb[0].mxu0 %v633
      %v1476 = vpop.f32.mrb[0].mxu0
      %v1477 = vadd.f32 %v1156, %v1476
      %v1478 = vpop.f32.mrb[0].mxu0
      %v1479 = vpop.f32.mrb[0].mxu0
      %v1480 = vadd.f32 %v1159, %v1479
      %v1481 = vpop.f32.mrb[0].mxu0
      %1482 = vmatprep.mubr.bf16.mxu0 0
      %1483 = vmatmul.mubr.bf16.gmra.mrb[0].mxu0 %v634
      %v1484 = vpop.f32.mrb[0].mxu0
      %v1485 = vadd.f32 %v1164, %v1484
      %v1486 = vpop.f32.mrb[0].mxu0
      %v1487 = vpop.f32.mrb[0].mxu0
      %v1488 = vadd.f32 %v1167, %v1487
      %v1489 = vpop.f32.mrb[0].mxu0
      %1490 = vmatprep.mubr.bf16.mxu0 0
      %1491 = vmatmul.mubr.bf16.gmra.mrb[0].mxu0 %v635
      %v1492 = vpop.f32.mrb[0].mxu0
      %v1493 = vadd.f32 %v1172, %v1492
      %v1494 = vpop.f32.mrb[0].mxu0
      %v1495 = vpop.f32.mrb[0].mxu0
      %v1496 = vadd.f32 %v1175, %v1495
      %v1497 = vpop.f32.mrb[0].mxu0
      %1498 = vmatprep.mubr.bf16.mxu0 0
      %1499 = vmatmul.mubr.bf16.gmra.mrb[0].mxu0 %v680
      %v1500 = vpop.f32.mrb[0].mxu0
      %v1501 = vadd.f32 %v1180, %v1500
      %v1502 = vpop.f32.mrb[0].mxu0
      %v1503 = vpop.f32.mrb[0].mxu0
      %v1504 = vadd.f32 %v1183, %v1503
      %v1505 = vpop.f32.mrb[0].mxu0
      %1506 = vmatprep.mubr.bf16.mxu0 0
      %1507 = vmatmul.mubr.bf16.gmra.mrb[0].mxu0 %v681
      %v1508 = vpop.f32.mrb[0].mxu0
      %v1509 = vadd.f32 %v1188, %v1508
      %v1510 = vpop.f32.mrb[0].mxu0
      %v1511 = vpop.f32.mrb[0].mxu0
      %v1512 = vadd.f32 %v1191, %v1511
      %v1513 = vpop.f32.mrb[0].mxu0
      %1514 = vmatprep.mubr.bf16.mxu0 0
      %1515 = vmatmul.mubr.bf16.gmra.mrb[0].mxu0 %v692
      %v1516 = vpop.f32.mrb[0].mxu0
      %v1517 = vadd.f32 %v1196, %v1516
      %v1518 = vpop.f32.mrb[0].mxu0
      %v1519 = vpop.f32.mrb[0].mxu0
      %v1520 = vadd.f32 %v1199, %v1519
      %v1521 = vpop.f32.mrb[0].mxu0
      %1522 = vmatprep.mubr.bf16.mxu0 0
      %1523 = vmatmul.mubr.bf16.gmra.mrb[0].mxu0 %v693
      %v1524 = vpop.f32.mrb[0].mxu0
      %v1525 = vadd.f32 %v1204, %v1524
      %v1526 = vpop.f32.mrb[0].mxu0
      %v1527 = vpop.f32.mrb[0].mxu0
      %v1528 = vadd.f32 %v1207, %v1527
      %v1529 = vpop.f32.mrb[0].mxu0
      %1530 = vdwg.mxu0
      %v1531 = vld [vmem:[%s2] sm:$0xf]
      %v1532 = vld [vmem:[%s2 + $0x4] sm:$0xf]
      %v1533 = vld [vmem:[%s2 + $0x8] sm:$0xf]
      %v1534 = vld [vmem:[%s2 + $0xc] sm:$0xf]
      %v1535 = vld [vmem:[%s2 + $0x10] sm:$0xf]
      %v1536 = vld [vmem:[%s2 + $0x14] sm:$0xf]
      %v1537 = vld [vmem:[%s2 + $0x18] sm:$0xf]
      %v1538 = vld [vmem:[%s2 + $0x1c] sm:$0xf]
      %v1539 = vld [vmem:[%s2 + $0x20] sm:$0xf]
      %v1540 = vld [vmem:[%s2 + $0x24] sm:$0xf]
      %v1541 = vld [vmem:[%s2 + $0x28] sm:$0xf]
      %v1542 = vld [vmem:[%s2 + $0x2c] sm:$0xf]
      %v1543 = vld [vmem:[%s2 + $0x30] sm:$0xf]
      %v1544 = vld [vmem:[%s2 + $0x34] sm:$0xf]
      %v1545 = vld [vmem:[%s2 + $0x38] sm:$0xf]
      %v1546 = vld [vmem:[%s2 + $0x3c] sm:$0xf]
      %v1547 = vld [vmem:[%s2 + $0x40] sm:$0xf]
      %v1548 = vld [vmem:[%s2 + $0x44] sm:$0xf]
      %v1549 = vld [vmem:[%s2 + $0x48] sm:$0xf]
      %v1550 = vld [vmem:[%s2 + $0x4c] sm:$0xf]
      %v1551 = vld [vmem:[%s2 + $0x50] sm:$0xf]
      %v1552 = vld [vmem:[%s2 + $0x54] sm:$0xf]
      %v1553 = vld [vmem:[%s2 + $0x58] sm:$0xf]
      %v1554 = vld [vmem:[%s2 + $0x5c] sm:$0xf]
      %v1555 = vld [vmem:[%s2 + $0x60] sm:$0xf]
      %v1556 = vld [vmem:[%s2 + $0x64] sm:$0xf]
      %v1557 = vld [vmem:[%s2 + $0x68] sm:$0xf]
      %v1558 = vld [vmem:[%s2 + $0x6c] sm:$0xf]
      %v1559 = vld [vmem:[%s2 + $0x70] sm:$0xf]
      %v1560 = vld [vmem:[%s2 + $0x74] sm:$0xf]
      %v1561 = vld [vmem:[%s2 + $0x78] sm:$0xf]
      %v1562 = vld [vmem:[%s2 + $0x7c] sm:$0xf]
      %v1563 = vld [vmem:[%s2 + $0x80] sm:$0xf]
      %v1564 = vld [vmem:[%s2 + $0x84] sm:$0xf]
      %v1565 = vld [vmem:[%s2 + $0x88] sm:$0xf]
      %v1566 = vld [vmem:[%s2 + $0x8c] sm:$0xf]
      %v1567 = vld [vmem:[%s2 + $0x90] sm:$0xf]
      %v1568 = vld [vmem:[%s2 + $0x94] sm:$0xf]
      %v1569 = vld [vmem:[%s2 + $0x98] sm:$0xf]
      %v1570 = vld [vmem:[%s2 + $0x9c] sm:$0xf]
      %v1571 = vld [vmem:[%s2 + $0xa0] sm:$0xf]
      %v1572 = vld [vmem:[%s2 + $0xa4] sm:$0xf]
      %v1573 = vld [vmem:[%s2 + $0xa8] sm:$0xf]
      %v1574 = vld [vmem:[%s2 + $0xac] sm:$0xf]
      %v1575 = vld [vmem:[%s2 + $0xb0] sm:$0xf]
      %v1576 = vld [vmem:[%s2 + $0xb4] sm:$0xf]
      %v1577 = vld [vmem:[%s2 + $0xb8] sm:$0xf]
      %v1578 = vld [vmem:[%s2 + $0xbc] sm:$0xf]
      %v1627 = vunpack.c.l.b16 %v1531
      %v1628 = vunpack.c.l.b16 %v1532
      %v1629 = vunpack.c.l.b16 %v1533
      %v1630 = vunpack.c.l.b16 %v1534
      %v1631 = vunpack.c.l.b16 %v1535
      %v1632 = vunpack.c.l.b16 %v1536
      %v1633 = vunpack.c.l.b16 %v1537
      %v1634 = vunpack.c.l.b16 %v1538
      %v1635 = vunpack.c.l.b16 %v1539
      %v1636 = vunpack.c.l.b16 %v1540
      %v1637 = vunpack.c.l.b16 %v1541
      %v1638 = vunpack.c.l.b16 %v1542
      %v1639 = vunpack.c.l.b16 %v1543
      %v1640 = vunpack.c.l.b16 %v1544
      %v1641 = vunpack.c.l.b16 %v1545
      %v1642 = vunpack.c.l.b16 %v1546
      %v1643 = vunpack.c.l.b16 %v1547
      %v1644 = vunpack.c.l.b16 %v1548
      %v1645 = vunpack.c.l.b16 %v1549
      %v1646 = vunpack.c.l.b16 %v1550
      %v1647 = vunpack.c.l.b16 %v1551
      %v1648 = vunpack.c.l.b16 %v1552
      %v1649 = vunpack.c.l.b16 %v1553
      %v1650 = vunpack.c.l.b16 %v1554
      %v1651 = vunpack.c.l.b16 %v1555
      %v1652 = vunpack.c.l.b16 %v1556
      %v1653 = vunpack.c.l.b16 %v1557
      %v1654 = vunpack.c.l.b16 %v1558
      %v1655 = vunpack.c.l.b16 %v1559
      %v1656 = vunpack.c.l.b16 %v1560
      %v1657 = vunpack.c.l.b16 %v1561
      %v1658 = vunpack.c.l.b16 %v1562
      %v1659 = vunpack.c.l.b16 %v1563
      %v1660 = vunpack.c.l.b16 %v1564
      %v1661 = vunpack.c.l.b16 %v1565
      %v1662 = vunpack.c.l.b16 %v1566
      %v1663 = vunpack.c.l.b16 %v1567
      %v1664 = vunpack.c.l.b16 %v1568
      %v1665 = vunpack.c.l.b16 %v1569
      %v1666 = vunpack.c.l.b16 %v1570
      %v1667 = vunpack.c.l.b16 %v1571
      %v1668 = vunpack.c.l.b16 %v1572
      %v1669 = vunpack.c.l.b16 %v1573
      %v1670 = vunpack.c.l.b16 %v1574
      %v1671 = vunpack.c.l.b16 %v1575
      %v1672 = vunpack.c.l.b16 %v1576
      %v1673 = vunpack.c.l.b16 %v1577
      %v1674 = vunpack.c.l.b16 %v1578
      %v1675 = vpack.c.b16 %v1628, %v1627
      %v1676 = vpack.c.b16 %v1630, %v1629
      %v1677 = vpack.c.b16 %v1632, %v1631
      %v1678 = vpack.c.b16 %v1634, %v1633
      %v1679 = vpack.c.b16 %v1636, %v1635
      %v1680 = vpack.c.b16 %v1638, %v1637
      %v1681 = vpack.c.b16 %v1640, %v1639
      %v1682 = vpack.c.b16 %v1642, %v1641
      %v1683 = vpack.c.b16 %v1644, %v1643
      %v1684 = vpack.c.b16 %v1646, %v1645
      %v1685 = vpack.c.b16 %v1648, %v1647
      %v1686 = vpack.c.b16 %v1650, %v1649
      %v1687 = vpack.c.b16 %v1652, %v1651
      %v1688 = vpack.c.b16 %v1654, %v1653
      %v1689 = vpack.c.b16 %v1656, %v1655
      %v1690 = vpack.c.b16 %v1658, %v1657
      %v1691 = vpack.c.b16 %v1660, %v1659
      %v1692 = vpack.c.b16 %v1662, %v1661
      %v1693 = vpack.c.b16 %v1664, %v1663
      %v1694 = vpack.c.b16 %v1666, %v1665
      %v1695 = vpack.c.b16 %v1668, %v1667
      %v1696 = vpack.c.b16 %v1670, %v1669
      %v1697 = vpack.c.b16 %v1672, %v1671
      %v1698 = vpack.c.b16 %v1674, %v1673
      %1723 = vmatprep.subr.bf16.mxu0 0
      %1724 = vmatpush1.bf16.msra.mxu0 %v1675
      %1725 = vmatprep.subr.bf16.mxu0 0
      %1726 = vmatpush1.bf16.msra.mxu0 %v1676
      %1727 = vmatprep.subr.bf16.mxu0 0
      %1728 = vmatpush1.bf16.msra.mxu0 %v1677
      %1729 = vmatprep.subr.bf16.mxu0 0
      %1730 = vmatpush1.bf16.msra.mxu0 %v1678
      %1731 = vmatprep.subr.bf16.mxu0 0
      %1732 = vmatpush1.bf16.msra.mxu0 %v1679
      %1733 = vmatprep.subr.bf16.mxu0 0
      %1734 = vmatpush1.bf16.msra.mxu0 %v1680
      %1735 = vmatprep.subr.bf16.mxu0 0
      %1736 = vmatpush1.bf16.msra.mxu0 %v1681
      %1737 = vmatprep.subr.bf16.mxu0 0
      %1738 = vmatpush1.bf16.msra.mxu0 %v1682
      %1739 = vmatprep.subr.bf16.mxu0 0
      %1740 = vmatpush1.bf16.msra.mxu0 %v1683
      %1741 = vmatprep.subr.bf16.mxu0 0
      %1742 = vmatpush1.bf16.msra.mxu0 %v1684
      %1743 = vmatprep.subr.bf16.mxu0 0
      %1744 = vmatpush1.bf16.msra.mxu0 %v1685
      %1745 = vmatprep.subr.bf16.mxu0 0
      %1746 = vmatpush1.bf16.msra.mxu0 %v1686
      %1747 = vmatprep.subr.bf16.mxu0 0
      %1748 = vmatpush1.bf16.msra.mxu0 %v1687
      %1749 = vmatprep.subr.bf16.mxu0 0
      %1750 = vmatpush1.bf16.msra.mxu0 %v1688
      %1751 = vmatprep.subr.bf16.mxu0 0
      %1752 = vmatpush1.bf16.msra.mxu0 %v1689
      %1753 = vmatprep.subr.bf16.mxu0 0
      %1754 = vmatpush1.bf16.msra.mxu0 %v1690
      %1755 = vmatprep.mubr.bf16.mxu0 %v602
      %1756 = vmatmul.mubr.bf16.gmra.mrb[0].mxu0 %v600
      %v1757 = vpop.f32.mrb[0].mxu0
      %v1758 = vadd.f32 0.0, %v1757
      %v1759 = vpop.f32.mrb[0].mxu0
      %v1760 = vpop.f32.mrb[0].mxu0
      %v1761 = vadd.f32 0.0, %v1760
      %v1762 = vpop.f32.mrb[0].mxu0
      %1763 = vmatprep.mubr.bf16.mxu0 %v603
      %1764 = vmatmul.mubr.bf16.gmra.mrb[0].mxu0 %v601
      %v1765 = vpop.f32.mrb[0].mxu0
      %v1766 = vadd.f32 0.0, %v1765
      %v1767 = vpop.f32.mrb[0].mxu0
      %v1768 = vpop.f32.mrb[0].mxu0
      %v1769 = vpop.f32.mrb[0].mxu0
      %1770 = vmatprep.mubr.bf16.mxu0 %v604
      %1771 = vmatmul.mubr.bf16.gmra.mrb[0].mxu0 %v602
      %v1772 = vpop.f32.mrb[0].mxu0
      %v1773 = vadd.f32 0.0, %v1772
      %v1774 = vpop.f32.mrb[0].mxu0
      %v1775 = vpop.f32.mrb[0].mxu0
      %v1776 = vadd.f32 0.0, %v1775
      %v1777 = vpop.f32.mrb[0].mxu0
      %1778 = vmatprep.mubr.bf16.mxu0 %v605
      %1779 = vmatmul.mubr.bf16.gmra.mrb[0].mxu0 %v603
      %v1780 = vpop.f32.mrb[0].mxu0
      %v1781 = vadd.f32 0.0, %v1780
      %v1782 = vpop.f32.mrb[0].mxu0
      %v1783 = vpop.f32.mrb[0].mxu0
      %v1784 = vpop.f32.mrb[0].mxu0
      %1785 = vmatprep.mubr.bf16.mxu0 %v606
      %1786 = vmatmul.mubr.bf16.gmra.mrb[0].mxu0 %v604
      %v1787 = vpop.f32.mrb[0].mxu0
      %v1788 = vadd.f32 0.0, %v1787
      %v1789 = vpop.f32.mrb[0].mxu0
      %v1790 = vpop.f32.mrb[0].mxu0
      %v1791 = vadd.f32 0.0, %v1790
      %v1792 = vpop.f32.mrb[0].mxu0
      %1793 = vmatprep.mubr.bf16.mxu0 %v607
      %1794 = vmatmul.mubr.bf16.gmra.mrb[0].mxu0 %v605
      %v1795 = vpop.f32.mrb[0].mxu0
      %v1796 = vadd.f32 0.0, %v1795
      %v1797 = vpop.f32.mrb[0].mxu0
      %v1798 = vpop.f32.mrb[0].mxu0
      %v1799 = vpop.f32.mrb[0].mxu0
      %1800 = vmatprep.mubr.bf16.mxu0 %v608
      %1801 = vmatmul.mubr.bf16.gmra.mrb[0].mxu0 %v606
      %v1802 = vpop.f32.mrb[0].mxu0
      %v1803 = vadd.f32 0.0, %v1802
      %v1804 = vpop.f32.mrb[0].mxu0
      %v1805 = vpop.f32.mrb[0].mxu0
      %v1806 = vadd.f32 0.0, %v1805
      %v1807 = vpop.f32.mrb[0].mxu0
      %1808 = vmatprep.mubr.bf16.mxu0 %v609
      %1809 = vmatmul.mubr.bf16.gmra.mrb[0].mxu0 %v607
      %v1810 = vpop.f32.mrb[0].mxu0
      %v1811 = vadd.f32 0.0, %v1810
      %v1812 = vpop.f32.mrb[0].mxu0
      %v1813 = vpop.f32.mrb[0].mxu0
      %v1814 = vpop.f32.mrb[0].mxu0
      %1815 = vmatprep.mubr.bf16.mxu0 %v610
      %1816 = vmatmul.mubr.bf16.gmra.mrb[0].mxu0 %v608
      %v1817 = vpop.f32.mrb[0].mxu0
      %v1818 = vadd.f32 0.0, %v1817
      %v1819 = vpop.f32.mrb[0].mxu0
      %v1820 = vpop.f32.mrb[0].mxu0
      %v1821 = vadd.f32 0.0, %v1820
      %v1822 = vpop.f32.mrb[0].mxu0
      %1823 = vmatprep.mubr.bf16.mxu0 %v611
      %1824 = vmatmul.mubr.bf16.gmra.mrb[0].mxu0 %v609
      %v1825 = vpop.f32.mrb[0].mxu0
      %v1826 = vadd.f32 0.0, %v1825
      %v1827 = vpop.f32.mrb[0].mxu0
      %v1828 = vpop.f32.mrb[0].mxu0
      %v1829 = vpop.f32.mrb[0].mxu0
      %1830 = vmatprep.mubr.bf16.mxu0 %v612
      %1831 = vmatmul.mubr.bf16.gmra.mrb[0].mxu0 %v610
      %v1832 = vpop.f32.mrb[0].mxu0
      %v1833 = vadd.f32 0.0, %v1832
      %v1834 = vpop.f32.mrb[0].mxu0
      %v1835 = vpop.f32.mrb[0].mxu0
      %v1836 = vadd.f32 0.0, %v1835
      %v1837 = vpop.f32.mrb[0].mxu0
      %1838 = vmatprep.mubr.bf16.mxu0 %v613
      %1839 = vmatmul.mubr.bf16.gmra.mrb[0].mxu0 %v611
      %v1840 = vpop.f32.mrb[0].mxu0
      %v1841 = vadd.f32 0.0, %v1840
      %v1842 = vpop.f32.mrb[0].mxu0
      %v1843 = vpop.f32.mrb[0].mxu0
      %v1844 = vpop.f32.mrb[0].mxu0
      %1845 = vmatprep.mubr.bf16.mxu0 %v614
      %1846 = vmatmul.mubr.bf16.gmra.mrb[0].mxu0 %v612
      %v1847 = vpop.f32.mrb[0].mxu0
      %v1848 = vadd.f32 0.0, %v1847
      %v1849 = vpop.f32.mrb[0].mxu0
      %v1850 = vpop.f32.mrb[0].mxu0
      %v1851 = vadd.f32 0.0, %v1850
      %v1852 = vpop.f32.mrb[0].mxu0
      %1853 = vmatprep.mubr.bf16.mxu0 %v615
      %1854 = vmatmul.mubr.bf16.gmra.mrb[0].mxu0 %v613
      %v1855 = vpop.f32.mrb[0].mxu0
      %v1856 = vadd.f32 0.0, %v1855
      %v1857 = vpop.f32.mrb[0].mxu0
      %v1858 = vpop.f32.mrb[0].mxu0
      %v1859 = vpop.f32.mrb[0].mxu0
      %1860 = vmatprep.mubr.bf16.mxu0 %v616
      %1861 = vmatmul.mubr.bf16.gmra.mrb[0].mxu0 %v614
      %v1862 = vpop.f32.mrb[0].mxu0
      %v1863 = vadd.f32 0.0, %v1862
      %v1864 = vpop.f32.mrb[0].mxu0
      %v1865 = vpop.f32.mrb[0].mxu0
      %v1866 = vadd.f32 0.0, %v1865
      %v1867 = vpop.f32.mrb[0].mxu0
      %1868 = vmatprep.mubr.bf16.mxu0 %v617
      %1869 = vmatmul.mubr.bf16.gmra.mrb[0].mxu0 %v615
      %v1870 = vpop.f32.mrb[0].mxu0
      %v1871 = vadd.f32 0.0, %v1870
      %v1872 = vpop.f32.mrb[0].mxu0
      %v1873 = vpop.f32.mrb[0].mxu0
      %v1874 = vpop.f32.mrb[0].mxu0
      %1875 = vmatprep.mubr.bf16.mxu0 %v618
      %1876 = vmatmul.mubr.bf16.gmra.mrb[0].mxu0 %v616
      %v1877 = vpop.f32.mrb[0].mxu0
      %v1878 = vadd.f32 0.0, %v1877
      %v1879 = vpop.f32.mrb[0].mxu0
      %v1880 = vpop.f32.mrb[0].mxu0
      %v1881 = vadd.f32 0.0, %v1880
      %v1882 = vpop.f32.mrb[0].mxu0
      %1883 = vmatprep.mubr.bf16.mxu0 %v619
      %1884 = vmatmul.mubr.bf16.gmra.mrb[0].mxu0 %v617
      %v1885 = vpop.f32.mrb[0].mxu0
      %v1886 = vadd.f32 0.0, %v1885
      %v1887 = vpop.f32.mrb[0].mxu0
      %v1888 = vpop.f32.mrb[0].mxu0
      %v1889 = vpop.f32.mrb[0].mxu0
      %1890 = vmatprep.mubr.bf16.mxu0 %v620
      %1891 = vmatmul.mubr.bf16.gmra.mrb[0].mxu0 %v618
      %v1892 = vpop.f32.mrb[0].mxu0
      %v1893 = vadd.f32 0.0, %v1892
      %v1894 = vpop.f32.mrb[0].mxu0
      %v1895 = vpop.f32.mrb[0].mxu0
      %v1896 = vadd.f32 0.0, %v1895
      %v1897 = vpop.f32.mrb[0].mxu0
      %1898 = vmatprep.mubr.bf16.mxu0 %v621
      %1899 = vmatmul.mubr.bf16.gmra.mrb[0].mxu0 %v619
      %v1900 = vpop.f32.mrb[0].mxu0
      %v1901 = vadd.f32 0.0, %v1900
      %v1902 = vpop.f32.mrb[0].mxu0
      %v1903 = vpop.f32.mrb[0].mxu0
      %v1904 = vpop.f32.mrb[0].mxu0
      %1905 = vmatprep.mubr.bf16.mxu0 %v622
      %1906 = vmatmul.mubr.bf16.gmra.mrb[0].mxu0 %v620
      %v1907 = vpop.f32.mrb[0].mxu0
      %v1908 = vadd.f32 0.0, %v1907
      %v1909 = vpop.f32.mrb[0].mxu0
      %v1910 = vpop.f32.mrb[0].mxu0
      %v1911 = vadd.f32 0.0, %v1910
      %v1912 = vpop.f32.mrb[0].mxu0
      %1913 = vmatprep.mubr.bf16.mxu0 %v623
      %1914 = vmatmul.mubr.bf16.gmra.mrb[0].mxu0 %v621
      %v1915 = vpop.f32.mrb[0].mxu0
      %v1916 = vadd.f32 0.0, %v1915
      %v1917 = vpop.f32.mrb[0].mxu0
      %v1918 = vpop.f32.mrb[0].mxu0
      %v1919 = vpop.f32.mrb[0].mxu0
      %1920 = vmatprep.mubr.bf16.mxu0 %v624
      %1921 = vmatmul.mubr.bf16.gmra.mrb[0].mxu0 %v622
      %v1922 = vpop.f32.mrb[0].mxu0
      %v1923 = vadd.f32 0.0, %v1922
      %v1924 = vpop.f32.mrb[0].mxu0
      %v1925 = vpop.f32.mrb[0].mxu0
      %v1926 = vadd.f32 0.0, %v1925
      %v1927 = vpop.f32.mrb[0].mxu0
      %1928 = vmatprep.mubr.bf16.mxu0 %v625
      %1929 = vmatmul.mubr.bf16.gmra.mrb[0].mxu0 %v623
      %v1930 = vpop.f32.mrb[0].mxu0
      %v1931 = vadd.f32 0.0, %v1930
      %v1932 = vpop.f32.mrb[0].mxu0
      %v1933 = vpop.f32.mrb[0].mxu0
      %v1934 = vpop.f32.mrb[0].mxu0
      %1935 = vmatprep.mubr.bf16.mxu0 %v626
      %1936 = vmatmul.mubr.bf16.gmra.mrb[0].mxu0 %v624
      %v1937 = vpop.f32.mrb[0].mxu0
      %v1938 = vadd.f32 0.0, %v1937
      %v1939 = vpop.f32.mrb[0].mxu0
      %v1940 = vpop.f32.mrb[0].mxu0
      %v1941 = vadd.f32 0.0, %v1940
      %v1942 = vpop.f32.mrb[0].mxu0
      %1943 = vmatprep.mubr.bf16.mxu0 %v627
      %1944 = vmatmul.mubr.bf16.gmra.mrb[0].mxu0 %v625
      %v1945 = vpop.f32.mrb[0].mxu0
      %v1946 = vadd.f32 0.0, %v1945
      %v1947 = vpop.f32.mrb[0].mxu0
      %v1948 = vpop.f32.mrb[0].mxu0
      %v1949 = vpop.f32.mrb[0].mxu0
      %1950 = vmatprep.mubr.bf16.mxu0 %v628
      %1951 = vmatmul.mubr.bf16.gmra.mrb[0].mxu0 %v626
      %v1952 = vpop.f32.mrb[0].mxu0
      %v1953 = vadd.f32 0.0, %v1952
      %v1954 = vpop.f32.mrb[0].mxu0
      %v1955 = vpop.f32.mrb[0].mxu0
      %v1956 = vadd.f32 0.0, %v1955
      %v1957 = vpop.f32.mrb[0].mxu0
      %1958 = vmatprep.mubr.bf16.mxu0 %v629
      %1959 = vmatmul.mubr.bf16.gmra.mrb[0].mxu0 %v627
      %v1960 = vpop.f32.mrb[0].mxu0
      %v1961 = vadd.f32 0.0, %v1960
      %v1962 = vpop.f32.mrb[0].mxu0
      %v1963 = vpop.f32.mrb[0].mxu0
      %v1964 = vpop.f32.mrb[0].mxu0
      %1965 = vmatprep.mubr.bf16.mxu0 %v630
      %1966 = vmatmul.mubr.bf16.gmra.mrb[0].mxu0 %v628
      %v1967 = vpop.f32.mrb[0].mxu0
      %v1968 = vadd.f32 0.0, %v1967
      %v1969 = vpop.f32.mrb[0].mxu0
      %v1970 = vpop.f32.mrb[0].mxu0
      %v1971 = vadd.f32 0.0, %v1970
      %v1972 = vpop.f32.mrb[0].mxu0
      %1973 = vmatprep.mubr.bf16.mxu0 %v631
      %1974 = vmatmul.mubr.bf16.gmra.mrb[0].mxu0 %v629
      %v1975 = vpop.f32.mrb[0].mxu0
      %v1976 = vadd.f32 0.0, %v1975
      %v1977 = vpop.f32.mrb[0].mxu0
      %v1978 = vpop.f32.mrb[0].mxu0
      %v1979 = vpop.f32.mrb[0].mxu0
      %1980 = vmatprep.mubr.bf16.mxu0 %v632
      %1981 = vmatmul.mubr.bf16.gmra.mrb[0].mxu0 %v630
      %v1982 = vpop.f32.mrb[0].mxu0
      %v1983 = vadd.f32 0.0, %v1982
      %v1984 = vpop.f32.mrb[0].mxu0
      %v1985 = vpop.f32.mrb[0].mxu0
      %v1986 = vadd.f32 0.0, %v1985
      %v1987 = vpop.f32.mrb[0].mxu0
      %1988 = vmatprep.mubr.bf16.mxu0 %v633
      %1989 = vmatmul.mubr.bf16.gmra.mrb[0].mxu0 %v631
      %v1990 = vpop.f32.mrb[0].mxu0
      %v1991 = vadd.f32 0.0, %v1990
      %v1992 = vpop.f32.mrb[0].mxu0
      %v1993 = vpop.f32.mrb[0].mxu0
      %v1994 = vpop.f32.mrb[0].mxu0
      %1995 = vmatprep.mubr.bf16.mxu0 %v634
      %1996 = vmatmul.mubr.bf16.gmra.mrb[0].mxu0 %v632
      %v1997 = vpop.f32.mrb[0].mxu0
      %v1998 = vadd.f32 0.0, %v1997
      %v1999 = vpop.f32.mrb[0].mxu0
      %v2000 = vpop.f32.mrb[0].mxu0
      %v2001 = vadd.f32 0.0, %v2000
      %v2002 = vpop.f32.mrb[0].mxu0
      %2003 = vmatprep.mubr.bf16.mxu0 %v635
      %2004 = vmatmul.mubr.bf16.gmra.mrb[0].mxu0 %v633
      %v2005 = vpop.f32.mrb[0].mxu0
      %v2006 = vadd.f32 0.0, %v2005
      %v2007 = vpop.f32.mrb[0].mxu0
      %v2008 = vpop.f32.mrb[0].mxu0
      %v2009 = vpop.f32.mrb[0].mxu0
      %2010 = vmatprep.mubr.bf16.mxu0 %v680
      %2011 = vmatmul.mubr.bf16.gmra.mrb[0].mxu0 %v634
      %v2012 = vpop.f32.mrb[0].mxu0
      %v2013 = vadd.f32 0.0, %v2012
      %v2014 = vpop.f32.mrb[0].mxu0
      %v2015 = vpop.f32.mrb[0].mxu0
      %v2016 = vadd.f32 0.0, %v2015
      %v2017 = vpop.f32.mrb[0].mxu0
      %2018 = vmatprep.mubr.bf16.mxu0 %v681
      %2019 = vmatmul.mubr.bf16.gmra.mrb[0].mxu0 %v635
      %v2020 = vpop.f32.mrb[0].mxu0
      %v2021 = vadd.f32 0.0, %v2020
      %v2022 = vpop.f32.mrb[0].mxu0
      %v2023 = vpop.f32.mrb[0].mxu0
      %v2024 = vpop.f32.mrb[0].mxu0
      %2025 = vdwg.mxu0
      %2026 = vmatprep.subr.bf16.mxu0 0
      %2027 = vmatpush1.bf16.msra.mxu0 %v1691
      %2028 = vmatprep.subr.bf16.mxu0 0
      %2029 = vmatpush1.bf16.msra.mxu0 %v1692
      %2030 = vmatprep.subr.bf16.mxu0 0
      %2031 = vmatpush1.bf16.msra.mxu0 %v1693
      %2032 = vmatprep.subr.bf16.mxu0 0
      %2033 = vmatpush1.bf16.msra.mxu0 %v1694
      %2034 = vmatprep.subr.bf16.mxu0 0
      %2035 = vmatpush1.bf16.msra.mxu0 %v1695
      %2036 = vmatprep.subr.bf16.mxu0 0
      %2037 = vmatpush1.bf16.msra.mxu0 %v1696
      %2038 = vmatprep.subr.bf16.mxu0 0
      %2039 = vmatpush1.bf16.msra.mxu0 %v1697
      %2040 = vmatprep.subr.bf16.mxu0 0
      %2041 = vmatpush1.bf16.msra.mxu0 %v1698
      %2042 = vmatprep.subr.bf16.mxu0 0
      %2043 = vmatpush1.bf16.msra.mxu0 0
      %2044 = vmatprep.subr.bf16.mxu0 0
      %2045 = vmatpush1.bf16.msra.mxu0 0
      %2046 = vmatprep.subr.bf16.mxu0 0
      %2047 = vmatpush1.bf16.msra.mxu0 0
      %2048 = vmatprep.subr.bf16.mxu0 0
      %2049 = vmatpush1.bf16.msra.mxu0 0
      %2050 = vmatprep.subr.bf16.mxu0 0
      %2051 = vmatpush1.bf16.msra.mxu0 0
      %2052 = vmatprep.subr.bf16.mxu0 0
      %2053 = vmatpush1.bf16.msra.mxu0 0
      %2054 = vmatprep.subr.bf16.mxu0 0
      %2055 = vmatpush1.bf16.msra.mxu0 0
      %2056 = vmatprep.subr.bf16.mxu0 0
      %2057 = vmatpush1.bf16.msra.mxu0 0
      %2058 = vmatprep.mubr.bf16.mxu0 0
      %2059 = vmatmul.mubr.bf16.gmra.mrb[0].mxu0 %v604
      %v2060 = vpop.f32.mrb[0].mxu0
      %v2061 = vadd.f32 %v1758, %v2060
      %v2062 = vpop.f32.mrb[0].mxu0
      %v2063 = vpop.f32.mrb[0].mxu0
      %v2064 = vadd.f32 %v1761, %v2063
      %v2065 = vpop.f32.mrb[0].mxu0
      %2066 = vmatprep.mubr.bf16.mxu0 0
      %2067 = vmatmul.mubr.bf16.gmra.mrb[0].mxu0 %v605
      %v2068 = vpop.f32.mrb[0].mxu0
      %v2069 = vadd.f32 %v1766, %v2068
      %v2070 = vpop.f32.mrb[0].mxu0
      %v2071 = vpop.f32.mrb[0].mxu0
      %v2072 = vpop.f32.mrb[0].mxu0
      %2073 = vmatprep.mubr.bf16.mxu0 0
      %2074 = vmatmul.mubr.bf16.gmra.mrb[0].mxu0 %v606
      %v2075 = vpop.f32.mrb[0].mxu0
      %v2076 = vadd.f32 %v1773, %v2075
      %v2077 = vpop.f32.mrb[0].mxu0
      %v2078 = vpop.f32.mrb[0].mxu0
      %v2079 = vadd.f32 %v1776, %v2078
      %v2080 = vpop.f32.mrb[0].mxu0
      %2081 = vmatprep.mubr.bf16.mxu0 0
      %2082 = vmatmul.mubr.bf16.gmra.mrb[0].mxu0 %v607
      %v2083 = vpop.f32.mrb[0].mxu0
      %v2084 = vadd.f32 %v1781, %v2083
      %v2085 = vpop.f32.mrb[0].mxu0
      %v2086 = vpop.f32.mrb[0].mxu0
      %v2087 = vpop.f32.mrb[0].mxu0
      %2088 = vmatprep.mubr.bf16.mxu0 0
      %2089 = vmatmul.mubr.bf16.gmra.mrb[0].mxu0 %v608
      %v2090 = vpop.f32.mrb[0].mxu0
      %v2091 = vadd.f32 %v1788, %v2090
      %v2092 = vpop.f32.mrb[0].mxu0
      %v2093 = vpop.f32.mrb[0].mxu0
      %v2094 = vadd.f32 %v1791, %v2093
      %v2095 = vpop.f32.mrb[0].mxu0
      %2096 = vmatprep.mubr.bf16.mxu0 0
      %2097 = vmatmul.mubr.bf16.gmra.mrb[0].mxu0 %v609
      %v2098 = vpop.f32.mrb[0].mxu0
      %v2099 = vadd.f32 %v1796, %v2098
      %v2100 = vpop.f32.mrb[0].mxu0
      %v2101 = vpop.f32.mrb[0].mxu0
      %v2102 = vpop.f32.mrb[0].mxu0
      %2103 = vmatprep.mubr.bf16.mxu0 0
      %2104 = vmatmul.mubr.bf16.gmra.mrb[0].mxu0 %v610
      %v2105 = vpop.f32.mrb[0].mxu0
      %v2106 = vadd.f32 %v1803, %v2105
      %v2107 = vpop.f32.mrb[0].mxu0
      %v2108 = vpop.f32.mrb[0].mxu0
      %v2109 = vadd.f32 %v1806, %v2108
      %v2110 = vpop.f32.mrb[0].mxu0
      %2111 = vmatprep.mubr.bf16.mxu0 0
      %2112 = vmatmul.mubr.bf16.gmra.mrb[0].mxu0 %v611
      %v2113 = vpop.f32.mrb[0].mxu0
      %v2114 = vadd.f32 %v1811, %v2113
      %v2115 = vpop.f32.mrb[0].mxu0
      %v2116 = vpop.f32.mrb[0].mxu0
      %v2117 = vpop.f32.mrb[0].mxu0
      %2118 = vmatprep.mubr.bf16.mxu0 0
      %2119 = vmatmul.mubr.bf16.gmra.mrb[0].mxu0 %v612
      %v2120 = vpop.f32.mrb[0].mxu0
      %v2121 = vadd.f32 %v1818, %v2120
      %v2122 = vpop.f32.mrb[0].mxu0
      %v2123 = vpop.f32.mrb[0].mxu0
      %v2124 = vadd.f32 %v1821, %v2123
      %v2125 = vpop.f32.mrb[0].mxu0
      %2126 = vmatprep.mubr.bf16.mxu0 0
      %2127 = vmatmul.mubr.bf16.gmra.mrb[0].mxu0 %v613
      %v2128 = vpop.f32.mrb[0].mxu0
      %v2129 = vadd.f32 %v1826, %v2128
      %v2130 = vpop.f32.mrb[0].mxu0
      %v2131 = vpop.f32.mrb[0].mxu0
      %v2132 = vpop.f32.mrb[0].mxu0
      %2133 = vmatprep.mubr.bf16.mxu0 0
      %2134 = vmatmul.mubr.bf16.gmra.mrb[0].mxu0 %v614
      %v2135 = vpop.f32.mrb[0].mxu0
      %v2136 = vadd.f32 %v1833, %v2135
      %v2137 = vpop.f32.mrb[0].mxu0
      %v2138 = vpop.f32.mrb[0].mxu0
      %v2139 = vadd.f32 %v1836, %v2138
      %v2140 = vpop.f32.mrb[0].mxu0
      %2141 = vmatprep.mubr.bf16.mxu0 0
      %2142 = vmatmul.mubr.bf16.gmra.mrb[0].mxu0 %v615
      %v2143 = vpop.f32.mrb[0].mxu0
      %v2144 = vadd.f32 %v1841, %v2143
      %v2145 = vpop.f32.mrb[0].mxu0
      %v2146 = vpop.f32.mrb[0].mxu0
      %v2147 = vpop.f32.mrb[0].mxu0
      %2148 = vmatprep.mubr.bf16.mxu0 0
      %2149 = vmatmul.mubr.bf16.gmra.mrb[0].mxu0 %v616
      %v2150 = vpop.f32.mrb[0].mxu0
      %v2151 = vadd.f32 %v1848, %v2150
      %v2152 = vpop.f32.mrb[0].mxu0
      %v2153 = vpop.f32.mrb[0].mxu0
      %v2154 = vadd.f32 %v1851, %v2153
      %v2155 = vpop.f32.mrb[0].mxu0
      %2156 = vmatprep.mubr.bf16.mxu0 0
      %2157 = vmatmul.mubr.bf16.gmra.mrb[0].mxu0 %v617
      %v2158 = vpop.f32.mrb[0].mxu0
      %v2159 = vadd.f32 %v1856, %v2158
      %v2160 = vpop.f32.mrb[0].mxu0
      %v2161 = vpop.f32.mrb[0].mxu0
      %v2162 = vpop.f32.mrb[0].mxu0
      %2163 = vmatprep.mubr.bf16.mxu0 0
      %2164 = vmatmul.mubr.bf16.gmra.mrb[0].mxu0 %v618
      %v2165 = vpop.f32.mrb[0].mxu0
      %v2166 = vadd.f32 %v1863, %v2165
      %v2167 = vpop.f32.mrb[0].mxu0
      %v2168 = vpop.f32.mrb[0].mxu0
      %v2169 = vadd.f32 %v1866, %v2168
      %v2170 = vpop.f32.mrb[0].mxu0
      %2171 = vmatprep.mubr.bf16.mxu0 0
      %2172 = vmatmul.mubr.bf16.gmra.mrb[0].mxu0 %v619
      %v2173 = vpop.f32.mrb[0].mxu0
      %v2174 = vadd.f32 %v1871, %v2173
      %v2175 = vpop.f32.mrb[0].mxu0
      %v2176 = vpop.f32.mrb[0].mxu0
      %v2177 = vpop.f32.mrb[0].mxu0
      %2178 = vmatprep.mubr.bf16.mxu0 0
      %2179 = vmatmul.mubr.bf16.gmra.mrb[0].mxu0 %v620
      %v2180 = vpop.f32.mrb[0].mxu0
      %v2181 = vadd.f32 %v1878, %v2180
      %v2182 = vpop.f32.mrb[0].mxu0
      %v2183 = vpop.f32.mrb[0].mxu0
      %v2184 = vadd.f32 %v1881, %v2183
      %v2185 = vpop.f32.mrb[0].mxu0
      %2186 = vmatprep.mubr.bf16.mxu0 0
      %2187 = vmatmul.mubr.bf16.gmra.mrb[0].mxu0 %v621
      %v2188 = vpop.f32.mrb[0].mxu0
      %v2189 = vadd.f32 %v1886, %v2188
      %v2190 = vpop.f32.mrb[0].mxu0
      %v2191 = vpop.f32.mrb[0].mxu0
      %v2192 = vpop.f32.mrb[0].mxu0
      %2193 = vmatprep.mubr.bf16.mxu0 0
      %2194 = vmatmul.mubr.bf16.gmra.mrb[0].mxu0 %v622
      %v2195 = vpop.f32.mrb[0].mxu0
      %v2196 = vadd.f32 %v1893, %v2195
      %v2197 = vpop.f32.mrb[0].mxu0
      %v2198 = vpop.f32.mrb[0].mxu0
      %v2199 = vadd.f32 %v1896, %v2198
      %v2200 = vpop.f32.mrb[0].mxu0
      %2201 = vmatprep.mubr.bf16.mxu0 0
      %2202 = vmatmul.mubr.bf16.gmra.mrb[0].mxu0 %v623
      %v2203 = vpop.f32.mrb[0].mxu0
      %v2204 = vadd.f32 %v1901, %v2203
      %v2205 = vpop.f32.mrb[0].mxu0
      %v2206 = vpop.f32.mrb[0].mxu0
      %v2207 = vpop.f32.mrb[0].mxu0
      %2208 = vmatprep.mubr.bf16.mxu0 0
      %2209 = vmatmul.mubr.bf16.gmra.mrb[0].mxu0 %v624
      %v2210 = vpop.f32.mrb[0].mxu0
      %v2211 = vadd.f32 %v1908, %v2210
      %v2212 = vpop.f32.mrb[0].mxu0
      %v2213 = vpop.f32.mrb[0].mxu0
      %v2214 = vadd.f32 %v1911, %v2213
      %v2215 = vpop.f32.mrb[0].mxu0
      %2216 = vmatprep.mubr.bf16.mxu0 0
      %2217 = vmatmul.mubr.bf16.gmra.mrb[0].mxu0 %v625
      %v2218 = vpop.f32.mrb[0].mxu0
      %v2219 = vadd.f32 %v1916, %v2218
      %v2220 = vpop.f32.mrb[0].mxu0
      %v2221 = vpop.f32.mrb[0].mxu0
      %v2222 = vpop.f32.mrb[0].mxu0
      %2223 = vmatprep.mubr.bf16.mxu0 0
      %2224 = vmatmul.mubr.bf16.gmra.mrb[0].mxu0 %v626
      %v2225 = vpop.f32.mrb[0].mxu0
      %v2226 = vadd.f32 %v1923, %v2225
      %v2227 = vpop.f32.mrb[0].mxu0
      %v2228 = vpop.f32.mrb[0].mxu0
      %v2229 = vadd.f32 %v1926, %v2228
      %v2230 = vpop.f32.mrb[0].mxu0
      %2231 = vmatprep.mubr.bf16.mxu0 0
      %2232 = vmatmul.mubr.bf16.gmra.mrb[0].mxu0 %v627
      %v2233 = vpop.f32.mrb[0].mxu0
      %v2234 = vadd.f32 %v1931, %v2233
      %v2235 = vpop.f32.mrb[0].mxu0
      %v2236 = vpop.f32.mrb[0].mxu0
      %v2237 = vpop.f32.mrb[0].mxu0
      %2238 = vmatprep.mubr.bf16.mxu0 0
      %2239 = vmatmul.mubr.bf16.gmra.mrb[0].mxu0 %v628
      %v2240 = vpop.f32.mrb[0].mxu0
      %v2241 = vadd.f32 %v1938, %v2240
      %v2242 = vpop.f32.mrb[0].mxu0
      %v2243 = vpop.f32.mrb[0].mxu0
      %v2244 = vadd.f32 %v1941, %v2243
      %v2245 = vpop.f32.mrb[0].mxu0
      %2246 = vmatprep.mubr.bf16.mxu0 0
      %2247 = vmatmul.mubr.bf16.gmra.mrb[0].mxu0 %v629
      %v2248 = vpop.f32.mrb[0].mxu0
      %v2249 = vadd.f32 %v1946, %v2248
      %v2250 = vpop.f32.mrb[0].mxu0
      %v2251 = vpop.f32.mrb[0].mxu0
      %v2252 = vpop.f32.mrb[0].mxu0
      %2253 = vmatprep.mubr.bf16.mxu0 0
      %2254 = vmatmul.mubr.bf16.gmra.mrb[0].mxu0 %v630
      %v2255 = vpop.f32.mrb[0].mxu0
      %v2256 = vadd.f32 %v1953, %v2255
      %v2257 = vpop.f32.mrb[0].mxu0
      %v2258 = vpop.f32.mrb[0].mxu0
      %v2259 = vadd.f32 %v1956, %v2258
      %v2260 = vpop.f32.mrb[0].mxu0
      %2261 = vmatprep.mubr.bf16.mxu0 0
      %2262 = vmatmul.mubr.bf16.gmra.mrb[0].mxu0 %v631
      %v2263 = vpop.f32.mrb[0].mxu0
      %v2264 = vadd.f32 %v1961, %v2263
      %v2265 = vpop.f32.mrb[0].mxu0
      %v2266 = vpop.f32.mrb[0].mxu0
      %v2267 = vpop.f32.mrb[0].mxu0
      %2268 = vmatprep.mubr.bf16.mxu0 0
      %2269 = vmatmul.mubr.bf16.gmra.mrb[0].mxu0 %v632
      %v2270 = vpop.f32.mrb[0].mxu0
      %v2271 = vadd.f32 %v1968, %v2270
      %v2272 = vpop.f32.mrb[0].mxu0
      %v2273 = vpop.f32.mrb[0].mxu0
      %v2274 = vadd.f32 %v1971, %v2273
      %v2275 = vpop.f32.mrb[0].mxu0
      %2276 = vmatprep.mubr.bf16.mxu0 0
      %2277 = vmatmul.mubr.bf16.gmra.mrb[0].mxu0 %v633
      %v2278 = vpop.f32.mrb[0].mxu0
      %v2279 = vadd.f32 %v1976, %v2278
      %v2280 = vpop.f32.mrb[0].mxu0
      %v2281 = vpop.f32.mrb[0].mxu0
      %v2282 = vpop.f32.mrb[0].mxu0
      %2283 = vmatprep.mubr.bf16.mxu0 0
      %2284 = vmatmul.mubr.bf16.gmra.mrb[0].mxu0 %v634
      %v2285 = vpop.f32.mrb[0].mxu0
      %v2286 = vadd.f32 %v1983, %v2285
      %v2287 = vpop.f32.mrb[0].mxu0
      %v2288 = vpop.f32.mrb[0].mxu0
      %v2289 = vadd.f32 %v1986, %v2288
      %v2290 = vpop.f32.mrb[0].mxu0
      %2291 = vmatprep.mubr.bf16.mxu0 0
      %2292 = vmatmul.mubr.bf16.gmra.mrb[0].mxu0 %v635
      %v2293 = vpop.f32.mrb[0].mxu0
      %v2294 = vadd.f32 %v1991, %v2293
      %v2295 = vpop.f32.mrb[0].mxu0
      %v2296 = vpop.f32.mrb[0].mxu0
      %v2297 = vpop.f32.mrb[0].mxu0
      %2298 = vmatprep.mubr.bf16.mxu0 0
      %2299 = vmatmul.mubr.bf16.gmra.mrb[0].mxu0 %v680
      %v2300 = vpop.f32.mrb[0].mxu0
      %v2301 = vadd.f32 %v1998, %v2300
      %v2302 = vpop.f32.mrb[0].mxu0
      %v2303 = vpop.f32.mrb[0].mxu0
      %v2304 = vadd.f32 %v2001, %v2303
      %v2305 = vpop.f32.mrb[0].mxu0
      %2306 = vmatprep.mubr.bf16.mxu0 0
      %2307 = vmatmul.mubr.bf16.gmra.mrb[0].mxu0 %v681
      %v2308 = vpop.f32.mrb[0].mxu0
      %v2309 = vadd.f32 %v2006, %v2308
      %v2310 = vpop.f32.mrb[0].mxu0
      %v2311 = vpop.f32.mrb[0].mxu0
      %v2312 = vpop.f32.mrb[0].mxu0
      %2313 = vmatprep.mubr.bf16.mxu0 0
      %2314 = vmatmul.mubr.bf16.gmra.mrb[0].mxu0 %v692
      %v2315 = vpop.f32.mrb[0].mxu0
      %v2316 = vadd.f32 %v2013, %v2315
      %v2317 = vpop.f32.mrb[0].mxu0
      %v2318 = vpop.f32.mrb[0].mxu0
      %v2319 = vadd.f32 %v2016, %v2318
      %v2320 = vpop.f32.mrb[0].mxu0
      %2321 = vmatprep.mubr.bf16.mxu0 0
      %2322 = vmatmul.mubr.bf16.gmra.mrb[0].mxu0 %v693
      %v2323 = vpop.f32.mrb[0].mxu0
      %v2324 = vadd.f32 %v2021, %v2323
      %v2325 = vpop.f32.mrb[0].mxu0
      %v2326 = vpop.f32.mrb[0].mxu0
      %v2327 = vpop.f32.mrb[0].mxu0
      %2328 = vdwg.mxu0
      %vm2383 = vcmask 1040384
      %v2384 = vrot.slane %v2061, 7
      %v2385 = vrot.slane %v2064, 7
      %v2386 = vsel %vm2383, %v2384, %v2385
      %v2387 = vrot.slane %v2069, 7
      %v2388 = vsel %vm2383, %v2385, %v2387
      %v2389 = vrot.slane %v2076, 7
      %v2390 = vrot.slane %v2079, 7
      %v2391 = vsel %vm2383, %v2389, %v2390
      %v2392 = vrot.slane %v2084, 7
      %v2393 = vsel %vm2383, %v2390, %v2392
      %v2394 = vrot.slane %v2091, 7
      %v2395 = vrot.slane %v2094, 7
      %v2396 = vsel %vm2383, %v2394, %v2395
      %v2397 = vrot.slane %v2099, 7
      %v2398 = vsel %vm2383, %v2395, %v2397
      %v2399 = vrot.slane %v2106, 7
      %v2400 = vrot.slane %v2109, 7
      %v2401 = vsel %vm2383, %v2399, %v2400
      %v2402 = vrot.slane %v2114, 7
      %v2403 = vsel %vm2383, %v2400, %v2402
      %v2404 = vrot.slane %v2121, 7
      %v2405 = vrot.slane %v2124, 7
      %v2406 = vsel %vm2383, %v2404, %v2405
      %v2407 = vrot.slane %v2129, 7
      %v2408 = vsel %vm2383, %v2405, %v2407
      %v2409 = vrot.slane %v2136, 7
      %v2410 = vrot.slane %v2139, 7
      %v2411 = vsel %vm2383, %v2409, %v2410
      %v2412 = vrot.slane %v2144, 7
      %v2413 = vsel %vm2383, %v2410, %v2412
      %v2414 = vrot.slane %v2151, 7
      %v2415 = vrot.slane %v2154, 7
      %v2416 = vsel %vm2383, %v2414, %v2415
      %v2417 = vrot.slane %v2159, 7
      %v2418 = vsel %vm2383, %v2415, %v2417
      %v2419 = vrot.slane %v2166, 7
      %v2420 = vrot.slane %v2169, 7
      %v2421 = vsel %vm2383, %v2419, %v2420
      %v2422 = vrot.slane %v2174, 7
      %v2423 = vsel %vm2383, %v2420, %v2422
      %v2424 = vrot.slane %v2181, 7
      %v2425 = vrot.slane %v2184, 7
      %v2426 = vsel %vm2383, %v2424, %v2425
      %v2427 = vrot.slane %v2189, 7
      %v2428 = vsel %vm2383, %v2425, %v2427
      %v2429 = vrot.slane %v2196, 7
      %v2430 = vrot.slane %v2199, 7
      %v2431 = vsel %vm2383, %v2429, %v2430
      %v2432 = vrot.slane %v2204, 7
      %v2433 = vsel %vm2383, %v2430, %v2432
      %v2434 = vrot.slane %v2211, 7
      %v2435 = vrot.slane %v2214, 7
      %v2436 = vsel %vm2383, %v2434, %v2435
      %v2437 = vrot.slane %v2219, 7
      %v2438 = vsel %vm2383, %v2435, %v2437
      %v2439 = vrot.slane %v2226, 7
      %v2440 = vrot.slane %v2229, 7
      %v2441 = vsel %vm2383, %v2439, %v2440
      %v2442 = vrot.slane %v2234, 7
      %v2443 = vsel %vm2383, %v2440, %v2442
      %v2444 = vrot.slane %v2241, 7
      %v2445 = vrot.slane %v2244, 7
      %v2446 = vsel %vm2383, %v2444, %v2445
      %v2447 = vrot.slane %v2249, 7
      %v2448 = vsel %vm2383, %v2445, %v2447
      %v2449 = vrot.slane %v2256, 7
      %v2450 = vrot.slane %v2259, 7
      %v2451 = vsel %vm2383, %v2449, %v2450
      %v2452 = vrot.slane %v2264, 7
      %v2453 = vsel %vm2383, %v2450, %v2452
      %v2454 = vrot.slane %v2271, 7
      %v2455 = vrot.slane %v2274, 7
      %v2456 = vsel %vm2383, %v2454, %v2455
      %v2457 = vrot.slane %v2279, 7
      %v2458 = vsel %vm2383, %v2455, %v2457
      %v2459 = vrot.slane %v2286, 7
      %v2460 = vrot.slane %v2289, 7
      %v2461 = vsel %vm2383, %v2459, %v2460
      %v2462 = vrot.slane %v2294, 7
      %v2463 = vsel %vm2383, %v2460, %v2462
      %v2464 = vrot.slane %v2301, 7
      %v2465 = vrot.slane %v2304, 7
      %v2466 = vsel %vm2383, %v2464, %v2465
      %v2467 = vrot.slane %v2309, 7
      %v2468 = vsel %vm2383, %v2465, %v2467
      %v2469 = vrot.slane %v2316, 7
      %v2470 = vrot.slane %v2319, 7
      %v2471 = vsel %vm2383, %v2469, %v2470
      %v2472 = vrot.slane %v2324, 7
      %v2473 = vsel %vm2383, %v2470, %v2472
      %v2546 = vadd.f32 %v1245, %v2384
      %v2547 = vadd.f32 %v1248, %v2386
      %v2548 = vadd.f32 %v1253, %v2388
      %v2549 = vadd.f32 %v1256, %v2387
      %v2550 = vadd.f32 %v1261, %v2389
      %v2551 = vadd.f32 %v1264, %v2391
      %v2552 = vadd.f32 %v1269, %v2393
      %v2553 = vadd.f32 %v1272, %v2392
      %v2554 = vadd.f32 %v1277, %v2394
      %v2555 = vadd.f32 %v1280, %v2396
      %v2556 = vadd.f32 %v1285, %v2398
      %v2557 = vadd.f32 %v1288, %v2397
      %v2558 = vadd.f32 %v1293, %v2399
      %v2559 = vadd.f32 %v1296, %v2401
      %v2560 = vadd.f32 %v1301, %v2403
      %v2561 = vadd.f32 %v1304, %v2402
      %v2562 = vadd.f32 %v1309, %v2404
      %v2563 = vadd.f32 %v1312, %v2406
      %v2564 = vadd.f32 %v1317, %v2408
      %v2565 = vadd.f32 %v1320, %v2407
      %v2566 = vadd.f32 %v1325, %v2409
      %v2567 = vadd.f32 %v1328, %v2411
      %v2568 = vadd.f32 %v1333, %v2413
      %v2569 = vadd.f32 %v1336, %v2412
      %v2570 = vadd.f32 %v1341, %v2414
      %v2571 = vadd.f32 %v1344, %v2416
      %v2572 = vadd.f32 %v1349, %v2418
      %v2573 = vadd.f32 %v1352, %v2417
      %v2574 = vadd.f32 %v1357, %v2419
      %v2575 = vadd.f32 %v1360, %v2421
      %v2576 = vadd.f32 %v1365, %v2423
      %v2577 = vadd.f32 %v1368, %v2422
      %v2578 = vadd.f32 %v1373, %v2424
      %v2579 = vadd.f32 %v1376, %v2426
      %v2580 = vadd.f32 %v1381, %v2428
      %v2581 = vadd.f32 %v1384, %v2427
      %v2582 = vadd.f32 %v1389, %v2429
      %v2583 = vadd.f32 %v1392, %v2431
      %v2584 = vadd.f32 %v1397, %v2433
      %v2585 = vadd.f32 %v1400, %v2432
      %v2586 = vadd.f32 %v1405, %v2434
      %v2587 = vadd.f32 %v1408, %v2436
      %v2588 = vadd.f32 %v1413, %v2438
      %v2589 = vadd.f32 %v1416, %v2437
      %v2590 = vadd.f32 %v1421, %v2439
      %v2591 = vadd.f32 %v1424, %v2441
      %v2592 = vadd.f32 %v1429, %v2443
      %v2593 = vadd.f32 %v1432, %v2442
      %v2594 = vadd.f32 %v1437, %v2444
      %v2595 = vadd.f32 %v1440, %v2446
      %v2596 = vadd.f32 %v1445, %v2448
      %v2597 = vadd.f32 %v1448, %v2447
      %v2598 = vadd.f32 %v1453, %v2449
      %v2599 = vadd.f32 %v1456, %v2451
      %v2600 = vadd.f32 %v1461, %v2453
      %v2601 = vadd.f32 %v1464, %v2452
      %v2602 = vadd.f32 %v1469, %v2454
      %v2603 = vadd.f32 %v1472, %v2456
      %v2604 = vadd.f32 %v1477, %v2458
      %v2605 = vadd.f32 %v1480, %v2457
      %v2606 = vadd.f32 %v1485, %v2459
      %v2607 = vadd.f32 %v1488, %v2461
      %v2608 = vadd.f32 %v1493, %v2463
      %v2609 = vadd.f32 %v1496, %v2462
      %v2610 = vadd.f32 %v1501, %v2464
      %v2611 = vadd.f32 %v1504, %v2466
      %v2612 = vadd.f32 %v1509, %v2468
      %v2613 = vadd.f32 %v1512, %v2467
      %v2614 = vadd.f32 %v1517, %v2469
      %v2615 = vadd.f32 %v1520, %v2471
      %v2616 = vadd.f32 %v1525, %v2473
      %v2617 = vadd.f32 %v1528, %v2472
      %s2618 = scalar_lea.vmem %s2, 384
      %v2619 = vld [vmem:[%s2618] sm:$0xf]
      %v2620 = vld [vmem:[%s2618 + $0x4] sm:$0xf]
      %v2621 = vld [vmem:[%s2618 + $0x8] sm:$0xf]
      %v2622 = vld [vmem:[%s2618 + $0xc] sm:$0xf]
      %v2623 = vld [vmem:[%s2618 + $0x10] sm:$0xf]
      %v2624 = vld [vmem:[%s2618 + $0x14] sm:$0xf]
      %v2625 = vld [vmem:[%s2618 + $0x18] sm:$0xf]
      %v2626 = vld [vmem:[%s2618 + $0x1c] sm:$0xf]
      %v2627 = vld [vmem:[%s2618 + $0x20] sm:$0xf]
      %v2628 = vld [vmem:[%s2618 + $0x24] sm:$0xf]
      %v2629 = vld [vmem:[%s2618 + $0x28] sm:$0xf]
      %v2630 = vld [vmem:[%s2618 + $0x2c] sm:$0xf]
      %v2631 = vld [vmem:[%s2618 + $0x30] sm:$0xf]
      %v2632 = vld [vmem:[%s2618 + $0x34] sm:$0xf]
      %v2633 = vld [vmem:[%s2618 + $0x38] sm:$0xf]
      %v2634 = vld [vmem:[%s2618 + $0x3c] sm:$0xf]
      %v2635 = vld [vmem:[%s2618 + $0x40] sm:$0xf]
      %v2636 = vld [vmem:[%s2618 + $0x44] sm:$0xf]
      %v2637 = vld [vmem:[%s2618 + $0x48] sm:$0xf]
      %v2638 = vld [vmem:[%s2618 + $0x4c] sm:$0xf]
      %v2639 = vld [vmem:[%s2618 + $0x50] sm:$0xf]
      %v2640 = vld [vmem:[%s2618 + $0x54] sm:$0xf]
      %v2641 = vld [vmem:[%s2618 + $0x58] sm:$0xf]
      %v2642 = vld [vmem:[%s2618 + $0x5c] sm:$0xf]
      %v2643 = vld [vmem:[%s2618 + $0x60] sm:$0xf]
      %v2644 = vld [vmem:[%s2618 + $0x64] sm:$0xf]
      %v2645 = vld [vmem:[%s2618 + $0x68] sm:$0xf]
      %v2646 = vld [vmem:[%s2618 + $0x6c] sm:$0xf]
      %v2647 = vld [vmem:[%s2618 + $0x70] sm:$0xf]
      %v2648 = vld [vmem:[%s2618 + $0x74] sm:$0xf]
      %v2649 = vld [vmem:[%s2618 + $0x78] sm:$0xf]
      %v2650 = vld [vmem:[%s2618 + $0x7c] sm:$0xf]
      %v2651 = vld [vmem:[%s2618 + $0x80] sm:$0xf]
      %v2652 = vld [vmem:[%s2618 + $0x84] sm:$0xf]
      %v2653 = vld [vmem:[%s2618 + $0x88] sm:$0xf]
      %v2654 = vld [vmem:[%s2618 + $0x8c] sm:$0xf]
      %v2655 = vld [vmem:[%s2618 + $0x90] sm:$0xf]
      %v2656 = vld [vmem:[%s2618 + $0x94] sm:$0xf]
      %v2657 = vld [vmem:[%s2618 + $0x98] sm:$0xf]
      %v2658 = vld [vmem:[%s2618 + $0x9c] sm:$0xf]
      %v2659 = vld [vmem:[%s2618 + $0xa0] sm:$0xf]
      %v2660 = vld [vmem:[%s2618 + $0xa4] sm:$0xf]
      %v2661 = vld [vmem:[%s2618 + $0xa8] sm:$0xf]
      %v2662 = vld [vmem:[%s2618 + $0xac] sm:$0xf]
      %v2663 = vld [vmem:[%s2618 + $0xb0] sm:$0xf]
      %v2664 = vld [vmem:[%s2618 + $0xb4] sm:$0xf]
      %v2665 = vld [vmem:[%s2618 + $0xb8] sm:$0xf]
      %v2666 = vld [vmem:[%s2618 + $0xbc] sm:$0xf]
      %v2715 = vunpack.c.l.b16 %v2619
      %v2716 = vunpack.c.l.b16 %v2620
      %v2717 = vunpack.c.l.b16 %v2621
      %v2718 = vunpack.c.l.b16 %v2622
      %v2719 = vunpack.c.l.b16 %v2623
      %v2720 = vunpack.c.l.b16 %v2624
      %v2721 = vunpack.c.l.b16 %v2625
      %v2722 = vunpack.c.l.b16 %v2626
      %v2723 = vunpack.c.l.b16 %v2627
      %v2724 = vunpack.c.l.b16 %v2628
      %v2725 = vunpack.c.l.b16 %v2629
      %v2726 = vunpack.c.l.b16 %v2630
      %v2727 = vunpack.c.l.b16 %v2631
      %v2728 = vunpack.c.l.b16 %v2632
      %v2729 = vunpack.c.l.b16 %v2633
      %v2730 = vunpack.c.l.b16 %v2634
      %v2731 = vunpack.c.l.b16 %v2635
      %v2732 = vunpack.c.l.b16 %v2636
      %v2733 = vunpack.c.l.b16 %v2637
      %v2734 = vunpack.c.l.b16 %v2638
      %v2735 = vunpack.c.l.b16 %v2639
      %v2736 = vunpack.c.l.b16 %v2640
      %v2737 = vunpack.c.l.b16 %v2641
      %v2738 = vunpack.c.l.b16 %v2642
      %v2739 = vunpack.c.l.b16 %v2643
      %v2740 = vunpack.c.l.b16 %v2644
      %v2741 = vunpack.c.l.b16 %v2645
      %v2742 = vunpack.c.l.b16 %v2646
      %v2743 = vunpack.c.l.b16 %v2647
      %v2744 = vunpack.c.l.b16 %v2648
      %v2745 = vunpack.c.l.b16 %v2649
      %v2746 = vunpack.c.l.b16 %v2650
      %v2747 = vunpack.c.l.b16 %v2651
      %v2748 = vunpack.c.l.b16 %v2652
      %v2749 = vunpack.c.l.b16 %v2653
      %v2750 = vunpack.c.l.b16 %v2654
      %v2751 = vunpack.c.l.b16 %v2655
      %v2752 = vunpack.c.l.b16 %v2656
      %v2753 = vunpack.c.l.b16 %v2657
      %v2754 = vunpack.c.l.b16 %v2658
      %v2755 = vunpack.c.l.b16 %v2659
      %v2756 = vunpack.c.l.b16 %v2660
      %v2757 = vunpack.c.l.b16 %v2661
      %v2758 = vunpack.c.l.b16 %v2662
      %v2759 = vunpack.c.l.b16 %v2663
      %v2760 = vunpack.c.l.b16 %v2664
      %v2761 = vunpack.c.l.b16 %v2665
      %v2762 = vunpack.c.l.b16 %v2666
      %v2763 = vpack.c.b16 %v2716, %v2715
      %v2764 = vpack.c.b16 %v2718, %v2717
      %v2765 = vpack.c.b16 %v2720, %v2719
      %v2766 = vpack.c.b16 %v2722, %v2721
      %v2767 = vpack.c.b16 %v2724, %v2723
      %v2768 = vpack.c.b16 %v2726, %v2725
      %v2769 = vpack.c.b16 %v2728, %v2727
      %v2770 = vpack.c.b16 %v2730, %v2729
      %v2771 = vpack.c.b16 %v2732, %v2731
      %v2772 = vpack.c.b16 %v2734, %v2733
      %v2773 = vpack.c.b16 %v2736, %v2735
      %v2774 = vpack.c.b16 %v2738, %v2737
      %v2775 = vpack.c.b16 %v2740, %v2739
      %v2776 = vpack.c.b16 %v2742, %v2741
      %v2777 = vpack.c.b16 %v2744, %v2743
      %v2778 = vpack.c.b16 %v2746, %v2745
      %v2779 = vpack.c.b16 %v2748, %v2747
      %v2780 = vpack.c.b16 %v2750, %v2749
      %v2781 = vpack.c.b16 %v2752, %v2751
      %v2782 = vpack.c.b16 %v2754, %v2753
      %v2783 = vpack.c.b16 %v2756, %v2755
      %v2784 = vpack.c.b16 %v2758, %v2757
      %v2785 = vpack.c.b16 %v2760, %v2759
      %v2786 = vpack.c.b16 %v2762, %v2761
      %2811 = vmatprep.subr.bf16.mxu0 0
      %2812 = vmatpush1.bf16.msra.mxu0 %v2763
      %2813 = vmatprep.subr.bf16.mxu0 0
      %2814 = vmatpush1.bf16.msra.mxu0 %v2764
      %2815 = vmatprep.subr.bf16.mxu0 0
      %2816 = vmatpush1.bf16.msra.mxu0 %v2765
      %2817 = vmatprep.subr.bf16.mxu0 0
      %2818 = vmatpush1.bf16.msra.mxu0 %v2766
      %2819 = vmatprep.subr.bf16.mxu0 0
      %2820 = vmatpush1.bf16.msra.mxu0 %v2767
      %2821 = vmatprep.subr.bf16.mxu0 0
      %2822 = vmatpush1.bf16.msra.mxu0 %v2768
      %2823 = vmatprep.subr.bf16.mxu0 0
      %2824 = vmatpush1.bf16.msra.mxu0 %v2769
      %2825 = vmatprep.subr.bf16.mxu0 0
      %2826 = vmatpush1.bf16.msra.mxu0 %v2770
      %2827 = vmatprep.subr.bf16.mxu0 0
      %2828 = vmatpush1.bf16.msra.mxu0 %v2771
      %2829 = vmatprep.subr.bf16.mxu0 0
      %2830 = vmatpush1.bf16.msra.mxu0 %v2772
      %2831 = vmatprep.subr.bf16.mxu0 0
      %2832 = vmatpush1.bf16.msra.mxu0 %v2773
      %2833 = vmatprep.subr.bf16.mxu0 0
      %2834 = vmatpush1.bf16.msra.mxu0 %v2774
      %2835 = vmatprep.subr.bf16.mxu0 0
      %2836 = vmatpush1.bf16.msra.mxu0 %v2775
      %2837 = vmatprep.subr.bf16.mxu0 0
      %2838 = vmatpush1.bf16.msra.mxu0 %v2776
      %2839 = vmatprep.subr.bf16.mxu0 0
      %2840 = vmatpush1.bf16.msra.mxu0 %v2777
      %2841 = vmatprep.subr.bf16.mxu0 0
      %2842 = vmatpush1.bf16.msra.mxu0 %v2778
      %2843 = vmatprep.mubr.bf16.mxu0 %v602
      %2844 = vmatmul.mubr.bf16.gmra.mrb[0].mxu0 %v600
      %v2845 = vpop.f32.mrb[0].mxu0
      %v2846 = vadd.f32 0.0, %v2845
      %v2847 = vpop.f32.mrb[0].mxu0
      %v2848 = vpop.f32.mrb[0].mxu0
      %v2849 = vadd.f32 0.0, %v2848
      %v2850 = vpop.f32.mrb[0].mxu0
      %2851 = vmatprep.mubr.bf16.mxu0 %v603
      %2852 = vmatmul.mubr.bf16.gmra.mrb[0].mxu0 %v601
      %v2853 = vpop.f32.mrb[0].mxu0
      %v2854 = vadd.f32 0.0, %v2853
      %v2855 = vpop.f32.mrb[0].mxu0
      %v2856 = vpop.f32.mrb[0].mxu0
      %v2857 = vadd.f32 0.0, %v2856
      %v2858 = vpop.f32.mrb[0].mxu0
      %2859 = vmatprep.mubr.bf16.mxu0 %v604
      %2860 = vmatmul.mubr.bf16.gmra.mrb[0].mxu0 %v602
      %v2861 = vpop.f32.mrb[0].mxu0
      %v2862 = vadd.f32 0.0, %v2861
      %v2863 = vpop.f32.mrb[0].mxu0
      %v2864 = vpop.f32.mrb[0].mxu0
      %v2865 = vadd.f32 0.0, %v2864
      %v2866 = vpop.f32.mrb[0].mxu0
      %2867 = vmatprep.mubr.bf16.mxu0 %v605
      %2868 = vmatmul.mubr.bf16.gmra.mrb[0].mxu0 %v603
      %v2869 = vpop.f32.mrb[0].mxu0
      %v2870 = vadd.f32 0.0, %v2869
      %v2871 = vpop.f32.mrb[0].mxu0
      %v2872 = vpop.f32.mrb[0].mxu0
      %v2873 = vadd.f32 0.0, %v2872
      %v2874 = vpop.f32.mrb[0].mxu0
      %2875 = vmatprep.mubr.bf16.mxu0 %v606
      %2876 = vmatmul.mubr.bf16.gmra.mrb[0].mxu0 %v604
      %v2877 = vpop.f32.mrb[0].mxu0
      %v2878 = vadd.f32 0.0, %v2877
      %v2879 = vpop.f32.mrb[0].mxu0
      %v2880 = vpop.f32.mrb[0].mxu0
      %v2881 = vadd.f32 0.0, %v2880
      %v2882 = vpop.f32.mrb[0].mxu0
      %2883 = vmatprep.mubr.bf16.mxu0 %v607
      %2884 = vmatmul.mubr.bf16.gmra.mrb[0].mxu0 %v605
      %v2885 = vpop.f32.mrb[0].mxu0
      %v2886 = vadd.f32 0.0, %v2885
      %v2887 = vpop.f32.mrb[0].mxu0
      %v2888 = vpop.f32.mrb[0].mxu0
      %v2889 = vadd.f32 0.0, %v2888
      %v2890 = vpop.f32.mrb[0].mxu0
      %2891 = vmatprep.mubr.bf16.mxu0 %v608
      %2892 = vmatmul.mubr.bf16.gmra.mrb[0].mxu0 %v606
      %v2893 = vpop.f32.mrb[0].mxu0
      %v2894 = vadd.f32 0.0, %v2893
      %v2895 = vpop.f32.mrb[0].mxu0
      %v2896 = vpop.f32.mrb[0].mxu0
      %v2897 = vadd.f32 0.0, %v2896
      %v2898 = vpop.f32.mrb[0].mxu0
      %2899 = vmatprep.mubr.bf16.mxu0 %v609
      %2900 = vmatmul.mubr.bf16.gmra.mrb[0].mxu0 %v607
      %v2901 = vpop.f32.mrb[0].mxu0
      %v2902 = vadd.f32 0.0, %v2901
      %v2903 = vpop.f32.mrb[0].mxu0
      %v2904 = vpop.f32.mrb[0].mxu0
      %v2905 = vadd.f32 0.0, %v2904
      %v2906 = vpop.f32.mrb[0].mxu0
      %2907 = vmatprep.mubr.bf16.mxu0 %v610
      %2908 = vmatmul.mubr.bf16.gmra.mrb[0].mxu0 %v608
      %v2909 = vpop.f32.mrb[0].mxu0
      %v2910 = vadd.f32 0.0, %v2909
      %v2911 = vpop.f32.mrb[0].mxu0
      %v2912 = vpop.f32.mrb[0].mxu0
      %v2913 = vadd.f32 0.0, %v2912
      %v2914 = vpop.f32.mrb[0].mxu0
      %2915 = vmatprep.mubr.bf16.mxu0 %v611
      %2916 = vmatmul.mubr.bf16.gmra.mrb[0].mxu0 %v609
      %v2917 = vpop.f32.mrb[0].mxu0
      %v2918 = vadd.f32 0.0, %v2917
      %v2919 = vpop.f32.mrb[0].mxu0
      %v2920 = vpop.f32.mrb[0].mxu0
      %v2921 = vadd.f32 0.0, %v2920
      %v2922 = vpop.f32.mrb[0].mxu0
      %2923 = vmatprep.mubr.bf16.mxu0 %v612
      %2924 = vmatmul.mubr.bf16.gmra.mrb[0].mxu0 %v610
      %v2925 = vpop.f32.mrb[0].mxu0
      %v2926 = vadd.f32 0.0, %v2925
      %v2927 = vpop.f32.mrb[0].mxu0
      %v2928 = vpop.f32.mrb[0].mxu0
      %v2929 = vadd.f32 0.0, %v2928
      %v2930 = vpop.f32.mrb[0].mxu0
      %2931 = vmatprep.mubr.bf16.mxu0 %v613
      %2932 = vmatmul.mubr.bf16.gmra.mrb[0].mxu0 %v611
      %v2933 = vpop.f32.mrb[0].mxu0
      %v2934 = vadd.f32 0.0, %v2933
      %v2935 = vpop.f32.mrb[0].mxu0
      %v2936 = vpop.f32.mrb[0].mxu0
      %v2937 = vadd.f32 0.0, %v2936
      %v2938 = vpop.f32.mrb[0].mxu0
      %2939 = vmatprep.mubr.bf16.mxu0 %v614
      %2940 = vmatmul.mubr.bf16.gmra.mrb[0].mxu0 %v612
      %v2941 = vpop.f32.mrb[0].mxu0
      %v2942 = vadd.f32 0.0, %v2941
      %v2943 = vpop.f32.mrb[0].mxu0
      %v2944 = vpop.f32.mrb[0].mxu0
      %v2945 = vadd.f32 0.0, %v2944
      %v2946 = vpop.f32.mrb[0].mxu0
      %2947 = vmatprep.mubr.bf16.mxu0 %v615
      %2948 = vmatmul.mubr.bf16.gmra.mrb[0].mxu0 %v613
      %v2949 = vpop.f32.mrb[0].mxu0
      %v2950 = vadd.f32 0.0, %v2949
      %v2951 = vpop.f32.mrb[0].mxu0
      %v2952 = vpop.f32.mrb[0].mxu0
      %v2953 = vadd.f32 0.0, %v2952
      %v2954 = vpop.f32.mrb[0].mxu0
      %2955 = vmatprep.mubr.bf16.mxu0 %v616
      %2956 = vmatmul.mubr.bf16.gmra.mrb[0].mxu0 %v614
      %v2957 = vpop.f32.mrb[0].mxu0
      %v2958 = vadd.f32 0.0, %v2957
      %v2959 = vpop.f32.mrb[0].mxu0
      %v2960 = vpop.f32.mrb[0].mxu0
      %v2961 = vadd.f32 0.0, %v2960
      %v2962 = vpop.f32.mrb[0].mxu0
      %2963 = vmatprep.mubr.bf16.mxu0 %v617
      %2964 = vmatmul.mubr.bf16.gmra.mrb[0].mxu0 %v615
      %v2965 = vpop.f32.mrb[0].mxu0
      %v2966 = vadd.f32 0.0, %v2965
      %v2967 = vpop.f32.mrb[0].mxu0
      %v2968 = vpop.f32.mrb[0].mxu0
      %v2969 = vadd.f32 0.0, %v2968
      %v2970 = vpop.f32.mrb[0].mxu0
      %2971 = vmatprep.mubr.bf16.mxu0 %v618
      %2972 = vmatmul.mubr.bf16.gmra.mrb[0].mxu0 %v616
      %v2973 = vpop.f32.mrb[0].mxu0
      %v2974 = vadd.f32 0.0, %v2973
      %v2975 = vpop.f32.mrb[0].mxu0
      %v2976 = vpop.f32.mrb[0].mxu0
      %v2977 = vadd.f32 0.0, %v2976
      %v2978 = vpop.f32.mrb[0].mxu0
      %2979 = vmatprep.mubr.bf16.mxu0 %v619
      %2980 = vmatmul.mubr.bf16.gmra.mrb[0].mxu0 %v617
      %v2981 = vpop.f32.mrb[0].mxu0
      %v2982 = vadd.f32 0.0, %v2981
      %v2983 = vpop.f32.mrb[0].mxu0
      %v2984 = vpop.f32.mrb[0].mxu0
      %v2985 = vadd.f32 0.0, %v2984
      %v2986 = vpop.f32.mrb[0].mxu0
      %2987 = vmatprep.mubr.bf16.mxu0 %v620
      %2988 = vmatmul.mubr.bf16.gmra.mrb[0].mxu0 %v618
      %v2989 = vpop.f32.mrb[0].mxu0
      %v2990 = vadd.f32 0.0, %v2989
      %v2991 = vpop.f32.mrb[0].mxu0
      %v2992 = vpop.f32.mrb[0].mxu0
      %v2993 = vadd.f32 0.0, %v2992
      %v2994 = vpop.f32.mrb[0].mxu0
      %2995 = vmatprep.mubr.bf16.mxu0 %v621
      %2996 = vmatmul.mubr.bf16.gmra.mrb[0].mxu0 %v619
      %v2997 = vpop.f32.mrb[0].mxu0
      %v2998 = vadd.f32 0.0, %v2997
      %v2999 = vpop.f32.mrb[0].mxu0
      %v3000 = vpop.f32.mrb[0].mxu0
      %v3001 = vadd.f32 0.0, %v3000
      %v3002 = vpop.f32.mrb[0].mxu0
      %3003 = vmatprep.mubr.bf16.mxu0 %v622
      %3004 = vmatmul.mubr.bf16.gmra.mrb[0].mxu0 %v620
      %v3005 = vpop.f32.mrb[0].mxu0
      %v3006 = vadd.f32 0.0, %v3005
      %v3007 = vpop.f32.mrb[0].mxu0
      %v3008 = vpop.f32.mrb[0].mxu0
      %v3009 = vadd.f32 0.0, %v3008
      %v3010 = vpop.f32.mrb[0].mxu0
      %3011 = vmatprep.mubr.bf16.mxu0 %v623
      %3012 = vmatmul.mubr.bf16.gmra.mrb[0].mxu0 %v621
      %v3013 = vpop.f32.mrb[0].mxu0
      %v3014 = vadd.f32 0.0, %v3013
      %v3015 = vpop.f32.mrb[0].mxu0
      %v3016 = vpop.f32.mrb[0].mxu0
      %v3017 = vadd.f32 0.0, %v3016
      %v3018 = vpop.f32.mrb[0].mxu0
      %3019 = vmatprep.mubr.bf16.mxu0 %v624
      %3020 = vmatmul.mubr.bf16.gmra.mrb[0].mxu0 %v622
      %v3021 = vpop.f32.mrb[0].mxu0
      %v3022 = vadd.f32 0.0, %v3021
      %v3023 = vpop.f32.mrb[0].mxu0
      %v3024 = vpop.f32.mrb[0].mxu0
      %v3025 = vadd.f32 0.0, %v3024
      %v3026 = vpop.f32.mrb[0].mxu0
      %3027 = vmatprep.mubr.bf16.mxu0 %v625
      %3028 = vmatmul.mubr.bf16.gmra.mrb[0].mxu0 %v623
      %v3029 = vpop.f32.mrb[0].mxu0
      %v3030 = vadd.f32 0.0, %v3029
      %v3031 = vpop.f32.mrb[0].mxu0
      %v3032 = vpop.f32.mrb[0].mxu0
      %v3033 = vadd.f32 0.0, %v3032
      %v3034 = vpop.f32.mrb[0].mxu0
      %3035 = vmatprep.mubr.bf16.mxu0 %v626
      %3036 = vmatmul.mubr.bf16.gmra.mrb[0].mxu0 %v624
      %v3037 = vpop.f32.mrb[0].mxu0
      %v3038 = vadd.f32 0.0, %v3037
      %v3039 = vpop.f32.mrb[0].mxu0
      %v3040 = vpop.f32.mrb[0].mxu0
      %v3041 = vadd.f32 0.0, %v3040
      %v3042 = vpop.f32.mrb[0].mxu0
      %3043 = vmatprep.mubr.bf16.mxu0 %v627
      %3044 = vmatmul.mubr.bf16.gmra.mrb[0].mxu0 %v625
      %v3045 = vpop.f32.mrb[0].mxu0
      %v3046 = vadd.f32 0.0, %v3045
      %v3047 = vpop.f32.mrb[0].mxu0
      %v3048 = vpop.f32.mrb[0].mxu0
      %v3049 = vadd.f32 0.0, %v3048
      %v3050 = vpop.f32.mrb[0].mxu0
      %3051 = vmatprep.mubr.bf16.mxu0 %v628
      %3052 = vmatmul.mubr.bf16.gmra.mrb[0].mxu0 %v626
      %v3053 = vpop.f32.mrb[0].mxu0
      %v3054 = vadd.f32 0.0, %v3053
      %v3055 = vpop.f32.mrb[0].mxu0
      %v3056 = vpop.f32.mrb[0].mxu0
      %v3057 = vadd.f32 0.0, %v3056
      %v3058 = vpop.f32.mrb[0].mxu0
      %3059 = vmatprep.mubr.bf16.mxu0 %v629
      %3060 = vmatmul.mubr.bf16.gmra.mrb[0].mxu0 %v627
      %v3061 = vpop.f32.mrb[0].mxu0
      %v3062 = vadd.f32 0.0, %v3061
      %v3063 = vpop.f32.mrb[0].mxu0
      %v3064 = vpop.f32.mrb[0].mxu0
      %v3065 = vadd.f32 0.0, %v3064
      %v3066 = vpop.f32.mrb[0].mxu0
      %3067 = vmatprep.mubr.bf16.mxu0 %v630
      %3068 = vmatmul.mubr.bf16.gmra.mrb[0].mxu0 %v628
      %v3069 = vpop.f32.mrb[0].mxu0
      %v3070 = vadd.f32 0.0, %v3069
      %v3071 = vpop.f32.mrb[0].mxu0
      %v3072 = vpop.f32.mrb[0].mxu0
      %v3073 = vadd.f32 0.0, %v3072
      %v3074 = vpop.f32.mrb[0].mxu0
      %3075 = vmatprep.mubr.bf16.mxu0 %v631
      %3076 = vmatmul.mubr.bf16.gmra.mrb[0].mxu0 %v629
      %v3077 = vpop.f32.mrb[0].mxu0
      %v3078 = vadd.f32 0.0, %v3077
      %v3079 = vpop.f32.mrb[0].mxu0
      %v3080 = vpop.f32.mrb[0].mxu0
      %v3081 = vadd.f32 0.0, %v3080
      %v3082 = vpop.f32.mrb[0].mxu0
      %3083 = vmatprep.mubr.bf16.mxu0 %v632
      %3084 = vmatmul.mubr.bf16.gmra.mrb[0].mxu0 %v630
      %v3085 = vpop.f32.mrb[0].mxu0
      %v3086 = vadd.f32 0.0, %v3085
      %v3087 = vpop.f32.mrb[0].mxu0
      %v3088 = vpop.f32.mrb[0].mxu0
      %v3089 = vadd.f32 0.0, %v3088
      %v3090 = vpop.f32.mrb[0].mxu0
      %3091 = vmatprep.mubr.bf16.mxu0 %v633
      %3092 = vmatmul.mubr.bf16.gmra.mrb[0].mxu0 %v631
      %v3093 = vpop.f32.mrb[0].mxu0
      %v3094 = vadd.f32 0.0, %v3093
      %v3095 = vpop.f32.mrb[0].mxu0
      %v3096 = vpop.f32.mrb[0].mxu0
      %v3097 = vadd.f32 0.0, %v3096
      %v3098 = vpop.f32.mrb[0].mxu0
      %3099 = vmatprep.mubr.bf16.mxu0 %v634
      %3100 = vmatmul.mubr.bf16.gmra.mrb[0].mxu0 %v632
      %v3101 = vpop.f32.mrb[0].mxu0
      %v3102 = vadd.f32 0.0, %v3101
      %v3103 = vpop.f32.mrb[0].mxu0
      %v3104 = vpop.f32.mrb[0].mxu0
      %v3105 = vadd.f32 0.0, %v3104
      %v3106 = vpop.f32.mrb[0].mxu0
      %3107 = vmatprep.mubr.bf16.mxu0 %v635
      %3108 = vmatmul.mubr.bf16.gmra.mrb[0].mxu0 %v633
      %v3109 = vpop.f32.mrb[0].mxu0
      %v3110 = vadd.f32 0.0, %v3109
      %v3111 = vpop.f32.mrb[0].mxu0
      %v3112 = vpop.f32.mrb[0].mxu0
      %v3113 = vadd.f32 0.0, %v3112
      %v3114 = vpop.f32.mrb[0].mxu0
      %3115 = vmatprep.mubr.bf16.mxu0 %v680
      %3116 = vmatmul.mubr.bf16.gmra.mrb[0].mxu0 %v634
      %v3117 = vpop.f32.mrb[0].mxu0
      %v3118 = vadd.f32 0.0, %v3117
      %v3119 = vpop.f32.mrb[0].mxu0
      %v3120 = vpop.f32.mrb[0].mxu0
      %v3121 = vadd.f32 0.0, %v3120
      %v3122 = vpop.f32.mrb[0].mxu0
      %3123 = vmatprep.mubr.bf16.mxu0 %v681
      %3124 = vmatmul.mubr.bf16.gmra.mrb[0].mxu0 %v635
      %v3125 = vpop.f32.mrb[0].mxu0
      %v3126 = vadd.f32 0.0, %v3125
      %v3127 = vpop.f32.mrb[0].mxu0
      %v3128 = vpop.f32.mrb[0].mxu0
      %v3129 = vadd.f32 0.0, %v3128
      %v3130 = vpop.f32.mrb[0].mxu0
      %3131 = vdwg.mxu0
      %3132 = vmatprep.subr.bf16.mxu0 0
      %3133 = vmatpush1.bf16.msra.mxu0 %v2779
      %3134 = vmatprep.subr.bf16.mxu0 0
      %3135 = vmatpush1.bf16.msra.mxu0 %v2780
      %3136 = vmatprep.subr.bf16.mxu0 0
      %3137 = vmatpush1.bf16.msra.mxu0 %v2781
      %3138 = vmatprep.subr.bf16.mxu0 0
      %3139 = vmatpush1.bf16.msra.mxu0 %v2782
      %3140 = vmatprep.subr.bf16.mxu0 0
      %3141 = vmatpush1.bf16.msra.mxu0 %v2783
      %3142 = vmatprep.subr.bf16.mxu0 0
      %3143 = vmatpush1.bf16.msra.mxu0 %v2784
      %3144 = vmatprep.subr.bf16.mxu0 0
      %3145 = vmatpush1.bf16.msra.mxu0 %v2785
      %3146 = vmatprep.subr.bf16.mxu0 0
      %3147 = vmatpush1.bf16.msra.mxu0 %v2786
      %3148 = vmatprep.subr.bf16.mxu0 0
      %3149 = vmatpush1.bf16.msra.mxu0 0
      %3150 = vmatprep.subr.bf16.mxu0 0
      %3151 = vmatpush1.bf16.msra.mxu0 0
      %3152 = vmatprep.subr.bf16.mxu0 0
      %3153 = vmatpush1.bf16.msra.mxu0 0
      %3154 = vmatprep.subr.bf16.mxu0 0
      %3155 = vmatpush1.bf16.msra.mxu0 0
      %3156 = vmatprep.subr.bf16.mxu0 0
      %3157 = vmatpush1.bf16.msra.mxu0 0
      %3158 = vmatprep.subr.bf16.mxu0 0
      %3159 = vmatpush1.bf16.msra.mxu0 0
      %3160 = vmatprep.subr.bf16.mxu0 0
      %3161 = vmatpush1.bf16.msra.mxu0 0
      %3162 = vmatprep.subr.bf16.mxu0 0
      %3163 = vmatpush1.bf16.msra.mxu0 0
      %3164 = vmatprep.mubr.bf16.mxu0 0
      %3165 = vmatmul.mubr.bf16.gmra.mrb[0].mxu0 %v604
      %v3166 = vpop.f32.mrb[0].mxu0
      %v3167 = vadd.f32 %v2846, %v3166
      %v3168 = vpop.f32.mrb[0].mxu0
      %v3169 = vpop.f32.mrb[0].mxu0
      %v3170 = vadd.f32 %v2849, %v3169
      %v3171 = vpop.f32.mrb[0].mxu0
      %3172 = vmatprep.mubr.bf16.mxu0 0
      %3173 = vmatmul.mubr.bf16.gmra.mrb[0].mxu0 %v605
      %v3174 = vpop.f32.mrb[0].mxu0
      %v3175 = vadd.f32 %v2854, %v3174
      %v3176 = vpop.f32.mrb[0].mxu0
      %v3177 = vpop.f32.mrb[0].mxu0
      %v3178 = vadd.f32 %v2857, %v3177
      %v3179 = vpop.f32.mrb[0].mxu0
      %3180 = vmatprep.mubr.bf16.mxu0 0
      %3181 = vmatmul.mubr.bf16.gmra.mrb[0].mxu0 %v606
      %v3182 = vpop.f32.mrb[0].mxu0
      %v3183 = vadd.f32 %v2862, %v3182
      %v3184 = vpop.f32.mrb[0].mxu0
      %v3185 = vpop.f32.mrb[0].mxu0
      %v3186 = vadd.f32 %v2865, %v3185
      %v3187 = vpop.f32.mrb[0].mxu0
      %3188 = vmatprep.mubr.bf16.mxu0 0
      %3189 = vmatmul.mubr.bf16.gmra.mrb[0].mxu0 %v607
      %v3190 = vpop.f32.mrb[0].mxu0
      %v3191 = vadd.f32 %v2870, %v3190
      %v3192 = vpop.f32.mrb[0].mxu0
      %v3193 = vpop.f32.mrb[0].mxu0
      %v3194 = vadd.f32 %v2873, %v3193
      %v3195 = vpop.f32.mrb[0].mxu0
      %3196 = vmatprep.mubr.bf16.mxu0 0
      %3197 = vmatmul.mubr.bf16.gmra.mrb[0].mxu0 %v608
      %v3198 = vpop.f32.mrb[0].mxu0
      %v3199 = vadd.f32 %v2878, %v3198
      %v3200 = vpop.f32.mrb[0].mxu0
      %v3201 = vpop.f32.mrb[0].mxu0
      %v3202 = vadd.f32 %v2881, %v3201
      %v3203 = vpop.f32.mrb[0].mxu0
      %3204 = vmatprep.mubr.bf16.mxu0 0
      %3205 = vmatmul.mubr.bf16.gmra.mrb[0].mxu0 %v609
      %v3206 = vpop.f32.mrb[0].mxu0
      %v3207 = vadd.f32 %v2886, %v3206
      %v3208 = vpop.f32.mrb[0].mxu0
      %v3209 = vpop.f32.mrb[0].mxu0
      %v3210 = vadd.f32 %v2889, %v3209
      %v3211 = vpop.f32.mrb[0].mxu0
      %3212 = vmatprep.mubr.bf16.mxu0 0
      %3213 = vmatmul.mubr.bf16.gmra.mrb[0].mxu0 %v610
      %v3214 = vpop.f32.mrb[0].mxu0
      %v3215 = vadd.f32 %v2894, %v3214
      %v3216 = vpop.f32.mrb[0].mxu0
      %v3217 = vpop.f32.mrb[0].mxu0
      %v3218 = vadd.f32 %v2897, %v3217
      %v3219 = vpop.f32.mrb[0].mxu0
      %3220 = vmatprep.mubr.bf16.mxu0 0
      %3221 = vmatmul.mubr.bf16.gmra.mrb[0].mxu0 %v611
      %v3222 = vpop.f32.mrb[0].mxu0
      %v3223 = vadd.f32 %v2902, %v3222
      %v3224 = vpop.f32.mrb[0].mxu0
      %v3225 = vpop.f32.mrb[0].mxu0
      %v3226 = vadd.f32 %v2905, %v3225
      %v3227 = vpop.f32.mrb[0].mxu0
      %3228 = vmatprep.mubr.bf16.mxu0 0
      %3229 = vmatmul.mubr.bf16.gmra.mrb[0].mxu0 %v612
      %v3230 = vpop.f32.mrb[0].mxu0
      %v3231 = vadd.f32 %v2910, %v3230
      %v3232 = vpop.f32.mrb[0].mxu0
      %v3233 = vpop.f32.mrb[0].mxu0
      %v3234 = vadd.f32 %v2913, %v3233
      %v3235 = vpop.f32.mrb[0].mxu0
      %3236 = vmatprep.mubr.bf16.mxu0 0
      %3237 = vmatmul.mubr.bf16.gmra.mrb[0].mxu0 %v613
      %v3238 = vpop.f32.mrb[0].mxu0
      %v3239 = vadd.f32 %v2918, %v3238
      %v3240 = vpop.f32.mrb[0].mxu0
      %v3241 = vpop.f32.mrb[0].mxu0
      %v3242 = vadd.f32 %v2921, %v3241
      %v3243 = vpop.f32.mrb[0].mxu0
      %3244 = vmatprep.mubr.bf16.mxu0 0
      %3245 = vmatmul.mubr.bf16.gmra.mrb[0].mxu0 %v614
      %v3246 = vpop.f32.mrb[0].mxu0
      %v3247 = vadd.f32 %v2926, %v3246
      %v3248 = vpop.f32.mrb[0].mxu0
      %v3249 = vpop.f32.mrb[0].mxu0
      %v3250 = vadd.f32 %v2929, %v3249
      %v3251 = vpop.f32.mrb[0].mxu0
      %3252 = vmatprep.mubr.bf16.mxu0 0
      %3253 = vmatmul.mubr.bf16.gmra.mrb[0].mxu0 %v615
      %v3254 = vpop.f32.mrb[0].mxu0
      %v3255 = vadd.f32 %v2934, %v3254
      %v3256 = vpop.f32.mrb[0].mxu0
      %v3257 = vpop.f32.mrb[0].mxu0
      %v3258 = vadd.f32 %v2937, %v3257
      %v3259 = vpop.f32.mrb[0].mxu0
      %3260 = vmatprep.mubr.bf16.mxu0 0
      %3261 = vmatmul.mubr.bf16.gmra.mrb[0].mxu0 %v616
      %v3262 = vpop.f32.mrb[0].mxu0
      %v3263 = vadd.f32 %v2942, %v3262
      %v3264 = vpop.f32.mrb[0].mxu0
      %v3265 = vpop.f32.mrb[0].mxu0
      %v3266 = vadd.f32 %v2945, %v3265
      %v3267 = vpop.f32.mrb[0].mxu0
      %3268 = vmatprep.mubr.bf16.mxu0 0
      %3269 = vmatmul.mubr.bf16.gmra.mrb[0].mxu0 %v617
      %v3270 = vpop.f32.mrb[0].mxu0
      %v3271 = vadd.f32 %v2950, %v3270
      %v3272 = vpop.f32.mrb[0].mxu0
      %v3273 = vpop.f32.mrb[0].mxu0
      %v3274 = vadd.f32 %v2953, %v3273
      %v3275 = vpop.f32.mrb[0].mxu0
      %3276 = vmatprep.mubr.bf16.mxu0 0
      %3277 = vmatmul.mubr.bf16.gmra.mrb[0].mxu0 %v618
      %v3278 = vpop.f32.mrb[0].mxu0
      %v3279 = vadd.f32 %v2958, %v3278
      %v3280 = vpop.f32.mrb[0].mxu0
      %v3281 = vpop.f32.mrb[0].mxu0
      %v3282 = vadd.f32 %v2961, %v3281
      %v3283 = vpop.f32.mrb[0].mxu0
      %3284 = vmatprep.mubr.bf16.mxu0 0
      %3285 = vmatmul.mubr.bf16.gmra.mrb[0].mxu0 %v619
      %v3286 = vpop.f32.mrb[0].mxu0
      %v3287 = vadd.f32 %v2966, %v3286
      %v3288 = vpop.f32.mrb[0].mxu0
      %v3289 = vpop.f32.mrb[0].mxu0
      %v3290 = vadd.f32 %v2969, %v3289
      %v3291 = vpop.f32.mrb[0].mxu0
      %3292 = vmatprep.mubr.bf16.mxu0 0
      %3293 = vmatmul.mubr.bf16.gmra.mrb[0].mxu0 %v620
      %v3294 = vpop.f32.mrb[0].mxu0
      %v3295 = vadd.f32 %v2974, %v3294
      %v3296 = vpop.f32.mrb[0].mxu0
      %v3297 = vpop.f32.mrb[0].mxu0
      %v3298 = vadd.f32 %v2977, %v3297
      %v3299 = vpop.f32.mrb[0].mxu0
      %3300 = vmatprep.mubr.bf16.mxu0 0
      %3301 = vmatmul.mubr.bf16.gmra.mrb[0].mxu0 %v621
      %v3302 = vpop.f32.mrb[0].mxu0
      %v3303 = vadd.f32 %v2982, %v3302
      %v3304 = vpop.f32.mrb[0].mxu0
      %v3305 = vpop.f32.mrb[0].mxu0
      %v3306 = vadd.f32 %v2985, %v3305
      %v3307 = vpop.f32.mrb[0].mxu0
      %3308 = vmatprep.mubr.bf16.mxu0 0
      %3309 = vmatmul.mubr.bf16.gmra.mrb[0].mxu0 %v622
      %v3310 = vpop.f32.mrb[0].mxu0
      %v3311 = vadd.f32 %v2990, %v3310
      %v3312 = vpop.f32.mrb[0].mxu0
      %v3313 = vpop.f32.mrb[0].mxu0
      %v3314 = vadd.f32 %v2993, %v3313
      %v3315 = vpop.f32.mrb[0].mxu0
      %3316 = vmatprep.mubr.bf16.mxu0 0
      %3317 = vmatmul.mubr.bf16.gmra.mrb[0].mxu0 %v623
      %v3318 = vpop.f32.mrb[0].mxu0
      %v3319 = vadd.f32 %v2998, %v3318
      %v3320 = vpop.f32.mrb[0].mxu0
      %v3321 = vpop.f32.mrb[0].mxu0
      %v3322 = vadd.f32 %v3001, %v3321
      %v3323 = vpop.f32.mrb[0].mxu0
      %3324 = vmatprep.mubr.bf16.mxu0 0
      %3325 = vmatmul.mubr.bf16.gmra.mrb[0].mxu0 %v624
      %v3326 = vpop.f32.mrb[0].mxu0
      %v3327 = vadd.f32 %v3006, %v3326
      %v3328 = vpop.f32.mrb[0].mxu0
      %v3329 = vpop.f32.mrb[0].mxu0
      %v3330 = vadd.f32 %v3009, %v3329
      %v3331 = vpop.f32.mrb[0].mxu0
      %3332 = vmatprep.mubr.bf16.mxu0 0
      %3333 = vmatmul.mubr.bf16.gmra.mrb[0].mxu0 %v625
      %v3334 = vpop.f32.mrb[0].mxu0
      %v3335 = vadd.f32 %v3014, %v3334
      %v3336 = vpop.f32.mrb[0].mxu0
      %v3337 = vpop.f32.mrb[0].mxu0
      %v3338 = vadd.f32 %v3017, %v3337
      %v3339 = vpop.f32.mrb[0].mxu0
      %3340 = vmatprep.mubr.bf16.mxu0 0
      %3341 = vmatmul.mubr.bf16.gmra.mrb[0].mxu0 %v626
      %v3342 = vpop.f32.mrb[0].mxu0
      %v3343 = vadd.f32 %v3022, %v3342
      %v3344 = vpop.f32.mrb[0].mxu0
      %v3345 = vpop.f32.mrb[0].mxu0
      %v3346 = vadd.f32 %v3025, %v3345
      %v3347 = vpop.f32.mrb[0].mxu0
      %3348 = vmatprep.mubr.bf16.mxu0 0
      %3349 = vmatmul.mubr.bf16.gmra.mrb[0].mxu0 %v627
      %v3350 = vpop.f32.mrb[0].mxu0
      %v3351 = vadd.f32 %v3030, %v3350
      %v3352 = vpop.f32.mrb[0].mxu0
      %v3353 = vpop.f32.mrb[0].mxu0
      %v3354 = vadd.f32 %v3033, %v3353
      %v3355 = vpop.f32.mrb[0].mxu0
      %3356 = vmatprep.mubr.bf16.mxu0 0
      %3357 = vmatmul.mubr.bf16.gmra.mrb[0].mxu0 %v628
      %v3358 = vpop.f32.mrb[0].mxu0
      %v3359 = vadd.f32 %v3038, %v3358
      %v3360 = vpop.f32.mrb[0].mxu0
      %v3361 = vpop.f32.mrb[0].mxu0
      %v3362 = vadd.f32 %v3041, %v3361
      %v3363 = vpop.f32.mrb[0].mxu0
      %3364 = vmatprep.mubr.bf16.mxu0 0
      %3365 = vmatmul.mubr.bf16.gmra.mrb[0].mxu0 %v629
      %v3366 = vpop.f32.mrb[0].mxu0
      %v3367 = vadd.f32 %v3046, %v3366
      %v3368 = vpop.f32.mrb[0].mxu0
      %v3369 = vpop.f32.mrb[0].mxu0
      %v3370 = vadd.f32 %v3049, %v3369
      %v3371 = vpop.f32.mrb[0].mxu0
      %3372 = vmatprep.mubr.bf16.mxu0 0
      %3373 = vmatmul.mubr.bf16.gmra.mrb[0].mxu0 %v630
      %v3374 = vpop.f32.mrb[0].mxu0
      %v3375 = vadd.f32 %v3054, %v3374
      %v3376 = vpop.f32.mrb[0].mxu0
      %v3377 = vpop.f32.mrb[0].mxu0
      %v3378 = vadd.f32 %v3057, %v3377
      %v3379 = vpop.f32.mrb[0].mxu0
      %3380 = vmatprep.mubr.bf16.mxu0 0
      %3381 = vmatmul.mubr.bf16.gmra.mrb[0].mxu0 %v631
      %v3382 = vpop.f32.mrb[0].mxu0
      %v3383 = vadd.f32 %v3062, %v3382
      %v3384 = vpop.f32.mrb[0].mxu0
      %v3385 = vpop.f32.mrb[0].mxu0
      %v3386 = vadd.f32 %v3065, %v3385
      %v3387 = vpop.f32.mrb[0].mxu0
      %3388 = vmatprep.mubr.bf16.mxu0 0
      %3389 = vmatmul.mubr.bf16.gmra.mrb[0].mxu0 %v632
      %v3390 = vpop.f32.mrb[0].mxu0
      %v3391 = vadd.f32 %v3070, %v3390
      %v3392 = vpop.f32.mrb[0].mxu0
      %v3393 = vpop.f32.mrb[0].mxu0
      %v3394 = vadd.f32 %v3073, %v3393
      %v3395 = vpop.f32.mrb[0].mxu0
      %3396 = vmatprep.mubr.bf16.mxu0 0
      %3397 = vmatmul.mubr.bf16.gmra.mrb[0].mxu0 %v633
      %v3398 = vpop.f32.mrb[0].mxu0
      %v3399 = vadd.f32 %v3078, %v3398
      %v3400 = vpop.f32.mrb[0].mxu0
      %v3401 = vpop.f32.mrb[0].mxu0
      %v3402 = vadd.f32 %v3081, %v3401
      %v3403 = vpop.f32.mrb[0].mxu0
      %3404 = vmatprep.mubr.bf16.mxu0 0
      %3405 = vmatmul.mubr.bf16.gmra.mrb[0].mxu0 %v634
      %v3406 = vpop.f32.mrb[0].mxu0
      %v3407 = vadd.f32 %v3086, %v3406
      %v3408 = vpop.f32.mrb[0].mxu0
      %v3409 = vpop.f32.mrb[0].mxu0
      %v3410 = vadd.f32 %v3089, %v3409
      %v3411 = vpop.f32.mrb[0].mxu0
      %3412 = vmatprep.mubr.bf16.mxu0 0
      %3413 = vmatmul.mubr.bf16.gmra.mrb[0].mxu0 %v635
      %v3414 = vpop.f32.mrb[0].mxu0
      %v3415 = vadd.f32 %v3094, %v3414
      %v3416 = vpop.f32.mrb[0].mxu0
      %v3417 = vpop.f32.mrb[0].mxu0
      %v3418 = vadd.f32 %v3097, %v3417
      %v3419 = vpop.f32.mrb[0].mxu0
      %3420 = vmatprep.mubr.bf16.mxu0 0
      %3421 = vmatmul.mubr.bf16.gmra.mrb[0].mxu0 %v680
      %v3422 = vpop.f32.mrb[0].mxu0
      %v3423 = vadd.f32 %v3102, %v3422
      %v3424 = vpop.f32.mrb[0].mxu0
      %v3425 = vpop.f32.mrb[0].mxu0
      %v3426 = vadd.f32 %v3105, %v3425
      %v3427 = vpop.f32.mrb[0].mxu0
      %3428 = vmatprep.mubr.bf16.mxu0 0
      %3429 = vmatmul.mubr.bf16.gmra.mrb[0].mxu0 %v681
      %v3430 = vpop.f32.mrb[0].mxu0
      %v3431 = vadd.f32 %v3110, %v3430
      %v3432 = vpop.f32.mrb[0].mxu0
      %v3433 = vpop.f32.mrb[0].mxu0
      %v3434 = vadd.f32 %v3113, %v3433
      %v3435 = vpop.f32.mrb[0].mxu0
      %3436 = vmatprep.mubr.bf16.mxu0 0
      %3437 = vmatmul.mubr.bf16.gmra.mrb[0].mxu0 %v692
      %v3438 = vpop.f32.mrb[0].mxu0
      %v3439 = vadd.f32 %v3118, %v3438
      %v3440 = vpop.f32.mrb[0].mxu0
      %v3441 = vpop.f32.mrb[0].mxu0
      %v3442 = vadd.f32 %v3121, %v3441
      %v3443 = vpop.f32.mrb[0].mxu0
      %3444 = vmatprep.mubr.bf16.mxu0 0
      %3445 = vmatmul.mubr.bf16.gmra.mrb[0].mxu0 %v693
      %v3446 = vpop.f32.mrb[0].mxu0
      %v3447 = vadd.f32 %v3126, %v3446
      %v3448 = vpop.f32.mrb[0].mxu0
      %v3449 = vpop.f32.mrb[0].mxu0
      %v3450 = vadd.f32 %v3129, %v3449
      %v3451 = vpop.f32.mrb[0].mxu0
      %3452 = vdwg.mxu0
      %vm3525 = vcmask 1046528
      %v3526 = vrot.slane %v3167, 1
      %v3527 = vrot.slane %v3170, 1
      %v3528 = vsel %vm3525, %v3526, %v3527
      %v3529 = vrot.slane %v3175, 1
      %v3530 = vsel %vm3525, %v3527, %v3529
      %v3531 = vrot.slane %v3178, 1
      %v3532 = vsel %vm3525, %v3529, %v3531
      %v3533 = vrot.slane %v3183, 1
      %v3534 = vrot.slane %v3186, 1
      %v3535 = vsel %vm3525, %v3533, %v3534
      %v3536 = vrot.slane %v3191, 1
      %v3537 = vsel %vm3525, %v3534, %v3536
      %v3538 = vrot.slane %v3194, 1
      %v3539 = vsel %vm3525, %v3536, %v3538
      %v3540 = vrot.slane %v3199, 1
      %v3541 = vrot.slane %v3202, 1
      %v3542 = vsel %vm3525, %v3540, %v3541
      %v3543 = vrot.slane %v3207, 1
      %v3544 = vsel %vm3525, %v3541, %v3543
      %v3545 = vrot.slane %v3210, 1
      %v3546 = vsel %vm3525, %v3543, %v3545
      %v3547 = vrot.slane %v3215, 1
      %v3548 = vrot.slane %v3218, 1
      %v3549 = vsel %vm3525, %v3547, %v3548
      %v3550 = vrot.slane %v3223, 1
      %v3551 = vsel %vm3525, %v3548, %v3550
      %v3552 = vrot.slane %v3226, 1
      %v3553 = vsel %vm3525, %v3550, %v3552
      %v3554 = vrot.slane %v3231, 1
      %v3555 = vrot.slane %v3234, 1
      %v3556 = vsel %vm3525, %v3554, %v3555
      %v3557 = vrot.slane %v3239, 1
      %v3558 = vsel %vm3525, %v3555, %v3557
      %v3559 = vrot.slane %v3242, 1
      %v3560 = vsel %vm3525, %v3557, %v3559
      %v3561 = vrot.slane %v3247, 1
      %v3562 = vrot.slane %v3250, 1
      %v3563 = vsel %vm3525, %v3561, %v3562
      %v3564 = vrot.slane %v3255, 1
      %v3565 = vsel %vm3525, %v3562, %v3564
      %v3566 = vrot.slane %v3258, 1
      %v3567 = vsel %vm3525, %v3564, %v3566
      %v3568 = vrot.slane %v3263, 1
      %v3569 = vrot.slane %v3266, 1
      %v3570 = vsel %vm3525, %v3568, %v3569
      %v3571 = vrot.slane %v3271, 1
      %v3572 = vsel %vm3525, %v3569, %v3571
      %v3573 = vrot.slane %v3274, 1
      %v3574 = vsel %vm3525, %v3571, %v3573
      %v3575 = vrot.slane %v3279, 1
      %v3576 = vrot.slane %v3282, 1
      %v3577 = vsel %vm3525, %v3575, %v3576
      %v3578 = vrot.slane %v3287, 1
      %v3579 = vsel %vm3525, %v3576, %v3578
      %v3580 = vrot.slane %v3290, 1
      %v3581 = vsel %vm3525, %v3578, %v3580
      %v3582 = vrot.slane %v3295, 1
      %v3583 = vrot.slane %v3298, 1
      %v3584 = vsel %vm3525, %v3582, %v3583
      %v3585 = vrot.slane %v3303, 1
      %v3586 = vsel %vm3525, %v3583, %v3585
      %v3587 = vrot.slane %v3306, 1
      %v3588 = vsel %vm3525, %v3585, %v3587
      %v3589 = vrot.slane %v3311, 1
      %v3590 = vrot.slane %v3314, 1
      %v3591 = vsel %vm3525, %v3589, %v3590
      %v3592 = vrot.slane %v3319, 1
      %v3593 = vsel %vm3525, %v3590, %v3592
      %v3594 = vrot.slane %v3322, 1
      %v3595 = vsel %vm3525, %v3592, %v3594
      %v3596 = vrot.slane %v3327, 1
      %v3597 = vrot.slane %v3330, 1
      %v3598 = vsel %vm3525, %v3596, %v3597
      %v3599 = vrot.slane %v3335, 1
      %v3600 = vsel %vm3525, %v3597, %v3599
      %v3601 = vrot.slane %v3338, 1
      %v3602 = vsel %vm3525, %v3599, %v3601
      %v3603 = vrot.slane %v3343, 1
      %v3604 = vrot.slane %v3346, 1
      %v3605 = vsel %vm3525, %v3603, %v3604
      %v3606 = vrot.slane %v3351, 1
      %v3607 = vsel %vm3525, %v3604, %v3606
      %v3608 = vrot.slane %v3354, 1
      %v3609 = vsel %vm3525, %v3606, %v3608
      %v3610 = vrot.slane %v3359, 1
      %v3611 = vrot.slane %v3362, 1
      %v3612 = vsel %vm3525, %v3610, %v3611
      %v3613 = vrot.slane %v3367, 1
      %v3614 = vsel %vm3525, %v3611, %v3613
      %v3615 = vrot.slane %v3370, 1
      %v3616 = vsel %vm3525, %v3613, %v3615
      %v3617 = vrot.slane %v3375, 1
      %v3618 = vrot.slane %v3378, 1
      %v3619 = vsel %vm3525, %v3617, %v3618
      %v3620 = vrot.slane %v3383, 1
      %v3621 = vsel %vm3525, %v3618, %v3620
      %v3622 = vrot.slane %v3386, 1
      %v3623 = vsel %vm3525, %v3620, %v3622
      %v3624 = vrot.slane %v3391, 1
      %v3625 = vrot.slane %v3394, 1
      %v3626 = vsel %vm3525, %v3624, %v3625
      %v3627 = vrot.slane %v3399, 1
      %v3628 = vsel %vm3525, %v3625, %v3627
      %v3629 = vrot.slane %v3402, 1
      %v3630 = vsel %vm3525, %v3627, %v3629
      %v3631 = vrot.slane %v3407, 1
      %v3632 = vrot.slane %v3410, 1
      %v3633 = vsel %vm3525, %v3631, %v3632
      %v3634 = vrot.slane %v3415, 1
      %v3635 = vsel %vm3525, %v3632, %v3634
      %v3636 = vrot.slane %v3418, 1
      %v3637 = vsel %vm3525, %v3634, %v3636
      %v3638 = vrot.slane %v3423, 1
      %v3639 = vrot.slane %v3426, 1
      %v3640 = vsel %vm3525, %v3638, %v3639
      %v3641 = vrot.slane %v3431, 1
      %v3642 = vsel %vm3525, %v3639, %v3641
      %v3643 = vrot.slane %v3434, 1
      %v3644 = vsel %vm3525, %v3641, %v3643
      %v3645 = vrot.slane %v3439, 1
      %v3646 = vrot.slane %v3442, 1
      %v3647 = vsel %vm3525, %v3645, %v3646
      %v3648 = vrot.slane %v3447, 1
      %v3649 = vsel %vm3525, %v3646, %v3648
      %v3650 = vrot.slane %v3450, 1
      %v3651 = vsel %vm3525, %v3648, %v3650
      %v3724 = vadd.f32 %v2546, %v3528
      %v3725 = vadd.f32 %v2547, %v3530
      %v3726 = vadd.f32 %v2548, %v3532
      %v3727 = vadd.f32 %v2549, %v3531
      %v3728 = vadd.f32 %v2550, %v3535
      %v3729 = vadd.f32 %v2551, %v3537
      %v3730 = vadd.f32 %v2552, %v3539
      %v3731 = vadd.f32 %v2553, %v3538
      %v3732 = vadd.f32 %v2554, %v3542
      %v3733 = vadd.f32 %v2555, %v3544
      %v3734 = vadd.f32 %v2556, %v3546
      %v3735 = vadd.f32 %v2557, %v3545
      %v3736 = vadd.f32 %v2558, %v3549
      %v3737 = vadd.f32 %v2559, %v3551
      %v3738 = vadd.f32 %v2560, %v3553
      %v3739 = vadd.f32 %v2561, %v3552
      %v3740 = vadd.f32 %v2562, %v3556
      %v3741 = vadd.f32 %v2563, %v3558
      %v3742 = vadd.f32 %v2564, %v3560
      %v3743 = vadd.f32 %v2565, %v3559
      %v3744 = vadd.f32 %v2566, %v3563
      %v3745 = vadd.f32 %v2567, %v3565
      %v3746 = vadd.f32 %v2568, %v3567
      %v3747 = vadd.f32 %v2569, %v3566
      %v3748 = vadd.f32 %v2570, %v3570
      %v3749 = vadd.f32 %v2571, %v3572
      %v3750 = vadd.f32 %v2572, %v3574
      %v3751 = vadd.f32 %v2573, %v3573
      %v3752 = vadd.f32 %v2574, %v3577
      %v3753 = vadd.f32 %v2575, %v3579
      %v3754 = vadd.f32 %v2576, %v3581
      %v3755 = vadd.f32 %v2577, %v3580
      %v3756 = vadd.f32 %v2578, %v3584
      %v3757 = vadd.f32 %v2579, %v3586
      %v3758 = vadd.f32 %v2580, %v3588
      %v3759 = vadd.f32 %v2581, %v3587
      %v3760 = vadd.f32 %v2582, %v3591
      %v3761 = vadd.f32 %v2583, %v3593
      %v3762 = vadd.f32 %v2584, %v3595
      %v3763 = vadd.f32 %v2585, %v3594
      %v3764 = vadd.f32 %v2586, %v3598
      %v3765 = vadd.f32 %v2587, %v3600
      %v3766 = vadd.f32 %v2588, %v3602
      %v3767 = vadd.f32 %v2589, %v3601
      %v3768 = vadd.f32 %v2590, %v3605
      %v3769 = vadd.f32 %v2591, %v3607
      %v3770 = vadd.f32 %v2592, %v3609
      %v3771 = vadd.f32 %v2593, %v3608
      %v3772 = vadd.f32 %v2594, %v3612
      %v3773 = vadd.f32 %v2595, %v3614
      %v3774 = vadd.f32 %v2596, %v3616
      %v3775 = vadd.f32 %v2597, %v3615
      %v3776 = vadd.f32 %v2598, %v3619
      %v3777 = vadd.f32 %v2599, %v3621
      %v3778 = vadd.f32 %v2600, %v3623
      %v3779 = vadd.f32 %v2601, %v3622
      %v3780 = vadd.f32 %v2602, %v3626
      %v3781 = vadd.f32 %v2603, %v3628
      %v3782 = vadd.f32 %v2604, %v3630
      %v3783 = vadd.f32 %v2605, %v3629
      %v3784 = vadd.f32 %v2606, %v3633
      %v3785 = vadd.f32 %v2607, %v3635
      %v3786 = vadd.f32 %v2608, %v3637
      %v3787 = vadd.f32 %v2609, %v3636
      %v3788 = vadd.f32 %v2610, %v3640
      %v3789 = vadd.f32 %v2611, %v3642
      %v3790 = vadd.f32 %v2612, %v3644
      %v3791 = vadd.f32 %v2613, %v3643
      %v3792 = vadd.f32 %v2614, %v3647
      %v3793 = vadd.f32 %v2615, %v3649
      %v3794 = vadd.f32 %v2616, %v3651
      %v3795 = vadd.f32 %v2617, %v3650
      %v3796 = vlaneseq
      %v3797 = vshrl.u32 %v3796, 7
      %v3798 = vsub.s32 0, %v3797
      %v3799 = vrot.slane %v375, %v3798
      %v3800 = vmul.f32 %v3724, %v3799
      %v3801 = vmul.f32 %v3725, %v3799
      %v3802 = vmul.f32 %v3726, %v3799
      %v3803 = vmul.f32 %v3727, %v3799
      %v3804 = vmul.f32 %v3728, %v3799
      %v3805 = vmul.f32 %v3729, %v3799
      %v3806 = vmul.f32 %v3730, %v3799
      %v3807 = vmul.f32 %v3731, %v3799
      %v3808 = vmul.f32 %v3732, %v3799
      %v3809 = vmul.f32 %v3733, %v3799
      %v3810 = vmul.f32 %v3734, %v3799
      %v3811 = vmul.f32 %v3735, %v3799
      %v3812 = vmul.f32 %v3736, %v3799
      %v3813 = vmul.f32 %v3737, %v3799
      %v3814 = vmul.f32 %v3738, %v3799
      %v3815 = vmul.f32 %v3739, %v3799
      %v3816 = vmul.f32 %v3740, %v3799
      %v3817 = vmul.f32 %v3741, %v3799
      %v3818 = vmul.f32 %v3742, %v3799
      %v3819 = vmul.f32 %v3743, %v3799
      %v3820 = vmul.f32 %v3744, %v3799
      %v3821 = vmul.f32 %v3745, %v3799
      %v3822 = vmul.f32 %v3746, %v3799
      %v3823 = vmul.f32 %v3747, %v3799
      %v3824 = vmul.f32 %v3748, %v3799
      %v3825 = vmul.f32 %v3749, %v3799
      %v3826 = vmul.f32 %v3750, %v3799
      %v3827 = vmul.f32 %v3751, %v3799
      %v3828 = vmul.f32 %v3752, %v3799
      %v3829 = vmul.f32 %v3753, %v3799
      %v3830 = vmul.f32 %v3754, %v3799
      %v3831 = vmul.f32 %v3755, %v3799
      %v3832 = vmul.f32 %v3756, %v3799
      %v3833 = vmul.f32 %v3757, %v3799
      %v3834 = vmul.f32 %v3758, %v3799
      %v3835 = vmul.f32 %v3759, %v3799
      %v3836 = vmul.f32 %v3760, %v3799
      %v3837 = vmul.f32 %v3761, %v3799
      %v3838 = vmul.f32 %v3762, %v3799
      %v3839 = vmul.f32 %v3763, %v3799
      %v3840 = vmul.f32 %v3764, %v3799
      %v3841 = vmul.f32 %v3765, %v3799
      %v3842 = vmul.f32 %v3766, %v3799
      %v3843 = vmul.f32 %v3767, %v3799
      %v3844 = vmul.f32 %v3768, %v3799
      %v3845 = vmul.f32 %v3769, %v3799
      %v3846 = vmul.f32 %v3770, %v3799
      %v3847 = vmul.f32 %v3771, %v3799
      %v3848 = vmul.f32 %v3772, %v3799
      %v3849 = vmul.f32 %v3773, %v3799
      %v3850 = vmul.f32 %v3774, %v3799
      %v3851 = vmul.f32 %v3775, %v3799
      %v3852 = vmul.f32 %v3776, %v3799
      %v3853 = vmul.f32 %v3777, %v3799
      %v3854 = vmul.f32 %v3778, %v3799
      %v3855 = vmul.f32 %v3779, %v3799
      %v3856 = vmul.f32 %v3780, %v3799
      %v3857 = vmul.f32 %v3781, %v3799
      %v3858 = vmul.f32 %v3782, %v3799
      %v3859 = vmul.f32 %v3783, %v3799
      %v3860 = vmul.f32 %v3784, %v3799
      %v3861 = vmul.f32 %v3785, %v3799
      %v3862 = vmul.f32 %v3786, %v3799
      %v3863 = vmul.f32 %v3787, %v3799
      %v3864 = vmul.f32 %v3788, %v3799
      %v3865 = vmul.f32 %v3789, %v3799
      %v3866 = vmul.f32 %v3790, %v3799
      %v3867 = vmul.f32 %v3791, %v3799
      %v3868 = vmul.f32 %v3792, %v3799
      %v3869 = vmul.f32 %v3793, %v3799
      %v3870 = vmul.f32 %v3794, %v3799
      %v3871 = vmul.f32 %v3795, %v3799
      %v3872 = vlaneseq
      %v3873 = vshrl.u32 %v3872, 7
      %v3874 = vsub.s32 1, %v3873
      %v3875 = vrot.slane %v375, %v3874
      %v3876 = vadd.f32 %v3800, %v3875
      %v3877 = vadd.f32 %v3801, %v3875
      %v3878 = vadd.f32 %v3802, %v3875
      %v3879 = vadd.f32 %v3803, %v3875
      %v3880 = vadd.f32 %v3804, %v3875
      %v3881 = vadd.f32 %v3805, %v3875
      %v3882 = vadd.f32 %v3806, %v3875
      %v3883 = vadd.f32 %v3807, %v3875
      %v3884 = vadd.f32 %v3808, %v3875
      %v3885 = vadd.f32 %v3809, %v3875
      %v3886 = vadd.f32 %v3810, %v3875
      %v3887 = vadd.f32 %v3811, %v3875
      %v3888 = vadd.f32 %v3812, %v3875
      %v3889 = vadd.f32 %v3813, %v3875
      %v3890 = vadd.f32 %v3814, %v3875
      %v3891 = vadd.f32 %v3815, %v3875
      %v3892 = vadd.f32 %v3816, %v3875
      %v3893 = vadd.f32 %v3817, %v3875
      %v3894 = vadd.f32 %v3818, %v3875
      %v3895 = vadd.f32 %v3819, %v3875
      %v3896 = vadd.f32 %v3820, %v3875
      %v3897 = vadd.f32 %v3821, %v3875
      %v3898 = vadd.f32 %v3822, %v3875
      %v3899 = vadd.f32 %v3823, %v3875
      %v3900 = vadd.f32 %v3824, %v3875
      %v3901 = vadd.f32 %v3825, %v3875
      %v3902 = vadd.f32 %v3826, %v3875
      %v3903 = vadd.f32 %v3827, %v3875
      %v3904 = vadd.f32 %v3828, %v3875
      %v3905 = vadd.f32 %v3829, %v3875
      %v3906 = vadd.f32 %v3830, %v3875
      %v3907 = vadd.f32 %v3831, %v3875
      %v3908 = vadd.f32 %v3832, %v3875
      %v3909 = vadd.f32 %v3833, %v3875
      %v3910 = vadd.f32 %v3834, %v3875
      %v3911 = vadd.f32 %v3835, %v3875
      %v3912 = vadd.f32 %v3836, %v3875
      %v3913 = vadd.f32 %v3837, %v3875
      %v3914 = vadd.f32 %v3838, %v3875
      %v3915 = vadd.f32 %v3839, %v3875
      %v3916 = vadd.f32 %v3840, %v3875
      %v3917 = vadd.f32 %v3841, %v3875
      %v3918 = vadd.f32 %v3842, %v3875
      %v3919 = vadd.f32 %v3843, %v3875
      %v3920 = vadd.f32 %v3844, %v3875
      %v3921 = vadd.f32 %v3845, %v3875
      %v3922 = vadd.f32 %v3846, %v3875
      %v3923 = vadd.f32 %v3847, %v3875
      %v3924 = vadd.f32 %v3848, %v3875
      %v3925 = vadd.f32 %v3849, %v3875
      %v3926 = vadd.f32 %v3850, %v3875
      %v3927 = vadd.f32 %v3851, %v3875
      %v3928 = vadd.f32 %v3852, %v3875
      %v3929 = vadd.f32 %v3853, %v3875
      %v3930 = vadd.f32 %v3854, %v3875
      %v3931 = vadd.f32 %v3855, %v3875
      %v3932 = vadd.f32 %v3856, %v3875
      %v3933 = vadd.f32 %v3857, %v3875
      %v3934 = vadd.f32 %v3858, %v3875
      %v3935 = vadd.f32 %v3859, %v3875
      %v3936 = vadd.f32 %v3860, %v3875
      %v3937 = vadd.f32 %v3861, %v3875
      %v3938 = vadd.f32 %v3862, %v3875
      %v3939 = vadd.f32 %v3863, %v3875
      %v3940 = vadd.f32 %v3864, %v3875
      %v3941 = vadd.f32 %v3865, %v3875
      %v3942 = vadd.f32 %v3866, %v3875
      %v3943 = vadd.f32 %v3867, %v3875
      %v3944 = vadd.f32 %v3868, %v3875
      %v3945 = vadd.f32 %v3869, %v3875
      %v3946 = vadd.f32 %v3870, %v3875
      %v3947 = vadd.f32 %v3871, %v3875
      %v3948 = vmax.f32 %v3876, 0.0
      %v3949 = vmax.f32 %v3877, 0.0
      %v3950 = vmax.f32 %v3878, 0.0
      %v3951 = vmax.f32 %v3879, 0.0
      %v3952 = vmax.f32 %v3880, 0.0
      %v3953 = vmax.f32 %v3881, 0.0
      %v3954 = vmax.f32 %v3882, 0.0
      %v3955 = vmax.f32 %v3883, 0.0
      %v3956 = vmax.f32 %v3884, 0.0
      %v3957 = vmax.f32 %v3885, 0.0
      %v3958 = vmax.f32 %v3886, 0.0
      %v3959 = vmax.f32 %v3887, 0.0
      %v3960 = vmax.f32 %v3888, 0.0
      %v3961 = vmax.f32 %v3889, 0.0
      %v3962 = vmax.f32 %v3890, 0.0
      %v3963 = vmax.f32 %v3891, 0.0
      %v3964 = vmax.f32 %v3892, 0.0
      %v3965 = vmax.f32 %v3893, 0.0
      %v3966 = vmax.f32 %v3894, 0.0
      %v3967 = vmax.f32 %v3895, 0.0
      %v3968 = vmax.f32 %v3896, 0.0
      %v3969 = vmax.f32 %v3897, 0.0
      %v3970 = vmax.f32 %v3898, 0.0
      %v3971 = vmax.f32 %v3899, 0.0
      %v3972 = vmax.f32 %v3900, 0.0
      %v3973 = vmax.f32 %v3901, 0.0
      %v3974 = vmax.f32 %v3902, 0.0
      %v3975 = vmax.f32 %v3903, 0.0
      %v3976 = vmax.f32 %v3904, 0.0
      %v3977 = vmax.f32 %v3905, 0.0
      %v3978 = vmax.f32 %v3906, 0.0
      %v3979 = vmax.f32 %v3907, 0.0
      %v3980 = vmax.f32 %v3908, 0.0
      %v3981 = vmax.f32 %v3909, 0.0
      %v3982 = vmax.f32 %v3910, 0.0
      %v3983 = vmax.f32 %v3911, 0.0
      %v3984 = vmax.f32 %v3912, 0.0
      %v3985 = vmax.f32 %v3913, 0.0
      %v3986 = vmax.f32 %v3914, 0.0
      %v3987 = vmax.f32 %v3915, 0.0
      %v3988 = vmax.f32 %v3916, 0.0
      %v3989 = vmax.f32 %v3917, 0.0
      %v3990 = vmax.f32 %v3918, 0.0
      %v3991 = vmax.f32 %v3919, 0.0
      %v3992 = vmax.f32 %v3920, 0.0
      %v3993 = vmax.f32 %v3921, 0.0
      %v3994 = vmax.f32 %v3922, 0.0
      %v3995 = vmax.f32 %v3923, 0.0
      %v3996 = vmax.f32 %v3924, 0.0
      %v3997 = vmax.f32 %v3925, 0.0
      %v3998 = vmax.f32 %v3926, 0.0
      %v3999 = vmax.f32 %v3927, 0.0
      %v4000 = vmax.f32 %v3928, 0.0
      %v4001 = vmax.f32 %v3929, 0.0
      %v4002 = vmax.f32 %v3930, 0.0
      %v4003 = vmax.f32 %v3931, 0.0
      %v4004 = vmax.f32 %v3932, 0.0
      %v4005 = vmax.f32 %v3933, 0.0
      %v4006 = vmax.f32 %v3934, 0.0
      %v4007 = vmax.f32 %v3935, 0.0
      %v4008 = vmax.f32 %v3936, 0.0
      %v4009 = vmax.f32 %v3937, 0.0
      %v4010 = vmax.f32 %v3938, 0.0
      %v4011 = vmax.f32 %v3939, 0.0
      %v4012 = vmax.f32 %v3940, 0.0
      %v4013 = vmax.f32 %v3941, 0.0
      %v4014 = vmax.f32 %v3942, 0.0
      %v4015 = vmax.f32 %v3943, 0.0
      %v4016 = vmax.f32 %v3944, 0.0
      %v4017 = vmax.f32 %v3945, 0.0
      %v4018 = vmax.f32 %v3946, 0.0
      %v4019 = vmax.f32 %v3947, 0.0
      %v4020 = vlaneseq
      %v4021 = vshrl.u32 %v4020, 7
      %v4022 = vadd.s32 %v4021, 8
      %v4023 = vadd.s32 %v4021, 16
      %vm4024 = vcmp.ne.s32.totalorder %v4021, 0
      %vm4025 = vcmp.ne.s32.totalorder %v4022, 0
      %vm4026 = vcmp.ne.s32.totalorder %v4023, 0
      %vm4027 = vcmp.ne.s32.totalorder %v4021, 17
      %vm4028 = vcmp.ne.s32.totalorder %v4022, 17
      %vm4029 = vcmp.ne.s32.totalorder %v4023, 17
      %vm4030 = vmand %vm4024, %vm4027
      %vm4031 = vmand %vm4025, %vm4028
      %vm4032 = vmand %vm4026, %vm4029
      %p4033 = scmp.ne.s32.totalorder %s22, 0
      %s4034 = scalar_select %p4033, 1, 0
      %v4035 = vstv %s4034
      %vm4036 = vcmp.eq.s32.totalorder %v4035, 1
      %vm4037 = vmand %vm4030, %vm4036
      %vm4038 = vmand %vm4031, %vm4036
      %vm4039 = vmand %vm4032, %vm4036
      %vm4040 = vmand %vm4030, 1
      %vm4041 = vmand %vm4031, 1
      %vm4042 = vmand %vm4032, 1
      %vm4043 = vmand %vm4037, 1
      %vm4044 = vmand %vm4038, 1
      %vm4045 = vmand %vm4039, 1
      %vm4046 = vmand %vm4040, %vm4036
      %vm4047 = vmand %vm4041, %vm4036
      %vm4048 = vmand %vm4042, %vm4036
      %v4049 = vsel %vm4043, 1, 0
      %v4050 = vsel %vm4044, 1, 0
      %v4051 = vsel %vm4045, 1, 0
      %v4052 = vsel %vm4040, 1, 0
      %v4053 = vsel %vm4041, 1, 0
      %v4054 = vsel %vm4042, 1, 0
      %v4055 = vsel %vm4046, 1, 0
      %v4056 = vsel %vm4047, 1, 0
      %v4057 = vsel %vm4048, 1, 0
      %vm4058 = vcmp.eq.s32.totalorder %v4049, 1
      %vm4059 = vcmp.eq.s32.totalorder %v4050, 1
      %vm4060 = vcmp.eq.s32.totalorder %v4051, 1
      %vm4061 = vcmp.eq.s32.totalorder %v4052, 1
      %vm4062 = vcmp.eq.s32.totalorder %v4053, 1
      %vm4063 = vcmp.eq.s32.totalorder %v4054, 1
      %vm4064 = vcmp.eq.s32.totalorder %v4055, 1
      %vm4065 = vcmp.eq.s32.totalorder %v4056, 1
      %vm4066 = vcmp.eq.s32.totalorder %v4057, 1
      %v4139 = vrot.slane %v3948, 1
      %v4140 = vrot.slane %v3949, 1
      %v4141 = vsel %vm3525, %v4139, %v4140
      %v4142 = vrot.slane %v3950, 1
      %v4143 = vsel %vm3525, %v4140, %v4142
      %v4144 = vrot.slane %v3951, 1
      %v4145 = vsel %vm3525, %v4142, %v4144
      %v4146 = vrot.slane %v3952, 1
      %v4147 = vrot.slane %v3953, 1
      %v4148 = vsel %vm3525, %v4146, %v4147
      %v4149 = vrot.slane %v3954, 1
      %v4150 = vsel %vm3525, %v4147, %v4149
      %v4151 = vrot.slane %v3955, 1
      %v4152 = vsel %vm3525, %v4149, %v4151
      %v4153 = vrot.slane %v3956, 1
      %v4154 = vrot.slane %v3957, 1
      %v4155 = vsel %vm3525, %v4153, %v4154
      %v4156 = vrot.slane %v3958, 1
      %v4157 = vsel %vm3525, %v4154, %v4156
      %v4158 = vrot.slane %v3959, 1
      %v4159 = vsel %vm3525, %v4156, %v4158
      %v4160 = vrot.slane %v3960, 1
      %v4161 = vrot.slane %v3961, 1
      %v4162 = vsel %vm3525, %v4160, %v4161
      %v4163 = vrot.slane %v3962, 1
      %v4164 = vsel %vm3525, %v4161, %v4163
      %v4165 = vrot.slane %v3963, 1
      %v4166 = vsel %vm3525, %v4163, %v4165
      %v4167 = vrot.slane %v3964, 1
      %v4168 = vrot.slane %v3965, 1
      %v4169 = vsel %vm3525, %v4167, %v4168
      %v4170 = vrot.slane %v3966, 1
      %v4171 = vsel %vm3525, %v4168, %v4170
      %v4172 = vrot.slane %v3967, 1
      %v4173 = vsel %vm3525, %v4170, %v4172
      %v4174 = vrot.slane %v3968, 1
      %v4175 = vrot.slane %v3969, 1
      %v4176 = vsel %vm3525, %v4174, %v4175
      %v4177 = vrot.slane %v3970, 1
      %v4178 = vsel %vm3525, %v4175, %v4177
      %v4179 = vrot.slane %v3971, 1
      %v4180 = vsel %vm3525, %v4177, %v4179
      %v4181 = vrot.slane %v3972, 1
      %v4182 = vrot.slane %v3973, 1
      %v4183 = vsel %vm3525, %v4181, %v4182
      %v4184 = vrot.slane %v3974, 1
      %v4185 = vsel %vm3525, %v4182, %v4184
      %v4186 = vrot.slane %v3975, 1
      %v4187 = vsel %vm3525, %v4184, %v4186
      %v4188 = vrot.slane %v3976, 1
      %v4189 = vrot.slane %v3977, 1
      %v4190 = vsel %vm3525, %v4188, %v4189
      %v4191 = vrot.slane %v3978, 1
      %v4192 = vsel %vm3525, %v4189, %v4191
      %v4193 = vrot.slane %v3979, 1
      %v4194 = vsel %vm3525, %v4191, %v4193
      %v4195 = vrot.slane %v3980, 1
      %v4196 = vrot.slane %v3981, 1
      %v4197 = vsel %vm3525, %v4195, %v4196
      %v4198 = vrot.slane %v3982, 1
      %v4199 = vsel %vm3525, %v4196, %v4198
      %v4200 = vrot.slane %v3983, 1
      %v4201 = vsel %vm3525, %v4198, %v4200
      %v4202 = vrot.slane %v3984, 1
      %v4203 = vrot.slane %v3985, 1
      %v4204 = vsel %vm3525, %v4202, %v4203
      %v4205 = vrot.slane %v3986, 1
      %v4206 = vsel %vm3525, %v4203, %v4205
      %v4207 = vrot.slane %v3987, 1
      %v4208 = vsel %vm3525, %v4205, %v4207
      %v4209 = vrot.slane %v3988, 1
      %v4210 = vrot.slane %v3989, 1
      %v4211 = vsel %vm3525, %v4209, %v4210
      %v4212 = vrot.slane %v3990, 1
      %v4213 = vsel %vm3525, %v4210, %v4212
      %v4214 = vrot.slane %v3991, 1
      %v4215 = vsel %vm3525, %v4212, %v4214
      %v4216 = vrot.slane %v3992, 1
      %v4217 = vrot.slane %v3993, 1
      %v4218 = vsel %vm3525, %v4216, %v4217
      %v4219 = vrot.slane %v3994, 1
      %v4220 = vsel %vm3525, %v4217, %v4219
      %v4221 = vrot.slane %v3995, 1
      %v4222 = vsel %vm3525, %v4219, %v4221
      %v4223 = vrot.slane %v3996, 1
      %v4224 = vrot.slane %v3997, 1
      %v4225 = vsel %vm3525, %v4223, %v4224
      %v4226 = vrot.slane %v3998, 1
      %v4227 = vsel %vm3525, %v4224, %v4226
      %v4228 = vrot.slane %v3999, 1
      %v4229 = vsel %vm3525, %v4226, %v4228
      %v4230 = vrot.slane %v4000, 1
      %v4231 = vrot.slane %v4001, 1
      %v4232 = vsel %vm3525, %v4230, %v4231
      %v4233 = vrot.slane %v4002, 1
      %v4234 = vsel %vm3525, %v4231, %v4233
      %v4235 = vrot.slane %v4003, 1
      %v4236 = vsel %vm3525, %v4233, %v4235
      %v4237 = vrot.slane %v4004, 1
      %v4238 = vrot.slane %v4005, 1
      %v4239 = vsel %vm3525, %v4237, %v4238
      %v4240 = vrot.slane %v4006, 1
      %v4241 = vsel %vm3525, %v4238, %v4240
      %v4242 = vrot.slane %v4007, 1
      %v4243 = vsel %vm3525, %v4240, %v4242
      %v4244 = vrot.slane %v4008, 1
      %v4245 = vrot.slane %v4009, 1
      %v4246 = vsel %vm3525, %v4244, %v4245
      %v4247 = vrot.slane %v4010, 1
      %v4248 = vsel %vm3525, %v4245, %v4247
      %v4249 = vrot.slane %v4011, 1
      %v4250 = vsel %vm3525, %v4247, %v4249
      %v4251 = vrot.slane %v4012, 1
      %v4252 = vrot.slane %v4013, 1
      %v4253 = vsel %vm3525, %v4251, %v4252
      %v4254 = vrot.slane %v4014, 1
      %v4255 = vsel %vm3525, %v4252, %v4254
      %v4256 = vrot.slane %v4015, 1
      %v4257 = vsel %vm3525, %v4254, %v4256
      %v4258 = vrot.slane %v4016, 1
      %v4259 = vrot.slane %v4017, 1
      %v4260 = vsel %vm3525, %v4258, %v4259
      %v4261 = vrot.slane %v4018, 1
      %v4262 = vsel %vm3525, %v4259, %v4261
      %v4263 = vrot.slane %v4019, 1
      %v4264 = vsel %vm3525, %v4261, %v4263
      %v4319 = vsel %vm4058, %v4141, 0.0
      %v4320 = vsel %vm4059, %v4143, 0.0
      %v4321 = vsel %vm4060, %v4145, 0.0
      %v4322 = vsel %vm4061, %v4148, 0.0
      %v4323 = vsel %vm4062, %v4150, 0.0
      %v4324 = vsel %vm4063, %v4152, 0.0
      %v4325 = vsel %vm4061, %v4155, 0.0
      %v4326 = vsel %vm4062, %v4157, 0.0
      %v4327 = vsel %vm4063, %v4159, 0.0
      %v4328 = vsel %vm4061, %v4162, 0.0
      %v4329 = vsel %vm4062, %v4164, 0.0
      %v4330 = vsel %vm4063, %v4166, 0.0
      %v4331 = vsel %vm4061, %v4169, 0.0
      %v4332 = vsel %vm4062, %v4171, 0.0
      %v4333 = vsel %vm4063, %v4173, 0.0
      %v4334 = vsel %vm4061, %v4176, 0.0
      %v4335 = vsel %vm4062, %v4178, 0.0
      %v4336 = vsel %vm4063, %v4180, 0.0
      %v4337 = vsel %vm4061, %v4183, 0.0
      %v4338 = vsel %vm4062, %v4185, 0.0
      %v4339 = vsel %vm4063, %v4187, 0.0
      %v4340 = vsel %vm4061, %v4190, 0.0
      %v4341 = vsel %vm4062, %v4192, 0.0
      %v4342 = vsel %vm4063, %v4194, 0.0
      %v4343 = vsel %vm4061, %v4197, 0.0
      %v4344 = vsel %vm4062, %v4199, 0.0
      %v4345 = vsel %vm4063, %v4201, 0.0
      %v4346 = vsel %vm4061, %v4204, 0.0
      %v4347 = vsel %vm4062, %v4206, 0.0
      %v4348 = vsel %vm4063, %v4208, 0.0
      %v4349 = vsel %vm4061, %v4211, 0.0
      %v4350 = vsel %vm4062, %v4213, 0.0
      %v4351 = vsel %vm4063, %v4215, 0.0
      %v4352 = vsel %vm4061, %v4218, 0.0
      %v4353 = vsel %vm4062, %v4220, 0.0
      %v4354 = vsel %vm4063, %v4222, 0.0
      %v4355 = vsel %vm4061, %v4225, 0.0
      %v4356 = vsel %vm4062, %v4227, 0.0
      %v4357 = vsel %vm4063, %v4229, 0.0
      %v4358 = vsel %vm4061, %v4232, 0.0
      %v4359 = vsel %vm4062, %v4234, 0.0
      %v4360 = vsel %vm4063, %v4236, 0.0
      %v4361 = vsel %vm4061, %v4239, 0.0
      %v4362 = vsel %vm4062, %v4241, 0.0
      %v4363 = vsel %vm4063, %v4243, 0.0
      %v4364 = vsel %vm4061, %v4246, 0.0
      %v4365 = vsel %vm4062, %v4248, 0.0
      %v4366 = vsel %vm4063, %v4250, 0.0
      %v4367 = vsel %vm4061, %v4253, 0.0
      %v4368 = vsel %vm4062, %v4255, 0.0
      %v4369 = vsel %vm4063, %v4257, 0.0
      %v4370 = vsel %vm4064, %v4260, 0.0
      %v4371 = vsel %vm4065, %v4262, 0.0
      %v4372 = vsel %vm4066, %v4264, 0.0
      %v4373 = vpack.c.bf16 %v4320, %v4319
      %v4374 = vpack.c.bf16 %v4321, %v4321
      %v4375 = vpack.c.bf16 %v4323, %v4322
      %v4376 = vpack.c.bf16 %v4324, %v4324
      %v4377 = vpack.c.bf16 %v4326, %v4325
      %v4378 = vpack.c.bf16 %v4327, %v4327
      %v4379 = vpack.c.bf16 %v4329, %v4328
      %v4380 = vpack.c.bf16 %v4330, %v4330
      %v4381 = vpack.c.bf16 %v4332, %v4331
      %v4382 = vpack.c.bf16 %v4333, %v4333
      %v4383 = vpack.c.bf16 %v4335, %v4334
      %v4384 = vpack.c.bf16 %v4336, %v4336
      %v4385 = vpack.c.bf16 %v4338, %v4337
      %v4386 = vpack.c.bf16 %v4339, %v4339
      %v4387 = vpack.c.bf16 %v4341, %v4340
      %v4388 = vpack.c.bf16 %v4342, %v4342
      %v4389 = vpack.c.bf16 %v4344, %v4343
      %v4390 = vpack.c.bf16 %v4345, %v4345
      %v4391 = vpack.c.bf16 %v4347, %v4346
      %v4392 = vpack.c.bf16 %v4348, %v4348
      %v4393 = vpack.c.bf16 %v4350, %v4349
      %v4394 = vpack.c.bf16 %v4351, %v4351
      %v4395 = vpack.c.bf16 %v4353, %v4352
      %v4396 = vpack.c.bf16 %v4354, %v4354
      %v4397 = vpack.c.bf16 %v4356, %v4355
      %v4398 = vpack.c.bf16 %v4357, %v4357
      %v4399 = vpack.c.bf16 %v4359, %v4358
      %v4400 = vpack.c.bf16 %v4360, %v4360
      %v4401 = vpack.c.bf16 %v4362, %v4361
      %v4402 = vpack.c.bf16 %v4363, %v4363
      %v4403 = vpack.c.bf16 %v4365, %v4364
      %v4404 = vpack.c.bf16 %v4366, %v4366
      %v4405 = vpack.c.bf16 %v4368, %v4367
      %v4406 = vpack.c.bf16 %v4369, %v4369
      %v4407 = vpack.c.bf16 %v4371, %v4370
      %v4408 = vpack.c.bf16 %v4372, %v4372
      %v4445 = vunpack.c.l.b16 %v4373
      %v4446 = vunpack.c.h.b16 %v4373
      %v4447 = vunpack.c.l.b16 %v4374
      %v4448 = vunpack.c.l.b16 %v4375
      %v4449 = vunpack.c.h.b16 %v4375
      %v4450 = vunpack.c.l.b16 %v4376
      %v4451 = vunpack.c.l.b16 %v4377
      %v4452 = vunpack.c.h.b16 %v4377
      %v4453 = vunpack.c.l.b16 %v4378
      %v4454 = vunpack.c.l.b16 %v4379
      %v4455 = vunpack.c.h.b16 %v4379
      %v4456 = vunpack.c.l.b16 %v4380
      %v4457 = vunpack.c.l.b16 %v4381
      %v4458 = vunpack.c.h.b16 %v4381
      %v4459 = vunpack.c.l.b16 %v4382
      %v4460 = vunpack.c.l.b16 %v4383
      %v4461 = vunpack.c.h.b16 %v4383
      %v4462 = vunpack.c.l.b16 %v4384
      %v4463 = vunpack.c.l.b16 %v4385
      %v4464 = vunpack.c.h.b16 %v4385
      %v4465 = vunpack.c.l.b16 %v4386
      %v4466 = vunpack.c.l.b16 %v4387
      %v4467 = vunpack.c.h.b16 %v4387
      %v4468 = vunpack.c.l.b16 %v4388
      %v4469 = vunpack.c.l.b16 %v4389
      %v4470 = vunpack.c.h.b16 %v4389
      %v4471 = vunpack.c.l.b16 %v4390
      %v4472 = vunpack.c.l.b16 %v4391
      %v4473 = vunpack.c.h.b16 %v4391
      %v4474 = vunpack.c.l.b16 %v4392
      %v4475 = vunpack.c.l.b16 %v4393
      %v4476 = vunpack.c.h.b16 %v4393
      %v4477 = vunpack.c.l.b16 %v4394
      %v4478 = vunpack.c.l.b16 %v4395
      %v4479 = vunpack.c.h.b16 %v4395
      %v4480 = vunpack.c.l.b16 %v4396
      %v4481 = vunpack.c.l.b16 %v4397
      %v4482 = vunpack.c.h.b16 %v4397
      %v4483 = vunpack.c.l.b16 %v4398
      %v4484 = vunpack.c.l.b16 %v4399
      %v4485 = vunpack.c.h.b16 %v4399
      %v4486 = vunpack.c.l.b16 %v4400
      %v4487 = vunpack.c.l.b16 %v4401
      %v4488 = vunpack.c.h.b16 %v4401
      %v4489 = vunpack.c.l.b16 %v4402
      %v4490 = vunpack.c.l.b16 %v4403
      %v4491 = vunpack.c.h.b16 %v4403
      %v4492 = vunpack.c.l.b16 %v4404
      %v4493 = vunpack.c.l.b16 %v4405
      %v4494 = vunpack.c.h.b16 %v4405
      %v4495 = vunpack.c.l.b16 %v4406
      %v4496 = vunpack.c.l.b16 %v4407
      %v4497 = vunpack.c.h.b16 %v4407
      %v4498 = vunpack.c.l.b16 %v4408
      %v4499 = vpack.c.b16 %v4446, %v4445
      %v4500 = vpack.c.b16 %v4448, %v4447
      %v4501 = vpack.c.b16 %v4450, %v4449
      %v4502 = vpack.c.b16 %v4452, %v4451
      %v4503 = vpack.c.b16 %v4454, %v4453
      %v4504 = vpack.c.b16 %v4456, %v4455
      %v4505 = vpack.c.b16 %v4458, %v4457
      %v4506 = vpack.c.b16 %v4460, %v4459
      %v4507 = vpack.c.b16 %v4462, %v4461
      %v4508 = vpack.c.b16 %v4464, %v4463
      %v4509 = vpack.c.b16 %v4466, %v4465
      %v4510 = vpack.c.b16 %v4468, %v4467
      %v4511 = vpack.c.b16 %v4470, %v4469
      %v4512 = vpack.c.b16 %v4472, %v4471
      %v4513 = vpack.c.b16 %v4474, %v4473
      %v4514 = vpack.c.b16 %v4476, %v4475
      %v4515 = vpack.c.b16 %v4478, %v4477
      %v4516 = vpack.c.b16 %v4480, %v4479
      %v4517 = vpack.c.b16 %v4482, %v4481
      %v4518 = vpack.c.b16 %v4484, %v4483
      %v4519 = vpack.c.b16 %v4486, %v4485
      %v4520 = vpack.c.b16 %v4488, %v4487
      %v4521 = vpack.c.b16 %v4490, %v4489
      %v4522 = vpack.c.b16 %v4492, %v4491
      %v4547 = vpack.c.b16 %v4449, %v4448
      %v4548 = vpack.c.b16 %v4451, %v4450
      %v4549 = vpack.c.b16 %v4453, %v4452
      %v4550 = vpack.c.b16 %v4455, %v4454
      %v4551 = vpack.c.b16 %v4457, %v4456
      %v4552 = vpack.c.b16 %v4459, %v4458
      %v4553 = vpack.c.b16 %v4461, %v4460
      %v4554 = vpack.c.b16 %v4463, %v4462
      %v4555 = vpack.c.b16 %v4465, %v4464
      %v4556 = vpack.c.b16 %v4467, %v4466
      %v4557 = vpack.c.b16 %v4469, %v4468
      %v4558 = vpack.c.b16 %v4471, %v4470
      %v4559 = vpack.c.b16 %v4473, %v4472
      %v4560 = vpack.c.b16 %v4475, %v4474
      %v4561 = vpack.c.b16 %v4477, %v4476
      %v4562 = vpack.c.b16 %v4479, %v4478
      %v4563 = vpack.c.b16 %v4481, %v4480
      %v4564 = vpack.c.b16 %v4483, %v4482
      %v4565 = vpack.c.b16 %v4485, %v4484
      %v4566 = vpack.c.b16 %v4487, %v4486
      %v4567 = vpack.c.b16 %v4489, %v4488
      %v4568 = vpack.c.b16 %v4491, %v4490
      %v4569 = vpack.c.b16 %v4493, %v4492
      %v4570 = vpack.c.b16 %v4495, %v4494
      %v4595 = vpack.c.b16 %v4494, %v4493
      %v4596 = vpack.c.b16 %v4496, %v4495
      %v4597 = vpack.c.b16 %v4498, %v4497
      %s4601 = scalar_lea.vmem %s4, 192
      %v4602 = vld [vmem:[%s4601] sm:$0xf]
      %v4603 = vld [vmem:[%s4601 + $0x4] sm:$0xf]
      %v4604 = vld [vmem:[%s4601 + $0x8] sm:$0xf]
      %v4605 = vld [vmem:[%s4601 + $0xc] sm:$0xf]
      %v4606 = vld [vmem:[%s4601 + $0x10] sm:$0xf]
      %v4607 = vld [vmem:[%s4601 + $0x14] sm:$0xf]
      %v4608 = vld [vmem:[%s4601 + $0x18] sm:$0xf]
      %v4609 = vld [vmem:[%s4601 + $0x1c] sm:$0xf]
      %v4610 = vld [vmem:[%s4601 + $0x20] sm:$0xf]
      %v4611 = vld [vmem:[%s4601 + $0x24] sm:$0xf]
      %v4612 = vld [vmem:[%s4601 + $0x28] sm:$0xf]
      %v4613 = vld [vmem:[%s4601 + $0x2c] sm:$0xf]
      %v4614 = vld [vmem:[%s4601 + $0x30] sm:$0xf]
      %v4615 = vld [vmem:[%s4601 + $0x34] sm:$0xf]
      %v4616 = vld [vmem:[%s4601 + $0x38] sm:$0xf]
      %v4617 = vld [vmem:[%s4601 + $0x3c] sm:$0xf]
      %v4618 = vld [vmem:[%s4601 + $0x40] sm:$0xf]
      %v4619 = vld [vmem:[%s4601 + $0x44] sm:$0xf]
      %v4620 = vld [vmem:[%s4601 + $0x48] sm:$0xf]
      %v4621 = vld [vmem:[%s4601 + $0x4c] sm:$0xf]
      %v4622 = vld [vmem:[%s4601 + $0x50] sm:$0xf]
      %v4623 = vld [vmem:[%s4601 + $0x54] sm:$0xf]
      %v4624 = vld [vmem:[%s4601 + $0x58] sm:$0xf]
      %v4625 = vld [vmem:[%s4601 + $0x5c] sm:$0xf]
      %v4626 = vld [vmem:[%s4601 + $0x60] sm:$0xf]
      %v4627 = vld [vmem:[%s4601 + $0x64] sm:$0xf]
      %v4628 = vld [vmem:[%s4601 + $0x68] sm:$0xf]
      %v4629 = vld [vmem:[%s4601 + $0x6c] sm:$0xf]
      %v4630 = vld [vmem:[%s4601 + $0x70] sm:$0xf]
      %v4631 = vld [vmem:[%s4601 + $0x74] sm:$0xf]
      %v4632 = vld [vmem:[%s4601 + $0x78] sm:$0xf]
      %v4633 = vld [vmem:[%s4601 + $0x7c] sm:$0xf]
      %v4634 = vld [vmem:[%s4601 + $0x80] sm:$0xf]
      %v4635 = vld [vmem:[%s4601 + $0x84] sm:$0xf]
      %v4636 = vld [vmem:[%s4601 + $0x88] sm:$0xf]
      %v4637 = vld [vmem:[%s4601 + $0x8c] sm:$0xf]
      %v4638 = vld [vmem:[%s4601 + $0x90] sm:$0xf]
      %v4639 = vld [vmem:[%s4601 + $0x94] sm:$0xf]
      %v4640 = vld [vmem:[%s4601 + $0x98] sm:$0xf]
      %v4641 = vld [vmem:[%s4601 + $0x9c] sm:$0xf]
      %v4642 = vld [vmem:[%s4601 + $0xa0] sm:$0xf]
      %v4643 = vld [vmem:[%s4601 + $0xa4] sm:$0xf]
      %v4644 = vld [vmem:[%s4601 + $0xa8] sm:$0xf]
      %v4645 = vld [vmem:[%s4601 + $0xac] sm:$0xf]
      %v4646 = vld [vmem:[%s4601 + $0xb0] sm:$0xf]
      %v4647 = vld [vmem:[%s4601 + $0xb4] sm:$0xf]
      %v4648 = vld [vmem:[%s4601 + $0xb8] sm:$0xf]
      %v4649 = vld [vmem:[%s4601 + $0xbc] sm:$0xf]
      %v4698 = vunpack.c.l.b16 %v4602
      %v4699 = vunpack.c.l.b16 %v4603
      %v4700 = vunpack.c.l.b16 %v4604
      %v4701 = vunpack.c.l.b16 %v4605
      %v4702 = vunpack.c.l.b16 %v4606
      %v4703 = vunpack.c.l.b16 %v4607
      %v4704 = vunpack.c.l.b16 %v4608
      %v4705 = vunpack.c.l.b16 %v4609
      %v4706 = vunpack.c.l.b16 %v4610
      %v4707 = vunpack.c.l.b16 %v4611
      %v4708 = vunpack.c.l.b16 %v4612
      %v4709 = vunpack.c.l.b16 %v4613
      %v4710 = vunpack.c.l.b16 %v4614
      %v4711 = vunpack.c.l.b16 %v4615
      %v4712 = vunpack.c.l.b16 %v4616
      %v4713 = vunpack.c.l.b16 %v4617
      %v4714 = vunpack.c.l.b16 %v4618
      %v4715 = vunpack.c.l.b16 %v4619
      %v4716 = vunpack.c.l.b16 %v4620
      %v4717 = vunpack.c.l.b16 %v4621
      %v4718 = vunpack.c.l.b16 %v4622
      %v4719 = vunpack.c.l.b16 %v4623
      %v4720 = vunpack.c.l.b16 %v4624
      %v4721 = vunpack.c.l.b16 %v4625
      %v4722 = vunpack.c.l.b16 %v4626
      %v4723 = vunpack.c.l.b16 %v4627
      %v4724 = vunpack.c.l.b16 %v4628
      %v4725 = vunpack.c.l.b16 %v4629
      %v4726 = vunpack.c.l.b16 %v4630
      %v4727 = vunpack.c.l.b16 %v4631
      %v4728 = vunpack.c.l.b16 %v4632
      %v4729 = vunpack.c.l.b16 %v4633
      %v4730 = vunpack.c.l.b16 %v4634
      %v4731 = vunpack.c.l.b16 %v4635
      %v4732 = vunpack.c.l.b16 %v4636
      %v4733 = vunpack.c.l.b16 %v4637
      %v4734 = vunpack.c.l.b16 %v4638
      %v4735 = vunpack.c.l.b16 %v4639
      %v4736 = vunpack.c.l.b16 %v4640
      %v4737 = vunpack.c.l.b16 %v4641
      %v4738 = vunpack.c.l.b16 %v4642
      %v4739 = vunpack.c.l.b16 %v4643
      %v4740 = vunpack.c.l.b16 %v4644
      %v4741 = vunpack.c.l.b16 %v4645
      %v4742 = vunpack.c.l.b16 %v4646
      %v4743 = vunpack.c.l.b16 %v4647
      %v4744 = vunpack.c.l.b16 %v4648
      %v4745 = vunpack.c.l.b16 %v4649
      %v4746 = vpack.c.b16 %v4699, %v4698
      %v4747 = vpack.c.b16 %v4701, %v4700
      %v4748 = vpack.c.b16 %v4703, %v4702
      %v4749 = vpack.c.b16 %v4705, %v4704
      %v4750 = vpack.c.b16 %v4707, %v4706
      %v4751 = vpack.c.b16 %v4709, %v4708
      %v4752 = vpack.c.b16 %v4711, %v4710
      %v4753 = vpack.c.b16 %v4713, %v4712
      %v4754 = vpack.c.b16 %v4715, %v4714
      %v4755 = vpack.c.b16 %v4717, %v4716
      %v4756 = vpack.c.b16 %v4719, %v4718
      %v4757 = vpack.c.b16 %v4721, %v4720
      %v4758 = vpack.c.b16 %v4723, %v4722
      %v4759 = vpack.c.b16 %v4725, %v4724
      %v4760 = vpack.c.b16 %v4727, %v4726
      %v4761 = vpack.c.b16 %v4729, %v4728
      %v4762 = vpack.c.b16 %v4731, %v4730
      %v4763 = vpack.c.b16 %v4733, %v4732
      %v4764 = vpack.c.b16 %v4735, %v4734
      %v4765 = vpack.c.b16 %v4737, %v4736
      %v4766 = vpack.c.b16 %v4739, %v4738
      %v4767 = vpack.c.b16 %v4741, %v4740
      %v4768 = vpack.c.b16 %v4743, %v4742
      %v4769 = vpack.c.b16 %v4745, %v4744
      %4794 = vmatprep.subr.bf16.mxu0 0
      %4795 = vmatpush1.bf16.msra.mxu0 %v4746
      %4796 = vmatprep.subr.bf16.mxu0 0
      %4797 = vmatpush1.bf16.msra.mxu0 %v4747
      %4798 = vmatprep.subr.bf16.mxu0 0
      %4799 = vmatpush1.bf16.msra.mxu0 %v4748
      %4800 = vmatprep.subr.bf16.mxu0 0
      %4801 = vmatpush1.bf16.msra.mxu0 %v4749
      %4802 = vmatprep.subr.bf16.mxu0 0
      %4803 = vmatpush1.bf16.msra.mxu0 %v4750
      %4804 = vmatprep.subr.bf16.mxu0 0
      %4805 = vmatpush1.bf16.msra.mxu0 %v4751
      %4806 = vmatprep.subr.bf16.mxu0 0
      %4807 = vmatpush1.bf16.msra.mxu0 %v4752
      %4808 = vmatprep.subr.bf16.mxu0 0
      %4809 = vmatpush1.bf16.msra.mxu0 %v4753
      %4810 = vmatprep.subr.bf16.mxu0 0
      %4811 = vmatpush1.bf16.msra.mxu0 %v4754
      %4812 = vmatprep.subr.bf16.mxu0 0
      %4813 = vmatpush1.bf16.msra.mxu0 %v4755
      %4814 = vmatprep.subr.bf16.mxu0 0
      %4815 = vmatpush1.bf16.msra.mxu0 %v4756
      %4816 = vmatprep.subr.bf16.mxu0 0
      %4817 = vmatpush1.bf16.msra.mxu0 %v4757
      %4818 = vmatprep.subr.bf16.mxu0 0
      %4819 = vmatpush1.bf16.msra.mxu0 %v4758
      %4820 = vmatprep.subr.bf16.mxu0 0
      %4821 = vmatpush1.bf16.msra.mxu0 %v4759
      %4822 = vmatprep.subr.bf16.mxu0 0
      %4823 = vmatpush1.bf16.msra.mxu0 %v4760
      %4824 = vmatprep.subr.bf16.mxu0 0
      %4825 = vmatpush1.bf16.msra.mxu0 %v4761
      %4826 = vmatprep.mubr.bf16.mxu0 %v4547
      %4827 = vmatmul.mubr.bf16.gmra.mrb[0].mxu0 %v4499
      %v4828 = vpop.f32.mrb[0].mxu0
      %v4829 = vadd.f32 0.0, %v4828
      %v4830 = vpop.f32.mrb[0].mxu0
      %v4831 = vpop.f32.mrb[0].mxu0
      %v4832 = vadd.f32 0.0, %v4831
      %v4833 = vpop.f32.mrb[0].mxu0
      %4834 = vmatprep.mubr.bf16.mxu0 %v4548
      %4835 = vmatmul.mubr.bf16.gmra.mrb[0].mxu0 %v4500
      %v4836 = vpop.f32.mrb[0].mxu0
      %v4837 = vadd.f32 0.0, %v4836
      %v4838 = vpop.f32.mrb[0].mxu0
      %v4839 = vpop.f32.mrb[0].mxu0
      %v4840 = vadd.f32 0.0, %v4839
      %v4841 = vpop.f32.mrb[0].mxu0
      %4842 = vmatprep.mubr.bf16.mxu0 %v4549
      %4843 = vmatmul.mubr.bf16.gmra.mrb[0].mxu0 %v4501
      %v4844 = vpop.f32.mrb[0].mxu0
      %v4845 = vadd.f32 0.0, %v4844
      %v4846 = vpop.f32.mrb[0].mxu0
      %v4847 = vpop.f32.mrb[0].mxu0
      %v4848 = vadd.f32 0.0, %v4847
      %v4849 = vpop.f32.mrb[0].mxu0
      %4850 = vmatprep.mubr.bf16.mxu0 %v4550
      %4851 = vmatmul.mubr.bf16.gmra.mrb[0].mxu0 %v4502
      %v4852 = vpop.f32.mrb[0].mxu0
      %v4853 = vadd.f32 0.0, %v4852
      %v4854 = vpop.f32.mrb[0].mxu0
      %v4855 = vpop.f32.mrb[0].mxu0
      %v4856 = vadd.f32 0.0, %v4855
      %v4857 = vpop.f32.mrb[0].mxu0
      %4858 = vmatprep.mubr.bf16.mxu0 %v4551
      %4859 = vmatmul.mubr.bf16.gmra.mrb[0].mxu0 %v4503
      %v4860 = vpop.f32.mrb[0].mxu0
      %v4861 = vadd.f32 0.0, %v4860
      %v4862 = vpop.f32.mrb[0].mxu0
      %v4863 = vpop.f32.mrb[0].mxu0
      %v4864 = vadd.f32 0.0, %v4863
      %v4865 = vpop.f32.mrb[0].mxu0
      %4866 = vmatprep.mubr.bf16.mxu0 %v4552
      %4867 = vmatmul.mubr.bf16.gmra.mrb[0].mxu0 %v4504
      %v4868 = vpop.f32.mrb[0].mxu0
      %v4869 = vadd.f32 0.0, %v4868
      %v4870 = vpop.f32.mrb[0].mxu0
      %v4871 = vpop.f32.mrb[0].mxu0
      %v4872 = vadd.f32 0.0, %v4871
      %v4873 = vpop.f32.mrb[0].mxu0
      %4874 = vmatprep.mubr.bf16.mxu0 %v4553
      %4875 = vmatmul.mubr.bf16.gmra.mrb[0].mxu0 %v4505
      %v4876 = vpop.f32.mrb[0].mxu0
      %v4877 = vadd.f32 0.0, %v4876
      %v4878 = vpop.f32.mrb[0].mxu0
      %v4879 = vpop.f32.mrb[0].mxu0
      %v4880 = vadd.f32 0.0, %v4879
      %v4881 = vpop.f32.mrb[0].mxu0
      %4882 = vmatprep.mubr.bf16.mxu0 %v4554
      %4883 = vmatmul.mubr.bf16.gmra.mrb[0].mxu0 %v4506
      %v4884 = vpop.f32.mrb[0].mxu0
      %v4885 = vadd.f32 0.0, %v4884
      %v4886 = vpop.f32.mrb[0].mxu0
      %v4887 = vpop.f32.mrb[0].mxu0
      %v4888 = vadd.f32 0.0, %v4887
      %v4889 = vpop.f32.mrb[0].mxu0
      %4890 = vmatprep.mubr.bf16.mxu0 %v4555
      %4891 = vmatmul.mubr.bf16.gmra.mrb[0].mxu0 %v4507
      %v4892 = vpop.f32.mrb[0].mxu0
      %v4893 = vadd.f32 0.0, %v4892
      %v4894 = vpop.f32.mrb[0].mxu0
      %v4895 = vpop.f32.mrb[0].mxu0
      %v4896 = vadd.f32 0.0, %v4895
      %v4897 = vpop.f32.mrb[0].mxu0
      %4898 = vmatprep.mubr.bf16.mxu0 %v4556
      %4899 = vmatmul.mubr.bf16.gmra.mrb[0].mxu0 %v4508
      %v4900 = vpop.f32.mrb[0].mxu0
      %v4901 = vadd.f32 0.0, %v4900
      %v4902 = vpop.f32.mrb[0].mxu0
      %v4903 = vpop.f32.mrb[0].mxu0
      %v4904 = vadd.f32 0.0, %v4903
      %v4905 = vpop.f32.mrb[0].mxu0
      %4906 = vmatprep.mubr.bf16.mxu0 %v4557
      %4907 = vmatmul.mubr.bf16.gmra.mrb[0].mxu0 %v4509
      %v4908 = vpop.f32.mrb[0].mxu0
      %v4909 = vadd.f32 0.0, %v4908
      %v4910 = vpop.f32.mrb[0].mxu0
      %v4911 = vpop.f32.mrb[0].mxu0
      %v4912 = vadd.f32 0.0, %v4911
      %v4913 = vpop.f32.mrb[0].mxu0
      %4914 = vmatprep.mubr.bf16.mxu0 %v4558
      %4915 = vmatmul.mubr.bf16.gmra.mrb[0].mxu0 %v4510
      %v4916 = vpop.f32.mrb[0].mxu0
      %v4917 = vadd.f32 0.0, %v4916
      %v4918 = vpop.f32.mrb[0].mxu0
      %v4919 = vpop.f32.mrb[0].mxu0
      %v4920 = vadd.f32 0.0, %v4919
      %v4921 = vpop.f32.mrb[0].mxu0
      %4922 = vmatprep.mubr.bf16.mxu0 %v4559
      %4923 = vmatmul.mubr.bf16.gmra.mrb[0].mxu0 %v4511
      %v4924 = vpop.f32.mrb[0].mxu0
      %v4925 = vadd.f32 0.0, %v4924
      %v4926 = vpop.f32.mrb[0].mxu0
      %v4927 = vpop.f32.mrb[0].mxu0
      %v4928 = vadd.f32 0.0, %v4927
      %v4929 = vpop.f32.mrb[0].mxu0
      %4930 = vmatprep.mubr.bf16.mxu0 %v4560
      %4931 = vmatmul.mubr.bf16.gmra.mrb[0].mxu0 %v4512
      %v4932 = vpop.f32.mrb[0].mxu0
      %v4933 = vadd.f32 0.0, %v4932
      %v4934 = vpop.f32.mrb[0].mxu0
      %v4935 = vpop.f32.mrb[0].mxu0
      %v4936 = vadd.f32 0.0, %v4935
      %v4937 = vpop.f32.mrb[0].mxu0
      %4938 = vmatprep.mubr.bf16.mxu0 %v4561
      %4939 = vmatmul.mubr.bf16.gmra.mrb[0].mxu0 %v4513
      %v4940 = vpop.f32.mrb[0].mxu0
      %v4941 = vadd.f32 0.0, %v4940
      %v4942 = vpop.f32.mrb[0].mxu0
      %v4943 = vpop.f32.mrb[0].mxu0
      %v4944 = vadd.f32 0.0, %v4943
      %v4945 = vpop.f32.mrb[0].mxu0
      %4946 = vmatprep.mubr.bf16.mxu0 %v4562
      %4947 = vmatmul.mubr.bf16.gmra.mrb[0].mxu0 %v4514
      %v4948 = vpop.f32.mrb[0].mxu0
      %v4949 = vadd.f32 0.0, %v4948
      %v4950 = vpop.f32.mrb[0].mxu0
      %v4951 = vpop.f32.mrb[0].mxu0
      %v4952 = vadd.f32 0.0, %v4951
      %v4953 = vpop.f32.mrb[0].mxu0
      %4954 = vmatprep.mubr.bf16.mxu0 %v4563
      %4955 = vmatmul.mubr.bf16.gmra.mrb[0].mxu0 %v4515
      %v4956 = vpop.f32.mrb[0].mxu0
      %v4957 = vadd.f32 0.0, %v4956
      %v4958 = vpop.f32.mrb[0].mxu0
      %v4959 = vpop.f32.mrb[0].mxu0
      %v4960 = vadd.f32 0.0, %v4959
      %v4961 = vpop.f32.mrb[0].mxu0
      %4962 = vmatprep.mubr.bf16.mxu0 %v4564
      %4963 = vmatmul.mubr.bf16.gmra.mrb[0].mxu0 %v4516
      %v4964 = vpop.f32.mrb[0].mxu0
      %v4965 = vadd.f32 0.0, %v4964
      %v4966 = vpop.f32.mrb[0].mxu0
      %v4967 = vpop.f32.mrb[0].mxu0
      %v4968 = vadd.f32 0.0, %v4967
      %v4969 = vpop.f32.mrb[0].mxu0
      %4970 = vmatprep.mubr.bf16.mxu0 %v4565
      %4971 = vmatmul.mubr.bf16.gmra.mrb[0].mxu0 %v4517
      %v4972 = vpop.f32.mrb[0].mxu0
      %v4973 = vadd.f32 0.0, %v4972
      %v4974 = vpop.f32.mrb[0].mxu0
      %v4975 = vpop.f32.mrb[0].mxu0
      %v4976 = vadd.f32 0.0, %v4975
      %v4977 = vpop.f32.mrb[0].mxu0
      %4978 = vmatprep.mubr.bf16.mxu0 %v4566
      %4979 = vmatmul.mubr.bf16.gmra.mrb[0].mxu0 %v4518
      %v4980 = vpop.f32.mrb[0].mxu0
      %v4981 = vadd.f32 0.0, %v4980
      %v4982 = vpop.f32.mrb[0].mxu0
      %v4983 = vpop.f32.mrb[0].mxu0
      %v4984 = vadd.f32 0.0, %v4983
      %v4985 = vpop.f32.mrb[0].mxu0
      %4986 = vmatprep.mubr.bf16.mxu0 %v4567
      %4987 = vmatmul.mubr.bf16.gmra.mrb[0].mxu0 %v4519
      %v4988 = vpop.f32.mrb[0].mxu0
      %v4989 = vadd.f32 0.0, %v4988
      %v4990 = vpop.f32.mrb[0].mxu0
      %v4991 = vpop.f32.mrb[0].mxu0
      %v4992 = vadd.f32 0.0, %v4991
      %v4993 = vpop.f32.mrb[0].mxu0
      %4994 = vmatprep.mubr.bf16.mxu0 %v4568
      %4995 = vmatmul.mubr.bf16.gmra.mrb[0].mxu0 %v4520
      %v4996 = vpop.f32.mrb[0].mxu0
      %v4997 = vadd.f32 0.0, %v4996
      %v4998 = vpop.f32.mrb[0].mxu0
      %v4999 = vpop.f32.mrb[0].mxu0
      %v5000 = vadd.f32 0.0, %v4999
      %v5001 = vpop.f32.mrb[0].mxu0
      %5002 = vmatprep.mubr.bf16.mxu0 %v4569
      %5003 = vmatmul.mubr.bf16.gmra.mrb[0].mxu0 %v4521
      %v5004 = vpop.f32.mrb[0].mxu0
      %v5005 = vadd.f32 0.0, %v5004
      %v5006 = vpop.f32.mrb[0].mxu0
      %v5007 = vpop.f32.mrb[0].mxu0
      %v5008 = vadd.f32 0.0, %v5007
      %v5009 = vpop.f32.mrb[0].mxu0
      %5010 = vmatprep.mubr.bf16.mxu0 %v4570
      %5011 = vmatmul.mubr.bf16.gmra.mrb[0].mxu0 %v4522
      %v5012 = vpop.f32.mrb[0].mxu0
      %v5013 = vadd.f32 0.0, %v5012
      %v5014 = vpop.f32.mrb[0].mxu0
      %v5015 = vpop.f32.mrb[0].mxu0
      %v5016 = vadd.f32 0.0, %v5015
      %v5017 = vpop.f32.mrb[0].mxu0
      %5018 = vdwg.mxu0
      %5019 = vmatprep.subr.bf16.mxu0 0
      %5020 = vmatpush1.bf16.msra.mxu0 %v4762
      %5021 = vmatprep.subr.bf16.mxu0 0
      %5022 = vmatpush1.bf16.msra.mxu0 %v4763
      %5023 = vmatprep.subr.bf16.mxu0 0
      %5024 = vmatpush1.bf16.msra.mxu0 %v4764
      %5025 = vmatprep.subr.bf16.mxu0 0
      %5026 = vmatpush1.bf16.msra.mxu0 %v4765
      %5027 = vmatprep.subr.bf16.mxu0 0
      %5028 = vmatpush1.bf16.msra.mxu0 %v4766
      %5029 = vmatprep.subr.bf16.mxu0 0
      %5030 = vmatpush1.bf16.msra.mxu0 %v4767
      %5031 = vmatprep.subr.bf16.mxu0 0
      %5032 = vmatpush1.bf16.msra.mxu0 %v4768
      %5033 = vmatprep.subr.bf16.mxu0 0
      %5034 = vmatpush1.bf16.msra.mxu0 %v4769
      %5035 = vmatprep.subr.bf16.mxu0 0
      %5036 = vmatpush1.bf16.msra.mxu0 0
      %5037 = vmatprep.subr.bf16.mxu0 0
      %5038 = vmatpush1.bf16.msra.mxu0 0
      %5039 = vmatprep.subr.bf16.mxu0 0
      %5040 = vmatpush1.bf16.msra.mxu0 0
      %5041 = vmatprep.subr.bf16.mxu0 0
      %5042 = vmatpush1.bf16.msra.mxu0 0
      %5043 = vmatprep.subr.bf16.mxu0 0
      %5044 = vmatpush1.bf16.msra.mxu0 0
      %5045 = vmatprep.subr.bf16.mxu0 0
      %5046 = vmatpush1.bf16.msra.mxu0 0
      %5047 = vmatprep.subr.bf16.mxu0 0
      %5048 = vmatpush1.bf16.msra.mxu0 0
      %5049 = vmatprep.subr.bf16.mxu0 0
      %5050 = vmatpush1.bf16.msra.mxu0 0
      %5051 = vmatprep.mubr.bf16.mxu0 0
      %5052 = vmatmul.mubr.bf16.gmra.mrb[0].mxu0 %v4502
      %v5053 = vpop.f32.mrb[0].mxu0
      %v5054 = vadd.f32 %v4829, %v5053
      %v5055 = vpop.f32.mrb[0].mxu0
      %v5056 = vpop.f32.mrb[0].mxu0
      %v5057 = vadd.f32 %v4832, %v5056
      %v5058 = vpop.f32.mrb[0].mxu0
      %5059 = vmatprep.mubr.bf16.mxu0 0
      %5060 = vmatmul.mubr.bf16.gmra.mrb[0].mxu0 %v4503
      %v5061 = vpop.f32.mrb[0].mxu0
      %v5062 = vadd.f32 %v4837, %v5061
      %v5063 = vpop.f32.mrb[0].mxu0
      %v5064 = vpop.f32.mrb[0].mxu0
      %v5065 = vadd.f32 %v4840, %v5064
      %v5066 = vpop.f32.mrb[0].mxu0
      %5067 = vmatprep.mubr.bf16.mxu0 0
      %5068 = vmatmul.mubr.bf16.gmra.mrb[0].mxu0 %v4504
      %v5069 = vpop.f32.mrb[0].mxu0
      %v5070 = vadd.f32 %v4845, %v5069
      %v5071 = vpop.f32.mrb[0].mxu0
      %v5072 = vpop.f32.mrb[0].mxu0
      %v5073 = vadd.f32 %v4848, %v5072
      %v5074 = vpop.f32.mrb[0].mxu0
      %5075 = vmatprep.mubr.bf16.mxu0 0
      %5076 = vmatmul.mubr.bf16.gmra.mrb[0].mxu0 %v4505
      %v5077 = vpop.f32.mrb[0].mxu0
      %v5078 = vadd.f32 %v4853, %v5077
      %v5079 = vpop.f32.mrb[0].mxu0
      %v5080 = vpop.f32.mrb[0].mxu0
      %v5081 = vadd.f32 %v4856, %v5080
      %v5082 = vpop.f32.mrb[0].mxu0
      %5083 = vmatprep.mubr.bf16.mxu0 0
      %5084 = vmatmul.mubr.bf16.gmra.mrb[0].mxu0 %v4506
      %v5085 = vpop.f32.mrb[0].mxu0
      %v5086 = vadd.f32 %v4861, %v5085
      %v5087 = vpop.f32.mrb[0].mxu0
      %v5088 = vpop.f32.mrb[0].mxu0
      %v5089 = vadd.f32 %v4864, %v5088
      %v5090 = vpop.f32.mrb[0].mxu0
      %5091 = vmatprep.mubr.bf16.mxu0 0
      %5092 = vmatmul.mubr.bf16.gmra.mrb[0].mxu0 %v4507
      %v5093 = vpop.f32.mrb[0].mxu0
      %v5094 = vadd.f32 %v4869, %v5093
      %v5095 = vpop.f32.mrb[0].mxu0
      %v5096 = vpop.f32.mrb[0].mxu0
      %v5097 = vadd.f32 %v4872, %v5096
      %v5098 = vpop.f32.mrb[0].mxu0
      %5099 = vmatprep.mubr.bf16.mxu0 0
      %5100 = vmatmul.mubr.bf16.gmra.mrb[0].mxu0 %v4508
      %v5101 = vpop.f32.mrb[0].mxu0
      %v5102 = vadd.f32 %v4877, %v5101
      %v5103 = vpop.f32.mrb[0].mxu0
      %v5104 = vpop.f32.mrb[0].mxu0
      %v5105 = vadd.f32 %v4880, %v5104
      %v5106 = vpop.f32.mrb[0].mxu0
      %5107 = vmatprep.mubr.bf16.mxu0 0
      %5108 = vmatmul.mubr.bf16.gmra.mrb[0].mxu0 %v4509
      %v5109 = vpop.f32.mrb[0].mxu0
      %v5110 = vadd.f32 %v4885, %v5109
      %v5111 = vpop.f32.mrb[0].mxu0
      %v5112 = vpop.f32.mrb[0].mxu0
      %v5113 = vadd.f32 %v4888, %v5112
      %v5114 = vpop.f32.mrb[0].mxu0
      %5115 = vmatprep.mubr.bf16.mxu0 0
      %5116 = vmatmul.mubr.bf16.gmra.mrb[0].mxu0 %v4510
      %v5117 = vpop.f32.mrb[0].mxu0
      %v5118 = vadd.f32 %v4893, %v5117
      %v5119 = vpop.f32.mrb[0].mxu0
      %v5120 = vpop.f32.mrb[0].mxu0
      %v5121 = vadd.f32 %v4896, %v5120
      %v5122 = vpop.f32.mrb[0].mxu0
      %5123 = vmatprep.mubr.bf16.mxu0 0
      %5124 = vmatmul.mubr.bf16.gmra.mrb[0].mxu0 %v4511
      %v5125 = vpop.f32.mrb[0].mxu0
      %v5126 = vadd.f32 %v4901, %v5125
      %v5127 = vpop.f32.mrb[0].mxu0
      %v5128 = vpop.f32.mrb[0].mxu0
      %v5129 = vadd.f32 %v4904, %v5128
      %v5130 = vpop.f32.mrb[0].mxu0
      %5131 = vmatprep.mubr.bf16.mxu0 0
      %5132 = vmatmul.mubr.bf16.gmra.mrb[0].mxu0 %v4512
      %v5133 = vpop.f32.mrb[0].mxu0
      %v5134 = vadd.f32 %v4909, %v5133
      %v5135 = vpop.f32.mrb[0].mxu0
      %v5136 = vpop.f32.mrb[0].mxu0
      %v5137 = vadd.f32 %v4912, %v5136
      %v5138 = vpop.f32.mrb[0].mxu0
      %5139 = vmatprep.mubr.bf16.mxu0 0
      %5140 = vmatmul.mubr.bf16.gmra.mrb[0].mxu0 %v4513
      %v5141 = vpop.f32.mrb[0].mxu0
      %v5142 = vadd.f32 %v4917, %v5141
      %v5143 = vpop.f32.mrb[0].mxu0
      %v5144 = vpop.f32.mrb[0].mxu0
      %v5145 = vadd.f32 %v4920, %v5144
      %v5146 = vpop.f32.mrb[0].mxu0
      %5147 = vmatprep.mubr.bf16.mxu0 0
      %5148 = vmatmul.mubr.bf16.gmra.mrb[0].mxu0 %v4514
      %v5149 = vpop.f32.mrb[0].mxu0
      %v5150 = vadd.f32 %v4925, %v5149
      %v5151 = vpop.f32.mrb[0].mxu0
      %v5152 = vpop.f32.mrb[0].mxu0
      %v5153 = vadd.f32 %v4928, %v5152
      %v5154 = vpop.f32.mrb[0].mxu0
      %5155 = vmatprep.mubr.bf16.mxu0 0
      %5156 = vmatmul.mubr.bf16.gmra.mrb[0].mxu0 %v4515
      %v5157 = vpop.f32.mrb[0].mxu0
      %v5158 = vadd.f32 %v4933, %v5157
      %v5159 = vpop.f32.mrb[0].mxu0
      %v5160 = vpop.f32.mrb[0].mxu0
      %v5161 = vadd.f32 %v4936, %v5160
      %v5162 = vpop.f32.mrb[0].mxu0
      %5163 = vmatprep.mubr.bf16.mxu0 0
      %5164 = vmatmul.mubr.bf16.gmra.mrb[0].mxu0 %v4516
      %v5165 = vpop.f32.mrb[0].mxu0
      %v5166 = vadd.f32 %v4941, %v5165
      %v5167 = vpop.f32.mrb[0].mxu0
      %v5168 = vpop.f32.mrb[0].mxu0
      %v5169 = vadd.f32 %v4944, %v5168
      %v5170 = vpop.f32.mrb[0].mxu0
      %5171 = vmatprep.mubr.bf16.mxu0 0
      %5172 = vmatmul.mubr.bf16.gmra.mrb[0].mxu0 %v4517
      %v5173 = vpop.f32.mrb[0].mxu0
      %v5174 = vadd.f32 %v4949, %v5173
      %v5175 = vpop.f32.mrb[0].mxu0
      %v5176 = vpop.f32.mrb[0].mxu0
      %v5177 = vadd.f32 %v4952, %v5176
      %v5178 = vpop.f32.mrb[0].mxu0
      %5179 = vmatprep.mubr.bf16.mxu0 0
      %5180 = vmatmul.mubr.bf16.gmra.mrb[0].mxu0 %v4518
      %v5181 = vpop.f32.mrb[0].mxu0
      %v5182 = vadd.f32 %v4957, %v5181
      %v5183 = vpop.f32.mrb[0].mxu0
      %v5184 = vpop.f32.mrb[0].mxu0
      %v5185 = vadd.f32 %v4960, %v5184
      %v5186 = vpop.f32.mrb[0].mxu0
      %5187 = vmatprep.mubr.bf16.mxu0 0
      %5188 = vmatmul.mubr.bf16.gmra.mrb[0].mxu0 %v4519
      %v5189 = vpop.f32.mrb[0].mxu0
      %v5190 = vadd.f32 %v4965, %v5189
      %v5191 = vpop.f32.mrb[0].mxu0
      %v5192 = vpop.f32.mrb[0].mxu0
      %v5193 = vadd.f32 %v4968, %v5192
      %v5194 = vpop.f32.mrb[0].mxu0
      %5195 = vmatprep.mubr.bf16.mxu0 0
      %5196 = vmatmul.mubr.bf16.gmra.mrb[0].mxu0 %v4520
      %v5197 = vpop.f32.mrb[0].mxu0
      %v5198 = vadd.f32 %v4973, %v5197
      %v5199 = vpop.f32.mrb[0].mxu0
      %v5200 = vpop.f32.mrb[0].mxu0
      %v5201 = vadd.f32 %v4976, %v5200
      %v5202 = vpop.f32.mrb[0].mxu0
      %5203 = vmatprep.mubr.bf16.mxu0 0
      %5204 = vmatmul.mubr.bf16.gmra.mrb[0].mxu0 %v4521
      %v5205 = vpop.f32.mrb[0].mxu0
      %v5206 = vadd.f32 %v4981, %v5205
      %v5207 = vpop.f32.mrb[0].mxu0
      %v5208 = vpop.f32.mrb[0].mxu0
      %v5209 = vadd.f32 %v4984, %v5208
      %v5210 = vpop.f32.mrb[0].mxu0
      %5211 = vmatprep.mubr.bf16.mxu0 0
      %5212 = vmatmul.mubr.bf16.gmra.mrb[0].mxu0 %v4522
      %v5213 = vpop.f32.mrb[0].mxu0
      %v5214 = vadd.f32 %v4989, %v5213
      %v5215 = vpop.f32.mrb[0].mxu0
      %v5216 = vpop.f32.mrb[0].mxu0
      %v5217 = vadd.f32 %v4992, %v5216
      %v5218 = vpop.f32.mrb[0].mxu0
      %5219 = vmatprep.mubr.bf16.mxu0 0
      %5220 = vmatmul.mubr.bf16.gmra.mrb[0].mxu0 %v4595
      %v5221 = vpop.f32.mrb[0].mxu0
      %v5222 = vadd.f32 %v4997, %v5221
      %v5223 = vpop.f32.mrb[0].mxu0
      %v5224 = vpop.f32.mrb[0].mxu0
      %v5225 = vadd.f32 %v5000, %v5224
      %v5226 = vpop.f32.mrb[0].mxu0
      %5227 = vmatprep.mubr.bf16.mxu0 0
      %5228 = vmatmul.mubr.bf16.gmra.mrb[0].mxu0 %v4596
      %v5229 = vpop.f32.mrb[0].mxu0
      %v5230 = vadd.f32 %v5005, %v5229
      %v5231 = vpop.f32.mrb[0].mxu0
      %v5232 = vpop.f32.mrb[0].mxu0
      %v5233 = vadd.f32 %v5008, %v5232
      %v5234 = vpop.f32.mrb[0].mxu0
      %5235 = vmatprep.mubr.bf16.mxu0 0
      %5236 = vmatmul.mubr.bf16.gmra.mrb[0].mxu0 %v4597
      %v5237 = vpop.f32.mrb[0].mxu0
      %v5238 = vadd.f32 %v5013, %v5237
      %v5239 = vpop.f32.mrb[0].mxu0
      %v5240 = vpop.f32.mrb[0].mxu0
      %v5241 = vadd.f32 %v5016, %v5240
      %v5242 = vpop.f32.mrb[0].mxu0
      %5243 = vdwg.mxu0
      %v5244 = vld [vmem:[%s4] sm:$0xf]
      %v5245 = vld [vmem:[%s4 + $0x4] sm:$0xf]
      %v5246 = vld [vmem:[%s4 + $0x8] sm:$0xf]
      %v5247 = vld [vmem:[%s4 + $0xc] sm:$0xf]
      %v5248 = vld [vmem:[%s4 + $0x10] sm:$0xf]
      %v5249 = vld [vmem:[%s4 + $0x14] sm:$0xf]
      %v5250 = vld [vmem:[%s4 + $0x18] sm:$0xf]
      %v5251 = vld [vmem:[%s4 + $0x1c] sm:$0xf]
      %v5252 = vld [vmem:[%s4 + $0x20] sm:$0xf]
      %v5253 = vld [vmem:[%s4 + $0x24] sm:$0xf]
      %v5254 = vld [vmem:[%s4 + $0x28] sm:$0xf]
      %v5255 = vld [vmem:[%s4 + $0x2c] sm:$0xf]
      %v5256 = vld [vmem:[%s4 + $0x30] sm:$0xf]
      %v5257 = vld [vmem:[%s4 + $0x34] sm:$0xf]
      %v5258 = vld [vmem:[%s4 + $0x38] sm:$0xf]
      %v5259 = vld [vmem:[%s4 + $0x3c] sm:$0xf]
      %v5260 = vld [vmem:[%s4 + $0x40] sm:$0xf]
      %v5261 = vld [vmem:[%s4 + $0x44] sm:$0xf]
      %v5262 = vld [vmem:[%s4 + $0x48] sm:$0xf]
      %v5263 = vld [vmem:[%s4 + $0x4c] sm:$0xf]
      %v5264 = vld [vmem:[%s4 + $0x50] sm:$0xf]
      %v5265 = vld [vmem:[%s4 + $0x54] sm:$0xf]
      %v5266 = vld [vmem:[%s4 + $0x58] sm:$0xf]
      %v5267 = vld [vmem:[%s4 + $0x5c] sm:$0xf]
      %v5268 = vld [vmem:[%s4 + $0x60] sm:$0xf]
      %v5269 = vld [vmem:[%s4 + $0x64] sm:$0xf]
      %v5270 = vld [vmem:[%s4 + $0x68] sm:$0xf]
      %v5271 = vld [vmem:[%s4 + $0x6c] sm:$0xf]
      %v5272 = vld [vmem:[%s4 + $0x70] sm:$0xf]
      %v5273 = vld [vmem:[%s4 + $0x74] sm:$0xf]
      %v5274 = vld [vmem:[%s4 + $0x78] sm:$0xf]
      %v5275 = vld [vmem:[%s4 + $0x7c] sm:$0xf]
      %v5276 = vld [vmem:[%s4 + $0x80] sm:$0xf]
      %v5277 = vld [vmem:[%s4 + $0x84] sm:$0xf]
      %v5278 = vld [vmem:[%s4 + $0x88] sm:$0xf]
      %v5279 = vld [vmem:[%s4 + $0x8c] sm:$0xf]
      %v5280 = vld [vmem:[%s4 + $0x90] sm:$0xf]
      %v5281 = vld [vmem:[%s4 + $0x94] sm:$0xf]
      %v5282 = vld [vmem:[%s4 + $0x98] sm:$0xf]
      %v5283 = vld [vmem:[%s4 + $0x9c] sm:$0xf]
      %v5284 = vld [vmem:[%s4 + $0xa0] sm:$0xf]
      %v5285 = vld [vmem:[%s4 + $0xa4] sm:$0xf]
      %v5286 = vld [vmem:[%s4 + $0xa8] sm:$0xf]
      %v5287 = vld [vmem:[%s4 + $0xac] sm:$0xf]
      %v5288 = vld [vmem:[%s4 + $0xb0] sm:$0xf]
      %v5289 = vld [vmem:[%s4 + $0xb4] sm:$0xf]
      %v5290 = vld [vmem:[%s4 + $0xb8] sm:$0xf]
      %v5291 = vld [vmem:[%s4 + $0xbc] sm:$0xf]
      %v5340 = vunpack.c.l.b16 %v5244
      %v5341 = vunpack.c.l.b16 %v5245
      %v5342 = vunpack.c.l.b16 %v5246
      %v5343 = vunpack.c.l.b16 %v5247
      %v5344 = vunpack.c.l.b16 %v5248
      %v5345 = vunpack.c.l.b16 %v5249
      %v5346 = vunpack.c.l.b16 %v5250
      %v5347 = vunpack.c.l.b16 %v5251
      %v5348 = vunpack.c.l.b16 %v5252
      %v5349 = vunpack.c.l.b16 %v5253
      %v5350 = vunpack.c.l.b16 %v5254
      %v5351 = vunpack.c.l.b16 %v5255
      %v5352 = vunpack.c.l.b16 %v5256
      %v5353 = vunpack.c.l.b16 %v5257
      %v5354 = vunpack.c.l.b16 %v5258
      %v5355 = vunpack.c.l.b16 %v5259
      %v5356 = vunpack.c.l.b16 %v5260
      %v5357 = vunpack.c.l.b16 %v5261
      %v5358 = vunpack.c.l.b16 %v5262
      %v5359 = vunpack.c.l.b16 %v5263
      %v5360 = vunpack.c.l.b16 %v5264
      %v5361 = vunpack.c.l.b16 %v5265
      %v5362 = vunpack.c.l.b16 %v5266
      %v5363 = vunpack.c.l.b16 %v5267
      %v5364 = vunpack.c.l.b16 %v5268
      %v5365 = vunpack.c.l.b16 %v5269
      %v5366 = vunpack.c.l.b16 %v5270
      %v5367 = vunpack.c.l.b16 %v5271
      %v5368 = vunpack.c.l.b16 %v5272
      %v5369 = vunpack.c.l.b16 %v5273
      %v5370 = vunpack.c.l.b16 %v5274
      %v5371 = vunpack.c.l.b16 %v5275
      %v5372 = vunpack.c.l.b16 %v5276
      %v5373 = vunpack.c.l.b16 %v5277
      %v5374 = vunpack.c.l.b16 %v5278
      %v5375 = vunpack.c.l.b16 %v5279
      %v5376 = vunpack.c.l.b16 %v5280
      %v5377 = vunpack.c.l.b16 %v5281
      %v5378 = vunpack.c.l.b16 %v5282
      %v5379 = vunpack.c.l.b16 %v5283
      %v5380 = vunpack.c.l.b16 %v5284
      %v5381 = vunpack.c.l.b16 %v5285
      %v5382 = vunpack.c.l.b16 %v5286
      %v5383 = vunpack.c.l.b16 %v5287
      %v5384 = vunpack.c.l.b16 %v5288
      %v5385 = vunpack.c.l.b16 %v5289
      %v5386 = vunpack.c.l.b16 %v5290
      %v5387 = vunpack.c.l.b16 %v5291
      %v5388 = vpack.c.b16 %v5341, %v5340
      %v5389 = vpack.c.b16 %v5343, %v5342
      %v5390 = vpack.c.b16 %v5345, %v5344
      %v5391 = vpack.c.b16 %v5347, %v5346
      %v5392 = vpack.c.b16 %v5349, %v5348
      %v5393 = vpack.c.b16 %v5351, %v5350
      %v5394 = vpack.c.b16 %v5353, %v5352
      %v5395 = vpack.c.b16 %v5355, %v5354
      %v5396 = vpack.c.b16 %v5357, %v5356
      %v5397 = vpack.c.b16 %v5359, %v5358
      %v5398 = vpack.c.b16 %v5361, %v5360
      %v5399 = vpack.c.b16 %v5363, %v5362
      %v5400 = vpack.c.b16 %v5365, %v5364
      %v5401 = vpack.c.b16 %v5367, %v5366
      %v5402 = vpack.c.b16 %v5369, %v5368
      %v5403 = vpack.c.b16 %v5371, %v5370
      %v5404 = vpack.c.b16 %v5373, %v5372
      %v5405 = vpack.c.b16 %v5375, %v5374
      %v5406 = vpack.c.b16 %v5377, %v5376
      %v5407 = vpack.c.b16 %v5379, %v5378
      %v5408 = vpack.c.b16 %v5381, %v5380
      %v5409 = vpack.c.b16 %v5383, %v5382
      %v5410 = vpack.c.b16 %v5385, %v5384
      %v5411 = vpack.c.b16 %v5387, %v5386
      %5436 = vmatprep.subr.bf16.mxu0 0
      %5437 = vmatpush1.bf16.msra.mxu0 %v5388
      %5438 = vmatprep.subr.bf16.mxu0 0
      %5439 = vmatpush1.bf16.msra.mxu0 %v5389
      %5440 = vmatprep.subr.bf16.mxu0 0
      %5441 = vmatpush1.bf16.msra.mxu0 %v5390
      %5442 = vmatprep.subr.bf16.mxu0 0
      %5443 = vmatpush1.bf16.msra.mxu0 %v5391
      %5444 = vmatprep.subr.bf16.mxu0 0
      %5445 = vmatpush1.bf16.msra.mxu0 %v5392
      %5446 = vmatprep.subr.bf16.mxu0 0
      %5447 = vmatpush1.bf16.msra.mxu0 %v5393
      %5448 = vmatprep.subr.bf16.mxu0 0
      %5449 = vmatpush1.bf16.msra.mxu0 %v5394
      %5450 = vmatprep.subr.bf16.mxu0 0
      %5451 = vmatpush1.bf16.msra.mxu0 %v5395
      %5452 = vmatprep.subr.bf16.mxu0 0
      %5453 = vmatpush1.bf16.msra.mxu0 %v5396
      %5454 = vmatprep.subr.bf16.mxu0 0
      %5455 = vmatpush1.bf16.msra.mxu0 %v5397
      %5456 = vmatprep.subr.bf16.mxu0 0
      %5457 = vmatpush1.bf16.msra.mxu0 %v5398
      %5458 = vmatprep.subr.bf16.mxu0 0
      %5459 = vmatpush1.bf16.msra.mxu0 %v5399
      %5460 = vmatprep.subr.bf16.mxu0 0
      %5461 = vmatpush1.bf16.msra.mxu0 %v5400
      %5462 = vmatprep.subr.bf16.mxu0 0
      %5463 = vmatpush1.bf16.msra.mxu0 %v5401
      %5464 = vmatprep.subr.bf16.mxu0 0
      %5465 = vmatpush1.bf16.msra.mxu0 %v5402
      %5466 = vmatprep.subr.bf16.mxu0 0
      %5467 = vmatpush1.bf16.msra.mxu0 %v5403
      %5468 = vmatprep.mubr.bf16.mxu0 %v4547
      %5469 = vmatmul.mubr.bf16.gmra.mrb[0].mxu0 %v4499
      %v5470 = vpop.f32.mrb[0].mxu0
      %v5471 = vadd.f32 0.0, %v5470
      %v5472 = vpop.f32.mrb[0].mxu0
      %v5473 = vpop.f32.mrb[0].mxu0
      %v5474 = vadd.f32 0.0, %v5473
      %v5475 = vpop.f32.mrb[0].mxu0
      %5476 = vmatprep.mubr.bf16.mxu0 %v4548
      %5477 = vmatmul.mubr.bf16.gmra.mrb[0].mxu0 %v4500
      %v5478 = vpop.f32.mrb[0].mxu0
      %v5479 = vpop.f32.mrb[0].mxu0
      %v5480 = vpop.f32.mrb[0].mxu0
      %v5481 = vadd.f32 0.0, %v5480
      %v5482 = vpop.f32.mrb[0].mxu0
      %5483 = vmatprep.mubr.bf16.mxu0 %v4549
      %5484 = vmatmul.mubr.bf16.gmra.mrb[0].mxu0 %v4501
      %v5485 = vpop.f32.mrb[0].mxu0
      %v5486 = vadd.f32 0.0, %v5485
      %v5487 = vpop.f32.mrb[0].mxu0
      %v5488 = vpop.f32.mrb[0].mxu0
      %v5489 = vpop.f32.mrb[0].mxu0
      %5490 = vmatprep.mubr.bf16.mxu0 %v4550
      %5491 = vmatmul.mubr.bf16.gmra.mrb[0].mxu0 %v4502
      %v5492 = vpop.f32.mrb[0].mxu0
      %v5493 = vadd.f32 0.0, %v5492
      %v5494 = vpop.f32.mrb[0].mxu0
      %v5495 = vpop.f32.mrb[0].mxu0
      %v5496 = vadd.f32 0.0, %v5495
      %v5497 = vpop.f32.mrb[0].mxu0
      %5498 = vmatprep.mubr.bf16.mxu0 %v4551
      %5499 = vmatmul.mubr.bf16.gmra.mrb[0].mxu0 %v4503
      %v5500 = vpop.f32.mrb[0].mxu0
      %v5501 = vpop.f32.mrb[0].mxu0
      %v5502 = vpop.f32.mrb[0].mxu0
      %v5503 = vadd.f32 0.0, %v5502
      %v5504 = vpop.f32.mrb[0].mxu0
      %5505 = vmatprep.mubr.bf16.mxu0 %v4552
      %5506 = vmatmul.mubr.bf16.gmra.mrb[0].mxu0 %v4504
      %v5507 = vpop.f32.mrb[0].mxu0
      %v5508 = vadd.f32 0.0, %v5507
      %v5509 = vpop.f32.mrb[0].mxu0
      %v5510 = vpop.f32.mrb[0].mxu0
      %v5511 = vpop.f32.mrb[0].mxu0
      %5512 = vmatprep.mubr.bf16.mxu0 %v4553
      %5513 = vmatmul.mubr.bf16.gmra.mrb[0].mxu0 %v4505
      %v5514 = vpop.f32.mrb[0].mxu0
      %v5515 = vadd.f32 0.0, %v5514
      %v5516 = vpop.f32.mrb[0].mxu0
      %v5517 = vpop.f32.mrb[0].mxu0
      %v5518 = vadd.f32 0.0, %v5517
      %v5519 = vpop.f32.mrb[0].mxu0
      %5520 = vmatprep.mubr.bf16.mxu0 %v4554
      %5521 = vmatmul.mubr.bf16.gmra.mrb[0].mxu0 %v4506
      %v5522 = vpop.f32.mrb[0].mxu0
      %v5523 = vpop.f32.mrb[0].mxu0
      %v5524 = vpop.f32.mrb[0].mxu0
      %v5525 = vadd.f32 0.0, %v5524
      %v5526 = vpop.f32.mrb[0].mxu0
      %5527 = vmatprep.mubr.bf16.mxu0 %v4555
      %5528 = vmatmul.mubr.bf16.gmra.mrb[0].mxu0 %v4507
      %v5529 = vpop.f32.mrb[0].mxu0
      %v5530 = vadd.f32 0.0, %v5529
      %v5531 = vpop.f32.mrb[0].mxu0
      %v5532 = vpop.f32.mrb[0].mxu0
      %v5533 = vpop.f32.mrb[0].mxu0
      %5534 = vmatprep.mubr.bf16.mxu0 %v4556
      %5535 = vmatmul.mubr.bf16.gmra.mrb[0].mxu0 %v4508
      %v5536 = vpop.f32.mrb[0].mxu0
      %v5537 = vadd.f32 0.0, %v5536
      %v5538 = vpop.f32.mrb[0].mxu0
      %v5539 = vpop.f32.mrb[0].mxu0
      %v5540 = vadd.f32 0.0, %v5539
      %v5541 = vpop.f32.mrb[0].mxu0
      %5542 = vmatprep.mubr.bf16.mxu0 %v4557
      %5543 = vmatmul.mubr.bf16.gmra.mrb[0].mxu0 %v4509
      %v5544 = vpop.f32.mrb[0].mxu0
      %v5545 = vpop.f32.mrb[0].mxu0
      %v5546 = vpop.f32.mrb[0].mxu0
      %v5547 = vadd.f32 0.0, %v5546
      %v5548 = vpop.f32.mrb[0].mxu0
      %5549 = vmatprep.mubr.bf16.mxu0 %v4558
      %5550 = vmatmul.mubr.bf16.gmra.mrb[0].mxu0 %v4510
      %v5551 = vpop.f32.mrb[0].mxu0
      %v5552 = vadd.f32 0.0, %v5551
      %v5553 = vpop.f32.mrb[0].mxu0
      %v5554 = vpop.f32.mrb[0].mxu0
      %v5555 = vpop.f32.mrb[0].mxu0
      %5556 = vmatprep.mubr.bf16.mxu0 %v4559
      %5557 = vmatmul.mubr.bf16.gmra.mrb[0].mxu0 %v4511
      %v5558 = vpop.f32.mrb[0].mxu0
      %v5559 = vadd.f32 0.0, %v5558
      %v5560 = vpop.f32.mrb[0].mxu0
      %v5561 = vpop.f32.mrb[0].mxu0
      %v5562 = vadd.f32 0.0, %v5561
      %v5563 = vpop.f32.mrb[0].mxu0
      %5564 = vmatprep.mubr.bf16.mxu0 %v4560
      %5565 = vmatmul.mubr.bf16.gmra.mrb[0].mxu0 %v4512
      %v5566 = vpop.f32.mrb[0].mxu0
      %v5567 = vpop.f32.mrb[0].mxu0
      %v5568 = vpop.f32.mrb[0].mxu0
      %v5569 = vadd.f32 0.0, %v5568
      %v5570 = vpop.f32.mrb[0].mxu0
      %5571 = vmatprep.mubr.bf16.mxu0 %v4561
      %5572 = vmatmul.mubr.bf16.gmra.mrb[0].mxu0 %v4513
      %v5573 = vpop.f32.mrb[0].mxu0
      %v5574 = vadd.f32 0.0, %v5573
      %v5575 = vpop.f32.mrb[0].mxu0
      %v5576 = vpop.f32.mrb[0].mxu0
      %v5577 = vpop.f32.mrb[0].mxu0
      %5578 = vmatprep.mubr.bf16.mxu0 %v4562
      %5579 = vmatmul.mubr.bf16.gmra.mrb[0].mxu0 %v4514
      %v5580 = vpop.f32.mrb[0].mxu0
      %v5581 = vadd.f32 0.0, %v5580
      %v5582 = vpop.f32.mrb[0].mxu0
      %v5583 = vpop.f32.mrb[0].mxu0
      %v5584 = vadd.f32 0.0, %v5583
      %v5585 = vpop.f32.mrb[0].mxu0
      %5586 = vmatprep.mubr.bf16.mxu0 %v4563
      %5587 = vmatmul.mubr.bf16.gmra.mrb[0].mxu0 %v4515
      %v5588 = vpop.f32.mrb[0].mxu0
      %v5589 = vpop.f32.mrb[0].mxu0
      %v5590 = vpop.f32.mrb[0].mxu0
      %v5591 = vadd.f32 0.0, %v5590
      %v5592 = vpop.f32.mrb[0].mxu0
      %5593 = vmatprep.mubr.bf16.mxu0 %v4564
      %5594 = vmatmul.mubr.bf16.gmra.mrb[0].mxu0 %v4516
      %v5595 = vpop.f32.mrb[0].mxu0
      %v5596 = vadd.f32 0.0, %v5595
      %v5597 = vpop.f32.mrb[0].mxu0
      %v5598 = vpop.f32.mrb[0].mxu0
      %v5599 = vpop.f32.mrb[0].mxu0
      %5600 = vmatprep.mubr.bf16.mxu0 %v4565
      %5601 = vmatmul.mubr.bf16.gmra.mrb[0].mxu0 %v4517
      %v5602 = vpop.f32.mrb[0].mxu0
      %v5603 = vadd.f32 0.0, %v5602
      %v5604 = vpop.f32.mrb[0].mxu0
      %v5605 = vpop.f32.mrb[0].mxu0
      %v5606 = vadd.f32 0.0, %v5605
      %v5607 = vpop.f32.mrb[0].mxu0
      %5608 = vmatprep.mubr.bf16.mxu0 %v4566
      %5609 = vmatmul.mubr.bf16.gmra.mrb[0].mxu0 %v4518
      %v5610 = vpop.f32.mrb[0].mxu0
      %v5611 = vpop.f32.mrb[0].mxu0
      %v5612 = vpop.f32.mrb[0].mxu0
      %v5613 = vadd.f32 0.0, %v5612
      %v5614 = vpop.f32.mrb[0].mxu0
      %5615 = vmatprep.mubr.bf16.mxu0 %v4567
      %5616 = vmatmul.mubr.bf16.gmra.mrb[0].mxu0 %v4519
      %v5617 = vpop.f32.mrb[0].mxu0
      %v5618 = vadd.f32 0.0, %v5617
      %v5619 = vpop.f32.mrb[0].mxu0
      %v5620 = vpop.f32.mrb[0].mxu0
      %v5621 = vpop.f32.mrb[0].mxu0
      %5622 = vmatprep.mubr.bf16.mxu0 %v4568
      %5623 = vmatmul.mubr.bf16.gmra.mrb[0].mxu0 %v4520
      %v5624 = vpop.f32.mrb[0].mxu0
      %v5625 = vadd.f32 0.0, %v5624
      %v5626 = vpop.f32.mrb[0].mxu0
      %v5627 = vpop.f32.mrb[0].mxu0
      %v5628 = vadd.f32 0.0, %v5627
      %v5629 = vpop.f32.mrb[0].mxu0
      %5630 = vmatprep.mubr.bf16.mxu0 %v4569
      %5631 = vmatmul.mubr.bf16.gmra.mrb[0].mxu0 %v4521
      %v5632 = vpop.f32.mrb[0].mxu0
      %v5633 = vpop.f32.mrb[0].mxu0
      %v5634 = vpop.f32.mrb[0].mxu0
      %v5635 = vadd.f32 0.0, %v5634
      %v5636 = vpop.f32.mrb[0].mxu0
      %5637 = vmatprep.mubr.bf16.mxu0 %v4570
      %5638 = vmatmul.mubr.bf16.gmra.mrb[0].mxu0 %v4522
      %v5639 = vpop.f32.mrb[0].mxu0
      %v5640 = vadd.f32 0.0, %v5639
      %v5641 = vpop.f32.mrb[0].mxu0
      %v5642 = vpop.f32.mrb[0].mxu0
      %v5643 = vpop.f32.mrb[0].mxu0
      %5644 = vdwg.mxu0
      %5645 = vmatprep.subr.bf16.mxu0 0
      %5646 = vmatpush1.bf16.msra.mxu0 %v5404
      %5647 = vmatprep.subr.bf16.mxu0 0
      %5648 = vmatpush1.bf16.msra.mxu0 %v5405
      %5649 = vmatprep.subr.bf16.mxu0 0
      %5650 = vmatpush1.bf16.msra.mxu0 %v5406
      %5651 = vmatprep.subr.bf16.mxu0 0
      %5652 = vmatpush1.bf16.msra.mxu0 %v5407
      %5653 = vmatprep.subr.bf16.mxu0 0
      %5654 = vmatpush1.bf16.msra.mxu0 %v5408
      %5655 = vmatprep.subr.bf16.mxu0 0
      %5656 = vmatpush1.bf16.msra.mxu0 %v5409
      %5657 = vmatprep.subr.bf16.mxu0 0
      %5658 = vmatpush1.bf16.msra.mxu0 %v5410
      %5659 = vmatprep.subr.bf16.mxu0 0
      %5660 = vmatpush1.bf16.msra.mxu0 %v5411
      %5661 = vmatprep.subr.bf16.mxu0 0
      %5662 = vmatpush1.bf16.msra.mxu0 0
      %5663 = vmatprep.subr.bf16.mxu0 0
      %5664 = vmatpush1.bf16.msra.mxu0 0
      %5665 = vmatprep.subr.bf16.mxu0 0
      %5666 = vmatpush1.bf16.msra.mxu0 0
      %5667 = vmatprep.subr.bf16.mxu0 0
      %5668 = vmatpush1.bf16.msra.mxu0 0
      %5669 = vmatprep.subr.bf16.mxu0 0
      %5670 = vmatpush1.bf16.msra.mxu0 0
      %5671 = vmatprep.subr.bf16.mxu0 0
      %5672 = vmatpush1.bf16.msra.mxu0 0
      %5673 = vmatprep.subr.bf16.mxu0 0
      %5674 = vmatpush1.bf16.msra.mxu0 0
      %5675 = vmatprep.subr.bf16.mxu0 0
      %5676 = vmatpush1.bf16.msra.mxu0 0
      %5677 = vmatprep.mubr.bf16.mxu0 0
      %5678 = vmatmul.mubr.bf16.gmra.mrb[0].mxu0 %v4502
      %v5679 = vpop.f32.mrb[0].mxu0
      %v5680 = vadd.f32 %v5471, %v5679
      %v5681 = vpop.f32.mrb[0].mxu0
      %v5682 = vpop.f32.mrb[0].mxu0
      %v5683 = vadd.f32 %v5474, %v5682
      %v5684 = vpop.f32.mrb[0].mxu0
      %5685 = vmatprep.mubr.bf16.mxu0 0
      %5686 = vmatmul.mubr.bf16.gmra.mrb[0].mxu0 %v4503
      %v5687 = vpop.f32.mrb[0].mxu0
      %v5688 = vpop.f32.mrb[0].mxu0
      %v5689 = vpop.f32.mrb[0].mxu0
      %v5690 = vadd.f32 %v5481, %v5689
      %v5691 = vpop.f32.mrb[0].mxu0
      %5692 = vmatprep.mubr.bf16.mxu0 0
      %5693 = vmatmul.mubr.bf16.gmra.mrb[0].mxu0 %v4504
      %v5694 = vpop.f32.mrb[0].mxu0
      %v5695 = vadd.f32 %v5486, %v5694
      %v5696 = vpop.f32.mrb[0].mxu0
      %v5697 = vpop.f32.mrb[0].mxu0
      %v5698 = vpop.f32.mrb[0].mxu0
      %5699 = vmatprep.mubr.bf16.mxu0 0
      %5700 = vmatmul.mubr.bf16.gmra.mrb[0].mxu0 %v4505
      %v5701 = vpop.f32.mrb[0].mxu0
      %v5702 = vadd.f32 %v5493, %v5701
      %v5703 = vpop.f32.mrb[0].mxu0
      %v5704 = vpop.f32.mrb[0].mxu0
      %v5705 = vadd.f32 %v5496, %v5704
      %v5706 = vpop.f32.mrb[0].mxu0
      %5707 = vmatprep.mubr.bf16.mxu0 0
      %5708 = vmatmul.mubr.bf16.gmra.mrb[0].mxu0 %v4506
      %v5709 = vpop.f32.mrb[0].mxu0
      %v5710 = vpop.f32.mrb[0].mxu0
      %v5711 = vpop.f32.mrb[0].mxu0
      %v5712 = vadd.f32 %v5503, %v5711
      %v5713 = vpop.f32.mrb[0].mxu0
      %5714 = vmatprep.mubr.bf16.mxu0 0
      %5715 = vmatmul.mubr.bf16.gmra.mrb[0].mxu0 %v4507
      %v5716 = vpop.f32.mrb[0].mxu0
      %v5717 = vadd.f32 %v5508, %v5716
      %v5718 = vpop.f32.mrb[0].mxu0
      %v5719 = vpop.f32.mrb[0].mxu0
      %v5720 = vpop.f32.mrb[0].mxu0
      %5721 = vmatprep.mubr.bf16.mxu0 0
      %5722 = vmatmul.mubr.bf16.gmra.mrb[0].mxu0 %v4508
      %v5723 = vpop.f32.mrb[0].mxu0
      %v5724 = vadd.f32 %v5515, %v5723
      %v5725 = vpop.f32.mrb[0].mxu0
      %v5726 = vpop.f32.mrb[0].mxu0
      %v5727 = vadd.f32 %v5518, %v5726
      %v5728 = vpop.f32.mrb[0].mxu0
      %5729 = vmatprep.mubr.bf16.mxu0 0
      %5730 = vmatmul.mubr.bf16.gmra.mrb[0].mxu0 %v4509
      %v5731 = vpop.f32.mrb[0].mxu0
      %v5732 = vpop.f32.mrb[0].mxu0
      %v5733 = vpop.f32.mrb[0].mxu0
      %v5734 = vadd.f32 %v5525, %v5733
      %v5735 = vpop.f32.mrb[0].mxu0
      %5736 = vmatprep.mubr.bf16.mxu0 0
      %5737 = vmatmul.mubr.bf16.gmra.mrb[0].mxu0 %v4510
      %v5738 = vpop.f32.mrb[0].mxu0
      %v5739 = vadd.f32 %v5530, %v5738
      %v5740 = vpop.f32.mrb[0].mxu0
      %v5741 = vpop.f32.mrb[0].mxu0
      %v5742 = vpop.f32.mrb[0].mxu0
      %5743 = vmatprep.mubr.bf16.mxu0 0
      %5744 = vmatmul.mubr.bf16.gmra.mrb[0].mxu0 %v4511
      %v5745 = vpop.f32.mrb[0].mxu0
      %v5746 = vadd.f32 %v5537, %v5745
      %v5747 = vpop.f32.mrb[0].mxu0
      %v5748 = vpop.f32.mrb[0].mxu0
      %v5749 = vadd.f32 %v5540, %v5748
      %v5750 = vpop.f32.mrb[0].mxu0
      %5751 = vmatprep.mubr.bf16.mxu0 0
      %5752 = vmatmul.mubr.bf16.gmra.mrb[0].mxu0 %v4512
      %v5753 = vpop.f32.mrb[0].mxu0
      %v5754 = vpop.f32.mrb[0].mxu0
      %v5755 = vpop.f32.mrb[0].mxu0
      %v5756 = vadd.f32 %v5547, %v5755
      %v5757 = vpop.f32.mrb[0].mxu0
      %5758 = vmatprep.mubr.bf16.mxu0 0
      %5759 = vmatmul.mubr.bf16.gmra.mrb[0].mxu0 %v4513
      %v5760 = vpop.f32.mrb[0].mxu0
      %v5761 = vadd.f32 %v5552, %v5760
      %v5762 = vpop.f32.mrb[0].mxu0
      %v5763 = vpop.f32.mrb[0].mxu0
      %v5764 = vpop.f32.mrb[0].mxu0
      %5765 = vmatprep.mubr.bf16.mxu0 0
      %5766 = vmatmul.mubr.bf16.gmra.mrb[0].mxu0 %v4514
      %v5767 = vpop.f32.mrb[0].mxu0
      %v5768 = vadd.f32 %v5559, %v5767
      %v5769 = vpop.f32.mrb[0].mxu0
      %v5770 = vpop.f32.mrb[0].mxu0
      %v5771 = vadd.f32 %v5562, %v5770
      %v5772 = vpop.f32.mrb[0].mxu0
      %5773 = vmatprep.mubr.bf16.mxu0 0
      %5774 = vmatmul.mubr.bf16.gmra.mrb[0].mxu0 %v4515
      %v5775 = vpop.f32.mrb[0].mxu0
      %v5776 = vpop.f32.mrb[0].mxu0
      %v5777 = vpop.f32.mrb[0].mxu0
      %v5778 = vadd.f32 %v5569, %v5777
      %v5779 = vpop.f32.mrb[0].mxu0
      %5780 = vmatprep.mubr.bf16.mxu0 0
      %5781 = vmatmul.mubr.bf16.gmra.mrb[0].mxu0 %v4516
      %v5782 = vpop.f32.mrb[0].mxu0
      %v5783 = vadd.f32 %v5574, %v5782
      %v5784 = vpop.f32.mrb[0].mxu0
      %v5785 = vpop.f32.mrb[0].mxu0
      %v5786 = vpop.f32.mrb[0].mxu0
      %5787 = vmatprep.mubr.bf16.mxu0 0
      %5788 = vmatmul.mubr.bf16.gmra.mrb[0].mxu0 %v4517
      %v5789 = vpop.f32.mrb[0].mxu0
      %v5790 = vadd.f32 %v5581, %v5789
      %v5791 = vpop.f32.mrb[0].mxu0
      %v5792 = vpop.f32.mrb[0].mxu0
      %v5793 = vadd.f32 %v5584, %v5792
      %v5794 = vpop.f32.mrb[0].mxu0
      %5795 = vmatprep.mubr.bf16.mxu0 0
      %5796 = vmatmul.mubr.bf16.gmra.mrb[0].mxu0 %v4518
      %v5797 = vpop.f32.mrb[0].mxu0
      %v5798 = vpop.f32.mrb[0].mxu0
      %v5799 = vpop.f32.mrb[0].mxu0
      %v5800 = vadd.f32 %v5591, %v5799
      %v5801 = vpop.f32.mrb[0].mxu0
      %5802 = vmatprep.mubr.bf16.mxu0 0
      %5803 = vmatmul.mubr.bf16.gmra.mrb[0].mxu0 %v4519
      %v5804 = vpop.f32.mrb[0].mxu0
      %v5805 = vadd.f32 %v5596, %v5804
      %v5806 = vpop.f32.mrb[0].mxu0
      %v5807 = vpop.f32.mrb[0].mxu0
      %v5808 = vpop.f32.mrb[0].mxu0
      %5809 = vmatprep.mubr.bf16.mxu0 0
      %5810 = vmatmul.mubr.bf16.gmra.mrb[0].mxu0 %v4520
      %v5811 = vpop.f32.mrb[0].mxu0
      %v5812 = vadd.f32 %v5603, %v5811
      %v5813 = vpop.f32.mrb[0].mxu0
      %v5814 = vpop.f32.mrb[0].mxu0
      %v5815 = vadd.f32 %v5606, %v5814
      %v5816 = vpop.f32.mrb[0].mxu0
      %5817 = vmatprep.mubr.bf16.mxu0 0
      %5818 = vmatmul.mubr.bf16.gmra.mrb[0].mxu0 %v4521
      %v5819 = vpop.f32.mrb[0].mxu0
      %v5820 = vpop.f32.mrb[0].mxu0
      %v5821 = vpop.f32.mrb[0].mxu0
      %v5822 = vadd.f32 %v5613, %v5821
      %v5823 = vpop.f32.mrb[0].mxu0
      %5824 = vmatprep.mubr.bf16.mxu0 0
      %5825 = vmatmul.mubr.bf16.gmra.mrb[0].mxu0 %v4522
      %v5826 = vpop.f32.mrb[0].mxu0
      %v5827 = vadd.f32 %v5618, %v5826
      %v5828 = vpop.f32.mrb[0].mxu0
      %v5829 = vpop.f32.mrb[0].mxu0
      %v5830 = vpop.f32.mrb[0].mxu0
      %5831 = vmatprep.mubr.bf16.mxu0 0
      %5832 = vmatmul.mubr.bf16.gmra.mrb[0].mxu0 %v4595
      %v5833 = vpop.f32.mrb[0].mxu0
      %v5834 = vadd.f32 %v5625, %v5833
      %v5835 = vpop.f32.mrb[0].mxu0
      %v5836 = vpop.f32.mrb[0].mxu0
      %v5837 = vadd.f32 %v5628, %v5836
      %v5838 = vpop.f32.mrb[0].mxu0
      %5839 = vmatprep.mubr.bf16.mxu0 0
      %5840 = vmatmul.mubr.bf16.gmra.mrb[0].mxu0 %v4596
      %v5841 = vpop.f32.mrb[0].mxu0
      %v5842 = vpop.f32.mrb[0].mxu0
      %v5843 = vpop.f32.mrb[0].mxu0
      %v5844 = vadd.f32 %v5635, %v5843
      %v5845 = vpop.f32.mrb[0].mxu0
      %5846 = vmatprep.mubr.bf16.mxu0 0
      %5847 = vmatmul.mubr.bf16.gmra.mrb[0].mxu0 %v4597
      %v5848 = vpop.f32.mrb[0].mxu0
      %v5849 = vadd.f32 %v5640, %v5848
      %v5850 = vpop.f32.mrb[0].mxu0
      %v5851 = vpop.f32.mrb[0].mxu0
      %v5852 = vpop.f32.mrb[0].mxu0
      %5853 = vdwg.mxu0
      %v5886 = vrot.slane %v5680, 7
      %v5887 = vrot.slane %v5683, 7
      %v5888 = vsel %vm2383, %v5886, %v5887
      %v5889 = vrot.slane %v5690, 7
      %v5890 = vrot.slane %v5695, 7
      %v5891 = vsel %vm2383, %v5889, %v5890
      %v5892 = vrot.slane %v5702, 7
      %v5893 = vrot.slane %v5705, 7
      %v5894 = vsel %vm2383, %v5892, %v5893
      %v5895 = vrot.slane %v5712, 7
      %v5896 = vrot.slane %v5717, 7
      %v5897 = vsel %vm2383, %v5895, %v5896
      %v5898 = vrot.slane %v5724, 7
      %v5899 = vrot.slane %v5727, 7
      %v5900 = vsel %vm2383, %v5898, %v5899
      %v5901 = vrot.slane %v5734, 7
      %v5902 = vrot.slane %v5739, 7
      %v5903 = vsel %vm2383, %v5901, %v5902
      %v5904 = vrot.slane %v5746, 7
      %v5905 = vrot.slane %v5749, 7
      %v5906 = vsel %vm2383, %v5904, %v5905
      %v5907 = vrot.slane %v5756, 7
      %v5908 = vrot.slane %v5761, 7
      %v5909 = vsel %vm2383, %v5907, %v5908
      %v5910 = vrot.slane %v5768, 7
      %v5911 = vrot.slane %v5771, 7
      %v5912 = vsel %vm2383, %v5910, %v5911
      %v5913 = vrot.slane %v5778, 7
      %v5914 = vrot.slane %v5783, 7
      %v5915 = vsel %vm2383, %v5913, %v5914
      %v5916 = vrot.slane %v5790, 7
      %v5917 = vrot.slane %v5793, 7
      %v5918 = vsel %vm2383, %v5916, %v5917
      %v5919 = vrot.slane %v5800, 7
      %v5920 = vrot.slane %v5805, 7
      %v5921 = vsel %vm2383, %v5919, %v5920
      %v5922 = vrot.slane %v5812, 7
      %v5923 = vrot.slane %v5815, 7
      %v5924 = vsel %vm2383, %v5922, %v5923
      %v5925 = vrot.slane %v5822, 7
      %v5926 = vrot.slane %v5827, 7
      %v5927 = vsel %vm2383, %v5925, %v5926
      %v5928 = vrot.slane %v5834, 7
      %v5929 = vrot.slane %v5837, 7
      %v5930 = vsel %vm2383, %v5928, %v5929
      %v5931 = vrot.slane %v5844, 7
      %v5932 = vrot.slane %v5849, 7
      %v5933 = vsel %vm2383, %v5931, %v5932
      %v5982 = vadd.f32 %v5054, %v5886
      %v5983 = vadd.f32 %v5057, %v5888
      %v5984 = vadd.f32 %v5062, %v5887
      %v5985 = vadd.f32 %v5065, %v5889
      %v5986 = vadd.f32 %v5070, %v5891
      %v5987 = vadd.f32 %v5073, %v5890
      %v5988 = vadd.f32 %v5078, %v5892
      %v5989 = vadd.f32 %v5081, %v5894
      %v5990 = vadd.f32 %v5086, %v5893
      %v5991 = vadd.f32 %v5089, %v5895
      %v5992 = vadd.f32 %v5094, %v5897
      %v5993 = vadd.f32 %v5097, %v5896
      %v5994 = vadd.f32 %v5102, %v5898
      %v5995 = vadd.f32 %v5105, %v5900
      %v5996 = vadd.f32 %v5110, %v5899
      %v5997 = vadd.f32 %v5113, %v5901
      %v5998 = vadd.f32 %v5118, %v5903
      %v5999 = vadd.f32 %v5121, %v5902
      %v6000 = vadd.f32 %v5126, %v5904
      %v6001 = vadd.f32 %v5129, %v5906
      %v6002 = vadd.f32 %v5134, %v5905
      %v6003 = vadd.f32 %v5137, %v5907
      %v6004 = vadd.f32 %v5142, %v5909
      %v6005 = vadd.f32 %v5145, %v5908
      %v6006 = vadd.f32 %v5150, %v5910
      %v6007 = vadd.f32 %v5153, %v5912
      %v6008 = vadd.f32 %v5158, %v5911
      %v6009 = vadd.f32 %v5161, %v5913
      %v6010 = vadd.f32 %v5166, %v5915
      %v6011 = vadd.f32 %v5169, %v5914
      %v6012 = vadd.f32 %v5174, %v5916
      %v6013 = vadd.f32 %v5177, %v5918
      %v6014 = vadd.f32 %v5182, %v5917
      %v6015 = vadd.f32 %v5185, %v5919
      %v6016 = vadd.f32 %v5190, %v5921
      %v6017 = vadd.f32 %v5193, %v5920
      %v6018 = vadd.f32 %v5198, %v5922
      %v6019 = vadd.f32 %v5201, %v5924
      %v6020 = vadd.f32 %v5206, %v5923
      %v6021 = vadd.f32 %v5209, %v5925
      %v6022 = vadd.f32 %v5214, %v5927
      %v6023 = vadd.f32 %v5217, %v5926
      %v6024 = vadd.f32 %v5222, %v5928
      %v6025 = vadd.f32 %v5225, %v5930
      %v6026 = vadd.f32 %v5230, %v5929
      %v6027 = vadd.f32 %v5233, %v5931
      %v6028 = vadd.f32 %v5238, %v5933
      %v6029 = vadd.f32 %v5241, %v5932
      %s6030 = scalar_lea.vmem %s4, 384
      %v6031 = vld [vmem:[%s6030] sm:$0xf]
      %v6032 = vld [vmem:[%s6030 + $0x4] sm:$0xf]
      %v6033 = vld [vmem:[%s6030 + $0x8] sm:$0xf]
      %v6034 = vld [vmem:[%s6030 + $0xc] sm:$0xf]
      %v6035 = vld [vmem:[%s6030 + $0x10] sm:$0xf]
      %v6036 = vld [vmem:[%s6030 + $0x14] sm:$0xf]
      %v6037 = vld [vmem:[%s6030 + $0x18] sm:$0xf]
      %v6038 = vld [vmem:[%s6030 + $0x1c] sm:$0xf]
      %v6039 = vld [vmem:[%s6030 + $0x20] sm:$0xf]
      %v6040 = vld [vmem:[%s6030 + $0x24] sm:$0xf]
      %v6041 = vld [vmem:[%s6030 + $0x28] sm:$0xf]
      %v6042 = vld [vmem:[%s6030 + $0x2c] sm:$0xf]
      %v6043 = vld [vmem:[%s6030 + $0x30] sm:$0xf]
      %v6044 = vld [vmem:[%s6030 + $0x34] sm:$0xf]
      %v6045 = vld [vmem:[%s6030 + $0x38] sm:$0xf]
      %v6046 = vld [vmem:[%s6030 + $0x3c] sm:$0xf]
      %v6047 = vld [vmem:[%s6030 + $0x40] sm:$0xf]
      %v6048 = vld [vmem:[%s6030 + $0x44] sm:$0xf]
      %v6049 = vld [vmem:[%s6030 + $0x48] sm:$0xf]
      %v6050 = vld [vmem:[%s6030 + $0x4c] sm:$0xf]
      %v6051 = vld [vmem:[%s6030 + $0x50] sm:$0xf]
      %v6052 = vld [vmem:[%s6030 + $0x54] sm:$0xf]
      %v6053 = vld [vmem:[%s6030 + $0x58] sm:$0xf]
      %v6054 = vld [vmem:[%s6030 + $0x5c] sm:$0xf]
      %v6055 = vld [vmem:[%s6030 + $0x60] sm:$0xf]
      %v6056 = vld [vmem:[%s6030 + $0x64] sm:$0xf]
      %v6057 = vld [vmem:[%s6030 + $0x68] sm:$0xf]
      %v6058 = vld [vmem:[%s6030 + $0x6c] sm:$0xf]
      %v6059 = vld [vmem:[%s6030 + $0x70] sm:$0xf]
      %v6060 = vld [vmem:[%s6030 + $0x74] sm:$0xf]
      %v6061 = vld [vmem:[%s6030 + $0x78] sm:$0xf]
      %v6062 = vld [vmem:[%s6030 + $0x7c] sm:$0xf]
      %v6063 = vld [vmem:[%s6030 + $0x80] sm:$0xf]
      %v6064 = vld [vmem:[%s6030 + $0x84] sm:$0xf]
      %v6065 = vld [vmem:[%s6030 + $0x88] sm:$0xf]
      %v6066 = vld [vmem:[%s6030 + $0x8c] sm:$0xf]
      %v6067 = vld [vmem:[%s6030 + $0x90] sm:$0xf]
      %v6068 = vld [vmem:[%s6030 + $0x94] sm:$0xf]
      %v6069 = vld [vmem:[%s6030 + $0x98] sm:$0xf]
      %v6070 = vld [vmem:[%s6030 + $0x9c] sm:$0xf]
      %v6071 = vld [vmem:[%s6030 + $0xa0] sm:$0xf]
      %v6072 = vld [vmem:[%s6030 + $0xa4] sm:$0xf]
      %v6073 = vld [vmem:[%s6030 + $0xa8] sm:$0xf]
      %v6074 = vld [vmem:[%s6030 + $0xac] sm:$0xf]
      %v6075 = vld [vmem:[%s6030 + $0xb0] sm:$0xf]
      %v6076 = vld [vmem:[%s6030 + $0xb4] sm:$0xf]
      %v6077 = vld [vmem:[%s6030 + $0xb8] sm:$0xf]
      %v6078 = vld [vmem:[%s6030 + $0xbc] sm:$0xf]
      %v6127 = vunpack.c.l.b16 %v6031
      %v6128 = vunpack.c.l.b16 %v6032
      %v6129 = vunpack.c.l.b16 %v6033
      %v6130 = vunpack.c.l.b16 %v6034
      %v6131 = vunpack.c.l.b16 %v6035
      %v6132 = vunpack.c.l.b16 %v6036
      %v6133 = vunpack.c.l.b16 %v6037
      %v6134 = vunpack.c.l.b16 %v6038
      %v6135 = vunpack.c.l.b16 %v6039
      %v6136 = vunpack.c.l.b16 %v6040
      %v6137 = vunpack.c.l.b16 %v6041
      %v6138 = vunpack.c.l.b16 %v6042
      %v6139 = vunpack.c.l.b16 %v6043
      %v6140 = vunpack.c.l.b16 %v6044
      %v6141 = vunpack.c.l.b16 %v6045
      %v6142 = vunpack.c.l.b16 %v6046
      %v6143 = vunpack.c.l.b16 %v6047
      %v6144 = vunpack.c.l.b16 %v6048
      %v6145 = vunpack.c.l.b16 %v6049
      %v6146 = vunpack.c.l.b16 %v6050
      %v6147 = vunpack.c.l.b16 %v6051
      %v6148 = vunpack.c.l.b16 %v6052
      %v6149 = vunpack.c.l.b16 %v6053
      %v6150 = vunpack.c.l.b16 %v6054
      %v6151 = vunpack.c.l.b16 %v6055
      %v6152 = vunpack.c.l.b16 %v6056
      %v6153 = vunpack.c.l.b16 %v6057
      %v6154 = vunpack.c.l.b16 %v6058
      %v6155 = vunpack.c.l.b16 %v6059
      %v6156 = vunpack.c.l.b16 %v6060
      %v6157 = vunpack.c.l.b16 %v6061
      %v6158 = vunpack.c.l.b16 %v6062
      %v6159 = vunpack.c.l.b16 %v6063
      %v6160 = vunpack.c.l.b16 %v6064
      %v6161 = vunpack.c.l.b16 %v6065
      %v6162 = vunpack.c.l.b16 %v6066
      %v6163 = vunpack.c.l.b16 %v6067
      %v6164 = vunpack.c.l.b16 %v6068
      %v6165 = vunpack.c.l.b16 %v6069
      %v6166 = vunpack.c.l.b16 %v6070
      %v6167 = vunpack.c.l.b16 %v6071
      %v6168 = vunpack.c.l.b16 %v6072
      %v6169 = vunpack.c.l.b16 %v6073
      %v6170 = vunpack.c.l.b16 %v6074
      %v6171 = vunpack.c.l.b16 %v6075
      %v6172 = vunpack.c.l.b16 %v6076
      %v6173 = vunpack.c.l.b16 %v6077
      %v6174 = vunpack.c.l.b16 %v6078
      %v6175 = vpack.c.b16 %v6128, %v6127
      %v6176 = vpack.c.b16 %v6130, %v6129
      %v6177 = vpack.c.b16 %v6132, %v6131
      %v6178 = vpack.c.b16 %v6134, %v6133
      %v6179 = vpack.c.b16 %v6136, %v6135
      %v6180 = vpack.c.b16 %v6138, %v6137
      %v6181 = vpack.c.b16 %v6140, %v6139
      %v6182 = vpack.c.b16 %v6142, %v6141
      %v6183 = vpack.c.b16 %v6144, %v6143
      %v6184 = vpack.c.b16 %v6146, %v6145
      %v6185 = vpack.c.b16 %v6148, %v6147
      %v6186 = vpack.c.b16 %v6150, %v6149
      %v6187 = vpack.c.b16 %v6152, %v6151
      %v6188 = vpack.c.b16 %v6154, %v6153
      %v6189 = vpack.c.b16 %v6156, %v6155
      %v6190 = vpack.c.b16 %v6158, %v6157
      %v6191 = vpack.c.b16 %v6160, %v6159
      %v6192 = vpack.c.b16 %v6162, %v6161
      %v6193 = vpack.c.b16 %v6164, %v6163
      %v6194 = vpack.c.b16 %v6166, %v6165
      %v6195 = vpack.c.b16 %v6168, %v6167
      %v6196 = vpack.c.b16 %v6170, %v6169
      %v6197 = vpack.c.b16 %v6172, %v6171
      %v6198 = vpack.c.b16 %v6174, %v6173
      %6223 = vmatprep.subr.bf16.mxu0 0
      %6224 = vmatpush1.bf16.msra.mxu0 %v6175
      %6225 = vmatprep.subr.bf16.mxu0 0
      %6226 = vmatpush1.bf16.msra.mxu0 %v6176
      %6227 = vmatprep.subr.bf16.mxu0 0
      %6228 = vmatpush1.bf16.msra.mxu0 %v6177
      %6229 = vmatprep.subr.bf16.mxu0 0
      %6230 = vmatpush1.bf16.msra.mxu0 %v6178
      %6231 = vmatprep.subr.bf16.mxu0 0
      %6232 = vmatpush1.bf16.msra.mxu0 %v6179
      %6233 = vmatprep.subr.bf16.mxu0 0
      %6234 = vmatpush1.bf16.msra.mxu0 %v6180
      %6235 = vmatprep.subr.bf16.mxu0 0
      %6236 = vmatpush1.bf16.msra.mxu0 %v6181
      %6237 = vmatprep.subr.bf16.mxu0 0
      %6238 = vmatpush1.bf16.msra.mxu0 %v6182
      %6239 = vmatprep.subr.bf16.mxu0 0
      %6240 = vmatpush1.bf16.msra.mxu0 %v6183
      %6241 = vmatprep.subr.bf16.mxu0 0
      %6242 = vmatpush1.bf16.msra.mxu0 %v6184
      %6243 = vmatprep.subr.bf16.mxu0 0
      %6244 = vmatpush1.bf16.msra.mxu0 %v6185
      %6245 = vmatprep.subr.bf16.mxu0 0
      %6246 = vmatpush1.bf16.msra.mxu0 %v6186
      %6247 = vmatprep.subr.bf16.mxu0 0
      %6248 = vmatpush1.bf16.msra.mxu0 %v6187
      %6249 = vmatprep.subr.bf16.mxu0 0
      %6250 = vmatpush1.bf16.msra.mxu0 %v6188
      %6251 = vmatprep.subr.bf16.mxu0 0
      %6252 = vmatpush1.bf16.msra.mxu0 %v6189
      %6253 = vmatprep.subr.bf16.mxu0 0
      %6254 = vmatpush1.bf16.msra.mxu0 %v6190
      %6255 = vmatprep.mubr.bf16.mxu0 %v4547
      %6256 = vmatmul.mubr.bf16.gmra.mrb[0].mxu0 %v4499
      %v6257 = vpop.f32.mrb[0].mxu0
      %v6258 = vadd.f32 0.0, %v6257
      %v6259 = vpop.f32.mrb[0].mxu0
      %v6260 = vpop.f32.mrb[0].mxu0
      %v6261 = vadd.f32 0.0, %v6260
      %v6262 = vpop.f32.mrb[0].mxu0
      %6263 = vmatprep.mubr.bf16.mxu0 %v4548
      %6264 = vmatmul.mubr.bf16.gmra.mrb[0].mxu0 %v4500
      %v6265 = vpop.f32.mrb[0].mxu0
      %v6266 = vadd.f32 0.0, %v6265
      %v6267 = vpop.f32.mrb[0].mxu0
      %v6268 = vpop.f32.mrb[0].mxu0
      %v6269 = vadd.f32 0.0, %v6268
      %v6270 = vpop.f32.mrb[0].mxu0
      %6271 = vmatprep.mubr.bf16.mxu0 %v4549
      %6272 = vmatmul.mubr.bf16.gmra.mrb[0].mxu0 %v4501
      %v6273 = vpop.f32.mrb[0].mxu0
      %v6274 = vadd.f32 0.0, %v6273
      %v6275 = vpop.f32.mrb[0].mxu0
      %v6276 = vpop.f32.mrb[0].mxu0
      %v6277 = vadd.f32 0.0, %v6276
      %v6278 = vpop.f32.mrb[0].mxu0
      %6279 = vmatprep.mubr.bf16.mxu0 %v4550
      %6280 = vmatmul.mubr.bf16.gmra.mrb[0].mxu0 %v4502
      %v6281 = vpop.f32.mrb[0].mxu0
      %v6282 = vadd.f32 0.0, %v6281
      %v6283 = vpop.f32.mrb[0].mxu0
      %v6284 = vpop.f32.mrb[0].mxu0
      %v6285 = vadd.f32 0.0, %v6284
      %v6286 = vpop.f32.mrb[0].mxu0
      %6287 = vmatprep.mubr.bf16.mxu0 %v4551
      %6288 = vmatmul.mubr.bf16.gmra.mrb[0].mxu0 %v4503
      %v6289 = vpop.f32.mrb[0].mxu0
      %v6290 = vadd.f32 0.0, %v6289
      %v6291 = vpop.f32.mrb[0].mxu0
      %v6292 = vpop.f32.mrb[0].mxu0
      %v6293 = vadd.f32 0.0, %v6292
      %v6294 = vpop.f32.mrb[0].mxu0
      %6295 = vmatprep.mubr.bf16.mxu0 %v4552
      %6296 = vmatmul.mubr.bf16.gmra.mrb[0].mxu0 %v4504
      %v6297 = vpop.f32.mrb[0].mxu0
      %v6298 = vadd.f32 0.0, %v6297
      %v6299 = vpop.f32.mrb[0].mxu0
      %v6300 = vpop.f32.mrb[0].mxu0
      %v6301 = vadd.f32 0.0, %v6300
      %v6302 = vpop.f32.mrb[0].mxu0
      %6303 = vmatprep.mubr.bf16.mxu0 %v4553
      %6304 = vmatmul.mubr.bf16.gmra.mrb[0].mxu0 %v4505
      %v6305 = vpop.f32.mrb[0].mxu0
      %v6306 = vadd.f32 0.0, %v6305
      %v6307 = vpop.f32.mrb[0].mxu0
      %v6308 = vpop.f32.mrb[0].mxu0
      %v6309 = vadd.f32 0.0, %v6308
      %v6310 = vpop.f32.mrb[0].mxu0
      %6311 = vmatprep.mubr.bf16.mxu0 %v4554
      %6312 = vmatmul.mubr.bf16.gmra.mrb[0].mxu0 %v4506
      %v6313 = vpop.f32.mrb[0].mxu0
      %v6314 = vadd.f32 0.0, %v6313
      %v6315 = vpop.f32.mrb[0].mxu0
      %v6316 = vpop.f32.mrb[0].mxu0
      %v6317 = vadd.f32 0.0, %v6316
      %v6318 = vpop.f32.mrb[0].mxu0
      %6319 = vmatprep.mubr.bf16.mxu0 %v4555
      %6320 = vmatmul.mubr.bf16.gmra.mrb[0].mxu0 %v4507
      %v6321 = vpop.f32.mrb[0].mxu0
      %v6322 = vadd.f32 0.0, %v6321
      %v6323 = vpop.f32.mrb[0].mxu0
      %v6324 = vpop.f32.mrb[0].mxu0
      %v6325 = vadd.f32 0.0, %v6324
      %v6326 = vpop.f32.mrb[0].mxu0
      %6327 = vmatprep.mubr.bf16.mxu0 %v4556
      %6328 = vmatmul.mubr.bf16.gmra.mrb[0].mxu0 %v4508
      %v6329 = vpop.f32.mrb[0].mxu0
      %v6330 = vadd.f32 0.0, %v6329
      %v6331 = vpop.f32.mrb[0].mxu0
      %v6332 = vpop.f32.mrb[0].mxu0
      %v6333 = vadd.f32 0.0, %v6332
      %v6334 = vpop.f32.mrb[0].mxu0
      %6335 = vmatprep.mubr.bf16.mxu0 %v4557
      %6336 = vmatmul.mubr.bf16.gmra.mrb[0].mxu0 %v4509
      %v6337 = vpop.f32.mrb[0].mxu0
      %v6338 = vadd.f32 0.0, %v6337
      %v6339 = vpop.f32.mrb[0].mxu0
      %v6340 = vpop.f32.mrb[0].mxu0
      %v6341 = vadd.f32 0.0, %v6340
      %v6342 = vpop.f32.mrb[0].mxu0
      %6343 = vmatprep.mubr.bf16.mxu0 %v4558
      %6344 = vmatmul.mubr.bf16.gmra.mrb[0].mxu0 %v4510
      %v6345 = vpop.f32.mrb[0].mxu0
      %v6346 = vadd.f32 0.0, %v6345
      %v6347 = vpop.f32.mrb[0].mxu0
      %v6348 = vpop.f32.mrb[0].mxu0
      %v6349 = vadd.f32 0.0, %v6348
      %v6350 = vpop.f32.mrb[0].mxu0
      %6351 = vmatprep.mubr.bf16.mxu0 %v4559
      %6352 = vmatmul.mubr.bf16.gmra.mrb[0].mxu0 %v4511
      %v6353 = vpop.f32.mrb[0].mxu0
      %v6354 = vadd.f32 0.0, %v6353
      %v6355 = vpop.f32.mrb[0].mxu0
      %v6356 = vpop.f32.mrb[0].mxu0
      %v6357 = vadd.f32 0.0, %v6356
      %v6358 = vpop.f32.mrb[0].mxu0
      %6359 = vmatprep.mubr.bf16.mxu0 %v4560
      %6360 = vmatmul.mubr.bf16.gmra.mrb[0].mxu0 %v4512
      %v6361 = vpop.f32.mrb[0].mxu0
      %v6362 = vadd.f32 0.0, %v6361
      %v6363 = vpop.f32.mrb[0].mxu0
      %v6364 = vpop.f32.mrb[0].mxu0
      %v6365 = vadd.f32 0.0, %v6364
      %v6366 = vpop.f32.mrb[0].mxu0
      %6367 = vmatprep.mubr.bf16.mxu0 %v4561
      %6368 = vmatmul.mubr.bf16.gmra.mrb[0].mxu0 %v4513
      %v6369 = vpop.f32.mrb[0].mxu0
      %v6370 = vadd.f32 0.0, %v6369
      %v6371 = vpop.f32.mrb[0].mxu0
      %v6372 = vpop.f32.mrb[0].mxu0
      %v6373 = vadd.f32 0.0, %v6372
      %v6374 = vpop.f32.mrb[0].mxu0
      %6375 = vmatprep.mubr.bf16.mxu0 %v4562
      %6376 = vmatmul.mubr.bf16.gmra.mrb[0].mxu0 %v4514
      %v6377 = vpop.f32.mrb[0].mxu0
      %v6378 = vadd.f32 0.0, %v6377
      %v6379 = vpop.f32.mrb[0].mxu0
      %v6380 = vpop.f32.mrb[0].mxu0
      %v6381 = vadd.f32 0.0, %v6380
      %v6382 = vpop.f32.mrb[0].mxu0
      %6383 = vmatprep.mubr.bf16.mxu0 %v4563
      %6384 = vmatmul.mubr.bf16.gmra.mrb[0].mxu0 %v4515
      %v6385 = vpop.f32.mrb[0].mxu0
      %v6386 = vadd.f32 0.0, %v6385
      %v6387 = vpop.f32.mrb[0].mxu0
      %v6388 = vpop.f32.mrb[0].mxu0
      %v6389 = vadd.f32 0.0, %v6388
      %v6390 = vpop.f32.mrb[0].mxu0
      %6391 = vmatprep.mubr.bf16.mxu0 %v4564
      %6392 = vmatmul.mubr.bf16.gmra.mrb[0].mxu0 %v4516
      %v6393 = vpop.f32.mrb[0].mxu0
      %v6394 = vadd.f32 0.0, %v6393
      %v6395 = vpop.f32.mrb[0].mxu0
      %v6396 = vpop.f32.mrb[0].mxu0
      %v6397 = vadd.f32 0.0, %v6396
      %v6398 = vpop.f32.mrb[0].mxu0
      %6399 = vmatprep.mubr.bf16.mxu0 %v4565
      %6400 = vmatmul.mubr.bf16.gmra.mrb[0].mxu0 %v4517
      %v6401 = vpop.f32.mrb[0].mxu0
      %v6402 = vadd.f32 0.0, %v6401
      %v6403 = vpop.f32.mrb[0].mxu0
      %v6404 = vpop.f32.mrb[0].mxu0
      %v6405 = vadd.f32 0.0, %v6404
      %v6406 = vpop.f32.mrb[0].mxu0
      %6407 = vmatprep.mubr.bf16.mxu0 %v4566
      %6408 = vmatmul.mubr.bf16.gmra.mrb[0].mxu0 %v4518
      %v6409 = vpop.f32.mrb[0].mxu0
      %v6410 = vadd.f32 0.0, %v6409
      %v6411 = vpop.f32.mrb[0].mxu0
      %v6412 = vpop.f32.mrb[0].mxu0
      %v6413 = vadd.f32 0.0, %v6412
      %v6414 = vpop.f32.mrb[0].mxu0
      %6415 = vmatprep.mubr.bf16.mxu0 %v4567
      %6416 = vmatmul.mubr.bf16.gmra.mrb[0].mxu0 %v4519
      %v6417 = vpop.f32.mrb[0].mxu0
      %v6418 = vadd.f32 0.0, %v6417
      %v6419 = vpop.f32.mrb[0].mxu0
      %v6420 = vpop.f32.mrb[0].mxu0
      %v6421 = vadd.f32 0.0, %v6420
      %v6422 = vpop.f32.mrb[0].mxu0
      %6423 = vmatprep.mubr.bf16.mxu0 %v4568
      %6424 = vmatmul.mubr.bf16.gmra.mrb[0].mxu0 %v4520
      %v6425 = vpop.f32.mrb[0].mxu0
      %v6426 = vadd.f32 0.0, %v6425
      %v6427 = vpop.f32.mrb[0].mxu0
      %v6428 = vpop.f32.mrb[0].mxu0
      %v6429 = vadd.f32 0.0, %v6428
      %v6430 = vpop.f32.mrb[0].mxu0
      %6431 = vmatprep.mubr.bf16.mxu0 %v4569
      %6432 = vmatmul.mubr.bf16.gmra.mrb[0].mxu0 %v4521
      %v6433 = vpop.f32.mrb[0].mxu0
      %v6434 = vadd.f32 0.0, %v6433
      %v6435 = vpop.f32.mrb[0].mxu0
      %v6436 = vpop.f32.mrb[0].mxu0
      %v6437 = vadd.f32 0.0, %v6436
      %v6438 = vpop.f32.mrb[0].mxu0
      %6439 = vmatprep.mubr.bf16.mxu0 %v4570
      %6440 = vmatmul.mubr.bf16.gmra.mrb[0].mxu0 %v4522
      %v6441 = vpop.f32.mrb[0].mxu0
      %v6442 = vadd.f32 0.0, %v6441
      %v6443 = vpop.f32.mrb[0].mxu0
      %v6444 = vpop.f32.mrb[0].mxu0
      %v6445 = vadd.f32 0.0, %v6444
      %v6446 = vpop.f32.mrb[0].mxu0
      %6447 = vdwg.mxu0
      %6448 = vmatprep.subr.bf16.mxu0 0
      %6449 = vmatpush1.bf16.msra.mxu0 %v6191
      %6450 = vmatprep.subr.bf16.mxu0 0
      %6451 = vmatpush1.bf16.msra.mxu0 %v6192
      %6452 = vmatprep.subr.bf16.mxu0 0
      %6453 = vmatpush1.bf16.msra.mxu0 %v6193
      %6454 = vmatprep.subr.bf16.mxu0 0
      %6455 = vmatpush1.bf16.msra.mxu0 %v6194
      %6456 = vmatprep.subr.bf16.mxu0 0
      %6457 = vmatpush1.bf16.msra.mxu0 %v6195
      %6458 = vmatprep.subr.bf16.mxu0 0
      %6459 = vmatpush1.bf16.msra.mxu0 %v6196
      %6460 = vmatprep.subr.bf16.mxu0 0
      %6461 = vmatpush1.bf16.msra.mxu0 %v6197
      %6462 = vmatprep.subr.bf16.mxu0 0
      %6463 = vmatpush1.bf16.msra.mxu0 %v6198
      %6464 = vmatprep.subr.bf16.mxu0 0
      %6465 = vmatpush1.bf16.msra.mxu0 0
      %6466 = vmatprep.subr.bf16.mxu0 0
      %6467 = vmatpush1.bf16.msra.mxu0 0
      %6468 = vmatprep.subr.bf16.mxu0 0
      %6469 = vmatpush1.bf16.msra.mxu0 0
      %6470 = vmatprep.subr.bf16.mxu0 0
      %6471 = vmatpush1.bf16.msra.mxu0 0
      %6472 = vmatprep.subr.bf16.mxu0 0
      %6473 = vmatpush1.bf16.msra.mxu0 0
      %6474 = vmatprep.subr.bf16.mxu0 0
      %6475 = vmatpush1.bf16.msra.mxu0 0
      %6476 = vmatprep.subr.bf16.mxu0 0
      %6477 = vmatpush1.bf16.msra.mxu0 0
      %6478 = vmatprep.subr.bf16.mxu0 0
      %6479 = vmatpush1.bf16.msra.mxu0 0
      %6480 = vmatprep.mubr.bf16.mxu0 0
      %6481 = vmatmul.mubr.bf16.gmra.mrb[0].mxu0 %v4502
      %v6482 = vpop.f32.mrb[0].mxu0
      %v6483 = vadd.f32 %v6258, %v6482
      %v6484 = vpop.f32.mrb[0].mxu0
      %v6485 = vpop.f32.mrb[0].mxu0
      %v6486 = vadd.f32 %v6261, %v6485
      %v6487 = vpop.f32.mrb[0].mxu0
      %6488 = vmatprep.mubr.bf16.mxu0 0
      %6489 = vmatmul.mubr.bf16.gmra.mrb[0].mxu0 %v4503
      %v6490 = vpop.f32.mrb[0].mxu0
      %v6491 = vadd.f32 %v6266, %v6490
      %v6492 = vpop.f32.mrb[0].mxu0
      %v6493 = vpop.f32.mrb[0].mxu0
      %v6494 = vadd.f32 %v6269, %v6493
      %v6495 = vpop.f32.mrb[0].mxu0
      %6496 = vmatprep.mubr.bf16.mxu0 0
      %6497 = vmatmul.mubr.bf16.gmra.mrb[0].mxu0 %v4504
      %v6498 = vpop.f32.mrb[0].mxu0
      %v6499 = vadd.f32 %v6274, %v6498
      %v6500 = vpop.f32.mrb[0].mxu0
      %v6501 = vpop.f32.mrb[0].mxu0
      %v6502 = vadd.f32 %v6277, %v6501
      %v6503 = vpop.f32.mrb[0].mxu0
      %6504 = vmatprep.mubr.bf16.mxu0 0
      %6505 = vmatmul.mubr.bf16.gmra.mrb[0].mxu0 %v4505
      %v6506 = vpop.f32.mrb[0].mxu0
      %v6507 = vadd.f32 %v6282, %v6506
      %v6508 = vpop.f32.mrb[0].mxu0
      %v6509 = vpop.f32.mrb[0].mxu0
      %v6510 = vadd.f32 %v6285, %v6509
      %v6511 = vpop.f32.mrb[0].mxu0
      %6512 = vmatprep.mubr.bf16.mxu0 0
      %6513 = vmatmul.mubr.bf16.gmra.mrb[0].mxu0 %v4506
      %v6514 = vpop.f32.mrb[0].mxu0
      %v6515 = vadd.f32 %v6290, %v6514
      %v6516 = vpop.f32.mrb[0].mxu0
      %v6517 = vpop.f32.mrb[0].mxu0
      %v6518 = vadd.f32 %v6293, %v6517
      %v6519 = vpop.f32.mrb[0].mxu0
      %6520 = vmatprep.mubr.bf16.mxu0 0
      %6521 = vmatmul.mubr.bf16.gmra.mrb[0].mxu0 %v4507
      %v6522 = vpop.f32.mrb[0].mxu0
      %v6523 = vadd.f32 %v6298, %v6522
      %v6524 = vpop.f32.mrb[0].mxu0
      %v6525 = vpop.f32.mrb[0].mxu0
      %v6526 = vadd.f32 %v6301, %v6525
      %v6527 = vpop.f32.mrb[0].mxu0
      %6528 = vmatprep.mubr.bf16.mxu0 0
      %6529 = vmatmul.mubr.bf16.gmra.mrb[0].mxu0 %v4508
      %v6530 = vpop.f32.mrb[0].mxu0
      %v6531 = vadd.f32 %v6306, %v6530
      %v6532 = vpop.f32.mrb[0].mxu0
      %v6533 = vpop.f32.mrb[0].mxu0
      %v6534 = vadd.f32 %v6309, %v6533
      %v6535 = vpop.f32.mrb[0].mxu0
      %6536 = vmatprep.mubr.bf16.mxu0 0
      %6537 = vmatmul.mubr.bf16.gmra.mrb[0].mxu0 %v4509
      %v6538 = vpop.f32.mrb[0].mxu0
      %v6539 = vadd.f32 %v6314, %v6538
      %v6540 = vpop.f32.mrb[0].mxu0
      %v6541 = vpop.f32.mrb[0].mxu0
      %v6542 = vadd.f32 %v6317, %v6541
      %v6543 = vpop.f32.mrb[0].mxu0
      %6544 = vmatprep.mubr.bf16.mxu0 0
      %6545 = vmatmul.mubr.bf16.gmra.mrb[0].mxu0 %v4510
      %v6546 = vpop.f32.mrb[0].mxu0
      %v6547 = vadd.f32 %v6322, %v6546
      %v6548 = vpop.f32.mrb[0].mxu0
      %v6549 = vpop.f32.mrb[0].mxu0
      %v6550 = vadd.f32 %v6325, %v6549
      %v6551 = vpop.f32.mrb[0].mxu0
      %6552 = vmatprep.mubr.bf16.mxu0 0
      %6553 = vmatmul.mubr.bf16.gmra.mrb[0].mxu0 %v4511
      %v6554 = vpop.f32.mrb[0].mxu0
      %v6555 = vadd.f32 %v6330, %v6554
      %v6556 = vpop.f32.mrb[0].mxu0
      %v6557 = vpop.f32.mrb[0].mxu0
      %v6558 = vadd.f32 %v6333, %v6557
      %v6559 = vpop.f32.mrb[0].mxu0
      %6560 = vmatprep.mubr.bf16.mxu0 0
      %6561 = vmatmul.mubr.bf16.gmra.mrb[0].mxu0 %v4512
      %v6562 = vpop.f32.mrb[0].mxu0
      %v6563 = vadd.f32 %v6338, %v6562
      %v6564 = vpop.f32.mrb[0].mxu0
      %v6565 = vpop.f32.mrb[0].mxu0
      %v6566 = vadd.f32 %v6341, %v6565
      %v6567 = vpop.f32.mrb[0].mxu0
      %6568 = vmatprep.mubr.bf16.mxu0 0
      %6569 = vmatmul.mubr.bf16.gmra.mrb[0].mxu0 %v4513
      %v6570 = vpop.f32.mrb[0].mxu0
      %v6571 = vadd.f32 %v6346, %v6570
      %v6572 = vpop.f32.mrb[0].mxu0
      %v6573 = vpop.f32.mrb[0].mxu0
      %v6574 = vadd.f32 %v6349, %v6573
      %v6575 = vpop.f32.mrb[0].mxu0
      %6576 = vmatprep.mubr.bf16.mxu0 0
      %6577 = vmatmul.mubr.bf16.gmra.mrb[0].mxu0 %v4514
      %v6578 = vpop.f32.mrb[0].mxu0
      %v6579 = vadd.f32 %v6354, %v6578
      %v6580 = vpop.f32.mrb[0].mxu0
      %v6581 = vpop.f32.mrb[0].mxu0
      %v6582 = vadd.f32 %v6357, %v6581
      %v6583 = vpop.f32.mrb[0].mxu0
      %6584 = vmatprep.mubr.bf16.mxu0 0
      %6585 = vmatmul.mubr.bf16.gmra.mrb[0].mxu0 %v4515
      %v6586 = vpop.f32.mrb[0].mxu0
      %v6587 = vadd.f32 %v6362, %v6586
      %v6588 = vpop.f32.mrb[0].mxu0
      %v6589 = vpop.f32.mrb[0].mxu0
      %v6590 = vadd.f32 %v6365, %v6589
      %v6591 = vpop.f32.mrb[0].mxu0
      %6592 = vmatprep.mubr.bf16.mxu0 0
      %6593 = vmatmul.mubr.bf16.gmra.mrb[0].mxu0 %v4516
      %v6594 = vpop.f32.mrb[0].mxu0
      %v6595 = vadd.f32 %v6370, %v6594
      %v6596 = vpop.f32.mrb[0].mxu0
      %v6597 = vpop.f32.mrb[0].mxu0
      %v6598 = vadd.f32 %v6373, %v6597
      %v6599 = vpop.f32.mrb[0].mxu0
      %6600 = vmatprep.mubr.bf16.mxu0 0
      %6601 = vmatmul.mubr.bf16.gmra.mrb[0].mxu0 %v4517
      %v6602 = vpop.f32.mrb[0].mxu0
      %v6603 = vadd.f32 %v6378, %v6602
      %v6604 = vpop.f32.mrb[0].mxu0
      %v6605 = vpop.f32.mrb[0].mxu0
      %v6606 = vadd.f32 %v6381, %v6605
      %v6607 = vpop.f32.mrb[0].mxu0
      %6608 = vmatprep.mubr.bf16.mxu0 0
      %6609 = vmatmul.mubr.bf16.gmra.mrb[0].mxu0 %v4518
      %v6610 = vpop.f32.mrb[0].mxu0
      %v6611 = vadd.f32 %v6386, %v6610
      %v6612 = vpop.f32.mrb[0].mxu0
      %v6613 = vpop.f32.mrb[0].mxu0
      %v6614 = vadd.f32 %v6389, %v6613
      %v6615 = vpop.f32.mrb[0].mxu0
      %6616 = vmatprep.mubr.bf16.mxu0 0
      %6617 = vmatmul.mubr.bf16.gmra.mrb[0].mxu0 %v4519
      %v6618 = vpop.f32.mrb[0].mxu0
      %v6619 = vadd.f32 %v6394, %v6618
      %v6620 = vpop.f32.mrb[0].mxu0
      %v6621 = vpop.f32.mrb[0].mxu0
      %v6622 = vadd.f32 %v6397, %v6621
      %v6623 = vpop.f32.mrb[0].mxu0
      %6624 = vmatprep.mubr.bf16.mxu0 0
      %6625 = vmatmul.mubr.bf16.gmra.mrb[0].mxu0 %v4520
      %v6626 = vpop.f32.mrb[0].mxu0
      %v6627 = vadd.f32 %v6402, %v6626
      %v6628 = vpop.f32.mrb[0].mxu0
      %v6629 = vpop.f32.mrb[0].mxu0
      %v6630 = vadd.f32 %v6405, %v6629
      %v6631 = vpop.f32.mrb[0].mxu0
      %6632 = vmatprep.mubr.bf16.mxu0 0
      %6633 = vmatmul.mubr.bf16.gmra.mrb[0].mxu0 %v4521
      %v6634 = vpop.f32.mrb[0].mxu0
      %v6635 = vadd.f32 %v6410, %v6634
      %v6636 = vpop.f32.mrb[0].mxu0
      %v6637 = vpop.f32.mrb[0].mxu0
      %v6638 = vadd.f32 %v6413, %v6637
      %v6639 = vpop.f32.mrb[0].mxu0
      %6640 = vmatprep.mubr.bf16.mxu0 0
      %6641 = vmatmul.mubr.bf16.gmra.mrb[0].mxu0 %v4522
      %v6642 = vpop.f32.mrb[0].mxu0
      %v6643 = vadd.f32 %v6418, %v6642
      %v6644 = vpop.f32.mrb[0].mxu0
      %v6645 = vpop.f32.mrb[0].mxu0
      %v6646 = vadd.f32 %v6421, %v6645
      %v6647 = vpop.f32.mrb[0].mxu0
      %6648 = vmatprep.mubr.bf16.mxu0 0
      %6649 = vmatmul.mubr.bf16.gmra.mrb[0].mxu0 %v4595
      %v6650 = vpop.f32.mrb[0].mxu0
      %v6651 = vadd.f32 %v6426, %v6650
      %v6652 = vpop.f32.mrb[0].mxu0
      %v6653 = vpop.f32.mrb[0].mxu0
      %v6654 = vadd.f32 %v6429, %v6653
      %v6655 = vpop.f32.mrb[0].mxu0
      %6656 = vmatprep.mubr.bf16.mxu0 0
      %6657 = vmatmul.mubr.bf16.gmra.mrb[0].mxu0 %v4596
      %v6658 = vpop.f32.mrb[0].mxu0
      %v6659 = vadd.f32 %v6434, %v6658
      %v6660 = vpop.f32.mrb[0].mxu0
      %v6661 = vpop.f32.mrb[0].mxu0
      %v6662 = vadd.f32 %v6437, %v6661
      %v6663 = vpop.f32.mrb[0].mxu0
      %6664 = vmatprep.mubr.bf16.mxu0 0
      %6665 = vmatmul.mubr.bf16.gmra.mrb[0].mxu0 %v4597
      %v6666 = vpop.f32.mrb[0].mxu0
      %v6667 = vadd.f32 %v6442, %v6666
      %v6668 = vpop.f32.mrb[0].mxu0
      %v6669 = vpop.f32.mrb[0].mxu0
      %v6670 = vadd.f32 %v6445, %v6669
      %v6671 = vpop.f32.mrb[0].mxu0
      %6672 = vdwg.mxu0
      %v6721 = vrot.slane %v6483, 1
      %v6722 = vrot.slane %v6486, 1
      %v6723 = vsel %vm3525, %v6721, %v6722
      %v6724 = vrot.slane %v6491, 1
      %v6725 = vsel %vm3525, %v6722, %v6724
      %v6726 = vrot.slane %v6494, 1
      %v6727 = vrot.slane %v6499, 1
      %v6728 = vsel %vm3525, %v6726, %v6727
      %v6729 = vrot.slane %v6502, 1
      %v6730 = vsel %vm3525, %v6727, %v6729
      %v6731 = vrot.slane %v6507, 1
      %v6732 = vrot.slane %v6510, 1
      %v6733 = vsel %vm3525, %v6731, %v6732
      %v6734 = vrot.slane %v6515, 1
      %v6735 = vsel %vm3525, %v6732, %v6734
      %v6736 = vrot.slane %v6518, 1
      %v6737 = vrot.slane %v6523, 1
      %v6738 = vsel %vm3525, %v6736, %v6737
      %v6739 = vrot.slane %v6526, 1
      %v6740 = vsel %vm3525, %v6737, %v6739
      %v6741 = vrot.slane %v6531, 1
      %v6742 = vrot.slane %v6534, 1
      %v6743 = vsel %vm3525, %v6741, %v6742
      %v6744 = vrot.slane %v6539, 1
      %v6745 = vsel %vm3525, %v6742, %v6744
      %v6746 = vrot.slane %v6542, 1
      %v6747 = vrot.slane %v6547, 1
      %v6748 = vsel %vm3525, %v6746, %v6747
      %v6749 = vrot.slane %v6550, 1
      %v6750 = vsel %vm3525, %v6747, %v6749
      %v6751 = vrot.slane %v6555, 1
      %v6752 = vrot.slane %v6558, 1
      %v6753 = vsel %vm3525, %v6751, %v6752
      %v6754 = vrot.slane %v6563, 1
      %v6755 = vsel %vm3525, %v6752, %v6754
      %v6756 = vrot.slane %v6566, 1
      %v6757 = vrot.slane %v6571, 1
      %v6758 = vsel %vm3525, %v6756, %v6757
      %v6759 = vrot.slane %v6574, 1
      %v6760 = vsel %vm3525, %v6757, %v6759
      %v6761 = vrot.slane %v6579, 1
      %v6762 = vrot.slane %v6582, 1
      %v6763 = vsel %vm3525, %v6761, %v6762
      %v6764 = vrot.slane %v6587, 1
      %v6765 = vsel %vm3525, %v6762, %v6764
      %v6766 = vrot.slane %v6590, 1
      %v6767 = vrot.slane %v6595, 1
      %v6768 = vsel %vm3525, %v6766, %v6767
      %v6769 = vrot.slane %v6598, 1
      %v6770 = vsel %vm3525, %v6767, %v6769
      %v6771 = vrot.slane %v6603, 1
      %v6772 = vrot.slane %v6606, 1
      %v6773 = vsel %vm3525, %v6771, %v6772
      %v6774 = vrot.slane %v6611, 1
      %v6775 = vsel %vm3525, %v6772, %v6774
      %v6776 = vrot.slane %v6614, 1
      %v6777 = vrot.slane %v6619, 1
      %v6778 = vsel %vm3525, %v6776, %v6777
      %v6779 = vrot.slane %v6622, 1
      %v6780 = vsel %vm3525, %v6777, %v6779
      %v6781 = vrot.slane %v6627, 1
      %v6782 = vrot.slane %v6630, 1
      %v6783 = vsel %vm3525, %v6781, %v6782
      %v6784 = vrot.slane %v6635, 1
      %v6785 = vsel %vm3525, %v6782, %v6784
      %v6786 = vrot.slane %v6638, 1
      %v6787 = vrot.slane %v6643, 1
      %v6788 = vsel %vm3525, %v6786, %v6787
      %v6789 = vrot.slane %v6646, 1
      %v6790 = vsel %vm3525, %v6787, %v6789
      %v6791 = vrot.slane %v6651, 1
      %v6792 = vrot.slane %v6654, 1
      %v6793 = vsel %vm3525, %v6791, %v6792
      %v6794 = vrot.slane %v6659, 1
      %v6795 = vsel %vm3525, %v6792, %v6794
      %v6796 = vrot.slane %v6662, 1
      %v6797 = vrot.slane %v6667, 1
      %v6798 = vsel %vm3525, %v6796, %v6797
      %v6799 = vrot.slane %v6670, 1
      %v6800 = vsel %vm3525, %v6797, %v6799
      %v6849 = vadd.f32 %v5982, %v6723
      %v6850 = vadd.f32 %v5983, %v6725
      %v6851 = vadd.f32 %v5984, %v6724
      %v6852 = vadd.f32 %v5985, %v6728
      %v6853 = vadd.f32 %v5986, %v6730
      %v6854 = vadd.f32 %v5987, %v6729
      %v6855 = vadd.f32 %v5988, %v6733
      %v6856 = vadd.f32 %v5989, %v6735
      %v6857 = vadd.f32 %v5990, %v6734
      %v6858 = vadd.f32 %v5991, %v6738
      %v6859 = vadd.f32 %v5992, %v6740
      %v6860 = vadd.f32 %v5993, %v6739
      %v6861 = vadd.f32 %v5994, %v6743
      %v6862 = vadd.f32 %v5995, %v6745
      %v6863 = vadd.f32 %v5996, %v6744
      %v6864 = vadd.f32 %v5997, %v6748
      %v6865 = vadd.f32 %v5998, %v6750
      %v6866 = vadd.f32 %v5999, %v6749
      %v6867 = vadd.f32 %v6000, %v6753
      %v6868 = vadd.f32 %v6001, %v6755
      %v6869 = vadd.f32 %v6002, %v6754
      %v6870 = vadd.f32 %v6003, %v6758
      %v6871 = vadd.f32 %v6004, %v6760
      %v6872 = vadd.f32 %v6005, %v6759
      %v6873 = vadd.f32 %v6006, %v6763
      %v6874 = vadd.f32 %v6007, %v6765
      %v6875 = vadd.f32 %v6008, %v6764
      %v6876 = vadd.f32 %v6009, %v6768
      %v6877 = vadd.f32 %v6010, %v6770
      %v6878 = vadd.f32 %v6011, %v6769
      %v6879 = vadd.f32 %v6012, %v6773
      %v6880 = vadd.f32 %v6013, %v6775
      %v6881 = vadd.f32 %v6014, %v6774
      %v6882 = vadd.f32 %v6015, %v6778
      %v6883 = vadd.f32 %v6016, %v6780
      %v6884 = vadd.f32 %v6017, %v6779
      %v6885 = vadd.f32 %v6018, %v6783
      %v6886 = vadd.f32 %v6019, %v6785
      %v6887 = vadd.f32 %v6020, %v6784
      %v6888 = vadd.f32 %v6021, %v6788
      %v6889 = vadd.f32 %v6022, %v6790
      %v6890 = vadd.f32 %v6023, %v6789
      %v6891 = vadd.f32 %v6024, %v6793
      %v6892 = vadd.f32 %v6025, %v6795
      %v6893 = vadd.f32 %v6026, %v6794
      %v6894 = vadd.f32 %v6027, %v6798
      %v6895 = vadd.f32 %v6028, %v6800
      %v6896 = vadd.f32 %v6029, %v6799
      %v6897 = vlaneseq
      %v6898 = vshrl.u32 %v6897, 7
      %v6899 = vsub.s32 4, %v6898
      %v6900 = vrot.slane %v375, %v6899
      %v6901 = vmul.f32 %v6849, %v6900
      %v6902 = vmul.f32 %v6850, %v6900
      %v6903 = vmul.f32 %v6851, %v6900
      %v6904 = vmul.f32 %v6852, %v6900
      %v6905 = vmul.f32 %v6853, %v6900
      %v6906 = vmul.f32 %v6854, %v6900
      %v6907 = vmul.f32 %v6855, %v6900
      %v6908 = vmul.f32 %v6856, %v6900
      %v6909 = vmul.f32 %v6857, %v6900
      %v6910 = vmul.f32 %v6858, %v6900
      %v6911 = vmul.f32 %v6859, %v6900
      %v6912 = vmul.f32 %v6860, %v6900
      %v6913 = vmul.f32 %v6861, %v6900
      %v6914 = vmul.f32 %v6862, %v6900
      %v6915 = vmul.f32 %v6863, %v6900
      %v6916 = vmul.f32 %v6864, %v6900
      %v6917 = vmul.f32 %v6865, %v6900
      %v6918 = vmul.f32 %v6866, %v6900
      %v6919 = vmul.f32 %v6867, %v6900
      %v6920 = vmul.f32 %v6868, %v6900
      %v6921 = vmul.f32 %v6869, %v6900
      %v6922 = vmul.f32 %v6870, %v6900
      %v6923 = vmul.f32 %v6871, %v6900
      %v6924 = vmul.f32 %v6872, %v6900
      %v6925 = vmul.f32 %v6873, %v6900
      %v6926 = vmul.f32 %v6874, %v6900
      %v6927 = vmul.f32 %v6875, %v6900
      %v6928 = vmul.f32 %v6876, %v6900
      %v6929 = vmul.f32 %v6877, %v6900
      %v6930 = vmul.f32 %v6878, %v6900
      %v6931 = vmul.f32 %v6879, %v6900
      %v6932 = vmul.f32 %v6880, %v6900
      %v6933 = vmul.f32 %v6881, %v6900
      %v6934 = vmul.f32 %v6882, %v6900
      %v6935 = vmul.f32 %v6883, %v6900
      %v6936 = vmul.f32 %v6884, %v6900
      %v6937 = vmul.f32 %v6885, %v6900
      %v6938 = vmul.f32 %v6886, %v6900
      %v6939 = vmul.f32 %v6887, %v6900
      %v6940 = vmul.f32 %v6888, %v6900
      %v6941 = vmul.f32 %v6889, %v6900
      %v6942 = vmul.f32 %v6890, %v6900
      %v6943 = vmul.f32 %v6891, %v6900
      %v6944 = vmul.f32 %v6892, %v6900
      %v6945 = vmul.f32 %v6893, %v6900
      %v6946 = vmul.f32 %v6894, %v6900
      %v6947 = vmul.f32 %v6895, %v6900
      %v6948 = vmul.f32 %v6896, %v6900
      %v6949 = vlaneseq
      %v6950 = vshrl.u32 %v6949, 7
      %v6951 = vsub.s32 5, %v6950
      %v6952 = vrot.slane %v375, %v6951
      %v6953 = vadd.f32 %v6901, %v6952
      %v6954 = vadd.f32 %v6902, %v6952
      %v6955 = vadd.f32 %v6903, %v6952
      %v6956 = vadd.f32 %v6904, %v6952
      %v6957 = vadd.f32 %v6905, %v6952
      %v6958 = vadd.f32 %v6906, %v6952
      %v6959 = vadd.f32 %v6907, %v6952
      %v6960 = vadd.f32 %v6908, %v6952
      %v6961 = vadd.f32 %v6909, %v6952
      %v6962 = vadd.f32 %v6910, %v6952
      %v6963 = vadd.f32 %v6911, %v6952
      %v6964 = vadd.f32 %v6912, %v6952
      %v6965 = vadd.f32 %v6913, %v6952
      %v6966 = vadd.f32 %v6914, %v6952
      %v6967 = vadd.f32 %v6915, %v6952
      %v6968 = vadd.f32 %v6916, %v6952
      %v6969 = vadd.f32 %v6917, %v6952
      %v6970 = vadd.f32 %v6918, %v6952
      %v6971 = vadd.f32 %v6919, %v6952
      %v6972 = vadd.f32 %v6920, %v6952
      %v6973 = vadd.f32 %v6921, %v6952
      %v6974 = vadd.f32 %v6922, %v6952
      %v6975 = vadd.f32 %v6923, %v6952
      %v6976 = vadd.f32 %v6924, %v6952
      %v6977 = vadd.f32 %v6925, %v6952
      %v6978 = vadd.f32 %v6926, %v6952
      %v6979 = vadd.f32 %v6927, %v6952
      %v6980 = vadd.f32 %v6928, %v6952
      %v6981 = vadd.f32 %v6929, %v6952
      %v6982 = vadd.f32 %v6930, %v6952
      %v6983 = vadd.f32 %v6931, %v6952
      %v6984 = vadd.f32 %v6932, %v6952
      %v6985 = vadd.f32 %v6933, %v6952
      %v6986 = vadd.f32 %v6934, %v6952
      %v6987 = vadd.f32 %v6935, %v6952
      %v6988 = vadd.f32 %v6936, %v6952
      %v6989 = vadd.f32 %v6937, %v6952
      %v6990 = vadd.f32 %v6938, %v6952
      %v6991 = vadd.f32 %v6939, %v6952
      %v6992 = vadd.f32 %v6940, %v6952
      %v6993 = vadd.f32 %v6941, %v6952
      %v6994 = vadd.f32 %v6942, %v6952
      %v6995 = vadd.f32 %v6943, %v6952
      %v6996 = vadd.f32 %v6944, %v6952
      %v6997 = vadd.f32 %v6945, %v6952
      %v6998 = vadd.f32 %v6946, %v6952
      %v6999 = vadd.f32 %v6947, %v6952
      %v7000 = vadd.f32 %v6948, %v6952
      %v7001 = vld [vmem:[%s3] sm:$0xf]
      %v7002 = vld [vmem:[%s3 + $0x4] sm:$0xf]
      %v7003 = vld [vmem:[%s3 + $0x8] sm:$0xf]
      %v7004 = vld [vmem:[%s3 + $0xc] sm:$0xf]
      %v7005 = vld [vmem:[%s3 + $0x10] sm:$0xf]
      %v7006 = vld [vmem:[%s3 + $0x14] sm:$0xf]
      %v7007 = vld [vmem:[%s3 + $0x18] sm:$0xf]
      %v7008 = vld [vmem:[%s3 + $0x1c] sm:$0xf]
      %v7009 = vld [vmem:[%s3 + $0x20] sm:$0xf]
      %v7010 = vld [vmem:[%s3 + $0x24] sm:$0xf]
      %v7011 = vld [vmem:[%s3 + $0x28] sm:$0xf]
      %v7012 = vld [vmem:[%s3 + $0x2c] sm:$0xf]
      %v7013 = vld [vmem:[%s3 + $0x30] sm:$0xf]
      %v7014 = vld [vmem:[%s3 + $0x34] sm:$0xf]
      %v7015 = vld [vmem:[%s3 + $0x38] sm:$0xf]
      %v7016 = vld [vmem:[%s3 + $0x3c] sm:$0xf]
      %v7033 = vunpack.c.l.b16 %v7001
      %v7034 = vunpack.c.l.b16 %v7002
      %v7035 = vunpack.c.l.b16 %v7003
      %v7036 = vunpack.c.l.b16 %v7004
      %v7037 = vunpack.c.l.b16 %v7005
      %v7038 = vunpack.c.l.b16 %v7006
      %v7039 = vunpack.c.l.b16 %v7007
      %v7040 = vunpack.c.l.b16 %v7008
      %v7041 = vunpack.c.l.b16 %v7009
      %v7042 = vunpack.c.l.b16 %v7010
      %v7043 = vunpack.c.l.b16 %v7011
      %v7044 = vunpack.c.l.b16 %v7012
      %v7045 = vunpack.c.l.b16 %v7013
      %v7046 = vunpack.c.l.b16 %v7014
      %v7047 = vunpack.c.l.b16 %v7015
      %v7048 = vunpack.c.l.b16 %v7016
      %v7049 = vpack.c.b16 %v7034, %v7033
      %v7050 = vpack.c.b16 %v7036, %v7035
      %v7051 = vpack.c.b16 %v7038, %v7037
      %v7052 = vpack.c.b16 %v7040, %v7039
      %v7053 = vpack.c.b16 %v7042, %v7041
      %v7054 = vpack.c.b16 %v7044, %v7043
      %v7055 = vpack.c.b16 %v7046, %v7045
      %v7056 = vpack.c.b16 %v7048, %v7047
      %7065 = vmatprep.subr.bf16.mxu0 0
      %7066 = vmatpush1.bf16.msra.mxu0 %v7049
      %7067 = vmatprep.subr.bf16.mxu0 0
      %7068 = vmatpush1.bf16.msra.mxu0 %v7050
      %7069 = vmatprep.subr.bf16.mxu0 0
      %7070 = vmatpush1.bf16.msra.mxu0 %v7051
      %7071 = vmatprep.subr.bf16.mxu0 0
      %7072 = vmatpush1.bf16.msra.mxu0 %v7052
      %7073 = vmatprep.subr.bf16.mxu0 0
      %7074 = vmatpush1.bf16.msra.mxu0 %v7053
      %7075 = vmatprep.subr.bf16.mxu0 0
      %7076 = vmatpush1.bf16.msra.mxu0 %v7054
      %7077 = vmatprep.subr.bf16.mxu0 0
      %7078 = vmatpush1.bf16.msra.mxu0 %v7055
      %7079 = vmatprep.subr.bf16.mxu0 0
      %7080 = vmatpush1.bf16.msra.mxu0 %v7056
      %7081 = vmatprep.subr.bf16.mxu0 0
      %7082 = vmatpush1.bf16.msra.mxu0 0
      %7083 = vmatprep.subr.bf16.mxu0 0
      %7084 = vmatpush1.bf16.msra.mxu0 0
      %7085 = vmatprep.subr.bf16.mxu0 0
      %7086 = vmatpush1.bf16.msra.mxu0 0
      %7087 = vmatprep.subr.bf16.mxu0 0
      %7088 = vmatpush1.bf16.msra.mxu0 0
      %7089 = vmatprep.subr.bf16.mxu0 0
      %7090 = vmatpush1.bf16.msra.mxu0 0
      %7091 = vmatprep.subr.bf16.mxu0 0
      %7092 = vmatpush1.bf16.msra.mxu0 0
      %7093 = vmatprep.subr.bf16.mxu0 0
      %7094 = vmatpush1.bf16.msra.mxu0 0
      %7095 = vmatprep.subr.bf16.mxu0 0
      %7096 = vmatpush1.bf16.msra.mxu0 0
      %7097 = vmatprep.mubr.bf16.mxu0 0
      %7098 = vmatmul.mubr.bf16.gmra.mrb[0].mxu0 %v604
      %v7099 = vpop.f32.mrb[0].mxu0
      %v7100 = vadd.f32 0.0, %v7099
      %v7101 = vpop.f32.mrb[0].mxu0
      %v7102 = vpop.f32.mrb[0].mxu0
      %v7103 = vadd.f32 0.0, %v7102
      %v7104 = vpop.f32.mrb[0].mxu0
      %7105 = vmatprep.mubr.bf16.mxu0 0
      %7106 = vmatmul.mubr.bf16.gmra.mrb[0].mxu0 %v605
      %v7107 = vpop.f32.mrb[0].mxu0
      %v7108 = vadd.f32 0.0, %v7107
      %v7109 = vpop.f32.mrb[0].mxu0
      %v7110 = vpop.f32.mrb[0].mxu0
      %v7111 = vpop.f32.mrb[0].mxu0
      %7112 = vmatprep.mubr.bf16.mxu0 0
      %7113 = vmatmul.mubr.bf16.gmra.mrb[0].mxu0 %v606
      %v7114 = vpop.f32.mrb[0].mxu0
      %v7115 = vadd.f32 0.0, %v7114
      %v7116 = vpop.f32.mrb[0].mxu0
      %v7117 = vpop.f32.mrb[0].mxu0
      %v7118 = vadd.f32 0.0, %v7117
      %v7119 = vpop.f32.mrb[0].mxu0
      %7120 = vmatprep.mubr.bf16.mxu0 0
      %7121 = vmatmul.mubr.bf16.gmra.mrb[0].mxu0 %v607
      %v7122 = vpop.f32.mrb[0].mxu0
      %v7123 = vadd.f32 0.0, %v7122
      %v7124 = vpop.f32.mrb[0].mxu0
      %v7125 = vpop.f32.mrb[0].mxu0
      %v7126 = vpop.f32.mrb[0].mxu0
      %7127 = vmatprep.mubr.bf16.mxu0 0
      %7128 = vmatmul.mubr.bf16.gmra.mrb[0].mxu0 %v608
      %v7129 = vpop.f32.mrb[0].mxu0
      %v7130 = vadd.f32 0.0, %v7129
      %v7131 = vpop.f32.mrb[0].mxu0
      %v7132 = vpop.f32.mrb[0].mxu0
      %v7133 = vadd.f32 0.0, %v7132
      %v7134 = vpop.f32.mrb[0].mxu0
      %7135 = vmatprep.mubr.bf16.mxu0 0
      %7136 = vmatmul.mubr.bf16.gmra.mrb[0].mxu0 %v609
      %v7137 = vpop.f32.mrb[0].mxu0
      %v7138 = vadd.f32 0.0, %v7137
      %v7139 = vpop.f32.mrb[0].mxu0
      %v7140 = vpop.f32.mrb[0].mxu0
      %v7141 = vpop.f32.mrb[0].mxu0
      %7142 = vmatprep.mubr.bf16.mxu0 0
      %7143 = vmatmul.mubr.bf16.gmra.mrb[0].mxu0 %v610
      %v7144 = vpop.f32.mrb[0].mxu0
      %v7145 = vadd.f32 0.0, %v7144
      %v7146 = vpop.f32.mrb[0].mxu0
      %v7147 = vpop.f32.mrb[0].mxu0
      %v7148 = vadd.f32 0.0, %v7147
      %v7149 = vpop.f32.mrb[0].mxu0
      %7150 = vmatprep.mubr.bf16.mxu0 0
      %7151 = vmatmul.mubr.bf16.gmra.mrb[0].mxu0 %v611
      %v7152 = vpop.f32.mrb[0].mxu0
      %v7153 = vadd.f32 0.0, %v7152
      %v7154 = vpop.f32.mrb[0].mxu0
      %v7155 = vpop.f32.mrb[0].mxu0
      %v7156 = vpop.f32.mrb[0].mxu0
      %7157 = vmatprep.mubr.bf16.mxu0 0
      %7158 = vmatmul.mubr.bf16.gmra.mrb[0].mxu0 %v612
      %v7159 = vpop.f32.mrb[0].mxu0
      %v7160 = vadd.f32 0.0, %v7159
      %v7161 = vpop.f32.mrb[0].mxu0
      %v7162 = vpop.f32.mrb[0].mxu0
      %v7163 = vadd.f32 0.0, %v7162
      %v7164 = vpop.f32.mrb[0].mxu0
      %7165 = vmatprep.mubr.bf16.mxu0 0
      %7166 = vmatmul.mubr.bf16.gmra.mrb[0].mxu0 %v613
      %v7167 = vpop.f32.mrb[0].mxu0
      %v7168 = vadd.f32 0.0, %v7167
      %v7169 = vpop.f32.mrb[0].mxu0
      %v7170 = vpop.f32.mrb[0].mxu0
      %v7171 = vpop.f32.mrb[0].mxu0
      %7172 = vmatprep.mubr.bf16.mxu0 0
      %7173 = vmatmul.mubr.bf16.gmra.mrb[0].mxu0 %v614
      %v7174 = vpop.f32.mrb[0].mxu0
      %v7175 = vadd.f32 0.0, %v7174
      %v7176 = vpop.f32.mrb[0].mxu0
      %v7177 = vpop.f32.mrb[0].mxu0
      %v7178 = vadd.f32 0.0, %v7177
      %v7179 = vpop.f32.mrb[0].mxu0
      %7180 = vmatprep.mubr.bf16.mxu0 0
      %7181 = vmatmul.mubr.bf16.gmra.mrb[0].mxu0 %v615
      %v7182 = vpop.f32.mrb[0].mxu0
      %v7183 = vadd.f32 0.0, %v7182
      %v7184 = vpop.f32.mrb[0].mxu0
      %v7185 = vpop.f32.mrb[0].mxu0
      %v7186 = vpop.f32.mrb[0].mxu0
      %7187 = vmatprep.mubr.bf16.mxu0 0
      %7188 = vmatmul.mubr.bf16.gmra.mrb[0].mxu0 %v616
      %v7189 = vpop.f32.mrb[0].mxu0
      %v7190 = vadd.f32 0.0, %v7189
      %v7191 = vpop.f32.mrb[0].mxu0
      %v7192 = vpop.f32.mrb[0].mxu0
      %v7193 = vadd.f32 0.0, %v7192
      %v7194 = vpop.f32.mrb[0].mxu0
      %7195 = vmatprep.mubr.bf16.mxu0 0
      %7196 = vmatmul.mubr.bf16.gmra.mrb[0].mxu0 %v617
      %v7197 = vpop.f32.mrb[0].mxu0
      %v7198 = vadd.f32 0.0, %v7197
      %v7199 = vpop.f32.mrb[0].mxu0
      %v7200 = vpop.f32.mrb[0].mxu0
      %v7201 = vpop.f32.mrb[0].mxu0
      %7202 = vmatprep.mubr.bf16.mxu0 0
      %7203 = vmatmul.mubr.bf16.gmra.mrb[0].mxu0 %v618
      %v7204 = vpop.f32.mrb[0].mxu0
      %v7205 = vadd.f32 0.0, %v7204
      %v7206 = vpop.f32.mrb[0].mxu0
      %v7207 = vpop.f32.mrb[0].mxu0
      %v7208 = vadd.f32 0.0, %v7207
      %v7209 = vpop.f32.mrb[0].mxu0
      %7210 = vmatprep.mubr.bf16.mxu0 0
      %7211 = vmatmul.mubr.bf16.gmra.mrb[0].mxu0 %v619
      %v7212 = vpop.f32.mrb[0].mxu0
      %v7213 = vadd.f32 0.0, %v7212
      %v7214 = vpop.f32.mrb[0].mxu0
      %v7215 = vpop.f32.mrb[0].mxu0
      %v7216 = vpop.f32.mrb[0].mxu0
      %7217 = vmatprep.mubr.bf16.mxu0 0
      %7218 = vmatmul.mubr.bf16.gmra.mrb[0].mxu0 %v620
      %v7219 = vpop.f32.mrb[0].mxu0
      %v7220 = vadd.f32 0.0, %v7219
      %v7221 = vpop.f32.mrb[0].mxu0
      %v7222 = vpop.f32.mrb[0].mxu0
      %v7223 = vadd.f32 0.0, %v7222
      %v7224 = vpop.f32.mrb[0].mxu0
      %7225 = vmatprep.mubr.bf16.mxu0 0
      %7226 = vmatmul.mubr.bf16.gmra.mrb[0].mxu0 %v621
      %v7227 = vpop.f32.mrb[0].mxu0
      %v7228 = vadd.f32 0.0, %v7227
      %v7229 = vpop.f32.mrb[0].mxu0
      %v7230 = vpop.f32.mrb[0].mxu0
      %v7231 = vpop.f32.mrb[0].mxu0
      %7232 = vmatprep.mubr.bf16.mxu0 0
      %7233 = vmatmul.mubr.bf16.gmra.mrb[0].mxu0 %v622
      %v7234 = vpop.f32.mrb[0].mxu0
      %v7235 = vadd.f32 0.0, %v7234
      %v7236 = vpop.f32.mrb[0].mxu0
      %v7237 = vpop.f32.mrb[0].mxu0
      %v7238 = vadd.f32 0.0, %v7237
      %v7239 = vpop.f32.mrb[0].mxu0
      %7240 = vmatprep.mubr.bf16.mxu0 0
      %7241 = vmatmul.mubr.bf16.gmra.mrb[0].mxu0 %v623
      %v7242 = vpop.f32.mrb[0].mxu0
      %v7243 = vadd.f32 0.0, %v7242
      %v7244 = vpop.f32.mrb[0].mxu0
      %v7245 = vpop.f32.mrb[0].mxu0
      %v7246 = vpop.f32.mrb[0].mxu0
      %7247 = vmatprep.mubr.bf16.mxu0 0
      %7248 = vmatmul.mubr.bf16.gmra.mrb[0].mxu0 %v624
      %v7249 = vpop.f32.mrb[0].mxu0
      %v7250 = vadd.f32 0.0, %v7249
      %v7251 = vpop.f32.mrb[0].mxu0
      %v7252 = vpop.f32.mrb[0].mxu0
      %v7253 = vadd.f32 0.0, %v7252
      %v7254 = vpop.f32.mrb[0].mxu0
      %7255 = vmatprep.mubr.bf16.mxu0 0
      %7256 = vmatmul.mubr.bf16.gmra.mrb[0].mxu0 %v625
      %v7257 = vpop.f32.mrb[0].mxu0
      %v7258 = vadd.f32 0.0, %v7257
      %v7259 = vpop.f32.mrb[0].mxu0
      %v7260 = vpop.f32.mrb[0].mxu0
      %v7261 = vpop.f32.mrb[0].mxu0
      %7262 = vmatprep.mubr.bf16.mxu0 0
      %7263 = vmatmul.mubr.bf16.gmra.mrb[0].mxu0 %v626
      %v7264 = vpop.f32.mrb[0].mxu0
      %v7265 = vadd.f32 0.0, %v7264
      %v7266 = vpop.f32.mrb[0].mxu0
      %v7267 = vpop.f32.mrb[0].mxu0
      %v7268 = vadd.f32 0.0, %v7267
      %v7269 = vpop.f32.mrb[0].mxu0
      %7270 = vmatprep.mubr.bf16.mxu0 0
      %7271 = vmatmul.mubr.bf16.gmra.mrb[0].mxu0 %v627
      %v7272 = vpop.f32.mrb[0].mxu0
      %v7273 = vadd.f32 0.0, %v7272
      %v7274 = vpop.f32.mrb[0].mxu0
      %v7275 = vpop.f32.mrb[0].mxu0
      %v7276 = vpop.f32.mrb[0].mxu0
      %7277 = vmatprep.mubr.bf16.mxu0 0
      %7278 = vmatmul.mubr.bf16.gmra.mrb[0].mxu0 %v628
      %v7279 = vpop.f32.mrb[0].mxu0
      %v7280 = vadd.f32 0.0, %v7279
      %v7281 = vpop.f32.mrb[0].mxu0
      %v7282 = vpop.f32.mrb[0].mxu0
      %v7283 = vadd.f32 0.0, %v7282
      %v7284 = vpop.f32.mrb[0].mxu0
      %7285 = vmatprep.mubr.bf16.mxu0 0
      %7286 = vmatmul.mubr.bf16.gmra.mrb[0].mxu0 %v629
      %v7287 = vpop.f32.mrb[0].mxu0
      %v7288 = vadd.f32 0.0, %v7287
      %v7289 = vpop.f32.mrb[0].mxu0
      %v7290 = vpop.f32.mrb[0].mxu0
      %v7291 = vpop.f32.mrb[0].mxu0
      %7292 = vmatprep.mubr.bf16.mxu0 0
      %7293 = vmatmul.mubr.bf16.gmra.mrb[0].mxu0 %v630
      %v7294 = vpop.f32.mrb[0].mxu0
      %v7295 = vadd.f32 0.0, %v7294
      %v7296 = vpop.f32.mrb[0].mxu0
      %v7297 = vpop.f32.mrb[0].mxu0
      %v7298 = vadd.f32 0.0, %v7297
      %v7299 = vpop.f32.mrb[0].mxu0
      %7300 = vmatprep.mubr.bf16.mxu0 0
      %7301 = vmatmul.mubr.bf16.gmra.mrb[0].mxu0 %v631
      %v7302 = vpop.f32.mrb[0].mxu0
      %v7303 = vadd.f32 0.0, %v7302
      %v7304 = vpop.f32.mrb[0].mxu0
      %v7305 = vpop.f32.mrb[0].mxu0
      %v7306 = vpop.f32.mrb[0].mxu0
      %7307 = vmatprep.mubr.bf16.mxu0 0
      %7308 = vmatmul.mubr.bf16.gmra.mrb[0].mxu0 %v632
      %v7309 = vpop.f32.mrb[0].mxu0
      %v7310 = vadd.f32 0.0, %v7309
      %v7311 = vpop.f32.mrb[0].mxu0
      %v7312 = vpop.f32.mrb[0].mxu0
      %v7313 = vadd.f32 0.0, %v7312
      %v7314 = vpop.f32.mrb[0].mxu0
      %7315 = vmatprep.mubr.bf16.mxu0 0
      %7316 = vmatmul.mubr.bf16.gmra.mrb[0].mxu0 %v633
      %v7317 = vpop.f32.mrb[0].mxu0
      %v7318 = vadd.f32 0.0, %v7317
      %v7319 = vpop.f32.mrb[0].mxu0
      %v7320 = vpop.f32.mrb[0].mxu0
      %v7321 = vpop.f32.mrb[0].mxu0
      %7322 = vmatprep.mubr.bf16.mxu0 0
      %7323 = vmatmul.mubr.bf16.gmra.mrb[0].mxu0 %v634
      %v7324 = vpop.f32.mrb[0].mxu0
      %v7325 = vadd.f32 0.0, %v7324
      %v7326 = vpop.f32.mrb[0].mxu0
      %v7327 = vpop.f32.mrb[0].mxu0
      %v7328 = vadd.f32 0.0, %v7327
      %v7329 = vpop.f32.mrb[0].mxu0
      %7330 = vmatprep.mubr.bf16.mxu0 0
      %7331 = vmatmul.mubr.bf16.gmra.mrb[0].mxu0 %v635
      %v7332 = vpop.f32.mrb[0].mxu0
      %v7333 = vadd.f32 0.0, %v7332
      %v7334 = vpop.f32.mrb[0].mxu0
      %v7335 = vpop.f32.mrb[0].mxu0
      %v7336 = vpop.f32.mrb[0].mxu0
      %7337 = vdwg.mxu0
      %v7338 = vlaneseq
      %v7339 = vshrl.u32 %v7338, 7
      %v7340 = vsub.s32 2, %v7339
      %v7341 = vrot.slane %v375, %v7340
      %v7342 = vmul.f32 %v7100, %v7341
      %v7343 = vmul.f32 %v7103, %v7341
      %v7344 = vmul.f32 %v7108, %v7341
      %v7345 = vmul.f32 %v7115, %v7341
      %v7346 = vmul.f32 %v7118, %v7341
      %v7347 = vmul.f32 %v7123, %v7341
      %v7348 = vmul.f32 %v7130, %v7341
      %v7349 = vmul.f32 %v7133, %v7341
      %v7350 = vmul.f32 %v7138, %v7341
      %v7351 = vmul.f32 %v7145, %v7341
      %v7352 = vmul.f32 %v7148, %v7341
      %v7353 = vmul.f32 %v7153, %v7341
      %v7354 = vmul.f32 %v7160, %v7341
      %v7355 = vmul.f32 %v7163, %v7341
      %v7356 = vmul.f32 %v7168, %v7341
      %v7357 = vmul.f32 %v7175, %v7341
      %v7358 = vmul.f32 %v7178, %v7341
      %v7359 = vmul.f32 %v7183, %v7341
      %v7360 = vmul.f32 %v7190, %v7341
      %v7361 = vmul.f32 %v7193, %v7341
      %v7362 = vmul.f32 %v7198, %v7341
      %v7363 = vmul.f32 %v7205, %v7341
      %v7364 = vmul.f32 %v7208, %v7341
      %v7365 = vmul.f32 %v7213, %v7341
      %v7366 = vmul.f32 %v7220, %v7341
      %v7367 = vmul.f32 %v7223, %v7341
      %v7368 = vmul.f32 %v7228, %v7341
      %v7369 = vmul.f32 %v7235, %v7341
      %v7370 = vmul.f32 %v7238, %v7341
      %v7371 = vmul.f32 %v7243, %v7341
      %v7372 = vmul.f32 %v7250, %v7341
      %v7373 = vmul.f32 %v7253, %v7341
      %v7374 = vmul.f32 %v7258, %v7341
      %v7375 = vmul.f32 %v7265, %v7341
      %v7376 = vmul.f32 %v7268, %v7341
      %v7377 = vmul.f32 %v7273, %v7341
      %v7378 = vmul.f32 %v7280, %v7341
      %v7379 = vmul.f32 %v7283, %v7341
      %v7380 = vmul.f32 %v7288, %v7341
      %v7381 = vmul.f32 %v7295, %v7341
      %v7382 = vmul.f32 %v7298, %v7341
      %v7383 = vmul.f32 %v7303, %v7341
      %v7384 = vmul.f32 %v7310, %v7341
      %v7385 = vmul.f32 %v7313, %v7341
      %v7386 = vmul.f32 %v7318, %v7341
      %v7387 = vmul.f32 %v7325, %v7341
      %v7388 = vmul.f32 %v7328, %v7341
      %v7389 = vmul.f32 %v7333, %v7341
      %v7390 = vlaneseq
      %v7391 = vshrl.u32 %v7390, 7
      %v7392 = vsub.s32 3, %v7391
      %v7393 = vrot.slane %v375, %v7392
      %v7394 = vadd.f32 %v7342, %v7393
      %v7395 = vadd.f32 %v7343, %v7393
      %v7396 = vadd.f32 %v7344, %v7393
      %v7397 = vadd.f32 %v7345, %v7393
      %v7398 = vadd.f32 %v7346, %v7393
      %v7399 = vadd.f32 %v7347, %v7393
      %v7400 = vadd.f32 %v7348, %v7393
      %v7401 = vadd.f32 %v7349, %v7393
      %v7402 = vadd.f32 %v7350, %v7393
      %v7403 = vadd.f32 %v7351, %v7393
      %v7404 = vadd.f32 %v7352, %v7393
      %v7405 = vadd.f32 %v7353, %v7393
      %v7406 = vadd.f32 %v7354, %v7393
      %v7407 = vadd.f32 %v7355, %v7393
      %v7408 = vadd.f32 %v7356, %v7393
      %v7409 = vadd.f32 %v7357, %v7393
      %v7410 = vadd.f32 %v7358, %v7393
      %v7411 = vadd.f32 %v7359, %v7393
      %v7412 = vadd.f32 %v7360, %v7393
      %v7413 = vadd.f32 %v7361, %v7393
      %v7414 = vadd.f32 %v7362, %v7393
      %v7415 = vadd.f32 %v7363, %v7393
      %v7416 = vadd.f32 %v7364, %v7393
      %v7417 = vadd.f32 %v7365, %v7393
      %v7418 = vadd.f32 %v7366, %v7393
      %v7419 = vadd.f32 %v7367, %v7393
      %v7420 = vadd.f32 %v7368, %v7393
      %v7421 = vadd.f32 %v7369, %v7393
      %v7422 = vadd.f32 %v7370, %v7393
      %v7423 = vadd.f32 %v7371, %v7393
      %v7424 = vadd.f32 %v7372, %v7393
      %v7425 = vadd.f32 %v7373, %v7393
      %v7426 = vadd.f32 %v7374, %v7393
      %v7427 = vadd.f32 %v7375, %v7393
      %v7428 = vadd.f32 %v7376, %v7393
      %v7429 = vadd.f32 %v7377, %v7393
      %v7430 = vadd.f32 %v7378, %v7393
      %v7431 = vadd.f32 %v7379, %v7393
      %v7432 = vadd.f32 %v7380, %v7393
      %v7433 = vadd.f32 %v7381, %v7393
      %v7434 = vadd.f32 %v7382, %v7393
      %v7435 = vadd.f32 %v7383, %v7393
      %v7436 = vadd.f32 %v7384, %v7393
      %v7437 = vadd.f32 %v7385, %v7393
      %v7438 = vadd.f32 %v7386, %v7393
      %v7439 = vadd.f32 %v7387, %v7393
      %v7440 = vadd.f32 %v7388, %v7393
      %v7441 = vadd.f32 %v7389, %v7393
      %v7490 = vrot.slane %v7394, 1
      %v7491 = vrot.slane %v7395, 1
      %v7492 = vsel %vm3525, %v7490, %v7491
      %v7493 = vrot.slane %v7396, 1
      %v7494 = vsel %vm3525, %v7491, %v7493
      %v7495 = vrot.slane %v7397, 1
      %v7496 = vrot.slane %v7398, 1
      %v7497 = vsel %vm3525, %v7495, %v7496
      %v7498 = vrot.slane %v7399, 1
      %v7499 = vsel %vm3525, %v7496, %v7498
      %v7500 = vrot.slane %v7400, 1
      %v7501 = vrot.slane %v7401, 1
      %v7502 = vsel %vm3525, %v7500, %v7501
      %v7503 = vrot.slane %v7402, 1
      %v7504 = vsel %vm3525, %v7501, %v7503
      %v7505 = vrot.slane %v7403, 1
      %v7506 = vrot.slane %v7404, 1
      %v7507 = vsel %vm3525, %v7505, %v7506
      %v7508 = vrot.slane %v7405, 1
      %v7509 = vsel %vm3525, %v7506, %v7508
      %v7510 = vrot.slane %v7406, 1
      %v7511 = vrot.slane %v7407, 1
      %v7512 = vsel %vm3525, %v7510, %v7511
      %v7513 = vrot.slane %v7408, 1
      %v7514 = vsel %vm3525, %v7511, %v7513
      %v7515 = vrot.slane %v7409, 1
      %v7516 = vrot.slane %v7410, 1
      %v7517 = vsel %vm3525, %v7515, %v7516
      %v7518 = vrot.slane %v7411, 1
      %v7519 = vsel %vm3525, %v7516, %v7518
      %v7520 = vrot.slane %v7412, 1
      %v7521 = vrot.slane %v7413, 1
      %v7522 = vsel %vm3525, %v7520, %v7521
      %v7523 = vrot.slane %v7414, 1
      %v7524 = vsel %vm3525, %v7521, %v7523
      %v7525 = vrot.slane %v7415, 1
      %v7526 = vrot.slane %v7416, 1
      %v7527 = vsel %vm3525, %v7525, %v7526
      %v7528 = vrot.slane %v7417, 1
      %v7529 = vsel %vm3525, %v7526, %v7528
      %v7530 = vrot.slane %v7418, 1
      %v7531 = vrot.slane %v7419, 1
      %v7532 = vsel %vm3525, %v7530, %v7531
      %v7533 = vrot.slane %v7420, 1
      %v7534 = vsel %vm3525, %v7531, %v7533
      %v7535 = vrot.slane %v7421, 1
      %v7536 = vrot.slane %v7422, 1
      %v7537 = vsel %vm3525, %v7535, %v7536
      %v7538 = vrot.slane %v7423, 1
      %v7539 = vsel %vm3525, %v7536, %v7538
      %v7540 = vrot.slane %v7424, 1
      %v7541 = vrot.slane %v7425, 1
      %v7542 = vsel %vm3525, %v7540, %v7541
      %v7543 = vrot.slane %v7426, 1
      %v7544 = vsel %vm3525, %v7541, %v7543
      %v7545 = vrot.slane %v7427, 1
      %v7546 = vrot.slane %v7428, 1
      %v7547 = vsel %vm3525, %v7545, %v7546
      %v7548 = vrot.slane %v7429, 1
      %v7549 = vsel %vm3525, %v7546, %v7548
      %v7550 = vrot.slane %v7430, 1
      %v7551 = vrot.slane %v7431, 1
      %v7552 = vsel %vm3525, %v7550, %v7551
      %v7553 = vrot.slane %v7432, 1
      %v7554 = vsel %vm3525, %v7551, %v7553
      %v7555 = vrot.slane %v7433, 1
      %v7556 = vrot.slane %v7434, 1
      %v7557 = vsel %vm3525, %v7555, %v7556
      %v7558 = vrot.slane %v7435, 1
      %v7559 = vsel %vm3525, %v7556, %v7558
      %v7560 = vrot.slane %v7436, 1
      %v7561 = vrot.slane %v7437, 1
      %v7562 = vsel %vm3525, %v7560, %v7561
      %v7563 = vrot.slane %v7438, 1
      %v7564 = vsel %vm3525, %v7561, %v7563
      %v7565 = vrot.slane %v7439, 1
      %v7566 = vrot.slane %v7440, 1
      %v7567 = vsel %vm3525, %v7565, %v7566
      %v7568 = vrot.slane %v7441, 1
      %v7569 = vsel %vm3525, %v7566, %v7568
      %v7618 = vadd.f32 %v6953, %v7492
      %v7619 = vadd.f32 %v6954, %v7494
      %v7620 = vadd.f32 %v6955, %v7493
      %v7621 = vadd.f32 %v6956, %v7497
      %v7622 = vadd.f32 %v6957, %v7499
      %v7623 = vadd.f32 %v6958, %v7498
      %v7624 = vadd.f32 %v6959, %v7502
      %v7625 = vadd.f32 %v6960, %v7504
      %v7626 = vadd.f32 %v6961, %v7503
      %v7627 = vadd.f32 %v6962, %v7507
      %v7628 = vadd.f32 %v6963, %v7509
      %v7629 = vadd.f32 %v6964, %v7508
      %v7630 = vadd.f32 %v6965, %v7512
      %v7631 = vadd.f32 %v6966, %v7514
      %v7632 = vadd.f32 %v6967, %v7513
      %v7633 = vadd.f32 %v6968, %v7517
      %v7634 = vadd.f32 %v6969, %v7519
      %v7635 = vadd.f32 %v6970, %v7518
      %v7636 = vadd.f32 %v6971, %v7522
      %v7637 = vadd.f32 %v6972, %v7524
      %v7638 = vadd.f32 %v6973, %v7523
      %v7639 = vadd.f32 %v6974, %v7527
      %v7640 = vadd.f32 %v6975, %v7529
      %v7641 = vadd.f32 %v6976, %v7528
      %v7642 = vadd.f32 %v6977, %v7532
      %v7643 = vadd.f32 %v6978, %v7534
      %v7644 = vadd.f32 %v6979, %v7533
      %v7645 = vadd.f32 %v6980, %v7537
      %v7646 = vadd.f32 %v6981, %v7539
      %v7647 = vadd.f32 %v6982, %v7538
      %v7648 = vadd.f32 %v6983, %v7542
      %v7649 = vadd.f32 %v6984, %v7544
      %v7650 = vadd.f32 %v6985, %v7543
      %v7651 = vadd.f32 %v6986, %v7547
      %v7652 = vadd.f32 %v6987, %v7549
      %v7653 = vadd.f32 %v6988, %v7548
      %v7654 = vadd.f32 %v6989, %v7552
      %v7655 = vadd.f32 %v6990, %v7554
      %v7656 = vadd.f32 %v6991, %v7553
      %v7657 = vadd.f32 %v6992, %v7557
      %v7658 = vadd.f32 %v6993, %v7559
      %v7659 = vadd.f32 %v6994, %v7558
      %v7660 = vadd.f32 %v6995, %v7562
      %v7661 = vadd.f32 %v6996, %v7564
      %v7662 = vadd.f32 %v6997, %v7563
      %v7663 = vadd.f32 %v6998, %v7567
      %v7664 = vadd.f32 %v6999, %v7569
      %v7665 = vadd.f32 %v7000, %v7568
      %v7666 = vmax.f32 %v7618, 0.0
      %v7667 = vmax.f32 %v7619, 0.0
      %v7668 = vmax.f32 %v7620, 0.0
      %v7669 = vmax.f32 %v7621, 0.0
      %v7670 = vmax.f32 %v7622, 0.0
      %v7671 = vmax.f32 %v7623, 0.0
      %v7672 = vmax.f32 %v7624, 0.0
      %v7673 = vmax.f32 %v7625, 0.0
      %v7674 = vmax.f32 %v7626, 0.0
      %v7675 = vmax.f32 %v7627, 0.0
      %v7676 = vmax.f32 %v7628, 0.0
      %v7677 = vmax.f32 %v7629, 0.0
      %v7678 = vmax.f32 %v7630, 0.0
      %v7679 = vmax.f32 %v7631, 0.0
      %v7680 = vmax.f32 %v7632, 0.0
      %v7681 = vmax.f32 %v7633, 0.0
      %v7682 = vmax.f32 %v7634, 0.0
      %v7683 = vmax.f32 %v7635, 0.0
      %v7684 = vmax.f32 %v7636, 0.0
      %v7685 = vmax.f32 %v7637, 0.0
      %v7686 = vmax.f32 %v7638, 0.0
      %v7687 = vmax.f32 %v7639, 0.0
      %v7688 = vmax.f32 %v7640, 0.0
      %v7689 = vmax.f32 %v7641, 0.0
      %v7690 = vmax.f32 %v7642, 0.0
      %v7691 = vmax.f32 %v7643, 0.0
      %v7692 = vmax.f32 %v7644, 0.0
      %v7693 = vmax.f32 %v7645, 0.0
      %v7694 = vmax.f32 %v7646, 0.0
      %v7695 = vmax.f32 %v7647, 0.0
      %v7696 = vmax.f32 %v7648, 0.0
      %v7697 = vmax.f32 %v7649, 0.0
      %v7698 = vmax.f32 %v7650, 0.0
      %v7699 = vmax.f32 %v7651, 0.0
      %v7700 = vmax.f32 %v7652, 0.0
      %v7701 = vmax.f32 %v7653, 0.0
      %v7702 = vmax.f32 %v7654, 0.0
      %v7703 = vmax.f32 %v7655, 0.0
      %v7704 = vmax.f32 %v7656, 0.0
      %v7705 = vmax.f32 %v7657, 0.0
      %v7706 = vmax.f32 %v7658, 0.0
      %v7707 = vmax.f32 %v7659, 0.0
      %v7708 = vmax.f32 %v7660, 0.0
      %v7709 = vmax.f32 %v7661, 0.0
      %v7710 = vmax.f32 %v7662, 0.0
      %v7711 = vmax.f32 %v7663, 0.0
      %v7712 = vmax.f32 %v7664, 0.0
      %v7713 = vmax.f32 %v7665, 0.0
      %v7714 = vpack.c.bf16 %v7667, %v7666
      %v7715 = vpack.c.bf16 %v7668, %v7668
      %v7716 = vpack.c.bf16 %v7670, %v7669
      %v7717 = vpack.c.bf16 %v7671, %v7671
      %v7718 = vpack.c.bf16 %v7673, %v7672
      %v7719 = vpack.c.bf16 %v7674, %v7674
      %v7720 = vpack.c.bf16 %v7676, %v7675
      %v7721 = vpack.c.bf16 %v7677, %v7677
      %v7722 = vpack.c.bf16 %v7679, %v7678
      %v7723 = vpack.c.bf16 %v7680, %v7680
      %v7724 = vpack.c.bf16 %v7682, %v7681
      %v7725 = vpack.c.bf16 %v7683, %v7683
      %v7726 = vpack.c.bf16 %v7685, %v7684
      %v7727 = vpack.c.bf16 %v7686, %v7686
      %v7728 = vpack.c.bf16 %v7688, %v7687
      %v7729 = vpack.c.bf16 %v7689, %v7689
      %v7730 = vpack.c.bf16 %v7691, %v7690
      %v7731 = vpack.c.bf16 %v7692, %v7692
      %v7732 = vpack.c.bf16 %v7694, %v7693
      %v7733 = vpack.c.bf16 %v7695, %v7695
      %v7734 = vpack.c.bf16 %v7697, %v7696
      %v7735 = vpack.c.bf16 %v7698, %v7698
      %v7736 = vpack.c.bf16 %v7700, %v7699
      %v7737 = vpack.c.bf16 %v7701, %v7701
      %v7738 = vpack.c.bf16 %v7703, %v7702
      %v7739 = vpack.c.bf16 %v7704, %v7704
      %v7740 = vpack.c.bf16 %v7706, %v7705
      %v7741 = vpack.c.bf16 %v7707, %v7707
      %v7742 = vpack.c.bf16 %v7709, %v7708
      %v7743 = vpack.c.bf16 %v7710, %v7710
      %v7744 = vpack.c.bf16 %v7712, %v7711
      %v7745 = vpack.c.bf16 %v7713, %v7713
      %v7778 = vunpack.c.l.b16 %v7714
      %v7779 = vunpack.c.h.b16 %v7714
      %v7780 = vunpack.c.l.b16 %v7715
      %v7781 = vunpack.c.l.b16 %v7716
      %v7782 = vunpack.c.h.b16 %v7716
      %v7783 = vunpack.c.l.b16 %v7717
      %v7784 = vunpack.c.l.b16 %v7718
      %v7785 = vunpack.c.h.b16 %v7718
      %v7786 = vunpack.c.l.b16 %v7719
      %v7787 = vunpack.c.l.b16 %v7720
      %v7788 = vunpack.c.h.b16 %v7720
      %v7789 = vunpack.c.l.b16 %v7721
      %v7790 = vunpack.c.l.b16 %v7722
      %v7791 = vunpack.c.h.b16 %v7722
      %v7792 = vunpack.c.l.b16 %v7723
      %v7793 = vunpack.c.l.b16 %v7724
      %v7794 = vunpack.c.h.b16 %v7724
      %v7795 = vunpack.c.l.b16 %v7725
      %v7796 = vunpack.c.l.b16 %v7726
      %v7797 = vunpack.c.h.b16 %v7726
      %v7798 = vunpack.c.l.b16 %v7727
      %v7799 = vunpack.c.l.b16 %v7728
      %v7800 = vunpack.c.h.b16 %v7728
      %v7801 = vunpack.c.l.b16 %v7729
      %v7802 = vunpack.c.l.b16 %v7730
      %v7803 = vunpack.c.h.b16 %v7730
      %v7804 = vunpack.c.l.b16 %v7731
      %v7805 = vunpack.c.l.b16 %v7732
      %v7806 = vunpack.c.h.b16 %v7732
      %v7807 = vunpack.c.l.b16 %v7733
      %v7808 = vunpack.c.l.b16 %v7734
      %v7809 = vunpack.c.h.b16 %v7734
      %v7810 = vunpack.c.l.b16 %v7735
      %v7811 = vunpack.c.l.b16 %v7736
      %v7812 = vunpack.c.h.b16 %v7736
      %v7813 = vunpack.c.l.b16 %v7737
      %v7814 = vunpack.c.l.b16 %v7738
      %v7815 = vunpack.c.h.b16 %v7738
      %v7816 = vunpack.c.l.b16 %v7739
      %v7817 = vunpack.c.l.b16 %v7740
      %v7818 = vunpack.c.h.b16 %v7740
      %v7819 = vunpack.c.l.b16 %v7741
      %v7820 = vunpack.c.l.b16 %v7742
      %v7821 = vunpack.c.h.b16 %v7742
      %v7822 = vunpack.c.l.b16 %v7743
      %v7823 = vunpack.c.l.b16 %v7744
      %v7824 = vunpack.c.h.b16 %v7744
      %v7825 = vunpack.c.l.b16 %v7745
      %v7826 = vpack.c.b16 %v7778, %v7778
      %v7827 = vpack.c.b16 %v7779, %v7779
      %v7828 = vpack.c.b16 %v7780, %v7780
      %v7829 = vpack.c.b16 %v7781, %v7781
      %v7830 = vpack.c.b16 %v7782, %v7782
      %v7831 = vpack.c.b16 %v7783, %v7783
      %v7832 = vpack.c.b16 %v7784, %v7784
      %v7833 = vpack.c.b16 %v7785, %v7785
      %v7834 = vpack.c.b16 %v7786, %v7786
      %v7835 = vpack.c.b16 %v7787, %v7787
      %v7836 = vpack.c.b16 %v7788, %v7788
      %v7837 = vpack.c.b16 %v7789, %v7789
      %v7838 = vpack.c.b16 %v7790, %v7790
      %v7839 = vpack.c.b16 %v7791, %v7791
      %v7840 = vpack.c.b16 %v7792, %v7792
      %v7841 = vpack.c.b16 %v7793, %v7793
      %v7842 = vpack.c.b16 %v7794, %v7794
      %v7843 = vpack.c.b16 %v7795, %v7795
      %v7844 = vpack.c.b16 %v7796, %v7796
      %v7845 = vpack.c.b16 %v7797, %v7797
      %v7846 = vpack.c.b16 %v7798, %v7798
      %v7847 = vpack.c.b16 %v7799, %v7799
      %v7848 = vpack.c.b16 %v7800, %v7800
      %v7849 = vpack.c.b16 %v7801, %v7801
      %v7850 = vpack.c.b16 %v7802, %v7802
      %v7851 = vpack.c.b16 %v7803, %v7803
      %v7852 = vpack.c.b16 %v7804, %v7804
      %v7853 = vpack.c.b16 %v7805, %v7805
      %v7854 = vpack.c.b16 %v7806, %v7806
      %v7855 = vpack.c.b16 %v7807, %v7807
      %v7856 = vpack.c.b16 %v7808, %v7808
      %v7857 = vpack.c.b16 %v7809, %v7809
      %v7858 = vpack.c.b16 %v7810, %v7810
      %v7859 = vpack.c.b16 %v7811, %v7811
      %v7860 = vpack.c.b16 %v7812, %v7812
      %v7861 = vpack.c.b16 %v7813, %v7813
      %v7862 = vpack.c.b16 %v7814, %v7814
      %v7863 = vpack.c.b16 %v7815, %v7815
      %v7864 = vpack.c.b16 %v7816, %v7816
      %v7865 = vpack.c.b16 %v7817, %v7817
      %v7866 = vpack.c.b16 %v7818, %v7818
      %v7867 = vpack.c.b16 %v7819, %v7819
      %v7868 = vpack.c.b16 %v7820, %v7820
      %v7869 = vpack.c.b16 %v7821, %v7821
      %v7870 = vpack.c.b16 %v7822, %v7822
      %v7871 = vpack.c.b16 %v7823, %v7823
      %v7872 = vpack.c.b16 %v7824, %v7824
      %v7873 = vpack.c.b16 %v7825, %v7825
      %vm7874 = vsmask.f32 3328
      %vm7875 = vsmask.f32 7440
      %vm7876 = vmor %vm7874, %vm7875
      %v7878 = vshrl.u32 %v7826, 16
      %v7880 = vrot.slane %v7878, 4
      %v7881 = vshll.u32 %v7826, 16
      %v7883 = vrot.slane %v7881, 5
      %v7884 = vor.u32 %v7880, %v7883
      %v7885 = vrot.slane %v7884, 4
      %v7887 = vshll.u32 %v7827, 16
      %v7889 = vrot.slane %v7887, 5
      %v7890 = vsel %vm7876, %v7885, %v7889
      %v7891 = vshrl.u32 %v7827, 16
      %v7893 = vrot.slane %v7891, 4
      %v7894 = vor.u32 %v7893, %v7889
      %v7895 = vrot.slane %v7894, 4
      %v7897 = vshll.u32 %v7828, 16
      %v7899 = vrot.slane %v7897, 5
      %v7900 = vsel %vm7876, %v7895, %v7899
      %v7902 = vshrl.u32 %v7829, 16
      %v7904 = vrot.slane %v7902, 4
      %v7905 = vshll.u32 %v7829, 16
      %v7907 = vrot.slane %v7905, 5
      %v7908 = vor.u32 %v7904, %v7907
      %v7909 = vrot.slane %v7908, 4
      %v7911 = vshll.u32 %v7830, 16
      %v7913 = vrot.slane %v7911, 5
      %v7914 = vsel %vm7876, %v7909, %v7913
      %v7915 = vshrl.u32 %v7830, 16
      %v7917 = vrot.slane %v7915, 4
      %v7918 = vor.u32 %v7917, %v7913
      %v7919 = vrot.slane %v7918, 4
      %v7921 = vshll.u32 %v7831, 16
      %v7923 = vrot.slane %v7921, 5
      %v7924 = vsel %vm7876, %v7919, %v7923
      %v7926 = vshrl.u32 %v7832, 16
      %v7928 = vrot.slane %v7926, 4
      %v7929 = vshll.u32 %v7832, 16
      %v7931 = vrot.slane %v7929, 5
      %v7932 = vor.u32 %v7928, %v7931
      %v7933 = vrot.slane %v7932, 4
      %v7935 = vshll.u32 %v7833, 16
      %v7937 = vrot.slane %v7935, 5
      %v7938 = vsel %vm7876, %v7933, %v7937
      %v7939 = vshrl.u32 %v7833, 16
      %v7941 = vrot.slane %v7939, 4
      %v7942 = vor.u32 %v7941, %v7937
      %v7943 = vrot.slane %v7942, 4
      %v7945 = vshll.u32 %v7834, 16
      %v7947 = vrot.slane %v7945, 5
      %v7948 = vsel %vm7876, %v7943, %v7947
      %v7950 = vshrl.u32 %v7835, 16
      %v7952 = vrot.slane %v7950, 4
      %v7953 = vshll.u32 %v7835, 16
      %v7955 = vrot.slane %v7953, 5
      %v7956 = vor.u32 %v7952, %v7955
      %v7957 = vrot.slane %v7956, 4
      %v7959 = vshll.u32 %v7836, 16
      %v7961 = vrot.slane %v7959, 5
      %v7962 = vsel %vm7876, %v7957, %v7961
      %v7963 = vshrl.u32 %v7836, 16
      %v7965 = vrot.slane %v7963, 4
      %v7966 = vor.u32 %v7965, %v7961
      %v7967 = vrot.slane %v7966, 4
      %v7969 = vshll.u32 %v7837, 16
      %v7971 = vrot.slane %v7969, 5
      %v7972 = vsel %vm7876, %v7967, %v7971
      %v7974 = vshrl.u32 %v7838, 16
      %v7976 = vrot.slane %v7974, 4
      %v7977 = vshll.u32 %v7838, 16
      %v7979 = vrot.slane %v7977, 5
      %v7980 = vor.u32 %v7976, %v7979
      %v7981 = vrot.slane %v7980, 4
      %v7983 = vshll.u32 %v7839, 16
      %v7985 = vrot.slane %v7983, 5
      %v7986 = vsel %vm7876, %v7981, %v7985
      %v7987 = vshrl.u32 %v7839, 16
      %v7989 = vrot.slane %v7987, 4
      %v7990 = vor.u32 %v7989, %v7985
      %v7991 = vrot.slane %v7990, 4
      %v7993 = vshll.u32 %v7840, 16
      %v7995 = vrot.slane %v7993, 5
      %v7996 = vsel %vm7876, %v7991, %v7995
      %v7998 = vshrl.u32 %v7841, 16
      %v8000 = vrot.slane %v7998, 4
      %v8001 = vshll.u32 %v7841, 16
      %v8003 = vrot.slane %v8001, 5
      %v8004 = vor.u32 %v8000, %v8003
      %v8005 = vrot.slane %v8004, 4
      %v8007 = vshll.u32 %v7842, 16
      %v8009 = vrot.slane %v8007, 5
      %v8010 = vsel %vm7876, %v8005, %v8009
      %v8011 = vshrl.u32 %v7842, 16
      %v8013 = vrot.slane %v8011, 4
      %v8014 = vor.u32 %v8013, %v8009
      %v8015 = vrot.slane %v8014, 4
      %v8017 = vshll.u32 %v7843, 16
      %v8019 = vrot.slane %v8017, 5
      %v8020 = vsel %vm7876, %v8015, %v8019
      %v8022 = vshrl.u32 %v7844, 16
      %v8024 = vrot.slane %v8022, 4
      %v8025 = vshll.u32 %v7844, 16
      %v8027 = vrot.slane %v8025, 5
      %v8028 = vor.u32 %v8024, %v8027
      %v8029 = vrot.slane %v8028, 4
      %v8031 = vshll.u32 %v7845, 16
      %v8033 = vrot.slane %v8031, 5
      %v8034 = vsel %vm7876, %v8029, %v8033
      %v8035 = vshrl.u32 %v7845, 16
      %v8037 = vrot.slane %v8035, 4
      %v8038 = vor.u32 %v8037, %v8033
      %v8039 = vrot.slane %v8038, 4
      %v8041 = vshll.u32 %v7846, 16
      %v8043 = vrot.slane %v8041, 5
      %v8044 = vsel %vm7876, %v8039, %v8043
      %v8046 = vshrl.u32 %v7847, 16
      %v8048 = vrot.slane %v8046, 4
      %v8049 = vshll.u32 %v7847, 16
      %v8051 = vrot.slane %v8049, 5
      %v8052 = vor.u32 %v8048, %v8051
      %v8053 = vrot.slane %v8052, 4
      %v8055 = vshll.u32 %v7848, 16
      %v8057 = vrot.slane %v8055, 5
      %v8058 = vsel %vm7876, %v8053, %v8057
      %v8059 = vshrl.u32 %v7848, 16
      %v8061 = vrot.slane %v8059, 4
      %v8062 = vor.u32 %v8061, %v8057
      %v8063 = vrot.slane %v8062, 4
      %v8065 = vshll.u32 %v7849, 16
      %v8067 = vrot.slane %v8065, 5
      %v8068 = vsel %vm7876, %v8063, %v8067
      %v8070 = vshrl.u32 %v7850, 16
      %v8072 = vrot.slane %v8070, 4
      %v8073 = vshll.u32 %v7850, 16
      %v8075 = vrot.slane %v8073, 5
      %v8076 = vor.u32 %v8072, %v8075
      %v8077 = vrot.slane %v8076, 4
      %v8079 = vshll.u32 %v7851, 16
      %v8081 = vrot.slane %v8079, 5
      %v8082 = vsel %vm7876, %v8077, %v8081
      %v8083 = vshrl.u32 %v7851, 16
      %v8085 = vrot.slane %v8083, 4
      %v8086 = vor.u32 %v8085, %v8081
      %v8087 = vrot.slane %v8086, 4
      %v8089 = vshll.u32 %v7852, 16
      %v8091 = vrot.slane %v8089, 5
      %v8092 = vsel %vm7876, %v8087, %v8091
      %v8094 = vshrl.u32 %v7853, 16
      %v8096 = vrot.slane %v8094, 4
      %v8097 = vshll.u32 %v7853, 16
      %v8099 = vrot.slane %v8097, 5
      %v8100 = vor.u32 %v8096, %v8099
      %v8101 = vrot.slane %v8100, 4
      %v8103 = vshll.u32 %v7854, 16
      %v8105 = vrot.slane %v8103, 5
      %v8106 = vsel %vm7876, %v8101, %v8105
      %v8107 = vshrl.u32 %v7854, 16
      %v8109 = vrot.slane %v8107, 4
      %v8110 = vor.u32 %v8109, %v8105
      %v8111 = vrot.slane %v8110, 4
      %v8113 = vshll.u32 %v7855, 16
      %v8115 = vrot.slane %v8113, 5
      %v8116 = vsel %vm7876, %v8111, %v8115
      %v8118 = vshrl.u32 %v7856, 16
      %v8120 = vrot.slane %v8118, 4
      %v8121 = vshll.u32 %v7856, 16
      %v8123 = vrot.slane %v8121, 5
      %v8124 = vor.u32 %v8120, %v8123
      %v8125 = vrot.slane %v8124, 4
      %v8127 = vshll.u32 %v7857, 16
      %v8129 = vrot.slane %v8127, 5
      %v8130 = vsel %vm7876, %v8125, %v8129
      %v8131 = vshrl.u32 %v7857, 16
      %v8133 = vrot.slane %v8131, 4
      %v8134 = vor.u32 %v8133, %v8129
      %v8135 = vrot.slane %v8134, 4
      %v8137 = vshll.u32 %v7858, 16
      %v8139 = vrot.slane %v8137, 5
      %v8140 = vsel %vm7876, %v8135, %v8139
      %v8142 = vshrl.u32 %v7859, 16
      %v8144 = vrot.slane %v8142, 4
      %v8145 = vshll.u32 %v7859, 16
      %v8147 = vrot.slane %v8145, 5
      %v8148 = vor.u32 %v8144, %v8147
      %v8149 = vrot.slane %v8148, 4
      %v8151 = vshll.u32 %v7860, 16
      %v8153 = vrot.slane %v8151, 5
      %v8154 = vsel %vm7876, %v8149, %v8153
      %v8155 = vshrl.u32 %v7860, 16
      %v8157 = vrot.slane %v8155, 4
      %v8158 = vor.u32 %v8157, %v8153
      %v8159 = vrot.slane %v8158, 4
      %v8161 = vshll.u32 %v7861, 16
      %v8163 = vrot.slane %v8161, 5
      %v8164 = vsel %vm7876, %v8159, %v8163
      %v8166 = vshrl.u32 %v7862, 16
      %v8168 = vrot.slane %v8166, 4
      %v8169 = vshll.u32 %v7862, 16
      %v8171 = vrot.slane %v8169, 5
      %v8172 = vor.u32 %v8168, %v8171
      %v8173 = vrot.slane %v8172, 4
      %v8175 = vshll.u32 %v7863, 16
      %v8177 = vrot.slane %v8175, 5
      %v8178 = vsel %vm7876, %v8173, %v8177
      %v8179 = vshrl.u32 %v7863, 16
      %v8181 = vrot.slane %v8179, 4
      %v8182 = vor.u32 %v8181, %v8177
      %v8183 = vrot.slane %v8182, 4
      %v8185 = vshll.u32 %v7864, 16
      %v8187 = vrot.slane %v8185, 5
      %v8188 = vsel %vm7876, %v8183, %v8187
      %v8190 = vshrl.u32 %v7865, 16
      %v8192 = vrot.slane %v8190, 4
      %v8193 = vshll.u32 %v7865, 16
      %v8195 = vrot.slane %v8193, 5
      %v8196 = vor.u32 %v8192, %v8195
      %v8197 = vrot.slane %v8196, 4
      %v8199 = vshll.u32 %v7866, 16
      %v8201 = vrot.slane %v8199, 5
      %v8202 = vsel %vm7876, %v8197, %v8201
      %v8203 = vshrl.u32 %v7866, 16
      %v8205 = vrot.slane %v8203, 4
      %v8206 = vor.u32 %v8205, %v8201
      %v8207 = vrot.slane %v8206, 4
      %v8209 = vshll.u32 %v7867, 16
      %v8211 = vrot.slane %v8209, 5
      %v8212 = vsel %vm7876, %v8207, %v8211
      %v8214 = vshrl.u32 %v7868, 16
      %v8216 = vrot.slane %v8214, 4
      %v8217 = vshll.u32 %v7868, 16
      %v8219 = vrot.slane %v8217, 5
      %v8220 = vor.u32 %v8216, %v8219
      %v8221 = vrot.slane %v8220, 4
      %v8223 = vshll.u32 %v7869, 16
      %v8225 = vrot.slane %v8223, 5
      %v8226 = vsel %vm7876, %v8221, %v8225
      %v8227 = vshrl.u32 %v7869, 16
      %v8229 = vrot.slane %v8227, 4
      %v8230 = vor.u32 %v8229, %v8225
      %v8231 = vrot.slane %v8230, 4
      %v8233 = vshll.u32 %v7870, 16
      %v8235 = vrot.slane %v8233, 5
      %v8236 = vsel %vm7876, %v8231, %v8235
      %v8238 = vshrl.u32 %v7871, 16
      %v8240 = vrot.slane %v8238, 4
      %v8241 = vshll.u32 %v7871, 16
      %v8243 = vrot.slane %v8241, 5
      %v8244 = vor.u32 %v8240, %v8243
      %v8245 = vrot.slane %v8244, 4
      %v8247 = vshll.u32 %v7872, 16
      %v8249 = vrot.slane %v8247, 5
      %v8250 = vsel %vm7876, %v8245, %v8249
      %v8251 = vshrl.u32 %v7872, 16
      %v8253 = vrot.slane %v8251, 4
      %v8254 = vor.u32 %v8253, %v8249
      %v8255 = vrot.slane %v8254, 4
      %v8257 = vshll.u32 %v7873, 16
      %v8259 = vrot.slane %v8257, 5
      %v8260 = vsel %vm7876, %v8255, %v8259
      %vm8293 = vcmask 60416
      %8294 = vst.msk [vmem:[%s372] sm:$0xf] %vm8293, %v7890
      %8295 = vst.msk [vmem:[%s372 + $0x4] sm:$0xf] %vm8293, %v7900
      %8296 = vst.msk [vmem:[%s372 + $0x8] sm:$0xf] %vm8293, %v7914
      %8297 = vst.msk [vmem:[%s372 + $0xc] sm:$0xf] %vm8293, %v7924
      %8298 = vst.msk [vmem:[%s372 + $0x10] sm:$0xf] %vm8293, %v7938
      %8299 = vst.msk [vmem:[%s372 + $0x14] sm:$0xf] %vm8293, %v7948
      %8300 = vst.msk [vmem:[%s372 + $0x18] sm:$0xf] %vm8293, %v7962
      %8301 = vst.msk [vmem:[%s372 + $0x1c] sm:$0xf] %vm8293, %v7972
      %8302 = vst.msk [vmem:[%s372 + $0x20] sm:$0xf] %vm8293, %v7986
      %8303 = vst.msk [vmem:[%s372 + $0x24] sm:$0xf] %vm8293, %v7996
      %8304 = vst.msk [vmem:[%s372 + $0x28] sm:$0xf] %vm8293, %v8010
      %8305 = vst.msk [vmem:[%s372 + $0x2c] sm:$0xf] %vm8293, %v8020
      %8306 = vst.msk [vmem:[%s372 + $0x30] sm:$0xf] %vm8293, %v8034
      %8307 = vst.msk [vmem:[%s372 + $0x34] sm:$0xf] %vm8293, %v8044
      %8308 = vst.msk [vmem:[%s372 + $0x38] sm:$0xf] %vm8293, %v8058
      %8309 = vst.msk [vmem:[%s372 + $0x3c] sm:$0xf] %vm8293, %v8068
      %8310 = vst.msk [vmem:[%s372 + $0x40] sm:$0xf] %vm8293, %v8082
      %8311 = vst.msk [vmem:[%s372 + $0x44] sm:$0xf] %vm8293, %v8092
      %8312 = vst.msk [vmem:[%s372 + $0x48] sm:$0xf] %vm8293, %v8106
      %8313 = vst.msk [vmem:[%s372 + $0x4c] sm:$0xf] %vm8293, %v8116
      %8314 = vst.msk [vmem:[%s372 + $0x50] sm:$0xf] %vm8293, %v8130
      %8315 = vst.msk [vmem:[%s372 + $0x54] sm:$0xf] %vm8293, %v8140
      %8316 = vst.msk [vmem:[%s372 + $0x58] sm:$0xf] %vm8293, %v8154
      %8317 = vst.msk [vmem:[%s372 + $0x5c] sm:$0xf] %vm8293, %v8164
      %8318 = vst.msk [vmem:[%s372 + $0x60] sm:$0xf] %vm8293, %v8178
      %8319 = vst.msk [vmem:[%s372 + $0x64] sm:$0xf] %vm8293, %v8188
      %8320 = vst.msk [vmem:[%s372 + $0x68] sm:$0xf] %vm8293, %v8202
      %8321 = vst.msk [vmem:[%s372 + $0x6c] sm:$0xf] %vm8293, %v8212
      %8322 = vst.msk [vmem:[%s372 + $0x70] sm:$0xf] %vm8293, %v8226
      %8323 = vst.msk [vmem:[%s372 + $0x74] sm:$0xf] %vm8293, %v8236
      %8324 = vst.msk [vmem:[%s372 + $0x78] sm:$0xf] %vm8293, %v8250
      %8325 = vst.msk [vmem:[%s372 + $0x7c] sm:$0xf] %vm8293, %v8260
      %s8326 = smul.u32 16, %s22
      %p8327 = scmp.lt.s32.totalorder %s21, 1
      %s8328 = scalar_select %p8327, %s21, 1
      %p8329 = scmp.lt.s32.totalorder %s8326, 15
      %s8330 = scalar_select %p8329, %s8326, 15
      %s8331 = smul.addr %s8330, 2
      %s8332 = smul.addr %s8328, 32
      %s8333 = sadd.s32 %s8331, %s8332
      %s8334 = smul.addr %s8333, 4
      %s8335 = scalar_lea.vmem %s6, %s8334
      // Predicated region
      $region45: #{up_forward.1} parent=43 // pred_check
        %p8336 = pneg %p193
      $region46: #{up_forward.1} parent=43 // pred_check_branch
        %8338 = sbr.rel (%p8336) target = $region48
      $region47: #{up_forward.1} parent=43 // pred_region
        %s8339 = smul.u32 16, %s22
      $region48: #{up_forward.1} parent=43 // pred_fallthru
        _
    $region44: #{up_forward.1} parent=5 // pred_fallthru
      _
    %p8340 = scmp.le.s32.totalorder 2, %s12
    // Predicated region
    $region49: #{up_forward.1} parent=5 // pred_check
      %p8341 = pneg %p8340
    $region50: #{up_forward.1} parent=5 // pred_check_branch
      %8343 = sbr.rel (%p8341) target = $region52
    $region51: #{up_forward.1} parent=5 // pred_region
      %s8344 = ssub.s32 %s12, 2
      // Predicated region
      $region53: #{up_forward.1} parent=51 // pred_check
        %p8345 = pneg %p199
      $region54: #{up_forward.1} parent=51 // pred_check_branch
        %8347 = sbr.rel (%p8345) target = $region56
      $region55: #{up_forward.1} parent=51 // pred_region
        %s8348 = smul.u32 16, %s24
        %p8349 = scmp.lt.s32.totalorder %s23, 1
        %s8350 = scalar_select %p8349, %s23, 1
        %p8351 = scmp.lt.s32.totalorder %s8348, 15
        %s8352 = scalar_select %p8351, %s8348, 15
        %s8353 = smul.addr %s8352, 2
        %s8354 = smul.addr %s8350, 32
        %s8355 = sadd.s32 %s8353, %s8354
        %s8356 = smul.addr %s8355, 4
        %s8357 = scalar_lea.vmem %s6, %s8356
      $region56: #{up_forward.1} parent=51 // pred_fallthru
        _
    $region52: #{up_forward.1} parent=5 // pred_fallthru
      _
  $region6: #{up_forward.1} parent=0 // loop_footer
    %s16 = sadd.s32 1, %s12
  $region7: #{up_forward.1} parent=0 // loop_footer_branch
    %11 = sbr.rel target = $region3
  $region8: #{up_forward.1} parent=0 // loop_exit
    _

</llo_original>
